<compile_context>
chip_gen: v7x
topology: tpu7x:2x2x1
jax: 0.10.0
libtpu: 0.0.40
codegen_flags: <defaults>
</compile_context>

<pallas_src>
import functools

import jax
import jax.numpy as jnp
from jax import lax
from jax.experimental import pallas as pl
from jax.experimental.pallas import tpu as pltpu


# ----------------------------------------------------------------------------
# Generation-aware compiler params
# ----------------------------------------------------------------------------
def _vmem_limit_bytes():
    try:
        cap = int(pltpu.get_tpu_info().vmem_capacity_bytes)
        return min(cap * 3 // 4, 100 * 1024 * 1024)   # 48 MiB on v7x, 96 MiB on v5e/v6e
    except Exception:
        return 48 * 1024 * 1024


def _cparams():
    return pltpu.CompilerParams(dimension_semantics=("parallel",),
                                vmem_limit_bytes=_vmem_limit_bytes())


# ----------------------------------------------------------------------------
# Row-major reinterpretation of a 2-D value (the torch raw .reshape(B,C,H,W))
# built from ops with proven Mosaic lowering: lane slices, stack along the
# sublane axis, leading-dim merge.
# ----------------------------------------------------------------------------
def _raw_rows(x, rows_out, cols_out):
    n, c = x.shape
    assert n * c == rows_out * cols_out
    if c % cols_out == 0:                    # each source row splits into chunks
        k = c // cols_out
        parts = [x[:, j * cols_out:(j + 1) * cols_out] for j in range(k)]
        return jnp.stack(parts, axis=1).reshape(rows_out, cols_out)
    if cols_out % c == 0:                    # whole source rows join per out row
        m = cols_out // c
        x3 = x.reshape(rows_out, m, c)       # leading-dim split, minor unchanged
        return jnp.concatenate([x3[:, j, :] for j in range(m)], axis=-1)
    # TODO(synk): general (non-divisible) case relies on Mosaic's generic
    # relayout; not exercised by this model's shapes (C % (H*W) == 0 here).
    return x.reshape(rows_out, cols_out)


# ----------------------------------------------------------------------------
# The fully fused kernel (one grid step per batch element)
# ----------------------------------------------------------------------------
def _fused_kernel(xr_ref, xt_ref, ln1g_ref, ln1b_ref, ln2g_ref, ln2b_ref,
                  wqkv_ref, wqkv1_ref, wp1_ref, bp1_ref, wp2_ref, bp2_ref,
                  wr1_ref, wr2_ref, wt1_ref, wt2_ref,
                  wf1a_ref, wf1b_ref, wf2a_ref, wf2b_ref,
                  or_ref, ot_ref, pad_r, pad_t,
                  *, num_heads, dim, H, W, n_prompt):
    C = dim
    hd = C // num_heads
    scale = hd ** (-0.5)
    HW = H * W
    bf16 = jnp.bfloat16
    f32 = jnp.float32

    # ---- helpers -----------------------------------------------------------
    def qkv_heads(w_bf16, x):            # x: (n, C) f32 -> (3, heads, hd, n) f32
        # single (3C,C)@(C,n) bf16 MXU pass, f32 accumulation
        yT = jnp.dot(w_bf16, x.T.astype(bf16), preferred_element_type=f32)
        return yT.reshape(3, num_heads, hd, x.shape[0])

    def attend(qT, kT, vT, drop_q=0):    # channel-major heads -> (Nq-drop_q, C)
        s = jnp.einsum('hdi,hdj->hij', qT.astype(bf16), kT.astype(bf16),
                       preferred_element_type=f32) * scale
        if drop_q:                       # drop prompt-query rows before softmax/PV
            s = s[:, drop_q:, :]
        s = s - jnp.max(s, axis=-1, keepdims=True)
        e = jnp.exp(s)
        p = e / jnp.sum(e, axis=-1, keepdims=True)          # exact softmax (f32)
        oT = jnp.einsum('hdj,hij->hdi', vT.astype(bf16), p.astype(bf16),
                        preferred_element_type=f32)          # (heads, hd, Nq)
        return oT.reshape(C, oT.shape[-1]).T                 # (Nq, C)

    # ---- optional prompt self-attention (Dropouts = identity) --------------
    if n_prompt:
        qkv_rp = qkv_heads(wqkv_ref[...], xr_ref[0])
        qkv_tp = qkv_heads(wqkv1_ref[...], xt_ref[0])
        xr = attend(qkv_rp[0], qkv_rp[1], qkv_rp[2], drop_q=n_prompt)   # (HW, C)
        xt = attend(qkv_tp[0], qkv_tp[1], qkv_tp[2], drop_q=n_prompt)
    else:
        xr = xr_ref[0]                                                  # (HW, C)
        xt = xt_ref[0]

    # ---- LayerNorm (f32) ----------------------------------------------------
    def ln(x, g, b):
        mu = jnp.mean(x, axis=-1, keepdims=True)
        var = jnp.mean(jnp.square(x - mu), axis=-1, keepdims=True)
        return (x - mu) * lax.rsqrt(var + 1e-6) * g + b

    xr_n = ln(xr, ln1g_ref[...], ln1b_ref[...])
    xt_n = ln(xt, ln2g_ref[...], ln2b_ref[...])

    # ---- cross attention: q from one stream, k/v from the other ------------
    qkv_r = qkv_heads(wqkv_ref[...], xr_n)
    qkv_t = qkv_heads(wqkv1_ref[...], xt_n)
    r_o = attend(qkv_r[0], qkv_t[1], qkv_t[2])
    t_o = attend(qkv_t[0], qkv_r[1], qkv_r[2])

    rx = (jnp.dot(r_o.astype(bf16), wp1_ref[...], preferred_element_type=f32)
          + bp1_ref[...] + xr)                                          # (HW, C)
    tx = (jnp.dot(t_o.astype(bf16), wp2_ref[...], preferred_element_type=f32)
          + bp2_ref[...] + xt)

    # ---- two 3x3 conv+ReLU chains: per-tap MXU accumulation, in-VMEM halo ---
    def conv3x3(pad, w_taps):
        acc = jnp.zeros((HW, C), f32)
        for t in range(9):                                   # unrolled, tiny
            dy, dx = divmod(t, 3)
            patch = pad[dy:dy + H, dx:dx + W, :].reshape(HW, C).astype(bf16)
            acc = acc + jnp.dot(patch, w_taps[t], preferred_element_type=f32)
        return acc

    def chain(pad, x_tok, w1_taps, w2_taps):
        # zero only the 1-px halo; interior is always overwritten below
        zrow = jnp.zeros((1, W + 2, C), f32)
        zcol = jnp.zeros((H + 2, 1, C), f32)
        pad[0:1, :, :] = zrow
        pad[H + 1:H + 2, :, :] = zrow
        pad[:, 0:1, :] = zcol
        pad[:, W + 1:W + 2, :] = zcol
        pad[1:H + 1, 1:W + 1, :] = x_tok.reshape(H, W, C)
        y = jnp.maximum(conv3x3(pad, w1_taps), 0.0)          # Conv -> ReLU
        pad[1:H + 1, 1:W + 1, :] = y.reshape(H, W, C)        # (Dropout = id)
        return jnp.maximum(conv3x3(pad, w2_taps), 0.0)       # Conv -> ReLU, (HW, C)

    x_rgb = chain(pad_r, xr_n, wr1_ref[...], wr2_ref[...])   # separate scratches:
    x_tc = chain(pad_t, xt_n, wt1_ref[...], wt2_ref[...])    # no false dependency

    gated_r = jax.nn.sigmoid(x_tc) * x_rgb + xr              # x_RGB_T (NHWC-flat)
    gated_t = jax.nn.sigmoid(x_rgb) * x_tc + xt              # x_T_RGB

    # ---- 1x1 channel fuse (no concat, no explicit transpose) ----------------
    # torch does a RAW reshape (B,N,C)->(B,C,H,W) of the attention stream.
    a_r = _raw_rows(rx, C, HW).astype(bf16)                  # (C, HW)
    a_t = _raw_rows(tx, C, HW).astype(bf16)
    or_ref[0] = (jnp.dot(wf1a_ref[...], a_r, preferred_element_type=f32)
                 + jnp.einsum('oc,pc->op', wf1b_ref[...], gated_r.astype(bf16),
                              preferred_element_type=f32))
    ot_ref[0] = (jnp.dot(wf2a_ref[...], a_t, preferred_element_type=f32)
                 + jnp.einsum('oc,pc->op', wf2b_ref[...], gated_t.astype(bf16),
                              preferred_element_type=f32))


# ----------------------------------------------------------------------------
# Host-side weight prep (free reshapes / one-time transposes + bf16 cast)
# ----------------------------------------------------------------------------
def _prep_weights(params):
    bf = jnp.bfloat16
    C = params["ln1_g"].shape[0]

    def taps(w):   # (Cout, Cin, 3, 3) -> (9, Cin, Cout), tap t = dy*3 + dx
        return jnp.transpose(w, (2, 3, 1, 0)).reshape(9, w.shape[1], w.shape[0]).astype(bf)

    return dict(
        wqkv=params["w_qkv"].astype(bf),                    # (3C, C)
        wqkv1=params["w_qkv1"].astype(bf),
        ln1g=params["ln1_g"].reshape(1, C), ln1b=params["ln1_b"].reshape(1, C),
        ln2g=params["ln2_g"].reshape(1, C), ln2b=params["ln2_b"].reshape(1, C),
        wp1=params["w_proj1"].T.astype(bf), bp1=params["b_proj1"].reshape(1, C),
        wp2=params["w_proj2"].T.astype(bf), bp2=params["b_proj2"].reshape(1, C),
        wr1=taps(params["w_convR1"]), wr2=taps(params["w_convR2"]),
        wt1=taps(params["w_convT1"]), wt2=taps(params["w_convT2"]),
        wf1a=params["w_fuse1"][:, :C, 0, 0].astype(bf),
        wf1b=params["w_fuse1"][:, C:, 0, 0].astype(bf),
        wf2a=params["w_fuse2"][:, :C, 0, 0].astype(bf),
        wf2b=params["w_fuse2"][:, C:, 0, 0].astype(bf),
    )


# ----------------------------------------------------------------------------
# Wrapper: one pallas_call for the whole forward pass
# ----------------------------------------------------------------------------
def multi_head_attention_forward(params, inputs_R_ori, inputs_T_ori, hw, prompt,
                                 *, num_heads=4):
    H, W = hw
    B, N_in, C = inputs_R_ori.shape
    n_prompt = 5 if prompt else 0
    HW = H * W
    assert N_in - n_prompt == HW, "token count (after prompt removal) must equal H*W"

    w = _prep_weights(params)
    kernel = functools.partial(_fused_kernel, num_heads=num_heads, dim=C,
                               H=H, W=W, n_prompt=n_prompt)

    vec_spec = pl.BlockSpec((1, C), lambda b: (0, 0))
    mat_spec = pl.BlockSpec((C, C), lambda b: (0, 0))
    out_r, out_t = pl.pallas_call(
        kernel,
        out_shape=(jax.ShapeDtypeStruct((B, C, HW), jnp.float32),
                   jax.ShapeDtypeStruct((B, C, HW), jnp.float32)),
        grid=(B,),
        in_specs=[
            pl.BlockSpec((1, N_in, C), lambda b: (b, 0, 0)),     # x_R
            pl.BlockSpec((1, N_in, C), lambda b: (b, 0, 0)),     # x_T
            vec_spec, vec_spec, vec_spec, vec_spec,              # ln1 g/b, ln2 g/b
            pl.BlockSpec((3 * C, C), lambda b: (0, 0)),          # w_qkv
            pl.BlockSpec((3 * C, C), lambda b: (0, 0)),          # w_qkv1
            mat_spec, vec_spec,                                  # proj1 w/b
            mat_spec, vec_spec,                                  # proj2 w/b
            pl.BlockSpec((9, C, C), lambda b: (0, 0, 0)),        # convR1 taps
            pl.BlockSpec((9, C, C), lambda b: (0, 0, 0)),        # convR2 taps
            pl.BlockSpec((9, C, C), lambda b: (0, 0, 0)),        # convT1 taps
            pl.BlockSpec((9, C, C), lambda b: (0, 0, 0)),        # convT2 taps
            mat_spec, mat_spec,                                  # fuse1 a/b
            mat_spec, mat_spec,                                  # fuse2 a/b
        ],
        out_specs=(pl.BlockSpec((1, C, HW), lambda b: (b, 0, 0)),
                   pl.BlockSpec((1, C, HW), lambda b: (b, 0, 0))),
        scratch_shapes=[pltpu.VMEM((H + 2, W + 2, C), jnp.float32),
                        pltpu.VMEM((H + 2, W + 2, C), jnp.float32)],
        compiler_params=_cparams(),
    )(inputs_R_ori, inputs_T_ori,
      w["ln1g"], w["ln1b"], w["ln2g"], w["ln2b"],
      w["wqkv"], w["wqkv1"], w["wp1"], w["bp1"], w["wp2"], w["bp2"],
      w["wr1"], w["wr2"], w["wt1"], w["wt2"],
      w["wf1a"], w["wf1b"], w["wf2a"], w["wf2b"])

    return out_r.reshape(B, C, H, W), out_t.reshape(B, C, H, W)


# ----------------------------------------------------------------------------
# Pure-JAX reference (mirrors the torch forward, f32) for correctness checking
# ----------------------------------------------------------------------------
def reference_forward(params, x_r, x_t, hw, prompt, num_heads=4):
    H, W = hw

    def split_qkv(x, w):
        B, N, C = x.shape
        hd = C // num_heads
        y = (x @ w.T).reshape(B, N, 3, num_heads, hd).transpose(2, 0, 3, 1, 4)
        return y[0], y[1], y[2]

    def attn(q, k, v, scale):
        s = jnp.einsum("bhqd,bhkd->bhqk", q, k) * scale
        p = jax.nn.softmax(s, axis=-1)
        return jnp.einsum("bhqk,bhkd->bhqd", p, v)

    if prompt:
        B, N, C = x_r.shape
        scale = (C // num_heads) ** (-0.5)
        q, k, v = split_qkv(x_r, params["w_qkv"])
        x_r = attn(q[:, :, 5:, :], k, v, scale).transpose(0, 2, 1, 3).reshape(B, N - 5, C)
        q2, k2, v2 = split_qkv(x_t, params["w_qkv1"])
        x_t = attn(q2[:, :, 5:, :], k2, v2, scale).transpose(0, 2, 1, 3).reshape(B, N - 5, C)

    B, N, C = x_r.shape
    scale = (C // num_heads) ** (-0.5)

    def ln(x, g, b):
        mu = x.mean(-1, keepdims=True)
        var = ((x - mu) ** 2).mean(-1, keepdims=True)
        return (x - mu) * lax.rsqrt(var + 1e-6) * g + b

    xr_n = ln(x_r, params["ln1_g"], params["ln1_b"])
    xt_n = ln(x_t, params["ln2_g"], params["ln2_b"])

    xr_cnn = xr_n.transpose(0, 2, 1).reshape(B, C, H, W)
    xt_cnn = xt_n.transpose(0, 2, 1).reshape(B, C, H, W)
    res_r = x_r.transpose(0, 2, 1).reshape(B, C, H, W)
    res_t = x_t.transpose(0, 2, 1).reshape(B, C, H, W)

    def conv(x, w, pad):
        return lax.conv_general_dilated(x, w, (1, 1), ((pad, pad), (pad, pad)),
                                        dimension_numbers=("NCHW", "OIHW", "NCHW"))

    x_rgb = jax.nn.relu(conv(jax.nn.relu(conv(xr_cnn, params["w_convR1"], 1)),
                             params["w_convR2"], 1))
    x_tc = jax.nn.relu(conv(jax.nn.relu(conv(xt_cnn, params["w_convT1"], 1)),
                            params["w_convT2"], 1))
    x_rgb_t = jax.nn.sigmoid(x_tc) * x_rgb + res_r
    x_t_rgb = jax.nn.sigmoid(x_rgb) * x_tc + res_t

    q, k_r, v_r = split_qkv(xr_n, params["w_qkv"])
    q2, k_t, v_t = split_qkv(xt_n, params["w_qkv1"])

    r_o = attn(q, k_t, v_t, scale).transpose(0, 2, 1, 3).reshape(B, N, C)
    r_x = r_o @ params["w_proj1"].T + params["b_proj1"] + x_r
    r_x = r_x.reshape(B, C, H, W)
    r_out = conv(jnp.concatenate([r_x, x_rgb_t], axis=1), params["w_fuse1"], 0)

    t_o = attn(q2, k_r, v_r, scale).transpose(0, 2, 1, 3).reshape(B, N, C)
    t_x = t_o @ params["w_proj2"].T + params["b_proj2"] + x_t
    t_x = t_x.reshape(B, C, H, W)
    t_out = conv(jnp.concatenate([t_x, x_t_rgb], axis=1), params["w_fuse2"], 0)
    return r_out, t_out


# ----------------------------------------------------------------------------
# Deterministic parameter init (shapes from the torch __init__)
# ----------------------------------------------------------------------------
def init_params(key, dim, num_heads):
    del num_heads
    ks = jax.random.split(key, 12)
    s = 0.05

    def w(k, shape):
        return (s * jax.random.normal(k, shape)).astype(jnp.float32)

    # qkv_prompt / qkv1_prompt are declared in torch but never used in forward.
    return dict(
        w_qkv=w(ks[0], (3 * dim, dim)),
        w_qkv1=w(ks[1], (3 * dim, dim)),
        ln1_g=jnp.ones((dim,), jnp.float32), ln1_b=jnp.zeros((dim,), jnp.float32),
        ln2_g=jnp.ones((dim,), jnp.float32), ln2_b=jnp.zeros((dim,), jnp.float32),
        w_proj1=w(ks[2], (dim, dim)), b_proj1=w(ks[3], (dim,)),
        w_proj2=w(ks[4], (dim, dim)), b_proj2=w(ks[5], (dim,)),
        w_convR1=w(ks[6], (dim, dim, 3, 3)), w_convR2=w(ks[7], (dim, dim, 3, 3)),
        w_convT1=w(ks[8], (dim, dim, 3, 3)), w_convT2=w(ks[9], (dim, dim, 3, 3)),
        w_fuse1=w(ks[10], (dim, 2 * dim, 1, 1)), w_fuse2=w(ks[11], (dim, 2 * dim, 1, 1)),
    )


if __name__ == "__main__":
    dim, num_heads = 32, 4
    B, H, W = 2, 4, 4
    # tolerance covers bf16 MXU operands (f32 accumulation) end-to-end vs the
    # pure-f32 reference; model outputs are O(0.3-0.5), so this still catches
    # any structural/semantic error.
    TOL = 5e-2

    root = jax.random.PRNGKey(0)
    kp, k1, k2, k3, k4 = jax.random.split(root, 5)
    params = init_params(kp, dim, num_heads)

    # ---- prompt=False path ----
    x_r = jax.random.normal(k1, (B, H * W, dim), jnp.float32)
    x_t = jax.random.normal(k2, (B, H * W, dim), jnp.float32)
    r_out, t_out = multi_head_attention_forward(params, x_r, x_t, (H, W), prompt=False,
                                                num_heads=num_heads)
    jax.block_until_ready((r_out, t_out))
    r_ref, t_ref = reference_forward(params, x_r, x_t, (H, W), prompt=False,
                                     num_heads=num_heads)
    assert r_out.shape == (B, dim, H, W) and t_out.shape == (B, dim, H, W)
    assert float(jnp.max(jnp.abs(r_out - r_ref))) < TOL
    assert float(jnp.max(jnp.abs(t_out - t_ref))) < TOL

    # ---- prompt=True path (5 prompt tokens stripped by the prompt attention) ----
    x_rp = jax.random.normal(k3, (B, H * W + 5, dim), jnp.float32)
    x_tp = jax.random.normal(k4, (B, H * W + 5, dim), jnp.float32)
    r_out_p, t_out_p = multi_head_attention_forward(params, x_rp, x_tp, (H, W), prompt=True,
                                                    num_heads=num_heads)
    jax.block_until_ready((r_out_p, t_out_p))
    r_ref_p, t_ref_p = reference_forward(params, x_rp, x_tp, (H, W), prompt=True,
                                         num_heads=num_heads)
    assert float(jnp.max(jnp.abs(r_out_p - r_ref_p))) < TOL
    assert float(jnp.max(jnp.abs(t_out_p - t_ref_p))) < TOL

    print("KERNEL_OK")
</pallas_src>

<mosaic_0001>
module attributes {stable_mosaic.version = 11 : i64} {
  func.func @_fused_kernel(%arg0: i32, %arg1: memref<1x16x32xf32, #tpu.memory_space<vmem>>, %arg2: memref<1x16x32xf32, #tpu.memory_space<vmem>>, %arg3: memref<1x32xf32, #tpu.memory_space<vmem>>, %arg4: memref<1x32xf32, #tpu.memory_space<vmem>>, %arg5: memref<1x32xf32, #tpu.memory_space<vmem>>, %arg6: memref<1x32xf32, #tpu.memory_space<vmem>>, %arg7: memref<96x32xbf16, #tpu.memory_space<vmem>>, %arg8: memref<96x32xbf16, #tpu.memory_space<vmem>>, %arg9: memref<32x32xbf16, #tpu.memory_space<vmem>>, %arg10: memref<1x32xf32, #tpu.memory_space<vmem>>, %arg11: memref<32x32xbf16, #tpu.memory_space<vmem>>, %arg12: memref<1x32xf32, #tpu.memory_space<vmem>>, %arg13: memref<9x32x32xbf16, #tpu.memory_space<vmem>>, %arg14: memref<9x32x32xbf16, #tpu.memory_space<vmem>>, %arg15: memref<9x32x32xbf16, #tpu.memory_space<vmem>>, %arg16: memref<9x32x32xbf16, #tpu.memory_space<vmem>>, %arg17: memref<32x32xbf16, #tpu.memory_space<vmem>>, %arg18: memref<32x32xbf16, #tpu.memory_space<vmem>>, %arg19: memref<32x32xbf16, #tpu.memory_space<vmem>>, %arg20: memref<32x32xbf16, #tpu.memory_space<vmem>>, %arg21: memref<1x32x16xf32, #tpu.memory_space<vmem>>, %arg22: memref<1x32x16xf32, #tpu.memory_space<vmem>>, %arg23: memref<6x6x32xf32, #tpu.memory_space<vmem>>, %arg24: memref<6x6x32xf32, #tpu.memory_space<vmem>>) attributes {dimension_semantics = [#tpu.dimension_semantics<parallel>], iteration_bounds = array<i64: 2>, scalar_prefetch = 0 : i64, scratch_operands = 2 : i64, tpu.core_type = #tpu.core_type<tc>, window_params = [{transform_indices = @transform_0, window_bounds = array<i64: 1, 16, 32>}, {transform_indices = @transform_1, window_bounds = array<i64: 1, 16, 32>}, {pipeline_mode = #tpu.pipeline_mode<synchronous>, transform_indices = @transform_2, window_bounds = array<i64: 1, 32>}, {pipeline_mode = #tpu.pipeline_mode<synchronous>, transform_indices = @transform_3, window_bounds = array<i64: 1, 32>}, {pipeline_mode = #tpu.pipeline_mode<synchronous>, transform_indices = @transform_4, window_bounds = array<i64: 1, 32>}, {pipeline_mode = #tpu.pipeline_mode<synchronous>, transform_indices = @transform_5, window_bounds = array<i64: 1, 32>}, {pipeline_mode = #tpu.pipeline_mode<synchronous>, transform_indices = @transform_6, window_bounds = array<i64: 96, 32>}, {pipeline_mode = #tpu.pipeline_mode<synchronous>, transform_indices = @transform_7, window_bounds = array<i64: 96, 32>}, {pipeline_mode = #tpu.pipeline_mode<synchronous>, transform_indices = @transform_8, window_bounds = array<i64: 32, 32>}, {pipeline_mode = #tpu.pipeline_mode<synchronous>, transform_indices = @transform_9, window_bounds = array<i64: 1, 32>}, {pipeline_mode = #tpu.pipeline_mode<synchronous>, transform_indices = @transform_10, window_bounds = array<i64: 32, 32>}, {pipeline_mode = #tpu.pipeline_mode<synchronous>, transform_indices = @transform_11, window_bounds = array<i64: 1, 32>}, {pipeline_mode = #tpu.pipeline_mode<synchronous>, transform_indices = @transform_12, window_bounds = array<i64: 9, 32, 32>}, {pipeline_mode = #tpu.pipeline_mode<synchronous>, transform_indices = @transform_13, window_bounds = array<i64: 9, 32, 32>}, {pipeline_mode = #tpu.pipeline_mode<synchronous>, transform_indices = @transform_14, window_bounds = array<i64: 9, 32, 32>}, {pipeline_mode = #tpu.pipeline_mode<synchronous>, transform_indices = @transform_15, window_bounds = array<i64: 9, 32, 32>}, {pipeline_mode = #tpu.pipeline_mode<synchronous>, transform_indices = @transform_16, window_bounds = array<i64: 32, 32>}, {pipeline_mode = #tpu.pipeline_mode<synchronous>, transform_indices = @transform_17, window_bounds = array<i64: 32, 32>}, {pipeline_mode = #tpu.pipeline_mode<synchronous>, transform_indices = @transform_18, window_bounds = array<i64: 32, 32>}, {pipeline_mode = #tpu.pipeline_mode<synchronous>, transform_indices = @transform_19, window_bounds = array<i64: 32, 32>}, {transform_indices = @transform_20, window_bounds = array<i64: 1, 32, 16>}, {transform_indices = @transform_21, window_bounds = array<i64: 1, 32, 16>}]} {
    %c0 = arith.constant 0 : index
    %c0_0 = arith.constant 0 : index
    %c0_1 = arith.constant 0 : index
    %0 = vector.load %arg1[%c0, %c0_0, %c0_1] : memref<1x16x32xf32, #tpu.memory_space<vmem>>, vector<1x16x32xf32>
    %1 = vector.shape_cast %0 : vector<1x16x32xf32> to vector<16x32xf32>
    %c0_2 = arith.constant 0 : index
    %c0_3 = arith.constant 0 : index
    %c0_4 = arith.constant 0 : index
    %2 = vector.load %arg2[%c0_2, %c0_3, %c0_4] : memref<1x16x32xf32, #tpu.memory_space<vmem>>, vector<1x16x32xf32>
    %3 = vector.shape_cast %2 : vector<1x16x32xf32> to vector<16x32xf32>
    %c0_5 = arith.constant 0 : index
    %c0_6 = arith.constant 0 : index
    %4 = vector.load %arg3[%c0_5, %c0_6] : memref<1x32xf32, #tpu.memory_space<vmem>>, vector<1x32xf32>
    %c0_7 = arith.constant 0 : index
    %c0_8 = arith.constant 0 : index
    %5 = vector.load %arg4[%c0_7, %c0_8] : memref<1x32xf32, #tpu.memory_space<vmem>>, vector<1x32xf32>
    %cst = arith.constant dense<0.000000e+00> : vector<16xf32>
    %6 = vector.multi_reduction <add>, %1, %cst [1] : vector<16x32xf32> to vector<16xf32>
    %7 = vector.shape_cast %6 : vector<16xf32> to vector<16x1xf32>
    %cst_9 = arith.constant 3.200000e+01 : f32
    %8 = vector.broadcast %cst_9 : f32 to vector<16x1xf32>
    %9 = arith.divf %7, %8 : vector<16x1xf32>
    %10 = vector.broadcast %9 : vector<16x1xf32> to vector<16x32xf32>
    %11 = arith.subf %1, %10 : vector<16x32xf32>
    %12 = arith.mulf %11, %11 : vector<16x32xf32>
    %cst_10 = arith.constant dense<0.000000e+00> : vector<16xf32>
    %13 = vector.multi_reduction <add>, %12, %cst_10 [1] : vector<16x32xf32> to vector<16xf32>
    %14 = vector.shape_cast %13 : vector<16xf32> to vector<16x1xf32>
    %cst_11 = arith.constant 3.200000e+01 : f32
    %15 = vector.broadcast %cst_11 : f32 to vector<16x1xf32>
    %16 = arith.divf %14, %15 : vector<16x1xf32>
    %17 = vector.broadcast %9 : vector<16x1xf32> to vector<16x32xf32>
    %18 = arith.subf %1, %17 : vector<16x32xf32>
    %cst_12 = arith.constant 9.99999997E-7 : f32
    %19 = vector.broadcast %cst_12 : f32 to vector<16x1xf32>
    %20 = arith.addf %16, %19 : vector<16x1xf32>
    %21 = math.rsqrt %20 : vector<16x1xf32>
    %22 = vector.broadcast %21 : vector<16x1xf32> to vector<16x32xf32>
    %23 = arith.mulf %18, %22 : vector<16x32xf32>
    %24 = vector.broadcast %4 : vector<1x32xf32> to vector<16x32xf32>
    %25 = arith.mulf %23, %24 : vector<16x32xf32>
    %26 = vector.broadcast %5 : vector<1x32xf32> to vector<16x32xf32>
    %27 = arith.addf %25, %26 : vector<16x32xf32>
    %c0_13 = arith.constant 0 : index
    %c0_14 = arith.constant 0 : index
    %28 = vector.load %arg5[%c0_13, %c0_14] : memref<1x32xf32, #tpu.memory_space<vmem>>, vector<1x32xf32>
    %c0_15 = arith.constant 0 : index
    %c0_16 = arith.constant 0 : index
    %29 = vector.load %arg6[%c0_15, %c0_16] : memref<1x32xf32, #tpu.memory_space<vmem>>, vector<1x32xf32>
    %cst_17 = arith.constant dense<0.000000e+00> : vector<16xf32>
    %30 = vector.multi_reduction <add>, %3, %cst_17 [1] : vector<16x32xf32> to vector<16xf32>
    %31 = vector.shape_cast %30 : vector<16xf32> to vector<16x1xf32>
    %cst_18 = arith.constant 3.200000e+01 : f32
    %32 = vector.broadcast %cst_18 : f32 to vector<16x1xf32>
    %33 = arith.divf %31, %32 : vector<16x1xf32>
    %34 = vector.broadcast %33 : vector<16x1xf32> to vector<16x32xf32>
    %35 = arith.subf %3, %34 : vector<16x32xf32>
    %36 = arith.mulf %35, %35 : vector<16x32xf32>
    %cst_19 = arith.constant dense<0.000000e+00> : vector<16xf32>
    %37 = vector.multi_reduction <add>, %36, %cst_19 [1] : vector<16x32xf32> to vector<16xf32>
    %38 = vector.shape_cast %37 : vector<16xf32> to vector<16x1xf32>
    %cst_20 = arith.constant 3.200000e+01 : f32
    %39 = vector.broadcast %cst_20 : f32 to vector<16x1xf32>
    %40 = arith.divf %38, %39 : vector<16x1xf32>
    %41 = vector.broadcast %33 : vector<16x1xf32> to vector<16x32xf32>
    %42 = arith.subf %3, %41 : vector<16x32xf32>
    %cst_21 = arith.constant 9.99999997E-7 : f32
    %43 = vector.broadcast %cst_21 : f32 to vector<16x1xf32>
    %44 = arith.addf %40, %43 : vector<16x1xf32>
    %45 = math.rsqrt %44 : vector<16x1xf32>
    %46 = vector.broadcast %45 : vector<16x1xf32> to vector<16x32xf32>
    %47 = arith.mulf %42, %46 : vector<16x32xf32>
    %48 = vector.broadcast %28 : vector<1x32xf32> to vector<16x32xf32>
    %49 = arith.mulf %47, %48 : vector<16x32xf32>
    %50 = vector.broadcast %29 : vector<1x32xf32> to vector<16x32xf32>
    %51 = arith.addf %49, %50 : vector<16x32xf32>
    %c0_22 = arith.constant 0 : index
    %c0_23 = arith.constant 0 : index
    %52 = vector.load %arg7[%c0_22, %c0_23] : memref<96x32xbf16, #tpu.memory_space<vmem>>, vector<96x32xbf16>
    %53 = tpu.transpose %27, [1, 0] : vector<16x32xf32> -> vector<32x16xf32>
    %54 = arith.truncf %53 : vector<32x16xf32> to vector<32x16xbf16>
    %cst_24 = arith.constant dense<0.000000e+00> : vector<96x16xf32>
    %55 = tpu.matmul %52, %54, %cst_24 {dimension_numbers = #tpu.dot_dimension_numbers<[1], [0], [0], [1], [0, 0, 1, 1], [], []>} : vector<96x32xbf16>, vector<32x16xbf16>, vector<96x16xf32> -> vector<96x16xf32>
    %56 = vector.shape_cast %55 : vector<96x16xf32> to vector<3x4x8x16xf32>
    %c0_25 = arith.constant 0 : index
    %c0_26 = arith.constant 0 : index
    %57 = vector.load %arg8[%c0_25, %c0_26] : memref<96x32xbf16, #tpu.memory_space<vmem>>, vector<96x32xbf16>
    %58 = tpu.transpose %51, [1, 0] : vector<16x32xf32> -> vector<32x16xf32>
    %59 = arith.truncf %58 : vector<32x16xf32> to vector<32x16xbf16>
    %cst_27 = arith.constant dense<0.000000e+00> : vector<96x16xf32>
    %60 = tpu.matmul %57, %59, %cst_27 {dimension_numbers = #tpu.dot_dimension_numbers<[1], [0], [0], [1], [0, 0, 1, 1], [], []>} : vector<96x32xbf16>, vector<32x16xbf16>, vector<96x16xf32> -> vector<96x16xf32>
    %61 = vector.shape_cast %60 : vector<96x16xf32> to vector<3x4x8x16xf32>
    %62 = vector.extract_strided_slice %56 {offsets = [0, 0, 0, 0], sizes = [1, 4, 8, 16], strides = [1, 1, 1, 1]} : vector<3x4x8x16xf32> to vector<1x4x8x16xf32>
    %63 = vector.shape_cast %62 : vector<1x4x8x16xf32> to vector<4x8x16xf32>
    %64 = vector.extract_strided_slice %61 {offsets = [1, 0, 0, 0], sizes = [1, 4, 8, 16], strides = [1, 1, 1, 1]} : vector<3x4x8x16xf32> to vector<1x4x8x16xf32>
    %65 = vector.shape_cast %64 : vector<1x4x8x16xf32> to vector<4x8x16xf32>
    %66 = vector.extract_strided_slice %61 {offsets = [2, 0, 0, 0], sizes = [1, 4, 8, 16], strides = [1, 1, 1, 1]} : vector<3x4x8x16xf32> to vector<1x4x8x16xf32>
    %67 = vector.shape_cast %66 : vector<1x4x8x16xf32> to vector<4x8x16xf32>
    %68 = arith.truncf %63 : vector<4x8x16xf32> to vector<4x8x16xbf16>
    %69 = arith.truncf %65 : vector<4x8x16xf32> to vector<4x8x16xbf16>
    "tpu.trace_start"() <{level = 10 : i32, message = "hdi,hdj->hij"}> : () -> ()
    %cst_28 = arith.constant dense<0.000000e+00> : vector<4x16x16xf32>
    %70 = tpu.matmul %68, %69, %cst_28 {dimension_numbers = #tpu.dot_dimension_numbers<[1], [1], [2], [2], [0, 0, 0, 2, 1, 2], [0], [0]>} : vector<4x8x16xbf16>, vector<4x8x16xbf16>, vector<4x16x16xf32> -> vector<4x16x16xf32>
    "tpu.trace_stop"() : () -> ()
    %cst_29 = arith.constant 0.353553385 : f32
    %71 = vector.broadcast %cst_29 : f32 to vector<4x16x16xf32>
    %72 = arith.mulf %70, %71 : vector<4x16x16xf32>
    %cst_30 = arith.constant dense<0xFF800000> : vector<4x16xf32>
    %73 = vector.multi_reduction <maximumf>, %72, %cst_30 [2] : vector<4x16x16xf32> to vector<4x16xf32>
    %74 = vector.shape_cast %73 : vector<4x16xf32> to vector<4x16x1xf32>
    %75 = vector.broadcast %74 : vector<4x16x1xf32> to vector<4x16x16xf32>
    %76 = arith.subf %72, %75 : vector<4x16x16xf32>
    %77 = math.exp %76 : vector<4x16x16xf32>
    %cst_31 = arith.constant dense<0.000000e+00> : vector<4x16xf32>
    %78 = vector.multi_reduction <add>, %77, %cst_31 [2] : vector<4x16x16xf32> to vector<4x16xf32>
    %79 = vector.shape_cast %78 : vector<4x16xf32> to vector<4x16x1xf32>
    %80 = vector.broadcast %79 : vector<4x16x1xf32> to vector<4x16x16xf32>
    %81 = arith.divf %77, %80 : vector<4x16x16xf32>
    %82 = arith.truncf %67 : vector<4x8x16xf32> to vector<4x8x16xbf16>
    %83 = arith.truncf %81 : vector<4x16x16xf32> to vector<4x16x16xbf16>
    "tpu.trace_start"() <{level = 10 : i32, message = "hdj,hij->hdi"}> : () -> ()
    %cst_32 = arith.constant dense<0.000000e+00> : vector<4x8x16xf32>
    %84 = tpu.matmul %82, %83, %cst_32 {dimension_numbers = #tpu.dot_dimension_numbers<[2], [2], [1], [1], [0, 0, 0, 1, 1, 1], [0], [0]>} : vector<4x8x16xbf16>, vector<4x16x16xbf16>, vector<4x8x16xf32> -> vector<4x8x16xf32>
    "tpu.trace_stop"() : () -> ()
    %85 = vector.shape_cast %84 : vector<4x8x16xf32> to vector<32x16xf32>
    %86 = tpu.transpose %85, [1, 0] : vector<32x16xf32> -> vector<16x32xf32>
    %87 = vector.extract_strided_slice %61 {offsets = [0, 0, 0, 0], sizes = [1, 4, 8, 16], strides = [1, 1, 1, 1]} : vector<3x4x8x16xf32> to vector<1x4x8x16xf32>
    %88 = vector.shape_cast %87 : vector<1x4x8x16xf32> to vector<4x8x16xf32>
    %89 = vector.extract_strided_slice %56 {offsets = [1, 0, 0, 0], sizes = [1, 4, 8, 16], strides = [1, 1, 1, 1]} : vector<3x4x8x16xf32> to vector<1x4x8x16xf32>
    %90 = vector.shape_cast %89 : vector<1x4x8x16xf32> to vector<4x8x16xf32>
    %91 = vector.extract_strided_slice %56 {offsets = [2, 0, 0, 0], sizes = [1, 4, 8, 16], strides = [1, 1, 1, 1]} : vector<3x4x8x16xf32> to vector<1x4x8x16xf32>
    %92 = vector.shape_cast %91 : vector<1x4x8x16xf32> to vector<4x8x16xf32>
    %93 = arith.truncf %88 : vector<4x8x16xf32> to vector<4x8x16xbf16>
    %94 = arith.truncf %90 : vector<4x8x16xf32> to vector<4x8x16xbf16>
    "tpu.trace_start"() <{level = 10 : i32, message = "hdi,hdj->hij"}> : () -> ()
    %cst_33 = arith.constant dense<0.000000e+00> : vector<4x16x16xf32>
    %95 = tpu.matmul %93, %94, %cst_33 {dimension_numbers = #tpu.dot_dimension_numbers<[1], [1], [2], [2], [0, 0, 0, 2, 1, 2], [0], [0]>} : vector<4x8x16xbf16>, vector<4x8x16xbf16>, vector<4x16x16xf32> -> vector<4x16x16xf32>
    "tpu.trace_stop"() : () -> ()
    %cst_34 = arith.constant 0.353553385 : f32
    %96 = vector.broadcast %cst_34 : f32 to vector<4x16x16xf32>
    %97 = arith.mulf %95, %96 : vector<4x16x16xf32>
    %cst_35 = arith.constant dense<0xFF800000> : vector<4x16xf32>
    %98 = vector.multi_reduction <maximumf>, %97, %cst_35 [2] : vector<4x16x16xf32> to vector<4x16xf32>
    %99 = vector.shape_cast %98 : vector<4x16xf32> to vector<4x16x1xf32>
    %100 = vector.broadcast %99 : vector<4x16x1xf32> to vector<4x16x16xf32>
    %101 = arith.subf %97, %100 : vector<4x16x16xf32>
    %102 = math.exp %101 : vector<4x16x16xf32>
    %cst_36 = arith.constant dense<0.000000e+00> : vector<4x16xf32>
    %103 = vector.multi_reduction <add>, %102, %cst_36 [2] : vector<4x16x16xf32> to vector<4x16xf32>
    %104 = vector.shape_cast %103 : vector<4x16xf32> to vector<4x16x1xf32>
    %105 = vector.broadcast %104 : vector<4x16x1xf32> to vector<4x16x16xf32>
    %106 = arith.divf %102, %105 : vector<4x16x16xf32>
    %107 = arith.truncf %92 : vector<4x8x16xf32> to vector<4x8x16xbf16>
    %108 = arith.truncf %106 : vector<4x16x16xf32> to vector<4x16x16xbf16>
    "tpu.trace_start"() <{level = 10 : i32, message = "hdj,hij->hdi"}> : () -> ()
    %cst_37 = arith.constant dense<0.000000e+00> : vector<4x8x16xf32>
    %109 = tpu.matmul %107, %108, %cst_37 {dimension_numbers = #tpu.dot_dimension_numbers<[2], [2], [1], [1], [0, 0, 0, 1, 1, 1], [0], [0]>} : vector<4x8x16xbf16>, vector<4x16x16xbf16>, vector<4x8x16xf32> -> vector<4x8x16xf32>
    "tpu.trace_stop"() : () -> ()
    %110 = vector.shape_cast %109 : vector<4x8x16xf32> to vector<32x16xf32>
    %111 = tpu.transpose %110, [1, 0] : vector<32x16xf32> -> vector<16x32xf32>
    %112 = arith.truncf %86 : vector<16x32xf32> to vector<16x32xbf16>
    %c0_38 = arith.constant 0 : index
    %c0_39 = arith.constant 0 : index
    %113 = vector.load %arg9[%c0_38, %c0_39] : memref<32x32xbf16, #tpu.memory_space<vmem>>, vector<32x32xbf16>
    %cst_40 = arith.constant dense<0.000000e+00> : vector<16x32xf32>
    %114 = tpu.matmul %112, %113, %cst_40 {dimension_numbers = #tpu.dot_dimension_numbers<[1], [0], [0], [1], [0, 0, 1, 1], [], []>} : vector<16x32xbf16>, vector<32x32xbf16>, vector<16x32xf32> -> vector<16x32xf32>
    %c0_41 = arith.constant 0 : index
    %c0_42 = arith.constant 0 : index
    %115 = vector.load %arg10[%c0_41, %c0_42] : memref<1x32xf32, #tpu.memory_space<vmem>>, vector<1x32xf32>
    %116 = vector.broadcast %115 : vector<1x32xf32> to vector<16x32xf32>
    %117 = arith.addf %114, %116 : vector<16x32xf32>
    %118 = arith.addf %117, %1 : vector<16x32xf32>
    %119 = arith.truncf %111 : vector<16x32xf32> to vector<16x32xbf16>
    %c0_43 = arith.constant 0 : index
    %c0_44 = arith.constant 0 : index
    %120 = vector.load %arg11[%c0_43, %c0_44] : memref<32x32xbf16, #tpu.memory_space<vmem>>, vector<32x32xbf16>
    %cst_45 = arith.constant dense<0.000000e+00> : vector<16x32xf32>
    %121 = tpu.matmul %119, %120, %cst_45 {dimension_numbers = #tpu.dot_dimension_numbers<[1], [0], [0], [1], [0, 0, 1, 1], [], []>} : vector<16x32xbf16>, vector<32x32xbf16>, vector<16x32xf32> -> vector<16x32xf32>
    %c0_46 = arith.constant 0 : index
    %c0_47 = arith.constant 0 : index
    %122 = vector.load %arg12[%c0_46, %c0_47] : memref<1x32xf32, #tpu.memory_space<vmem>>, vector<1x32xf32>
    %123 = vector.broadcast %122 : vector<1x32xf32> to vector<16x32xf32>
    %124 = arith.addf %121, %123 : vector<16x32xf32>
    %125 = arith.addf %124, %3 : vector<16x32xf32>
    %c0_48 = arith.constant 0 : index
    %c0_49 = arith.constant 0 : index
    %c0_50 = arith.constant 0 : index
    %126 = vector.load %arg13[%c0_48, %c0_49, %c0_50] : memref<9x32x32xbf16, #tpu.memory_space<vmem>>, vector<9x32x32xbf16>
    %c0_51 = arith.constant 0 : index
    %c0_52 = arith.constant 0 : index
    %c0_53 = arith.constant 0 : index
    %127 = vector.load %arg14[%c0_51, %c0_52, %c0_53] : memref<9x32x32xbf16, #tpu.memory_space<vmem>>, vector<9x32x32xbf16>
    %cst_54 = arith.constant 0.000000e+00 : f32
    %128 = vector.broadcast %cst_54 : f32 to vector<1x6x32xf32>
    %cst_55 = arith.constant 0.000000e+00 : f32
    %129 = vector.broadcast %cst_55 : f32 to vector<6x1x32xf32>
    %c0_56 = arith.constant 0 : index
    %c0_57 = arith.constant 0 : index
    %c0_58 = arith.constant 0 : index
    %130 = vector.load %arg23[%c0_56, %c0_57, %c0_58] : memref<6x6x32xf32, #tpu.memory_space<vmem>>, vector<1x6x32xf32>
    tpu.vector_store %arg23[%c0_56, %c0_57, %c0_58], %128 {strides = array<i32>} : memref<6x6x32xf32, #tpu.memory_space<vmem>>, vector<1x6x32xf32>,
    %c5 = arith.constant 5 : index
    %c0_59 = arith.constant 0 : index
    %c0_60 = arith.constant 0 : index
    %131 = vector.load %arg23[%c5, %c0_59, %c0_60] : memref<6x6x32xf32, #tpu.memory_space<vmem>>, vector<1x6x32xf32>
    tpu.vector_store %arg23[%c5, %c0_59, %c0_60], %128 {strides = array<i32>} : memref<6x6x32xf32, #tpu.memory_space<vmem>>, vector<1x6x32xf32>,
    %c0_61 = arith.constant 0 : index
    %c0_62 = arith.constant 0 : index
    %c0_63 = arith.constant 0 : index
    %132 = vector.load %arg23[%c0_61, %c0_62, %c0_63] : memref<6x6x32xf32, #tpu.memory_space<vmem>>, vector<6x1x32xf32>
    tpu.vector_store %arg23[%c0_61, %c0_62, %c0_63], %129 {strides = array<i32>} : memref<6x6x32xf32, #tpu.memory_space<vmem>>, vector<6x1x32xf32>,
    %c0_64 = arith.constant 0 : index
    %c5_65 = arith.constant 5 : index
    %c0_66 = arith.constant 0 : index
    %133 = vector.load %arg23[%c0_64, %c5_65, %c0_66] : memref<6x6x32xf32, #tpu.memory_space<vmem>>, vector<6x1x32xf32>
    tpu.vector_store %arg23[%c0_64, %c5_65, %c0_66], %129 {strides = array<i32>} : memref<6x6x32xf32, #tpu.memory_space<vmem>>, vector<6x1x32xf32>,
    %134 = vector.shape_cast %27 : vector<16x32xf32> to vector<4x4x32xf32>
    %c1 = arith.constant 1 : index
    %c1_67 = arith.constant 1 : index
    %c0_68 = arith.constant 0 : index
    %135 = vector.load %arg23[%c1, %c1_67, %c0_68] : memref<6x6x32xf32, #tpu.memory_space<vmem>>, vector<4x4x32xf32>
    tpu.vector_store %arg23[%c1, %c1_67, %c0_68], %134 {strides = array<i32>} : memref<6x6x32xf32, #tpu.memory_space<vmem>>, vector<4x4x32xf32>,
    %cst_69 = arith.constant 0.000000e+00 : f32
    %136 = vector.broadcast %cst_69 : f32 to vector<16x32xf32>
    %c0_70 = arith.constant 0 : index
    %c0_71 = arith.constant 0 : index
    %c0_72 = arith.constant 0 : index
    %137 = vector.load %arg23[%c0_70, %c0_71, %c0_72] : memref<6x6x32xf32, #tpu.memory_space<vmem>>, vector<4x4x32xf32>
    %138 = vector.shape_cast %137 : vector<4x4x32xf32> to vector<16x32xf32>
    %139 = arith.truncf %138 : vector<16x32xf32> to vector<16x32xbf16>
    %140 = vector.extract_strided_slice %126 {offsets = [0, 0, 0], sizes = [1, 32, 32], strides = [1, 1, 1]} : vector<9x32x32xbf16> to vector<1x32x32xbf16>
    %141 = vector.shape_cast %140 : vector<1x32x32xbf16> to vector<32x32xbf16>
    %cst_73 = arith.constant dense<0.000000e+00> : vector<16x32xf32>
    %142 = tpu.matmul %139, %141, %cst_73 {dimension_numbers = #tpu.dot_dimension_numbers<[1], [0], [0], [1], [0, 0, 1, 1], [], []>} : vector<16x32xbf16>, vector<32x32xbf16>, vector<16x32xf32> -> vector<16x32xf32>
    %143 = arith.addf %136, %142 : vector<16x32xf32>
    %c0_74 = arith.constant 0 : index
    %c1_75 = arith.constant 1 : index
    %c0_76 = arith.constant 0 : index
    %144 = vector.load %arg23[%c0_74, %c1_75, %c0_76] : memref<6x6x32xf32, #tpu.memory_space<vmem>>, vector<4x4x32xf32>
    %145 = vector.shape_cast %144 : vector<4x4x32xf32> to vector<16x32xf32>
    %146 = arith.truncf %145 : vector<16x32xf32> to vector<16x32xbf16>
    %147 = vector.extract_strided_slice %126 {offsets = [1, 0, 0], sizes = [1, 32, 32], strides = [1, 1, 1]} : vector<9x32x32xbf16> to vector<1x32x32xbf16>
    %148 = vector.shape_cast %147 : vector<1x32x32xbf16> to vector<32x32xbf16>
    %cst_77 = arith.constant dense<0.000000e+00> : vector<16x32xf32>
    %149 = tpu.matmul %146, %148, %cst_77 {dimension_numbers = #tpu.dot_dimension_numbers<[1], [0], [0], [1], [0, 0, 1, 1], [], []>} : vector<16x32xbf16>, vector<32x32xbf16>, vector<16x32xf32> -> vector<16x32xf32>
    %150 = arith.addf %143, %149 : vector<16x32xf32>
    %c0_78 = arith.constant 0 : index
    %c2 = arith.constant 2 : index
    %c0_79 = arith.constant 0 : index
    %151 = vector.load %arg23[%c0_78, %c2, %c0_79] : memref<6x6x32xf32, #tpu.memory_space<vmem>>, vector<4x4x32xf32>
    %152 = vector.shape_cast %151 : vector<4x4x32xf32> to vector<16x32xf32>
    %153 = arith.truncf %152 : vector<16x32xf32> to vector<16x32xbf16>
    %154 = vector.extract_strided_slice %126 {offsets = [2, 0, 0], sizes = [1, 32, 32], strides = [1, 1, 1]} : vector<9x32x32xbf16> to vector<1x32x32xbf16>
    %155 = vector.shape_cast %154 : vector<1x32x32xbf16> to vector<32x32xbf16>
    %cst_80 = arith.constant dense<0.000000e+00> : vector<16x32xf32>
    %156 = tpu.matmul %153, %155, %cst_80 {dimension_numbers = #tpu.dot_dimension_numbers<[1], [0], [0], [1], [0, 0, 1, 1], [], []>} : vector<16x32xbf16>, vector<32x32xbf16>, vector<16x32xf32> -> vector<16x32xf32>
    %157 = arith.addf %150, %156 : vector<16x32xf32>
    %c1_81 = arith.constant 1 : index
    %c0_82 = arith.constant 0 : index
    %c0_83 = arith.constant 0 : index
    %158 = vector.load %arg23[%c1_81, %c0_82, %c0_83] : memref<6x6x32xf32, #tpu.memory_space<vmem>>, vector<4x4x32xf32>
    %159 = vector.shape_cast %158 : vector<4x4x32xf32> to vector<16x32xf32>
    %160 = arith.truncf %159 : vector<16x32xf32> to vector<16x32xbf16>
    %161 = vector.extract_strided_slice %126 {offsets = [3, 0, 0], sizes = [1, 32, 32], strides = [1, 1, 1]} : vector<9x32x32xbf16> to vector<1x32x32xbf16>
    %162 = vector.shape_cast %161 : vector<1x32x32xbf16> to vector<32x32xbf16>
    %cst_84 = arith.constant dense<0.000000e+00> : vector<16x32xf32>
    %163 = tpu.matmul %160, %162, %cst_84 {dimension_numbers = #tpu.dot_dimension_numbers<[1], [0], [0], [1], [0, 0, 1, 1], [], []>} : vector<16x32xbf16>, vector<32x32xbf16>, vector<16x32xf32> -> vector<16x32xf32>
    %164 = arith.addf %157, %163 : vector<16x32xf32>
    %c1_85 = arith.constant 1 : index
    %c1_86 = arith.constant 1 : index
    %c0_87 = arith.constant 0 : index
    %165 = vector.load %arg23[%c1_85, %c1_86, %c0_87] : memref<6x6x32xf32, #tpu.memory_space<vmem>>, vector<4x4x32xf32>
    %166 = vector.shape_cast %165 : vector<4x4x32xf32> to vector<16x32xf32>
    %167 = arith.truncf %166 : vector<16x32xf32> to vector<16x32xbf16>
    %168 = vector.extract_strided_slice %126 {offsets = [4, 0, 0], sizes = [1, 32, 32], strides = [1, 1, 1]} : vector<9x32x32xbf16> to vector<1x32x32xbf16>
    %169 = vector.shape_cast %168 : vector<1x32x32xbf16> to vector<32x32xbf16>
    %cst_88 = arith.constant dense<0.000000e+00> : vector<16x32xf32>
    %170 = tpu.matmul %167, %169, %cst_88 {dimension_numbers = #tpu.dot_dimension_numbers<[1], [0], [0], [1], [0, 0, 1, 1], [], []>} : vector<16x32xbf16>, vector<32x32xbf16>, vector<16x32xf32> -> vector<16x32xf32>
    %171 = arith.addf %164, %170 : vector<16x32xf32>
    %c1_89 = arith.constant 1 : index
    %c2_90 = arith.constant 2 : index
    %c0_91 = arith.constant 0 : index
    %172 = vector.load %arg23[%c1_89, %c2_90, %c0_91] : memref<6x6x32xf32, #tpu.memory_space<vmem>>, vector<4x4x32xf32>
    %173 = vector.shape_cast %172 : vector<4x4x32xf32> to vector<16x32xf32>
    %174 = arith.truncf %173 : vector<16x32xf32> to vector<16x32xbf16>
    %175 = vector.extract_strided_slice %126 {offsets = [5, 0, 0], sizes = [1, 32, 32], strides = [1, 1, 1]} : vector<9x32x32xbf16> to vector<1x32x32xbf16>
    %176 = vector.shape_cast %175 : vector<1x32x32xbf16> to vector<32x32xbf16>
    %cst_92 = arith.constant dense<0.000000e+00> : vector<16x32xf32>
    %177 = tpu.matmul %174, %176, %cst_92 {dimension_numbers = #tpu.dot_dimension_numbers<[1], [0], [0], [1], [0, 0, 1, 1], [], []>} : vector<16x32xbf16>, vector<32x32xbf16>, vector<16x32xf32> -> vector<16x32xf32>
    %178 = arith.addf %171, %177 : vector<16x32xf32>
    %c2_93 = arith.constant 2 : index
    %c0_94 = arith.constant 0 : index
    %c0_95 = arith.constant 0 : index
    %179 = vector.load %arg23[%c2_93, %c0_94, %c0_95] : memref<6x6x32xf32, #tpu.memory_space<vmem>>, vector<4x4x32xf32>
    %180 = vector.shape_cast %179 : vector<4x4x32xf32> to vector<16x32xf32>
    %181 = arith.truncf %180 : vector<16x32xf32> to vector<16x32xbf16>
    %182 = vector.extract_strided_slice %126 {offsets = [6, 0, 0], sizes = [1, 32, 32], strides = [1, 1, 1]} : vector<9x32x32xbf16> to vector<1x32x32xbf16>
    %183 = vector.shape_cast %182 : vector<1x32x32xbf16> to vector<32x32xbf16>
    %cst_96 = arith.constant dense<0.000000e+00> : vector<16x32xf32>
    %184 = tpu.matmul %181, %183, %cst_96 {dimension_numbers = #tpu.dot_dimension_numbers<[1], [0], [0], [1], [0, 0, 1, 1], [], []>} : vector<16x32xbf16>, vector<32x32xbf16>, vector<16x32xf32> -> vector<16x32xf32>
    %185 = arith.addf %178, %184 : vector<16x32xf32>
    %c2_97 = arith.constant 2 : index
    %c1_98 = arith.constant 1 : index
    %c0_99 = arith.constant 0 : index
    %186 = vector.load %arg23[%c2_97, %c1_98, %c0_99] : memref<6x6x32xf32, #tpu.memory_space<vmem>>, vector<4x4x32xf32>
    %187 = vector.shape_cast %186 : vector<4x4x32xf32> to vector<16x32xf32>
    %188 = arith.truncf %187 : vector<16x32xf32> to vector<16x32xbf16>
    %189 = vector.extract_strided_slice %126 {offsets = [7, 0, 0], sizes = [1, 32, 32], strides = [1, 1, 1]} : vector<9x32x32xbf16> to vector<1x32x32xbf16>
    %190 = vector.shape_cast %189 : vector<1x32x32xbf16> to vector<32x32xbf16>
    %cst_100 = arith.constant dense<0.000000e+00> : vector<16x32xf32>
    %191 = tpu.matmul %188, %190, %cst_100 {dimension_numbers = #tpu.dot_dimension_numbers<[1], [0], [0], [1], [0, 0, 1, 1], [], []>} : vector<16x32xbf16>, vector<32x32xbf16>, vector<16x32xf32> -> vector<16x32xf32>
    %192 = arith.addf %185, %191 : vector<16x32xf32>
    %c2_101 = arith.constant 2 : index
    %c2_102 = arith.constant 2 : index
    %c0_103 = arith.constant 0 : index
    %193 = vector.load %arg23[%c2_101, %c2_102, %c0_103] : memref<6x6x32xf32, #tpu.memory_space<vmem>>, vector<4x4x32xf32>
    %194 = vector.shape_cast %193 : vector<4x4x32xf32> to vector<16x32xf32>
    %195 = arith.truncf %194 : vector<16x32xf32> to vector<16x32xbf16>
    %196 = vector.extract_strided_slice %126 {offsets = [8, 0, 0], sizes = [1, 32, 32], strides = [1, 1, 1]} : vector<9x32x32xbf16> to vector<1x32x32xbf16>
    %197 = vector.shape_cast %196 : vector<1x32x32xbf16> to vector<32x32xbf16>
    %cst_104 = arith.constant dense<0.000000e+00> : vector<16x32xf32>
    %198 = tpu.matmul %195, %197, %cst_104 {dimension_numbers = #tpu.dot_dimension_numbers<[1], [0], [0], [1], [0, 0, 1, 1], [], []>} : vector<16x32xbf16>, vector<32x32xbf16>, vector<16x32xf32> -> vector<16x32xf32>
    %199 = arith.addf %192, %198 : vector<16x32xf32>
    %cst_105 = arith.constant 0.000000e+00 : f32
    %200 = vector.broadcast %cst_105 : f32 to vector<16x32xf32>
    %201 = arith.maximumf %199, %200 : vector<16x32xf32>
    %202 = vector.shape_cast %201 : vector<16x32xf32> to vector<4x4x32xf32>
    %c1_106 = arith.constant 1 : index
    %c1_107 = arith.constant 1 : index
    %c0_108 = arith.constant 0 : index
    %203 = vector.load %arg23[%c1_106, %c1_107, %c0_108] : memref<6x6x32xf32, #tpu.memory_space<vmem>>, vector<4x4x32xf32>
    tpu.vector_store %arg23[%c1_106, %c1_107, %c0_108], %202 {strides = array<i32>} : memref<6x6x32xf32, #tpu.memory_space<vmem>>, vector<4x4x32xf32>,
    %cst_109 = arith.constant 0.000000e+00 : f32
    %204 = vector.broadcast %cst_109 : f32 to vector<16x32xf32>
    %c0_110 = arith.constant 0 : index
    %c0_111 = arith.constant 0 : index
    %c0_112 = arith.constant 0 : index
    %205 = vector.load %arg23[%c0_110, %c0_111, %c0_112] : memref<6x6x32xf32, #tpu.memory_space<vmem>>, vector<4x4x32xf32>
    %206 = vector.shape_cast %205 : vector<4x4x32xf32> to vector<16x32xf32>
    %207 = arith.truncf %206 : vector<16x32xf32> to vector<16x32xbf16>
    %208 = vector.extract_strided_slice %127 {offsets = [0, 0, 0], sizes = [1, 32, 32], strides = [1, 1, 1]} : vector<9x32x32xbf16> to vector<1x32x32xbf16>
    %209 = vector.shape_cast %208 : vector<1x32x32xbf16> to vector<32x32xbf16>
    %cst_113 = arith.constant dense<0.000000e+00> : vector<16x32xf32>
    %210 = tpu.matmul %207, %209, %cst_113 {dimension_numbers = #tpu.dot_dimension_numbers<[1], [0], [0], [1], [0, 0, 1, 1], [], []>} : vector<16x32xbf16>, vector<32x32xbf16>, vector<16x32xf32> -> vector<16x32xf32>
    %211 = arith.addf %204, %210 : vector<16x32xf32>
    %c0_114 = arith.constant 0 : index
    %c1_115 = arith.constant 1 : index
    %c0_116 = arith.constant 0 : index
    %212 = vector.load %arg23[%c0_114, %c1_115, %c0_116] : memref<6x6x32xf32, #tpu.memory_space<vmem>>, vector<4x4x32xf32>
    %213 = vector.shape_cast %212 : vector<4x4x32xf32> to vector<16x32xf32>
    %214 = arith.truncf %213 : vector<16x32xf32> to vector<16x32xbf16>
    %215 = vector.extract_strided_slice %127 {offsets = [1, 0, 0], sizes = [1, 32, 32], strides = [1, 1, 1]} : vector<9x32x32xbf16> to vector<1x32x32xbf16>
    %216 = vector.shape_cast %215 : vector<1x32x32xbf16> to vector<32x32xbf16>
    %cst_117 = arith.constant dense<0.000000e+00> : vector<16x32xf32>
    %217 = tpu.matmul %214, %216, %cst_117 {dimension_numbers = #tpu.dot_dimension_numbers<[1], [0], [0], [1], [0, 0, 1, 1], [], []>} : vector<16x32xbf16>, vector<32x32xbf16>, vector<16x32xf32> -> vector<16x32xf32>
    %218 = arith.addf %211, %217 : vector<16x32xf32>
    %c0_118 = arith.constant 0 : index
    %c2_119 = arith.constant 2 : index
    %c0_120 = arith.constant 0 : index
    %219 = vector.load %arg23[%c0_118, %c2_119, %c0_120] : memref<6x6x32xf32, #tpu.memory_space<vmem>>, vector<4x4x32xf32>
    %220 = vector.shape_cast %219 : vector<4x4x32xf32> to vector<16x32xf32>
    %221 = arith.truncf %220 : vector<16x32xf32> to vector<16x32xbf16>
    %222 = vector.extract_strided_slice %127 {offsets = [2, 0, 0], sizes = [1, 32, 32], strides = [1, 1, 1]} : vector<9x32x32xbf16> to vector<1x32x32xbf16>
    %223 = vector.shape_cast %222 : vector<1x32x32xbf16> to vector<32x32xbf16>
    %cst_121 = arith.constant dense<0.000000e+00> : vector<16x32xf32>
    %224 = tpu.matmul %221, %223, %cst_121 {dimension_numbers = #tpu.dot_dimension_numbers<[1], [0], [0], [1], [0, 0, 1, 1], [], []>} : vector<16x32xbf16>, vector<32x32xbf16>, vector<16x32xf32> -> vector<16x32xf32>
    %225 = arith.addf %218, %224 : vector<16x32xf32>
    %c1_122 = arith.constant 1 : index
    %c0_123 = arith.constant 0 : index
    %c0_124 = arith.constant 0 : index
    %226 = vector.load %arg23[%c1_122, %c0_123, %c0_124] : memref<6x6x32xf32, #tpu.memory_space<vmem>>, vector<4x4x32xf32>
    %227 = vector.shape_cast %226 : vector<4x4x32xf32> to vector<16x32xf32>
    %228 = arith.truncf %227 : vector<16x32xf32> to vector<16x32xbf16>
    %229 = vector.extract_strided_slice %127 {offsets = [3, 0, 0], sizes = [1, 32, 32], strides = [1, 1, 1]} : vector<9x32x32xbf16> to vector<1x32x32xbf16>
    %230 = vector.shape_cast %229 : vector<1x32x32xbf16> to vector<32x32xbf16>
    %cst_125 = arith.constant dense<0.000000e+00> : vector<16x32xf32>
    %231 = tpu.matmul %228, %230, %cst_125 {dimension_numbers = #tpu.dot_dimension_numbers<[1], [0], [0], [1], [0, 0, 1, 1], [], []>} : vector<16x32xbf16>, vector<32x32xbf16>, vector<16x32xf32> -> vector<16x32xf32>
    %232 = arith.addf %225, %231 : vector<16x32xf32>
    %c1_126 = arith.constant 1 : index
    %c1_127 = arith.constant 1 : index
    %c0_128 = arith.constant 0 : index
    %233 = vector.load %arg23[%c1_126, %c1_127, %c0_128] : memref<6x6x32xf32, #tpu.memory_space<vmem>>, vector<4x4x32xf32>
    %234 = vector.shape_cast %233 : vector<4x4x32xf32> to vector<16x32xf32>
    %235 = arith.truncf %234 : vector<16x32xf32> to vector<16x32xbf16>
    %236 = vector.extract_strided_slice %127 {offsets = [4, 0, 0], sizes = [1, 32, 32], strides = [1, 1, 1]} : vector<9x32x32xbf16> to vector<1x32x32xbf16>
    %237 = vector.shape_cast %236 : vector<1x32x32xbf16> to vector<32x32xbf16>
    %cst_129 = arith.constant dense<0.000000e+00> : vector<16x32xf32>
    %238 = tpu.matmul %235, %237, %cst_129 {dimension_numbers = #tpu.dot_dimension_numbers<[1], [0], [0], [1], [0, 0, 1, 1], [], []>} : vector<16x32xbf16>, vector<32x32xbf16>, vector<16x32xf32> -> vector<16x32xf32>
    %239 = arith.addf %232, %238 : vector<16x32xf32>
    %c1_130 = arith.constant 1 : index
    %c2_131 = arith.constant 2 : index
    %c0_132 = arith.constant 0 : index
    %240 = vector.load %arg23[%c1_130, %c2_131, %c0_132] : memref<6x6x32xf32, #tpu.memory_space<vmem>>, vector<4x4x32xf32>
    %241 = vector.shape_cast %240 : vector<4x4x32xf32> to vector<16x32xf32>
    %242 = arith.truncf %241 : vector<16x32xf32> to vector<16x32xbf16>
    %243 = vector.extract_strided_slice %127 {offsets = [5, 0, 0], sizes = [1, 32, 32], strides = [1, 1, 1]} : vector<9x32x32xbf16> to vector<1x32x32xbf16>
    %244 = vector.shape_cast %243 : vector<1x32x32xbf16> to vector<32x32xbf16>
    %cst_133 = arith.constant dense<0.000000e+00> : vector<16x32xf32>
    %245 = tpu.matmul %242, %244, %cst_133 {dimension_numbers = #tpu.dot_dimension_numbers<[1], [0], [0], [1], [0, 0, 1, 1], [], []>} : vector<16x32xbf16>, vector<32x32xbf16>, vector<16x32xf32> -> vector<16x32xf32>
    %246 = arith.addf %239, %245 : vector<16x32xf32>
    %c2_134 = arith.constant 2 : index
    %c0_135 = arith.constant 0 : index
    %c0_136 = arith.constant 0 : index
    %247 = vector.load %arg23[%c2_134, %c0_135, %c0_136] : memref<6x6x32xf32, #tpu.memory_space<vmem>>, vector<4x4x32xf32>
    %248 = vector.shape_cast %247 : vector<4x4x32xf32> to vector<16x32xf32>
    %249 = arith.truncf %248 : vector<16x32xf32> to vector<16x32xbf16>
    %250 = vector.extract_strided_slice %127 {offsets = [6, 0, 0], sizes = [1, 32, 32], strides = [1, 1, 1]} : vector<9x32x32xbf16> to vector<1x32x32xbf16>
    %251 = vector.shape_cast %250 : vector<1x32x32xbf16> to vector<32x32xbf16>
    %cst_137 = arith.constant dense<0.000000e+00> : vector<16x32xf32>
    %252 = tpu.matmul %249, %251, %cst_137 {dimension_numbers = #tpu.dot_dimension_numbers<[1], [0], [0], [1], [0, 0, 1, 1], [], []>} : vector<16x32xbf16>, vector<32x32xbf16>, vector<16x32xf32> -> vector<16x32xf32>
    %253 = arith.addf %246, %252 : vector<16x32xf32>
    %c2_138 = arith.constant 2 : index
    %c1_139 = arith.constant 1 : index
    %c0_140 = arith.constant 0 : index
    %254 = vector.load %arg23[%c2_138, %c1_139, %c0_140] : memref<6x6x32xf32, #tpu.memory_space<vmem>>, vector<4x4x32xf32>
    %255 = vector.shape_cast %254 : vector<4x4x32xf32> to vector<16x32xf32>
    %256 = arith.truncf %255 : vector<16x32xf32> to vector<16x32xbf16>
    %257 = vector.extract_strided_slice %127 {offsets = [7, 0, 0], sizes = [1, 32, 32], strides = [1, 1, 1]} : vector<9x32x32xbf16> to vector<1x32x32xbf16>
    %258 = vector.shape_cast %257 : vector<1x32x32xbf16> to vector<32x32xbf16>
    %cst_141 = arith.constant dense<0.000000e+00> : vector<16x32xf32>
    %259 = tpu.matmul %256, %258, %cst_141 {dimension_numbers = #tpu.dot_dimension_numbers<[1], [0], [0], [1], [0, 0, 1, 1], [], []>} : vector<16x32xbf16>, vector<32x32xbf16>, vector<16x32xf32> -> vector<16x32xf32>
    %260 = arith.addf %253, %259 : vector<16x32xf32>
    %c2_142 = arith.constant 2 : index
    %c2_143 = arith.constant 2 : index
    %c0_144 = arith.constant 0 : index
    %261 = vector.load %arg23[%c2_142, %c2_143, %c0_144] : memref<6x6x32xf32, #tpu.memory_space<vmem>>, vector<4x4x32xf32>
    %262 = vector.shape_cast %261 : vector<4x4x32xf32> to vector<16x32xf32>
    %263 = arith.truncf %262 : vector<16x32xf32> to vector<16x32xbf16>
    %264 = vector.extract_strided_slice %127 {offsets = [8, 0, 0], sizes = [1, 32, 32], strides = [1, 1, 1]} : vector<9x32x32xbf16> to vector<1x32x32xbf16>
    %265 = vector.shape_cast %264 : vector<1x32x32xbf16> to vector<32x32xbf16>
    %cst_145 = arith.constant dense<0.000000e+00> : vector<16x32xf32>
    %266 = tpu.matmul %263, %265, %cst_145 {dimension_numbers = #tpu.dot_dimension_numbers<[1], [0], [0], [1], [0, 0, 1, 1], [], []>} : vector<16x32xbf16>, vector<32x32xbf16>, vector<16x32xf32> -> vector<16x32xf32>
    %267 = arith.addf %260, %266 : vector<16x32xf32>
    %cst_146 = arith.constant 0.000000e+00 : f32
    %268 = vector.broadcast %cst_146 : f32 to vector<16x32xf32>
    %269 = arith.maximumf %267, %268 : vector<16x32xf32>
    %c0_147 = arith.constant 0 : index
    %c0_148 = arith.constant 0 : index
    %c0_149 = arith.constant 0 : index
    %270 = vector.load %arg15[%c0_147, %c0_148, %c0_149] : memref<9x32x32xbf16, #tpu.memory_space<vmem>>, vector<9x32x32xbf16>
    %c0_150 = arith.constant 0 : index
    %c0_151 = arith.constant 0 : index
    %c0_152 = arith.constant 0 : index
    %271 = vector.load %arg16[%c0_150, %c0_151, %c0_152] : memref<9x32x32xbf16, #tpu.memory_space<vmem>>, vector<9x32x32xbf16>
    %cst_153 = arith.constant 0.000000e+00 : f32
    %272 = vector.broadcast %cst_153 : f32 to vector<1x6x32xf32>
    %cst_154 = arith.constant 0.000000e+00 : f32
    %273 = vector.broadcast %cst_154 : f32 to vector<6x1x32xf32>
    %c0_155 = arith.constant 0 : index
    %c0_156 = arith.constant 0 : index
    %c0_157 = arith.constant 0 : index
    %274 = vector.load %arg24[%c0_155, %c0_156, %c0_157] : memref<6x6x32xf32, #tpu.memory_space<vmem>>, vector<1x6x32xf32>
    tpu.vector_store %arg24[%c0_155, %c0_156, %c0_157], %272 {strides = array<i32>} : memref<6x6x32xf32, #tpu.memory_space<vmem>>, vector<1x6x32xf32>,
    %c5_158 = arith.constant 5 : index
    %c0_159 = arith.constant 0 : index
    %c0_160 = arith.constant 0 : index
    %275 = vector.load %arg24[%c5_158, %c0_159, %c0_160] : memref<6x6x32xf32, #tpu.memory_space<vmem>>, vector<1x6x32xf32>
    tpu.vector_store %arg24[%c5_158, %c0_159, %c0_160], %272 {strides = array<i32>} : memref<6x6x32xf32, #tpu.memory_space<vmem>>, vector<1x6x32xf32>,
    %c0_161 = arith.constant 0 : index
    %c0_162 = arith.constant 0 : index
    %c0_163 = arith.constant 0 : index
    %276 = vector.load %arg24[%c0_161, %c0_162, %c0_163] : memref<6x6x32xf32, #tpu.memory_space<vmem>>, vector<6x1x32xf32>
    tpu.vector_store %arg24[%c0_161, %c0_162, %c0_163], %273 {strides = array<i32>} : memref<6x6x32xf32, #tpu.memory_space<vmem>>, vector<6x1x32xf32>,
    %c0_164 = arith.constant 0 : index
    %c5_165 = arith.constant 5 : index
    %c0_166 = arith.constant 0 : index
    %277 = vector.load %arg24[%c0_164, %c5_165, %c0_166] : memref<6x6x32xf32, #tpu.memory_space<vmem>>, vector<6x1x32xf32>
    tpu.vector_store %arg24[%c0_164, %c5_165, %c0_166], %273 {strides = array<i32>} : memref<6x6x32xf32, #tpu.memory_space<vmem>>, vector<6x1x32xf32>,
    %278 = vector.shape_cast %51 : vector<16x32xf32> to vector<4x4x32xf32>
    %c1_167 = arith.constant 1 : index
    %c1_168 = arith.constant 1 : index
    %c0_169 = arith.constant 0 : index
    %279 = vector.load %arg24[%c1_167, %c1_168, %c0_169] : memref<6x6x32xf32, #tpu.memory_space<vmem>>, vector<4x4x32xf32>
    tpu.vector_store %arg24[%c1_167, %c1_168, %c0_169], %278 {strides = array<i32>} : memref<6x6x32xf32, #tpu.memory_space<vmem>>, vector<4x4x32xf32>,
    %cst_170 = arith.constant 0.000000e+00 : f32
    %280 = vector.broadcast %cst_170 : f32 to vector<16x32xf32>
    %c0_171 = arith.constant 0 : index
    %c0_172 = arith.constant 0 : index
    %c0_173 = arith.constant 0 : index
    %281 = vector.load %arg24[%c0_171, %c0_172, %c0_173] : memref<6x6x32xf32, #tpu.memory_space<vmem>>, vector<4x4x32xf32>
    %282 = vector.shape_cast %281 : vector<4x4x32xf32> to vector<16x32xf32>
    %283 = arith.truncf %282 : vector<16x32xf32> to vector<16x32xbf16>
    %284 = vector.extract_strided_slice %270 {offsets = [0, 0, 0], sizes = [1, 32, 32], strides = [1, 1, 1]} : vector<9x32x32xbf16> to vector<1x32x32xbf16>
    %285 = vector.shape_cast %284 : vector<1x32x32xbf16> to vector<32x32xbf16>
    %cst_174 = arith.constant dense<0.000000e+00> : vector<16x32xf32>
    %286 = tpu.matmul %283, %285, %cst_174 {dimension_numbers = #tpu.dot_dimension_numbers<[1], [0], [0], [1], [0, 0, 1, 1], [], []>} : vector<16x32xbf16>, vector<32x32xbf16>, vector<16x32xf32> -> vector<16x32xf32>
    %287 = arith.addf %280, %286 : vector<16x32xf32>
    %c0_175 = arith.constant 0 : index
    %c1_176 = arith.constant 1 : index
    %c0_177 = arith.constant 0 : index
    %288 = vector.load %arg24[%c0_175, %c1_176, %c0_177] : memref<6x6x32xf32, #tpu.memory_space<vmem>>, vector<4x4x32xf32>
    %289 = vector.shape_cast %288 : vector<4x4x32xf32> to vector<16x32xf32>
    %290 = arith.truncf %289 : vector<16x32xf32> to vector<16x32xbf16>
    %291 = vector.extract_strided_slice %270 {offsets = [1, 0, 0], sizes = [1, 32, 32], strides = [1, 1, 1]} : vector<9x32x32xbf16> to vector<1x32x32xbf16>
    %292 = vector.shape_cast %291 : vector<1x32x32xbf16> to vector<32x32xbf16>
    %cst_178 = arith.constant dense<0.000000e+00> : vector<16x32xf32>
    %293 = tpu.matmul %290, %292, %cst_178 {dimension_numbers = #tpu.dot_dimension_numbers<[1], [0], [0], [1], [0, 0, 1, 1], [], []>} : vector<16x32xbf16>, vector<32x32xbf16>, vector<16x32xf32> -> vector<16x32xf32>
    %294 = arith.addf %287, %293 : vector<16x32xf32>
    %c0_179 = arith.constant 0 : index
    %c2_180 = arith.constant 2 : index
    %c0_181 = arith.constant 0 : index
    %295 = vector.load %arg24[%c0_179, %c2_180, %c0_181] : memref<6x6x32xf32, #tpu.memory_space<vmem>>, vector<4x4x32xf32>
    %296 = vector.shape_cast %295 : vector<4x4x32xf32> to vector<16x32xf32>
    %297 = arith.truncf %296 : vector<16x32xf32> to vector<16x32xbf16>
    %298 = vector.extract_strided_slice %270 {offsets = [2, 0, 0], sizes = [1, 32, 32], strides = [1, 1, 1]} : vector<9x32x32xbf16> to vector<1x32x32xbf16>
    %299 = vector.shape_cast %298 : vector<1x32x32xbf16> to vector<32x32xbf16>
    %cst_182 = arith.constant dense<0.000000e+00> : vector<16x32xf32>
    %300 = tpu.matmul %297, %299, %cst_182 {dimension_numbers = #tpu.dot_dimension_numbers<[1], [0], [0], [1], [0, 0, 1, 1], [], []>} : vector<16x32xbf16>, vector<32x32xbf16>, vector<16x32xf32> -> vector<16x32xf32>
    %301 = arith.addf %294, %300 : vector<16x32xf32>
    %c1_183 = arith.constant 1 : index
    %c0_184 = arith.constant 0 : index
    %c0_185 = arith.constant 0 : index
    %302 = vector.load %arg24[%c1_183, %c0_184, %c0_185] : memref<6x6x32xf32, #tpu.memory_space<vmem>>, vector<4x4x32xf32>
    %303 = vector.shape_cast %302 : vector<4x4x32xf32> to vector<16x32xf32>
    %304 = arith.truncf %303 : vector<16x32xf32> to vector<16x32xbf16>
    %305 = vector.extract_strided_slice %270 {offsets = [3, 0, 0], sizes = [1, 32, 32], strides = [1, 1, 1]} : vector<9x32x32xbf16> to vector<1x32x32xbf16>
    %306 = vector.shape_cast %305 : vector<1x32x32xbf16> to vector<32x32xbf16>
    %cst_186 = arith.constant dense<0.000000e+00> : vector<16x32xf32>
    %307 = tpu.matmul %304, %306, %cst_186 {dimension_numbers = #tpu.dot_dimension_numbers<[1], [0], [0], [1], [0, 0, 1, 1], [], []>} : vector<16x32xbf16>, vector<32x32xbf16>, vector<16x32xf32> -> vector<16x32xf32>
    %308 = arith.addf %301, %307 : vector<16x32xf32>
    %c1_187 = arith.constant 1 : index
    %c1_188 = arith.constant 1 : index
    %c0_189 = arith.constant 0 : index
    %309 = vector.load %arg24[%c1_187, %c1_188, %c0_189] : memref<6x6x32xf32, #tpu.memory_space<vmem>>, vector<4x4x32xf32>
    %310 = vector.shape_cast %309 : vector<4x4x32xf32> to vector<16x32xf32>
    %311 = arith.truncf %310 : vector<16x32xf32> to vector<16x32xbf16>
    %312 = vector.extract_strided_slice %270 {offsets = [4, 0, 0], sizes = [1, 32, 32], strides = [1, 1, 1]} : vector<9x32x32xbf16> to vector<1x32x32xbf16>
    %313 = vector.shape_cast %312 : vector<1x32x32xbf16> to vector<32x32xbf16>
    %cst_190 = arith.constant dense<0.000000e+00> : vector<16x32xf32>
    %314 = tpu.matmul %311, %313, %cst_190 {dimension_numbers = #tpu.dot_dimension_numbers<[1], [0], [0], [1], [0, 0, 1, 1], [], []>} : vector<16x32xbf16>, vector<32x32xbf16>, vector<16x32xf32> -> vector<16x32xf32>
    %315 = arith.addf %308, %314 : vector<16x32xf32>
    %c1_191 = arith.constant 1 : index
    %c2_192 = arith.constant 2 : index
    %c0_193 = arith.constant 0 : index
    %316 = vector.load %arg24[%c1_191, %c2_192, %c0_193] : memref<6x6x32xf32, #tpu.memory_space<vmem>>, vector<4x4x32xf32>
    %317 = vector.shape_cast %316 : vector<4x4x32xf32> to vector<16x32xf32>
    %318 = arith.truncf %317 : vector<16x32xf32> to vector<16x32xbf16>
    %319 = vector.extract_strided_slice %270 {offsets = [5, 0, 0], sizes = [1, 32, 32], strides = [1, 1, 1]} : vector<9x32x32xbf16> to vector<1x32x32xbf16>
    %320 = vector.shape_cast %319 : vector<1x32x32xbf16> to vector<32x32xbf16>
    %cst_194 = arith.constant dense<0.000000e+00> : vector<16x32xf32>
    %321 = tpu.matmul %318, %320, %cst_194 {dimension_numbers = #tpu.dot_dimension_numbers<[1], [0], [0], [1], [0, 0, 1, 1], [], []>} : vector<16x32xbf16>, vector<32x32xbf16>, vector<16x32xf32> -> vector<16x32xf32>
    %322 = arith.addf %315, %321 : vector<16x32xf32>
    %c2_195 = arith.constant 2 : index
    %c0_196 = arith.constant 0 : index
    %c0_197 = arith.constant 0 : index
    %323 = vector.load %arg24[%c2_195, %c0_196, %c0_197] : memref<6x6x32xf32, #tpu.memory_space<vmem>>, vector<4x4x32xf32>
    %324 = vector.shape_cast %323 : vector<4x4x32xf32> to vector<16x32xf32>
    %325 = arith.truncf %324 : vector<16x32xf32> to vector<16x32xbf16>
    %326 = vector.extract_strided_slice %270 {offsets = [6, 0, 0], sizes = [1, 32, 32], strides = [1, 1, 1]} : vector<9x32x32xbf16> to vector<1x32x32xbf16>
    %327 = vector.shape_cast %326 : vector<1x32x32xbf16> to vector<32x32xbf16>
    %cst_198 = arith.constant dense<0.000000e+00> : vector<16x32xf32>
    %328 = tpu.matmul %325, %327, %cst_198 {dimension_numbers = #tpu.dot_dimension_numbers<[1], [0], [0], [1], [0, 0, 1, 1], [], []>} : vector<16x32xbf16>, vector<32x32xbf16>, vector<16x32xf32> -> vector<16x32xf32>
    %329 = arith.addf %322, %328 : vector<16x32xf32>
    %c2_199 = arith.constant 2 : index
    %c1_200 = arith.constant 1 : index
    %c0_201 = arith.constant 0 : index
    %330 = vector.load %arg24[%c2_199, %c1_200, %c0_201] : memref<6x6x32xf32, #tpu.memory_space<vmem>>, vector<4x4x32xf32>
    %331 = vector.shape_cast %330 : vector<4x4x32xf32> to vector<16x32xf32>
    %332 = arith.truncf %331 : vector<16x32xf32> to vector<16x32xbf16>
    %333 = vector.extract_strided_slice %270 {offsets = [7, 0, 0], sizes = [1, 32, 32], strides = [1, 1, 1]} : vector<9x32x32xbf16> to vector<1x32x32xbf16>
    %334 = vector.shape_cast %333 : vector<1x32x32xbf16> to vector<32x32xbf16>
    %cst_202 = arith.constant dense<0.000000e+00> : vector<16x32xf32>
    %335 = tpu.matmul %332, %334, %cst_202 {dimension_numbers = #tpu.dot_dimension_numbers<[1], [0], [0], [1], [0, 0, 1, 1], [], []>} : vector<16x32xbf16>, vector<32x32xbf16>, vector<16x32xf32> -> vector<16x32xf32>
    %336 = arith.addf %329, %335 : vector<16x32xf32>
    %c2_203 = arith.constant 2 : index
    %c2_204 = arith.constant 2 : index
    %c0_205 = arith.constant 0 : index
    %337 = vector.load %arg24[%c2_203, %c2_204, %c0_205] : memref<6x6x32xf32, #tpu.memory_space<vmem>>, vector<4x4x32xf32>
    %338 = vector.shape_cast %337 : vector<4x4x32xf32> to vector<16x32xf32>
    %339 = arith.truncf %338 : vector<16x32xf32> to vector<16x32xbf16>
    %340 = vector.extract_strided_slice %270 {offsets = [8, 0, 0], sizes = [1, 32, 32], strides = [1, 1, 1]} : vector<9x32x32xbf16> to vector<1x32x32xbf16>
    %341 = vector.shape_cast %340 : vector<1x32x32xbf16> to vector<32x32xbf16>
    %cst_206 = arith.constant dense<0.000000e+00> : vector<16x32xf32>
    %342 = tpu.matmul %339, %341, %cst_206 {dimension_numbers = #tpu.dot_dimension_numbers<[1], [0], [0], [1], [0, 0, 1, 1], [], []>} : vector<16x32xbf16>, vector<32x32xbf16>, vector<16x32xf32> -> vector<16x32xf32>
    %343 = arith.addf %336, %342 : vector<16x32xf32>
    %cst_207 = arith.constant 0.000000e+00 : f32
    %344 = vector.broadcast %cst_207 : f32 to vector<16x32xf32>
    %345 = arith.maximumf %343, %344 : vector<16x32xf32>
    %346 = vector.shape_cast %345 : vector<16x32xf32> to vector<4x4x32xf32>
    %c1_208 = arith.constant 1 : index
    %c1_209 = arith.constant 1 : index
    %c0_210 = arith.constant 0 : index
    %347 = vector.load %arg24[%c1_208, %c1_209, %c0_210] : memref<6x6x32xf32, #tpu.memory_space<vmem>>, vector<4x4x32xf32>
    tpu.vector_store %arg24[%c1_208, %c1_209, %c0_210], %346 {strides = array<i32>} : memref<6x6x32xf32, #tpu.memory_space<vmem>>, vector<4x4x32xf32>,
    %cst_211 = arith.constant 0.000000e+00 : f32
    %348 = vector.broadcast %cst_211 : f32 to vector<16x32xf32>
    %c0_212 = arith.constant 0 : index
    %c0_213 = arith.constant 0 : index
    %c0_214 = arith.constant 0 : index
    %349 = vector.load %arg24[%c0_212, %c0_213, %c0_214] : memref<6x6x32xf32, #tpu.memory_space<vmem>>, vector<4x4x32xf32>
    %350 = vector.shape_cast %349 : vector<4x4x32xf32> to vector<16x32xf32>
    %351 = arith.truncf %350 : vector<16x32xf32> to vector<16x32xbf16>
    %352 = vector.extract_strided_slice %271 {offsets = [0, 0, 0], sizes = [1, 32, 32], strides = [1, 1, 1]} : vector<9x32x32xbf16> to vector<1x32x32xbf16>
    %353 = vector.shape_cast %352 : vector<1x32x32xbf16> to vector<32x32xbf16>
    %cst_215 = arith.constant dense<0.000000e+00> : vector<16x32xf32>
    %354 = tpu.matmul %351, %353, %cst_215 {dimension_numbers = #tpu.dot_dimension_numbers<[1], [0], [0], [1], [0, 0, 1, 1], [], []>} : vector<16x32xbf16>, vector<32x32xbf16>, vector<16x32xf32> -> vector<16x32xf32>
    %355 = arith.addf %348, %354 : vector<16x32xf32>
    %c0_216 = arith.constant 0 : index
    %c1_217 = arith.constant 1 : index
    %c0_218 = arith.constant 0 : index
    %356 = vector.load %arg24[%c0_216, %c1_217, %c0_218] : memref<6x6x32xf32, #tpu.memory_space<vmem>>, vector<4x4x32xf32>
    %357 = vector.shape_cast %356 : vector<4x4x32xf32> to vector<16x32xf32>
    %358 = arith.truncf %357 : vector<16x32xf32> to vector<16x32xbf16>
    %359 = vector.extract_strided_slice %271 {offsets = [1, 0, 0], sizes = [1, 32, 32], strides = [1, 1, 1]} : vector<9x32x32xbf16> to vector<1x32x32xbf16>
    %360 = vector.shape_cast %359 : vector<1x32x32xbf16> to vector<32x32xbf16>
    %cst_219 = arith.constant dense<0.000000e+00> : vector<16x32xf32>
    %361 = tpu.matmul %358, %360, %cst_219 {dimension_numbers = #tpu.dot_dimension_numbers<[1], [0], [0], [1], [0, 0, 1, 1], [], []>} : vector<16x32xbf16>, vector<32x32xbf16>, vector<16x32xf32> -> vector<16x32xf32>
    %362 = arith.addf %355, %361 : vector<16x32xf32>
    %c0_220 = arith.constant 0 : index
    %c2_221 = arith.constant 2 : index
    %c0_222 = arith.constant 0 : index
    %363 = vector.load %arg24[%c0_220, %c2_221, %c0_222] : memref<6x6x32xf32, #tpu.memory_space<vmem>>, vector<4x4x32xf32>
    %364 = vector.shape_cast %363 : vector<4x4x32xf32> to vector<16x32xf32>
    %365 = arith.truncf %364 : vector<16x32xf32> to vector<16x32xbf16>
    %366 = vector.extract_strided_slice %271 {offsets = [2, 0, 0], sizes = [1, 32, 32], strides = [1, 1, 1]} : vector<9x32x32xbf16> to vector<1x32x32xbf16>
    %367 = vector.shape_cast %366 : vector<1x32x32xbf16> to vector<32x32xbf16>
    %cst_223 = arith.constant dense<0.000000e+00> : vector<16x32xf32>
    %368 = tpu.matmul %365, %367, %cst_223 {dimension_numbers = #tpu.dot_dimension_numbers<[1], [0], [0], [1], [0, 0, 1, 1], [], []>} : vector<16x32xbf16>, vector<32x32xbf16>, vector<16x32xf32> -> vector<16x32xf32>
    %369 = arith.addf %362, %368 : vector<16x32xf32>
    %c1_224 = arith.constant 1 : index
    %c0_225 = arith.constant 0 : index
    %c0_226 = arith.constant 0 : index
    %370 = vector.load %arg24[%c1_224, %c0_225, %c0_226] : memref<6x6x32xf32, #tpu.memory_space<vmem>>, vector<4x4x32xf32>
    %371 = vector.shape_cast %370 : vector<4x4x32xf32> to vector<16x32xf32>
    %372 = arith.truncf %371 : vector<16x32xf32> to vector<16x32xbf16>
    %373 = vector.extract_strided_slice %271 {offsets = [3, 0, 0], sizes = [1, 32, 32], strides = [1, 1, 1]} : vector<9x32x32xbf16> to vector<1x32x32xbf16>
    %374 = vector.shape_cast %373 : vector<1x32x32xbf16> to vector<32x32xbf16>
    %cst_227 = arith.constant dense<0.000000e+00> : vector<16x32xf32>
    %375 = tpu.matmul %372, %374, %cst_227 {dimension_numbers = #tpu.dot_dimension_numbers<[1], [0], [0], [1], [0, 0, 1, 1], [], []>} : vector<16x32xbf16>, vector<32x32xbf16>, vector<16x32xf32> -> vector<16x32xf32>
    %376 = arith.addf %369, %375 : vector<16x32xf32>
    %c1_228 = arith.constant 1 : index
    %c1_229 = arith.constant 1 : index
    %c0_230 = arith.constant 0 : index
    %377 = vector.load %arg24[%c1_228, %c1_229, %c0_230] : memref<6x6x32xf32, #tpu.memory_space<vmem>>, vector<4x4x32xf32>
    %378 = vector.shape_cast %377 : vector<4x4x32xf32> to vector<16x32xf32>
    %379 = arith.truncf %378 : vector<16x32xf32> to vector<16x32xbf16>
    %380 = vector.extract_strided_slice %271 {offsets = [4, 0, 0], sizes = [1, 32, 32], strides = [1, 1, 1]} : vector<9x32x32xbf16> to vector<1x32x32xbf16>
    %381 = vector.shape_cast %380 : vector<1x32x32xbf16> to vector<32x32xbf16>
    %cst_231 = arith.constant dense<0.000000e+00> : vector<16x32xf32>
    %382 = tpu.matmul %379, %381, %cst_231 {dimension_numbers = #tpu.dot_dimension_numbers<[1], [0], [0], [1], [0, 0, 1, 1], [], []>} : vector<16x32xbf16>, vector<32x32xbf16>, vector<16x32xf32> -> vector<16x32xf32>
    %383 = arith.addf %376, %382 : vector<16x32xf32>
    %c1_232 = arith.constant 1 : index
    %c2_233 = arith.constant 2 : index
    %c0_234 = arith.constant 0 : index
    %384 = vector.load %arg24[%c1_232, %c2_233, %c0_234] : memref<6x6x32xf32, #tpu.memory_space<vmem>>, vector<4x4x32xf32>
    %385 = vector.shape_cast %384 : vector<4x4x32xf32> to vector<16x32xf32>
    %386 = arith.truncf %385 : vector<16x32xf32> to vector<16x32xbf16>
    %387 = vector.extract_strided_slice %271 {offsets = [5, 0, 0], sizes = [1, 32, 32], strides = [1, 1, 1]} : vector<9x32x32xbf16> to vector<1x32x32xbf16>
    %388 = vector.shape_cast %387 : vector<1x32x32xbf16> to vector<32x32xbf16>
    %cst_235 = arith.constant dense<0.000000e+00> : vector<16x32xf32>
    %389 = tpu.matmul %386, %388, %cst_235 {dimension_numbers = #tpu.dot_dimension_numbers<[1], [0], [0], [1], [0, 0, 1, 1], [], []>} : vector<16x32xbf16>, vector<32x32xbf16>, vector<16x32xf32> -> vector<16x32xf32>
    %390 = arith.addf %383, %389 : vector<16x32xf32>
    %c2_236 = arith.constant 2 : index
    %c0_237 = arith.constant 0 : index
    %c0_238 = arith.constant 0 : index
    %391 = vector.load %arg24[%c2_236, %c0_237, %c0_238] : memref<6x6x32xf32, #tpu.memory_space<vmem>>, vector<4x4x32xf32>
    %392 = vector.shape_cast %391 : vector<4x4x32xf32> to vector<16x32xf32>
    %393 = arith.truncf %392 : vector<16x32xf32> to vector<16x32xbf16>
    %394 = vector.extract_strided_slice %271 {offsets = [6, 0, 0], sizes = [1, 32, 32], strides = [1, 1, 1]} : vector<9x32x32xbf16> to vector<1x32x32xbf16>
    %395 = vector.shape_cast %394 : vector<1x32x32xbf16> to vector<32x32xbf16>
    %cst_239 = arith.constant dense<0.000000e+00> : vector<16x32xf32>
    %396 = tpu.matmul %393, %395, %cst_239 {dimension_numbers = #tpu.dot_dimension_numbers<[1], [0], [0], [1], [0, 0, 1, 1], [], []>} : vector<16x32xbf16>, vector<32x32xbf16>, vector<16x32xf32> -> vector<16x32xf32>
    %397 = arith.addf %390, %396 : vector<16x32xf32>
    %c2_240 = arith.constant 2 : index
    %c1_241 = arith.constant 1 : index
    %c0_242 = arith.constant 0 : index
    %398 = vector.load %arg24[%c2_240, %c1_241, %c0_242] : memref<6x6x32xf32, #tpu.memory_space<vmem>>, vector<4x4x32xf32>
    %399 = vector.shape_cast %398 : vector<4x4x32xf32> to vector<16x32xf32>
    %400 = arith.truncf %399 : vector<16x32xf32> to vector<16x32xbf16>
    %401 = vector.extract_strided_slice %271 {offsets = [7, 0, 0], sizes = [1, 32, 32], strides = [1, 1, 1]} : vector<9x32x32xbf16> to vector<1x32x32xbf16>
    %402 = vector.shape_cast %401 : vector<1x32x32xbf16> to vector<32x32xbf16>
    %cst_243 = arith.constant dense<0.000000e+00> : vector<16x32xf32>
    %403 = tpu.matmul %400, %402, %cst_243 {dimension_numbers = #tpu.dot_dimension_numbers<[1], [0], [0], [1], [0, 0, 1, 1], [], []>} : vector<16x32xbf16>, vector<32x32xbf16>, vector<16x32xf32> -> vector<16x32xf32>
    %404 = arith.addf %397, %403 : vector<16x32xf32>
    %c2_244 = arith.constant 2 : index
    %c2_245 = arith.constant 2 : index
    %c0_246 = arith.constant 0 : index
    %405 = vector.load %arg24[%c2_244, %c2_245, %c0_246] : memref<6x6x32xf32, #tpu.memory_space<vmem>>, vector<4x4x32xf32>
    %406 = vector.shape_cast %405 : vector<4x4x32xf32> to vector<16x32xf32>
    %407 = arith.truncf %406 : vector<16x32xf32> to vector<16x32xbf16>
    %408 = vector.extract_strided_slice %271 {offsets = [8, 0, 0], sizes = [1, 32, 32], strides = [1, 1, 1]} : vector<9x32x32xbf16> to vector<1x32x32xbf16>
    %409 = vector.shape_cast %408 : vector<1x32x32xbf16> to vector<32x32xbf16>
    %cst_247 = arith.constant dense<0.000000e+00> : vector<16x32xf32>
    %410 = tpu.matmul %407, %409, %cst_247 {dimension_numbers = #tpu.dot_dimension_numbers<[1], [0], [0], [1], [0, 0, 1, 1], [], []>} : vector<16x32xbf16>, vector<32x32xbf16>, vector<16x32xf32> -> vector<16x32xf32>
    %411 = arith.addf %404, %410 : vector<16x32xf32>
    %cst_248 = arith.constant 0.000000e+00 : f32
    %412 = vector.broadcast %cst_248 : f32 to vector<16x32xf32>
    %413 = arith.maximumf %411, %412 : vector<16x32xf32>
    %414 = arith.negf %413 : vector<16x32xf32>
    %415 = math.exp %414 : vector<16x32xf32>
    %cst_249 = arith.constant 1.000000e+00 : f32
    %416 = vector.broadcast %cst_249 : f32 to vector<16x32xf32>
    %417 = arith.addf %416, %415 : vector<16x32xf32>
    %418 = arith.divf %416, %417 : vector<16x32xf32>
    %419 = arith.mulf %418, %269 : vector<16x32xf32>
    %420 = arith.addf %419, %1 : vector<16x32xf32>
    %421 = arith.negf %269 : vector<16x32xf32>
    %422 = math.exp %421 : vector<16x32xf32>
    %cst_250 = arith.constant 1.000000e+00 : f32
    %423 = vector.broadcast %cst_250 : f32 to vector<16x32xf32>
    %424 = arith.addf %423, %422 : vector<16x32xf32>
    %425 = arith.divf %423, %424 : vector<16x32xf32>
    %426 = arith.mulf %425, %413 : vector<16x32xf32>
    %427 = arith.addf %426, %3 : vector<16x32xf32>
    %428 = vector.extract_strided_slice %118 {offsets = [0, 0], sizes = [16, 16], strides = [1, 1]} : vector<16x32xf32> to vector<16x16xf32>
    %429 = vector.extract_strided_slice %118 {offsets = [0, 16], sizes = [16, 16], strides = [1, 1]} : vector<16x32xf32> to vector<16x16xf32>
    %430 = vector.shape_cast %428 : vector<16x16xf32> to vector<16x1x16xf32>
    %431 = vector.shape_cast %429 : vector<16x16xf32> to vector<16x1x16xf32>
    %432 = tpu.concatenate %430, %431 in 1 : vector<16x1x16xf32>, vector<16x1x16xf32> -> vector<16x2x16xf32>
    %433 = vector.shape_cast %432 : vector<16x2x16xf32> to vector<32x16xf32>
    %434 = arith.truncf %433 : vector<32x16xf32> to vector<32x16xbf16>
    %435 = vector.extract_strided_slice %125 {offsets = [0, 0], sizes = [16, 16], strides = [1, 1]} : vector<16x32xf32> to vector<16x16xf32>
    %436 = vector.extract_strided_slice %125 {offsets = [0, 16], sizes = [16, 16], strides = [1, 1]} : vector<16x32xf32> to vector<16x16xf32>
    %437 = vector.shape_cast %435 : vector<16x16xf32> to vector<16x1x16xf32>
    %438 = vector.shape_cast %436 : vector<16x16xf32> to vector<16x1x16xf32>
    %439 = tpu.concatenate %437, %438 in 1 : vector<16x1x16xf32>, vector<16x1x16xf32> -> vector<16x2x16xf32>
    %440 = vector.shape_cast %439 : vector<16x2x16xf32> to vector<32x16xf32>
    %441 = arith.truncf %440 : vector<32x16xf32> to vector<32x16xbf16>
    %c0_251 = arith.constant 0 : index
    %c0_252 = arith.constant 0 : index
    %442 = vector.load %arg17[%c0_251, %c0_252] : memref<32x32xbf16, #tpu.memory_space<vmem>>, vector<32x32xbf16>
    %cst_253 = arith.constant dense<0.000000e+00> : vector<32x16xf32>
    %443 = tpu.matmul %442, %434, %cst_253 {dimension_numbers = #tpu.dot_dimension_numbers<[1], [0], [0], [1], [0, 0, 1, 1], [], []>} : vector<32x32xbf16>, vector<32x16xbf16>, vector<32x16xf32> -> vector<32x16xf32>
    %c0_254 = arith.constant 0 : index
    %c0_255 = arith.constant 0 : index
    %444 = vector.load %arg18[%c0_254, %c0_255] : memref<32x32xbf16, #tpu.memory_space<vmem>>, vector<32x32xbf16>
    %445 = arith.truncf %420 : vector<16x32xf32> to vector<16x32xbf16>
    "tpu.trace_start"() <{level = 10 : i32, message = "oc,pc->op"}> : () -> ()
    %cst_256 = arith.constant dense<0.000000e+00> : vector<32x16xf32>
    %446 = tpu.matmul %444, %445, %cst_256 {dimension_numbers = #tpu.dot_dimension_numbers<[1], [1], [0], [0], [0, 0, 1, 0], [], []>} : vector<32x32xbf16>, vector<16x32xbf16>, vector<32x16xf32> -> vector<32x16xf32>
    "tpu.trace_stop"() : () -> ()
    %447 = arith.addf %443, %446 : vector<32x16xf32>
    %c0_257 = arith.constant 0 : index
    %c0_258 = arith.constant 0 : index
    %c0_259 = arith.constant 0 : index
    %448 = vector.load %arg21[%c0_257, %c0_258, %c0_259] : memref<1x32x16xf32, #tpu.memory_space<vmem>>, vector<1x32x16xf32>
    %449 = vector.shape_cast %448 : vector<1x32x16xf32> to vector<32x16xf32>
    %450 = vector.shape_cast %447 : vector<32x16xf32> to vector<1x32x16xf32>
    tpu.vector_store %arg21[%c0_257, %c0_258, %c0_259], %450 {strides = array<i32>} : memref<1x32x16xf32, #tpu.memory_space<vmem>>, vector<1x32x16xf32>,
    %c0_260 = arith.constant 0 : index
    %c0_261 = arith.constant 0 : index
    %451 = vector.load %arg19[%c0_260, %c0_261] : memref<32x32xbf16, #tpu.memory_space<vmem>>, vector<32x32xbf16>
    %cst_262 = arith.constant dense<0.000000e+00> : vector<32x16xf32>
    %452 = tpu.matmul %451, %441, %cst_262 {dimension_numbers = #tpu.dot_dimension_numbers<[1], [0], [0], [1], [0, 0, 1, 1], [], []>} : vector<32x32xbf16>, vector<32x16xbf16>, vector<32x16xf32> -> vector<32x16xf32>
    %c0_263 = arith.constant 0 : index
    %c0_264 = arith.constant 0 : index
    %453 = vector.load %arg20[%c0_263, %c0_264] : memref<32x32xbf16, #tpu.memory_space<vmem>>, vector<32x32xbf16>
    %454 = arith.truncf %427 : vector<16x32xf32> to vector<16x32xbf16>
    "tpu.trace_start"() <{level = 10 : i32, message = "oc,pc->op"}> : () -> ()
    %cst_265 = arith.constant dense<0.000000e+00> : vector<32x16xf32>
    %455 = tpu.matmul %453, %454, %cst_265 {dimension_numbers = #tpu.dot_dimension_numbers<[1], [1], [0], [0], [0, 0, 1, 0], [], []>} : vector<32x32xbf16>, vector<16x32xbf16>, vector<32x16xf32> -> vector<32x16xf32>
    "tpu.trace_stop"() : () -> ()
    %456 = arith.addf %452, %455 : vector<32x16xf32>
    %c0_266 = arith.constant 0 : index
    %c0_267 = arith.constant 0 : index
    %c0_268 = arith.constant 0 : index
    %457 = vector.load %arg22[%c0_266, %c0_267, %c0_268] : memref<1x32x16xf32, #tpu.memory_space<vmem>>, vector<1x32x16xf32>
    %458 = vector.shape_cast %457 : vector<1x32x16xf32> to vector<32x16xf32>
    %459 = vector.shape_cast %456 : vector<32x16xf32> to vector<1x32x16xf32>
    tpu.vector_store %arg22[%c0_266, %c0_267, %c0_268], %459 {strides = array<i32>} : memref<1x32x16xf32, #tpu.memory_space<vmem>>, vector<1x32x16xf32>,
    return
  }
  func.func @transform_0(%arg0: i32) -> (i32, i32, i32) {
    %c0_i32 = arith.constant 0 : i32
    %c0_i32_0 = arith.constant 0 : i32
    %c0_i32_1 = arith.constant 0 : i32
    return %arg0, %c0_i32, %c0_i32_0 : i32, i32, i32
  }
  func.func @transform_1(%arg0: i32) -> (i32, i32, i32) {
    %c0_i32 = arith.constant 0 : i32
    %c0_i32_0 = arith.constant 0 : i32
    %c0_i32_1 = arith.constant 0 : i32
    return %arg0, %c0_i32, %c0_i32_0 : i32, i32, i32
  }
  func.func @transform_2(%arg0: i32) -> (i32, i32) {
    %c0_i32 = arith.constant 0 : i32
    %c0_i32_0 = arith.constant 0 : i32
    %c0_i32_1 = arith.constant 0 : i32
    return %c0_i32, %c0_i32_0 : i32, i32
  }
  func.func @transform_3(%arg0: i32) -> (i32, i32) {
    %c0_i32 = arith.constant 0 : i32
    %c0_i32_0 = arith.constant 0 : i32
    %c0_i32_1 = arith.constant 0 : i32
    return %c0_i32, %c0_i32_0 : i32, i32
  }
  func.func @transform_4(%arg0: i32) -> (i32, i32) {
    %c0_i32 = arith.constant 0 : i32
    %c0_i32_0 = arith.constant 0 : i32
    %c0_i32_1 = arith.constant 0 : i32
    return %c0_i32, %c0_i32_0 : i32, i32
  }
  func.func @transform_5(%arg0: i32) -> (i32, i32) {
    %c0_i32 = arith.constant 0 : i32
    %c0_i32_0 = arith.constant 0 : i32
    %c0_i32_1 = arith.constant 0 : i32
    return %c0_i32, %c0_i32_0 : i32, i32
  }
  func.func @transform_6(%arg0: i32) -> (i32, i32) {
    %c0_i32 = arith.constant 0 : i32
    %c0_i32_0 = arith.constant 0 : i32
    %c0_i32_1 = arith.constant 0 : i32
    return %c0_i32, %c0_i32_0 : i32, i32
  }
  func.func @transform_7(%arg0: i32) -> (i32, i32) {
    %c0_i32 = arith.constant 0 : i32
    %c0_i32_0 = arith.constant 0 : i32
    %c0_i32_1 = arith.constant 0 : i32
    return %c0_i32, %c0_i32_0 : i32, i32
  }
  func.func @transform_8(%arg0: i32) -> (i32, i32) {
    %c0_i32 = arith.constant 0 : i32
    %c0_i32_0 = arith.constant 0 : i32
    %c0_i32_1 = arith.constant 0 : i32
    return %c0_i32, %c0_i32_0 : i32, i32
  }
  func.func @transform_9(%arg0: i32) -> (i32, i32) {
    %c0_i32 = arith.constant 0 : i32
    %c0_i32_0 = arith.constant 0 : i32
    %c0_i32_1 = arith.constant 0 : i32
    return %c0_i32, %c0_i32_0 : i32, i32
  }
  func.func @transform_10(%arg0: i32) -> (i32, i32) {
    %c0_i32 = arith.constant 0 : i32
    %c0_i32_0 = arith.constant 0 : i32
    %c0_i32_1 = arith.constant 0 : i32
    return %c0_i32, %c0_i32_0 : i32, i32
  }
  func.func @transform_11(%arg0: i32) -> (i32, i32) {
    %c0_i32 = arith.constant 0 : i32
    %c0_i32_0 = arith.constant 0 : i32
    %c0_i32_1 = arith.constant 0 : i32
    return %c0_i32, %c0_i32_0 : i32, i32
  }
  func.func @transform_12(%arg0: i32) -> (i32, i32, i32) {
    %c0_i32 = arith.constant 0 : i32
    %c0_i32_0 = arith.constant 0 : i32
    %c0_i32_1 = arith.constant 0 : i32
    %c0_i32_2 = arith.constant 0 : i32
    return %c0_i32, %c0_i32_0, %c0_i32_1 : i32, i32, i32
  }
  func.func @transform_13(%arg0: i32) -> (i32, i32, i32) {
    %c0_i32 = arith.constant 0 : i32
    %c0_i32_0 = arith.constant 0 : i32
    %c0_i32_1 = arith.constant 0 : i32
    %c0_i32_2 = arith.constant 0 : i32
    return %c0_i32, %c0_i32_0, %c0_i32_1 : i32, i32, i32
  }
  func.func @transform_14(%arg0: i32) -> (i32, i32, i32) {
    %c0_i32 = arith.constant 0 : i32
    %c0_i32_0 = arith.constant 0 : i32
    %c0_i32_1 = arith.constant 0 : i32
    %c0_i32_2 = arith.constant 0 : i32
    return %c0_i32, %c0_i32_0, %c0_i32_1 : i32, i32, i32
  }
  func.func @transform_15(%arg0: i32) -> (i32, i32, i32) {
    %c0_i32 = arith.constant 0 : i32
    %c0_i32_0 = arith.constant 0 : i32
    %c0_i32_1 = arith.constant 0 : i32
    %c0_i32_2 = arith.constant 0 : i32
    return %c0_i32, %c0_i32_0, %c0_i32_1 : i32, i32, i32
  }
  func.func @transform_16(%arg0: i32) -> (i32, i32) {
    %c0_i32 = arith.constant 0 : i32
    %c0_i32_0 = arith.constant 0 : i32
    %c0_i32_1 = arith.constant 0 : i32
    return %c0_i32, %c0_i32_0 : i32, i32
  }
  func.func @transform_17(%arg0: i32) -> (i32, i32) {
    %c0_i32 = arith.constant 0 : i32
    %c0_i32_0 = arith.constant 0 : i32
    %c0_i32_1 = arith.constant 0 : i32
    return %c0_i32, %c0_i32_0 : i32, i32
  }
  func.func @transform_18(%arg0: i32) -> (i32, i32) {
    %c0_i32 = arith.constant 0 : i32
    %c0_i32_0 = arith.constant 0 : i32
    %c0_i32_1 = arith.constant 0 : i32
    return %c0_i32, %c0_i32_0 : i32, i32
  }
  func.func @transform_19(%arg0: i32) -> (i32, i32) {
    %c0_i32 = arith.constant 0 : i32
    %c0_i32_0 = arith.constant 0 : i32
    %c0_i32_1 = arith.constant 0 : i32
    return %c0_i32, %c0_i32_0 : i32, i32
  }
  func.func @transform_20(%arg0: i32) -> (i32, i32, i32) {
    %c0_i32 = arith.constant 0 : i32
    %c0_i32_0 = arith.constant 0 : i32
    %c0_i32_1 = arith.constant 0 : i32
    return %arg0, %c0_i32, %c0_i32_0 : i32, i32, i32
  }
  func.func @transform_21(%arg0: i32) -> (i32, i32, i32) {
    %c0_i32 = arith.constant 0 : i32
    %c0_i32_0 = arith.constant 0 : i32
    %c0_i32_1 = arith.constant 0 : i32
    return %arg0, %c0_i32, %c0_i32_0 : i32, i32, i32
  }
}

</mosaic_0001>

<llo_original>
// kernel: tpu_custom_call.1
$region0: #{tpu_custom_call.1}
  #allocation0 [shape = 'u32[]', space=smem, size = 0x4, offset = 0x4, fixed_abs, tag = 'smem constant byte address 0x4 - core index']
  #allocation1 [shape = 'u32[144,128]{1,0:T(1,128)}', space=vmem, size = 0x12000, scoped, tag = 'internal scratch']
  #allocation2 [shape = 'f32[6,6,32]{2,1,0:T(8,128)}', space=vmem, size = 0x6000, scoped, tag = 'scratch operand']
  #allocation3 [shape = 'f32[6,6,32]{2,1,0:T(8,128)}', space=vmem, size = 0x6000, scoped, tag = 'scratch operand']
  %s0 = inlined_call_operand.hbm [shape: f32[2,16,32], index: 0, kind: input, shape index: {}]
  %s1 = inlined_call_operand.hbm [shape: f32[2,16,32], index: 1, kind: input, shape index: {}]
  %s2 = inlined_call_operand.hbm [shape: f32[1,32], index: 2, kind: input, shape index: {}]
  %s3 = inlined_call_operand.hbm [shape: f32[1,32], index: 3, kind: input, shape index: {}]
  %s4 = inlined_call_operand.hbm [shape: f32[1,32], index: 4, kind: input, shape index: {}]
  %s5 = inlined_call_operand.hbm [shape: f32[1,32], index: 5, kind: input, shape index: {}]
  %s6 = inlined_call_operand.vmem [shape: bf16[96,32], index: 6, kind: input, shape index: {}]
  %s7 = inlined_call_operand.vmem [shape: bf16[96,32], index: 7, kind: input, shape index: {}]
  %s8 = inlined_call_operand.vmem [shape: bf16[32,32], index: 8, kind: input, shape index: {}]
  %s9 = inlined_call_operand.hbm [shape: f32[1,32], index: 9, kind: input, shape index: {}]
  %s10 = inlined_call_operand.hbm [shape: bf16[32,32], index: 10, kind: input, shape index: {}]
  %s11 = inlined_call_operand.hbm [shape: f32[1,32], index: 11, kind: input, shape index: {}]
  %s12 = inlined_call_operand.vmem [shape: bf16[9,32,32], index: 12, kind: input, shape index: {}]
  %s13 = inlined_call_operand.hbm [shape: bf16[9,32,32], index: 13, kind: input, shape index: {}]
  %s14 = inlined_call_operand.hbm [shape: bf16[9,32,32], index: 14, kind: input, shape index: {}]
  %s15 = inlined_call_operand.hbm [shape: bf16[9,32,32], index: 15, kind: input, shape index: {}]
  %s16 = inlined_call_operand.vmem [shape: bf16[32,32], index: 16, kind: input, shape index: {}]
  %s17 = inlined_call_operand.vmem [shape: bf16[32,32], index: 17, kind: input, shape index: {}]
  %s18 = inlined_call_operand.hbm [shape: bf16[32,32], index: 18, kind: input, shape index: {}]
  %s19 = inlined_call_operand.hbm [shape: bf16[32,32], index: 19, kind: input, shape index: {}]
  %s20 = inlined_call_operand.vmem [shape: f32[2,32,16], index: 20, kind: output, shape index: {0}]
  %s21 = inlined_call_operand.vmem [shape: f32[2,32,16], index: 21, kind: output, shape index: {1}]
  %22 = xla_tuple %s20, %s21
  %s23 = sld [smem:[#allocation0]]
  $region177: #{tpu_custom_call.1} parent=0
    _
  %s25 = ssub.s32 1, %s23
  %s26 = scalar_select 0, %s25, %s23
  $region1: #{tpu_custom_call.1} parent=0
    #allocation4 [shape = 'u8[16384]{0}', space=vmem, size = 0x4000, scoped, tag = 'input window, operand 0']
    #allocation5 [shape = 's32[2]{0}', space=sflag, size = 0x8, scoped, tag = 'scoped memory for tpu_custom_call.1']
    #allocation6 [shape = 'u8[16384]{0}', space=vmem, size = 0x4000, scoped, tag = 'input window, operand 1']
    #allocation7 [shape = 's32[2]{0}', space=sflag, size = 0x8, scoped, tag = 'scoped memory for tpu_custom_call.1']
    #allocation8 [shape = 'u8[512]{0}', space=vmem, size = 0x400, scoped, tag = 'input window, operand 2, single buffered']
    #allocation9 [shape = 'u8[512]{0}', space=vmem, size = 0x400, scoped, tag = 'input window, operand 3, single buffered']
    #allocation10 [shape = 's32[1]{0}', space=sflag, size = 0x4, scoped, tag = 'scoped memory for tpu_custom_call.1']
    #allocation11 [shape = 'u8[512]{0}', space=vmem, size = 0x400, scoped, tag = 'input window, operand 4, single buffered']
    #allocation12 [shape = 'u8[512]{0}', space=vmem, size = 0x400, scoped, tag = 'input window, operand 5, single buffered']
    #allocation13 [shape = 's32[1]{0}', space=sflag, size = 0x4, scoped, tag = 'scoped memory for tpu_custom_call.1']
    #allocation14 [shape = 'u8[512]{0}', space=vmem, size = 0x400, scoped, tag = 'input window, operand 9, single buffered']
    #allocation15 [shape = 'u8[8192]{0}', space=vmem, size = 0x2000, scoped, tag = 'input window, operand 10, single buffered']
    #allocation16 [shape = 's32[1]{0}', space=sflag, size = 0x4, scoped, tag = 'scoped memory for tpu_custom_call.1']
    #allocation17 [shape = 'u8[512]{0}', space=vmem, size = 0x400, scoped, tag = 'input window, operand 11, single buffered']
    #allocation18 [shape = 'u8[73728]{0}', space=vmem, size = 0x12000, scoped, tag = 'input window, operand 13, single buffered']
    #allocation19 [shape = 's32[1]{0}', space=sflag, size = 0x4, scoped, tag = 'scoped memory for tpu_custom_call.1']
    #allocation20 [shape = 'u8[73728]{0}', space=vmem, size = 0x12000, scoped, tag = 'input window, operand 14, single buffered']
    #allocation21 [shape = 'u8[73728]{0}', space=vmem, size = 0x12000, scoped, tag = 'input window, operand 15, single buffered']
    #allocation22 [shape = 's32[1]{0}', space=sflag, size = 0x4, scoped, tag = 'scoped memory for tpu_custom_call.1']
    #allocation23 [shape = 'u8[8192]{0}', space=vmem, size = 0x2000, scoped, tag = 'input window, operand 18, single buffered']
    #allocation24 [shape = 'u8[8192]{0}', space=vmem, size = 0x2000, scoped, tag = 'input window, operand 19, single buffered']
    #allocation25 [shape = 's32[1]{0}', space=sflag, size = 0x4, scoped, tag = 'scoped memory for tpu_custom_call.1']
    %27 = vsyncpa [#allocation5], 0
    %s28 = scalar_lea.sflag [#allocation5], 1
    %29 = vsyncpa %s28, 0
    %30 = vsyncpa [#allocation7], 0
    %s31 = scalar_lea.sflag [#allocation7], 1
    %32 = vsyncpa %s31, 0
    %33 = vsyncpa [#allocation10], 0
    %34 = vsyncpa [#allocation13], 0
    %35 = vsyncpa [#allocation16], 0
    %36 = vsyncpa [#allocation19], 0
    %37 = vsyncpa [#allocation22], 0
    %38 = vsyncpa [#allocation25], 0
    loop: start=0, step=1, limit=4
    $region2: #{tpu_custom_call.1} parent=1 // loop_pre_header
      _
    $region3: #{tpu_custom_call.1} parent=1 // loop_header
      %s40 = sphi 0, %s44
      %p41 = scmp.ge.s32.totalorder %s40, 4
      %s50 = sphi 0, %s52
      %s53 = sphi 0, %s50
      %s54 = sphi 0, %s53
      %s70 = sphi 0, %s54
      %s76 = sphi 0, %s78
      %s79 = sphi 0, %s76
      %s80 = sphi 0, %s79
      %s96 = sphi 0, %s80
      %s100 = sphi 0, %s100
      %s102 = sphi 0, %s100
      %s103 = sphi 0, %s102
      %s117 = sphi 0, %s103
      %s121 = sphi 0, %s121
      %s123 = sphi 0, %s121
      %s124 = sphi 0, %s123
      %s138 = sphi 0, %s124
      %s142 = sphi 0, %s142
      %s144 = sphi 0, %s142
      %s145 = sphi 0, %s144
      %s159 = sphi 0, %s145
      %s163 = sphi 0, %s163
      %s165 = sphi 0, %s163
      %s166 = sphi 0, %s165
      %s180 = sphi 0, %s166
      %s184 = sphi 0, %s184
      %s186 = sphi 0, %s184
      %s187 = sphi 0, %s186
      %s201 = sphi 0, %s187
      %s205 = sphi 0, %s205
      %s207 = sphi 0, %s205
      %s208 = sphi 0, %s207
      %s222 = sphi 0, %s208
      %s226 = sphi 0, %s226
      %s228 = sphi 0, %s226
      %s229 = sphi 0, %s228
      %s243 = sphi 0, %s229
      %s247 = sphi 0, %s247
      %s249 = sphi 0, %s247
      %s250 = sphi 0, %s249
      %s264 = sphi 0, %s250
      %s268 = sphi 0, %s268
      %s270 = sphi 0, %s268
      %s271 = sphi 0, %s270
      %s285 = sphi 0, %s271
      %s289 = sphi 0, %s289
      %s291 = sphi 0, %s289
      %s292 = sphi 0, %s291
      %s306 = sphi 0, %s292
      %s310 = sphi 0, %s310
      %s312 = sphi 0, %s310
      %s313 = sphi 0, %s312
      %s327 = sphi 0, %s313
      %s331 = sphi 0, %s331
      %s333 = sphi 0, %s331
      %s334 = sphi 0, %s333
      %s348 = sphi 0, %s334
      %s352 = sphi 0, %s352
      %s354 = sphi 0, %s352
      %s355 = sphi 0, %s354
      %s369 = sphi 0, %s355
      %s373 = sphi 0, %s373
      %s375 = sphi 0, %s373
      %s376 = sphi 0, %s375
      %s390 = sphi 0, %s376
      %s394 = sphi 0, %s394
      %s396 = sphi 0, %s394
      %s397 = sphi 0, %s396
      %s411 = sphi 0, %s397
      %s415 = sphi 0, %s415
      %s417 = sphi 0, %s415
      %s418 = sphi 0, %s417
      %s432 = sphi 0, %s418
      %s436 = sphi 0, %s436
      %s438 = sphi 0, %s436
      %s439 = sphi 0, %s438
      %s453 = sphi 0, %s439
      %s457 = sphi 0, %s457
      %s459 = sphi 0, %s457
      %s460 = sphi 0, %s459
      %s474 = sphi 0, %s460
      %s480 = sphi 0, %s482
      %s483 = sphi 0, %s480
      %s484 = sphi 0, %s483
      %s500 = sphi 0, %s484
      %s506 = sphi 0, %s508
      %s509 = sphi 0, %s506
      %s510 = sphi 0, %s509
      %s526 = sphi 0, %s510
    $region4: #{tpu_custom_call.1} parent=1 // loop_header_branch
      %43 = sbr.rel (%p41) target = $region8
    $region5: #{tpu_custom_call.1} parent=1 // loop_body
      %s45 = ssub.s32 %s40, 1
      %s46 = ssub.s32 %s40, 2
      %s47 = sadd.s32 %s40, 1
      %s48 = ssub.s32 %s40, %s47
      %p49 = scmp.eq.s32.totalorder %s48, 0
      %s51 = sadd.s32 %s50, 1
      %s52 = scalar_select %p49, %s50, %s51
      %p55 = pneg %p49
      %p56 = scmp.eq.s32.totalorder %s40, 1
      %p57 = por %p55, %p56
      %p58 = scmp.ne.s32.totalorder %s50, %s53
      %p59 = scmp.eq.s32.totalorder %s40, 0
      %p60 = por %p58, %p59
      %p61 = scmp.ne.s32.totalorder %s50, %s53
      %p62 = scmp.eq.s32.totalorder %s45, 1
      %p63 = por %p61, %p62
      %p64 = scmp.ne.s32.totalorder %s53, %s54
      %p65 = scmp.eq.s32.totalorder %s45, 0
      %p66 = por %p64, %p65
      %p67 = scmp.ne.s32.totalorder %s53, %s54
      %p68 = scmp.eq.s32.totalorder %s46, 1
      %p69 = por %p67, %p68
      %p71 = scmp.ne.s32.totalorder %s54, %s70
      %p72 = scmp.eq.s32.totalorder %s46, 0
      %p73 = por %p71, %p72
      %s74 = ssub.s32 %s40, %s47
      %p75 = scmp.eq.s32.totalorder %s74, 0
      %s77 = sadd.s32 %s76, 1
      %s78 = scalar_select %p75, %s76, %s77
      %p81 = pneg %p75
      %p82 = scmp.eq.s32.totalorder %s40, 1
      %p83 = por %p81, %p82
      %p84 = scmp.ne.s32.totalorder %s76, %s79
      %p85 = scmp.eq.s32.totalorder %s40, 0
      %p86 = por %p84, %p85
      %p87 = scmp.ne.s32.totalorder %s76, %s79
      %p88 = scmp.eq.s32.totalorder %s45, 1
      %p89 = por %p87, %p88
      %p90 = scmp.ne.s32.totalorder %s79, %s80
      %p91 = scmp.eq.s32.totalorder %s45, 0
      %p92 = por %p90, %p91
      %p93 = scmp.ne.s32.totalorder %s79, %s80
      %p94 = scmp.eq.s32.totalorder %s46, 1
      %p95 = por %p93, %p94
      %p97 = scmp.ne.s32.totalorder %s80, %s96
      %p98 = scmp.eq.s32.totalorder %s46, 0
      %p99 = por %p97, %p98
      %s101 = sadd.s32 %s100, 1
      %p104 = scmp.eq.s32.totalorder %s40, 1
      %p105 = scmp.ne.s32.totalorder %s100, %s102
      %p106 = scmp.eq.s32.totalorder %s40, 0
      %p107 = por %p105, %p106
      %p108 = scmp.ne.s32.totalorder %s100, %s102
      %p109 = scmp.eq.s32.totalorder %s45, 1
      %p110 = por %p108, %p109
      %p111 = scmp.ne.s32.totalorder %s102, %s103
      %p112 = scmp.eq.s32.totalorder %s45, 0
      %p113 = por %p111, %p112
      %p114 = scmp.ne.s32.totalorder %s102, %s103
      %p115 = scmp.eq.s32.totalorder %s46, 1
      %p116 = por %p114, %p115
      %p118 = scmp.ne.s32.totalorder %s103, %s117
      %p119 = scmp.eq.s32.totalorder %s46, 0
      %p120 = por %p118, %p119
      %s122 = sadd.s32 %s121, 1
      %p125 = scmp.eq.s32.totalorder %s40, 1
      %p126 = scmp.ne.s32.totalorder %s121, %s123
      %p127 = scmp.eq.s32.totalorder %s40, 0
      %p128 = por %p126, %p127
      %p129 = scmp.ne.s32.totalorder %s121, %s123
      %p130 = scmp.eq.s32.totalorder %s45, 1
      %p131 = por %p129, %p130
      %p132 = scmp.ne.s32.totalorder %s123, %s124
      %p133 = scmp.eq.s32.totalorder %s45, 0
      %p134 = por %p132, %p133
      %p135 = scmp.ne.s32.totalorder %s123, %s124
      %p136 = scmp.eq.s32.totalorder %s46, 1
      %p137 = por %p135, %p136
      %p139 = scmp.ne.s32.totalorder %s124, %s138
      %p140 = scmp.eq.s32.totalorder %s46, 0
      %p141 = por %p139, %p140
      %s143 = sadd.s32 %s142, 1
      %p146 = scmp.eq.s32.totalorder %s40, 1
      %p147 = scmp.ne.s32.totalorder %s142, %s144
      %p148 = scmp.eq.s32.totalorder %s40, 0
      %p149 = por %p147, %p148
      %p150 = scmp.ne.s32.totalorder %s142, %s144
      %p151 = scmp.eq.s32.totalorder %s45, 1
      %p152 = por %p150, %p151
      %p153 = scmp.ne.s32.totalorder %s144, %s145
      %p154 = scmp.eq.s32.totalorder %s45, 0
      %p155 = por %p153, %p154
      %p156 = scmp.ne.s32.totalorder %s144, %s145
      %p157 = scmp.eq.s32.totalorder %s46, 1
      %p158 = por %p156, %p157
      %p160 = scmp.ne.s32.totalorder %s145, %s159
      %p161 = scmp.eq.s32.totalorder %s46, 0
      %p162 = por %p160, %p161
      %s164 = sadd.s32 %s163, 1
      %p167 = scmp.eq.s32.totalorder %s40, 1
      %p168 = scmp.ne.s32.totalorder %s163, %s165
      %p169 = scmp.eq.s32.totalorder %s40, 0
      %p170 = por %p168, %p169
      %p171 = scmp.ne.s32.totalorder %s163, %s165
      %p172 = scmp.eq.s32.totalorder %s45, 1
      %p173 = por %p171, %p172
      %p174 = scmp.ne.s32.totalorder %s165, %s166
      %p175 = scmp.eq.s32.totalorder %s45, 0
      %p176 = por %p174, %p175
      %p177 = scmp.ne.s32.totalorder %s165, %s166
      %p178 = scmp.eq.s32.totalorder %s46, 1
      %p179 = por %p177, %p178
      %p181 = scmp.ne.s32.totalorder %s166, %s180
      %p182 = scmp.eq.s32.totalorder %s46, 0
      %p183 = por %p181, %p182
      %s185 = sadd.s32 %s184, 1
      %p188 = scmp.eq.s32.totalorder %s40, 1
      %p189 = scmp.ne.s32.totalorder %s184, %s186
      %p190 = scmp.eq.s32.totalorder %s40, 0
      %p191 = por %p189, %p190
      %p192 = scmp.ne.s32.totalorder %s184, %s186
      %p193 = scmp.eq.s32.totalorder %s45, 1
      %p194 = por %p192, %p193
      %p195 = scmp.ne.s32.totalorder %s186, %s187
      %p196 = scmp.eq.s32.totalorder %s45, 0
      %p197 = por %p195, %p196
      %p198 = scmp.ne.s32.totalorder %s186, %s187
      %p199 = scmp.eq.s32.totalorder %s46, 1
      %p200 = por %p198, %p199
      %p202 = scmp.ne.s32.totalorder %s187, %s201
      %p203 = scmp.eq.s32.totalorder %s46, 0
      %p204 = por %p202, %p203
      %s206 = sadd.s32 %s205, 1
      %p209 = scmp.eq.s32.totalorder %s40, 1
      %p210 = scmp.ne.s32.totalorder %s205, %s207
      %p211 = scmp.eq.s32.totalorder %s40, 0
      %p212 = por %p210, %p211
      %p213 = scmp.ne.s32.totalorder %s205, %s207
      %p214 = scmp.eq.s32.totalorder %s45, 1
      %p215 = por %p213, %p214
      %p216 = scmp.ne.s32.totalorder %s207, %s208
      %p217 = scmp.eq.s32.totalorder %s45, 0
      %p218 = por %p216, %p217
      %p219 = scmp.ne.s32.totalorder %s207, %s208
      %p220 = scmp.eq.s32.totalorder %s46, 1
      %p221 = por %p219, %p220
      %p223 = scmp.ne.s32.totalorder %s208, %s222
      %p224 = scmp.eq.s32.totalorder %s46, 0
      %p225 = por %p223, %p224
      %s227 = sadd.s32 %s226, 1
      %p230 = scmp.eq.s32.totalorder %s40, 1
      %p231 = scmp.ne.s32.totalorder %s226, %s228
      %p232 = scmp.eq.s32.totalorder %s40, 0
      %p233 = por %p231, %p232
      %p234 = scmp.ne.s32.totalorder %s226, %s228
      %p235 = scmp.eq.s32.totalorder %s45, 1
      %p236 = por %p234, %p235
      %p237 = scmp.ne.s32.totalorder %s228, %s229
      %p238 = scmp.eq.s32.totalorder %s45, 0
      %p239 = por %p237, %p238
      %p240 = scmp.ne.s32.totalorder %s228, %s229
      %p241 = scmp.eq.s32.totalorder %s46, 1
      %p242 = por %p240, %p241
      %p244 = scmp.ne.s32.totalorder %s229, %s243
      %p245 = scmp.eq.s32.totalorder %s46, 0
      %p246 = por %p244, %p245
      %s248 = sadd.s32 %s247, 1
      %p251 = scmp.eq.s32.totalorder %s40, 1
      %p252 = scmp.ne.s32.totalorder %s247, %s249
      %p253 = scmp.eq.s32.totalorder %s40, 0
      %p254 = por %p252, %p253
      %p255 = scmp.ne.s32.totalorder %s247, %s249
      %p256 = scmp.eq.s32.totalorder %s45, 1
      %p257 = por %p255, %p256
      %p258 = scmp.ne.s32.totalorder %s249, %s250
      %p259 = scmp.eq.s32.totalorder %s45, 0
      %p260 = por %p258, %p259
      %p261 = scmp.ne.s32.totalorder %s249, %s250
      %p262 = scmp.eq.s32.totalorder %s46, 1
      %p263 = por %p261, %p262
      %p265 = scmp.ne.s32.totalorder %s250, %s264
      %p266 = scmp.eq.s32.totalorder %s46, 0
      %p267 = por %p265, %p266
      %s269 = sadd.s32 %s268, 1
      %p272 = scmp.eq.s32.totalorder %s40, 1
      %p273 = scmp.ne.s32.totalorder %s268, %s270
      %p274 = scmp.eq.s32.totalorder %s40, 0
      %p275 = por %p273, %p274
      %p276 = scmp.ne.s32.totalorder %s268, %s270
      %p277 = scmp.eq.s32.totalorder %s45, 1
      %p278 = por %p276, %p277
      %p279 = scmp.ne.s32.totalorder %s270, %s271
      %p280 = scmp.eq.s32.totalorder %s45, 0
      %p281 = por %p279, %p280
      %p282 = scmp.ne.s32.totalorder %s270, %s271
      %p283 = scmp.eq.s32.totalorder %s46, 1
      %p284 = por %p282, %p283
      %p286 = scmp.ne.s32.totalorder %s271, %s285
      %p287 = scmp.eq.s32.totalorder %s46, 0
      %p288 = por %p286, %p287
      %s290 = sadd.s32 %s289, 1
      %p293 = scmp.eq.s32.totalorder %s40, 1
      %p294 = scmp.ne.s32.totalorder %s289, %s291
      %p295 = scmp.eq.s32.totalorder %s40, 0
      %p296 = por %p294, %p295
      %p297 = scmp.ne.s32.totalorder %s289, %s291
      %p298 = scmp.eq.s32.totalorder %s45, 1
      %p299 = por %p297, %p298
      %p300 = scmp.ne.s32.totalorder %s291, %s292
      %p301 = scmp.eq.s32.totalorder %s45, 0
      %p302 = por %p300, %p301
      %p303 = scmp.ne.s32.totalorder %s291, %s292
      %p304 = scmp.eq.s32.totalorder %s46, 1
      %p305 = por %p303, %p304
      %p307 = scmp.ne.s32.totalorder %s292, %s306
      %p308 = scmp.eq.s32.totalorder %s46, 0
      %p309 = por %p307, %p308
      %s311 = sadd.s32 %s310, 1
      %p314 = scmp.eq.s32.totalorder %s40, 1
      %p315 = scmp.ne.s32.totalorder %s310, %s312
      %p316 = scmp.eq.s32.totalorder %s40, 0
      %p317 = por %p315, %p316
      %p318 = scmp.ne.s32.totalorder %s310, %s312
      %p319 = scmp.eq.s32.totalorder %s45, 1
      %p320 = por %p318, %p319
      %p321 = scmp.ne.s32.totalorder %s312, %s313
      %p322 = scmp.eq.s32.totalorder %s45, 0
      %p323 = por %p321, %p322
      %p324 = scmp.ne.s32.totalorder %s312, %s313
      %p325 = scmp.eq.s32.totalorder %s46, 1
      %p326 = por %p324, %p325
      %p328 = scmp.ne.s32.totalorder %s313, %s327
      %p329 = scmp.eq.s32.totalorder %s46, 0
      %p330 = por %p328, %p329
      %s332 = sadd.s32 %s331, 1
      %p335 = scmp.eq.s32.totalorder %s40, 1
      %p336 = scmp.ne.s32.totalorder %s331, %s333
      %p337 = scmp.eq.s32.totalorder %s40, 0
      %p338 = por %p336, %p337
      %p339 = scmp.ne.s32.totalorder %s331, %s333
      %p340 = scmp.eq.s32.totalorder %s45, 1
      %p341 = por %p339, %p340
      %p342 = scmp.ne.s32.totalorder %s333, %s334
      %p343 = scmp.eq.s32.totalorder %s45, 0
      %p344 = por %p342, %p343
      %p345 = scmp.ne.s32.totalorder %s333, %s334
      %p346 = scmp.eq.s32.totalorder %s46, 1
      %p347 = por %p345, %p346
      %p349 = scmp.ne.s32.totalorder %s334, %s348
      %p350 = scmp.eq.s32.totalorder %s46, 0
      %p351 = por %p349, %p350
      %s353 = sadd.s32 %s352, 1
      %p356 = scmp.eq.s32.totalorder %s40, 1
      %p357 = scmp.ne.s32.totalorder %s352, %s354
      %p358 = scmp.eq.s32.totalorder %s40, 0
      %p359 = por %p357, %p358
      %p360 = scmp.ne.s32.totalorder %s352, %s354
      %p361 = scmp.eq.s32.totalorder %s45, 1
      %p362 = por %p360, %p361
      %p363 = scmp.ne.s32.totalorder %s354, %s355
      %p364 = scmp.eq.s32.totalorder %s45, 0
      %p365 = por %p363, %p364
      %p366 = scmp.ne.s32.totalorder %s354, %s355
      %p367 = scmp.eq.s32.totalorder %s46, 1
      %p368 = por %p366, %p367
      %p370 = scmp.ne.s32.totalorder %s355, %s369
      %p371 = scmp.eq.s32.totalorder %s46, 0
      %p372 = por %p370, %p371
      %s374 = sadd.s32 %s373, 1
      %p377 = scmp.eq.s32.totalorder %s40, 1
      %p378 = scmp.ne.s32.totalorder %s373, %s375
      %p379 = scmp.eq.s32.totalorder %s40, 0
      %p380 = por %p378, %p379
      %p381 = scmp.ne.s32.totalorder %s373, %s375
      %p382 = scmp.eq.s32.totalorder %s45, 1
      %p383 = por %p381, %p382
      %p384 = scmp.ne.s32.totalorder %s375, %s376
      %p385 = scmp.eq.s32.totalorder %s45, 0
      %p386 = por %p384, %p385
      %p387 = scmp.ne.s32.totalorder %s375, %s376
      %p388 = scmp.eq.s32.totalorder %s46, 1
      %p389 = por %p387, %p388
      %p391 = scmp.ne.s32.totalorder %s376, %s390
      %p392 = scmp.eq.s32.totalorder %s46, 0
      %p393 = por %p391, %p392
      %s395 = sadd.s32 %s394, 1
      %p398 = scmp.eq.s32.totalorder %s40, 1
      %p399 = scmp.ne.s32.totalorder %s394, %s396
      %p400 = scmp.eq.s32.totalorder %s40, 0
      %p401 = por %p399, %p400
      %p402 = scmp.ne.s32.totalorder %s394, %s396
      %p403 = scmp.eq.s32.totalorder %s45, 1
      %p404 = por %p402, %p403
      %p405 = scmp.ne.s32.totalorder %s396, %s397
      %p406 = scmp.eq.s32.totalorder %s45, 0
      %p407 = por %p405, %p406
      %p408 = scmp.ne.s32.totalorder %s396, %s397
      %p409 = scmp.eq.s32.totalorder %s46, 1
      %p410 = por %p408, %p409
      %p412 = scmp.ne.s32.totalorder %s397, %s411
      %p413 = scmp.eq.s32.totalorder %s46, 0
      %p414 = por %p412, %p413
      %s416 = sadd.s32 %s415, 1
      %p419 = scmp.eq.s32.totalorder %s40, 1
      %p420 = scmp.ne.s32.totalorder %s415, %s417
      %p421 = scmp.eq.s32.totalorder %s40, 0
      %p422 = por %p420, %p421
      %p423 = scmp.ne.s32.totalorder %s415, %s417
      %p424 = scmp.eq.s32.totalorder %s45, 1
      %p425 = por %p423, %p424
      %p426 = scmp.ne.s32.totalorder %s417, %s418
      %p427 = scmp.eq.s32.totalorder %s45, 0
      %p428 = por %p426, %p427
      %p429 = scmp.ne.s32.totalorder %s417, %s418
      %p430 = scmp.eq.s32.totalorder %s46, 1
      %p431 = por %p429, %p430
      %p433 = scmp.ne.s32.totalorder %s418, %s432
      %p434 = scmp.eq.s32.totalorder %s46, 0
      %p435 = por %p433, %p434
      %s437 = sadd.s32 %s436, 1
      %p440 = scmp.eq.s32.totalorder %s40, 1
      %p441 = scmp.ne.s32.totalorder %s436, %s438
      %p442 = scmp.eq.s32.totalorder %s40, 0
      %p443 = por %p441, %p442
      %p444 = scmp.ne.s32.totalorder %s436, %s438
      %p445 = scmp.eq.s32.totalorder %s45, 1
      %p446 = por %p444, %p445
      %p447 = scmp.ne.s32.totalorder %s438, %s439
      %p448 = scmp.eq.s32.totalorder %s45, 0
      %p449 = por %p447, %p448
      %p450 = scmp.ne.s32.totalorder %s438, %s439
      %p451 = scmp.eq.s32.totalorder %s46, 1
      %p452 = por %p450, %p451
      %p454 = scmp.ne.s32.totalorder %s439, %s453
      %p455 = scmp.eq.s32.totalorder %s46, 0
      %p456 = por %p454, %p455
      %s458 = sadd.s32 %s457, 1
      %p461 = scmp.eq.s32.totalorder %s40, 1
      %p462 = scmp.ne.s32.totalorder %s457, %s459
      %p463 = scmp.eq.s32.totalorder %s40, 0
      %p464 = por %p462, %p463
      %p465 = scmp.ne.s32.totalorder %s457, %s459
      %p466 = scmp.eq.s32.totalorder %s45, 1
      %p467 = por %p465, %p466
      %p468 = scmp.ne.s32.totalorder %s459, %s460
      %p469 = scmp.eq.s32.totalorder %s45, 0
      %p470 = por %p468, %p469
      %p471 = scmp.ne.s32.totalorder %s459, %s460
      %p472 = scmp.eq.s32.totalorder %s46, 1
      %p473 = por %p471, %p472
      %p475 = scmp.ne.s32.totalorder %s460, %s474
      %p476 = scmp.eq.s32.totalorder %s46, 0
      %p477 = por %p475, %p476
      %s478 = ssub.s32 %s40, %s47
      %p479 = scmp.eq.s32.totalorder %s478, 0
      %s481 = sadd.s32 %s480, 1
      %s482 = scalar_select %p479, %s480, %s481
      %p485 = pneg %p479
      %p486 = scmp.eq.s32.totalorder %s40, 1
      %p487 = por %p485, %p486
      %p488 = scmp.ne.s32.totalorder %s480, %s483
      %p489 = scmp.eq.s32.totalorder %s40, 0
      %p490 = por %p488, %p489
      %p491 = scmp.ne.s32.totalorder %s480, %s483
      %p492 = scmp.eq.s32.totalorder %s45, 1
      %p493 = por %p491, %p492
      %p494 = scmp.ne.s32.totalorder %s483, %s484
      %p495 = scmp.eq.s32.totalorder %s45, 0
      %p496 = por %p494, %p495
      %p497 = scmp.ne.s32.totalorder %s483, %s484
      %p498 = scmp.eq.s32.totalorder %s46, 1
      %p499 = por %p497, %p498
      %p501 = scmp.ne.s32.totalorder %s484, %s500
      %p502 = scmp.eq.s32.totalorder %s46, 0
      %p503 = por %p501, %p502
      %s504 = ssub.s32 %s40, %s47
      %p505 = scmp.eq.s32.totalorder %s504, 0
      %s507 = sadd.s32 %s506, 1
      %s508 = scalar_select %p505, %s506, %s507
      %p511 = pneg %p505
      %p512 = scmp.eq.s32.totalorder %s40, 1
      %p513 = por %p511, %p512
      %p514 = scmp.ne.s32.totalorder %s506, %s509
      %p515 = scmp.eq.s32.totalorder %s40, 0
      %p516 = por %p514, %p515
      %p517 = scmp.ne.s32.totalorder %s506, %s509
      %p518 = scmp.eq.s32.totalorder %s45, 1
      %p519 = por %p517, %p518
      %p520 = scmp.ne.s32.totalorder %s509, %s510
      %p521 = scmp.eq.s32.totalorder %s45, 0
      %p522 = por %p520, %p521
      %p523 = scmp.ne.s32.totalorder %s509, %s510
      %p524 = scmp.eq.s32.totalorder %s46, 1
      %p525 = por %p523, %p524
      %p527 = scmp.ne.s32.totalorder %s510, %s526
      %p528 = scmp.eq.s32.totalorder %s46, 0
      %p529 = por %p527, %p528
      %p530 = scmp.le.s32.totalorder 1, %s40
      %p531 = scmp.lt.s32.totalorder %s40, 3
      %p532 = pnand %p530, %p531
      %p533 = pneg %p532
      // Predicated region
      $region9: #{tpu_custom_call.1} parent=5 // pred_check
        _
      $region10: #{tpu_custom_call.1} parent=5 // pred_check_branch
        %535 = sbr.rel (%p532) target = $region12
      $region11: #{tpu_custom_call.1} parent=5 // pred_region
        %s536 = ssub.s32 %s40, 1
        // Predicated region
        $region13: #{tpu_custom_call.1} parent=11 // pred_check
          %p537 = pneg %p113
        $region14: #{tpu_custom_call.1} parent=11 // pred_check_branch
          %539 = sbr.rel (%p537) target = $region16
        $region15: #{tpu_custom_call.1} parent=11 // pred_region
          %s541 = ssub.s32 16, 16
          %542 = vsyncadd [#allocation7], %s541
          %s544 = sshll.u32 [#allocation8], 4
          %s545 = int_to_ptr.vmem [resolvable:$true] %s544
          %547 = dma.hbm_to_vmem [thread:$0]  %s2, 16, %s545, [#allocation7]
        $region16: #{tpu_custom_call.1} parent=11 // pred_fallthru
          _
        // Predicated region
        $region17: #{tpu_custom_call.1} parent=11 // pred_check
          %p548 = pneg %p134
        $region18: #{tpu_custom_call.1} parent=11 // pred_check_branch
          %550 = sbr.rel (%p548) target = $region20
        $region19: #{tpu_custom_call.1} parent=11 // pred_region
          %s552 = ssub.s32 16, 16
          %553 = vsyncadd [#allocation10], %s552
          %s555 = sshll.u32 [#allocation9], 4
          %s556 = int_to_ptr.vmem [resolvable:$true] %s555
          %558 = dma.hbm_to_vmem [thread:$0]  %s3, 16, %s556, [#allocation10]
        $region20: #{tpu_custom_call.1} parent=11 // pred_fallthru
          _
        // Predicated region
        $region21: #{tpu_custom_call.1} parent=11 // pred_check
          %p559 = pneg %p155
        $region22: #{tpu_custom_call.1} parent=11 // pred_check_branch
          %561 = sbr.rel (%p559) target = $region24
        $region23: #{tpu_custom_call.1} parent=11 // pred_region
          %s563 = ssub.s32 16, 16
          %564 = vsyncadd [#allocation10], %s563
          %s566 = sshll.u32 [#allocation11], 4
          %s567 = int_to_ptr.vmem [resolvable:$true] %s566
          %569 = dma.hbm_to_vmem [thread:$0]  %s4, 16, %s567, [#allocation10]
        $region24: #{tpu_custom_call.1} parent=11 // pred_fallthru
          _
        // Predicated region
        $region25: #{tpu_custom_call.1} parent=11 // pred_check
          %p570 = pneg %p176
        $region26: #{tpu_custom_call.1} parent=11 // pred_check_branch
          %572 = sbr.rel (%p570) target = $region28
        $region27: #{tpu_custom_call.1} parent=11 // pred_region
          %s574 = ssub.s32 16, 16
          %575 = vsyncadd [#allocation13], %s574
          %s577 = sshll.u32 [#allocation12], 4
          %s578 = int_to_ptr.vmem [resolvable:$true] %s577
          %580 = dma.hbm_to_vmem [thread:$0]  %s5, 16, %s578, [#allocation13]
        $region28: #{tpu_custom_call.1} parent=11 // pred_fallthru
          _
        // Predicated region
        $region29: #{tpu_custom_call.1} parent=11 // pred_check
          %p581 = pneg %p197
        $region30: #{tpu_custom_call.1} parent=11 // pred_check_branch
          %583 = sbr.rel (%p581) target = $region32
        $region31: #{tpu_custom_call.1} parent=11 // pred_region
          _
        $region32: #{tpu_custom_call.1} parent=11 // pred_fallthru
          _
        // Predicated region
        $region33: #{tpu_custom_call.1} parent=11 // pred_check
          %p584 = pneg %p218
        $region34: #{tpu_custom_call.1} parent=11 // pred_check_branch
          %586 = sbr.rel (%p584) target = $region36
        $region35: #{tpu_custom_call.1} parent=11 // pred_region
          _
        $region36: #{tpu_custom_call.1} parent=11 // pred_fallthru
          _
        // Predicated region
        $region37: #{tpu_custom_call.1} parent=11 // pred_check
          %p587 = pneg %p239
        $region38: #{tpu_custom_call.1} parent=11 // pred_check_branch
          %589 = sbr.rel (%p587) target = $region40
        $region39: #{tpu_custom_call.1} parent=11 // pred_region
          _
        $region40: #{tpu_custom_call.1} parent=11 // pred_fallthru
          _
        // Predicated region
        $region41: #{tpu_custom_call.1} parent=11 // pred_check
          %p590 = pneg %p260
        $region42: #{tpu_custom_call.1} parent=11 // pred_check_branch
          %592 = sbr.rel (%p590) target = $region44
        $region43: #{tpu_custom_call.1} parent=11 // pred_region
          %s594 = ssub.s32 16, 16
          %595 = vsyncadd [#allocation13], %s594
          %s597 = sshll.u32 [#allocation14], 4
          %s598 = int_to_ptr.vmem [resolvable:$true] %s597
          %600 = dma.hbm_to_vmem [thread:$0]  %s9, 16, %s598, [#allocation13]
        $region44: #{tpu_custom_call.1} parent=11 // pred_fallthru
          _
        // Predicated region
        $region45: #{tpu_custom_call.1} parent=11 // pred_check
          %p601 = pneg %p281
        $region46: #{tpu_custom_call.1} parent=11 // pred_check_branch
          %603 = sbr.rel (%p601) target = $region48
        $region47: #{tpu_custom_call.1} parent=11 // pred_region
          %s605 = ssub.s32 256, 256
          %606 = vsyncadd [#allocation16], %s605
          %s607 = sshll.u32 [#allocation15], 4
          %s608 = int_to_ptr.vmem [resolvable:$true] %s607
          %613 = dma.hbm_to_vmem [thread:$0]  %s10, 256, %s608, [#allocation16], 64, 64, 4
        $region48: #{tpu_custom_call.1} parent=11 // pred_fallthru
          _
        // Predicated region
        $region49: #{tpu_custom_call.1} parent=11 // pred_check
          %p614 = pneg %p302
        $region50: #{tpu_custom_call.1} parent=11 // pred_check_branch
          %616 = sbr.rel (%p614) target = $region52
        $region51: #{tpu_custom_call.1} parent=11 // pred_region
          %s618 = ssub.s32 16, 16
          %619 = vsyncadd [#allocation16], %s618
          %s621 = sshll.u32 [#allocation17], 4
          %s622 = int_to_ptr.vmem [resolvable:$true] %s621
          %624 = dma.hbm_to_vmem [thread:$0]  %s11, 16, %s622, [#allocation16]
        $region52: #{tpu_custom_call.1} parent=11 // pred_fallthru
          _
        // Predicated region
        $region53: #{tpu_custom_call.1} parent=11 // pred_check
          %p625 = pneg %p323
        $region54: #{tpu_custom_call.1} parent=11 // pred_check_branch
          %627 = sbr.rel (%p625) target = $region56
        $region55: #{tpu_custom_call.1} parent=11 // pred_region
          _
        $region56: #{tpu_custom_call.1} parent=11 // pred_fallthru
          _
        // Predicated region
        $region57: #{tpu_custom_call.1} parent=11 // pred_check
          %p628 = pneg %p344
        $region58: #{tpu_custom_call.1} parent=11 // pred_check_branch
          %630 = sbr.rel (%p628) target = $region60
        $region59: #{tpu_custom_call.1} parent=11 // pred_region
          %s632 = ssub.s32 2304, 2304
          %633 = vsyncadd [#allocation19], %s632
          %s634 = sshll.u32 [#allocation18], 4
          %s635 = int_to_ptr.vmem [resolvable:$true] %s634
          %640 = dma.hbm_to_vmem [thread:$0]  %s13, 2304, %s635, [#allocation19], 64, 64, 4
        $region60: #{tpu_custom_call.1} parent=11 // pred_fallthru
          _
        // Predicated region
        $region61: #{tpu_custom_call.1} parent=11 // pred_check
          %p641 = pneg %p365
        $region62: #{tpu_custom_call.1} parent=11 // pred_check_branch
          %643 = sbr.rel (%p641) target = $region64
        $region63: #{tpu_custom_call.1} parent=11 // pred_region
          %s645 = ssub.s32 2304, 2304
          %646 = vsyncadd [#allocation19], %s645
          %s647 = sshll.u32 [#allocation20], 4
          %s648 = int_to_ptr.vmem [resolvable:$true] %s647
          %653 = dma.hbm_to_vmem [thread:$0]  %s14, 2304, %s648, [#allocation19], 64, 64, 4
        $region64: #{tpu_custom_call.1} parent=11 // pred_fallthru
          _
        // Predicated region
        $region65: #{tpu_custom_call.1} parent=11 // pred_check
          %p654 = pneg %p386
        $region66: #{tpu_custom_call.1} parent=11 // pred_check_branch
          %656 = sbr.rel (%p654) target = $region68
        $region67: #{tpu_custom_call.1} parent=11 // pred_region
          %s658 = ssub.s32 2304, 2304
          %659 = vsyncadd [#allocation22], %s658
          %s660 = sshll.u32 [#allocation21], 4
          %s661 = int_to_ptr.vmem [resolvable:$true] %s660
          %666 = dma.hbm_to_vmem [thread:$0]  %s15, 2304, %s661, [#allocation22], 64, 64, 4
        $region68: #{tpu_custom_call.1} parent=11 // pred_fallthru
          _
        // Predicated region
        $region69: #{tpu_custom_call.1} parent=11 // pred_check
          %p667 = pneg %p407
        $region70: #{tpu_custom_call.1} parent=11 // pred_check_branch
          %669 = sbr.rel (%p667) target = $region72
        $region71: #{tpu_custom_call.1} parent=11 // pred_region
          _
        $region72: #{tpu_custom_call.1} parent=11 // pred_fallthru
          _
        // Predicated region
        $region73: #{tpu_custom_call.1} parent=11 // pred_check
          %p670 = pneg %p428
        $region74: #{tpu_custom_call.1} parent=11 // pred_check_branch
          %672 = sbr.rel (%p670) target = $region76
        $region75: #{tpu_custom_call.1} parent=11 // pred_region
          _
        $region76: #{tpu_custom_call.1} parent=11 // pred_fallthru
          _
        // Predicated region
        $region77: #{tpu_custom_call.1} parent=11 // pred_check
          %p673 = pneg %p449
        $region78: #{tpu_custom_call.1} parent=11 // pred_check_branch
          %675 = sbr.rel (%p673) target = $region80
        $region79: #{tpu_custom_call.1} parent=11 // pred_region
          %s677 = ssub.s32 256, 256
          %678 = vsyncadd [#allocation22], %s677
          %s679 = sshll.u32 [#allocation23], 4
          %s680 = int_to_ptr.vmem [resolvable:$true] %s679
          %685 = dma.hbm_to_vmem [thread:$0]  %s18, 256, %s680, [#allocation22], 64, 64, 4
        $region80: #{tpu_custom_call.1} parent=11 // pred_fallthru
          _
        // Predicated region
        $region81: #{tpu_custom_call.1} parent=11 // pred_check
          %p686 = pneg %p470
        $region82: #{tpu_custom_call.1} parent=11 // pred_check_branch
          %688 = sbr.rel (%p686) target = $region84
        $region83: #{tpu_custom_call.1} parent=11 // pred_region
          %s690 = ssub.s32 256, 256
          %691 = vsyncadd [#allocation25], %s690
          %s692 = sshll.u32 [#allocation24], 4
          %s693 = int_to_ptr.vmem [resolvable:$true] %s692
          %698 = dma.hbm_to_vmem [thread:$0]  %s19, 256, %s693, [#allocation25], 64, 64, 4
        $region84: #{tpu_custom_call.1} parent=11 // pred_fallthru
          _
      $region12: #{tpu_custom_call.1} parent=5 // pred_fallthru
        _
      %p699 = scmp.lt.s32.totalorder %s40, 2
      // Predicated region
      $region85: #{tpu_custom_call.1} parent=5 // pred_check
        %p700 = pneg %p699
      $region86: #{tpu_custom_call.1} parent=5 // pred_check_branch
        %702 = sbr.rel (%p700) target = $region88
      $region87: #{tpu_custom_call.1} parent=5 // pred_region
        // Predicated region
        $region89: #{tpu_custom_call.1} parent=87 // pred_check
          %p703 = pneg %p60
        $region90: #{tpu_custom_call.1} parent=87 // pred_check_branch
          %705 = sbr.rel (%p703) target = $region92
        $region91: #{tpu_custom_call.1} parent=87 // pred_region
          %s706 = sand.u32 %s50, 1
          %s707 = scalar_lea.sflag [#allocation5], %s706
          %s708 = sand.u32 %s50, 1
          %s709 = smul.addr %s708, 16
          %s710 = scalar_lea.vmem [#allocation4], %s709
          %s712 = ssub.s32 256, 256
          %713 = vsyncadd %s707, %s712
          %s714 = smul.addr %s40, 2
          %s715 = smul.addr %s714, 128
          %s716 = scalar_lea.hbm %s0, %s715
          %s717 = sshll.u32 %s710, 4
          %s718 = int_to_ptr.vmem [resolvable:$true] %s717
          %723 = dma.hbm_to_vmem [thread:$0]  %s716, 256, %s718, %s707, 128, 128, 8
        $region92: #{tpu_custom_call.1} parent=87 // pred_fallthru
          _
        // Predicated region
        $region93: #{tpu_custom_call.1} parent=87 // pred_check
          %p724 = pneg %p86
        $region94: #{tpu_custom_call.1} parent=87 // pred_check_branch
          %726 = sbr.rel (%p724) target = $region96
        $region95: #{tpu_custom_call.1} parent=87 // pred_region
          %s727 = sand.u32 %s40, 1
          %s728 = scalar_lea.sflag [#allocation7], %s727
          %s729 = sand.u32 %s76, 1
          %s730 = smul.addr %s729, 16
          %s731 = scalar_lea.vmem [#allocation6], %s730
          %s733 = ssub.s32 256, 256
          %734 = vsyncadd %s728, %s733
          %s735 = smul.addr %s40, 2
          %s736 = smul.addr %s735, 128
          %s737 = scalar_lea.hbm %s1, %s736
          %s738 = sshll.u32 %s731, 4
          %s739 = int_to_ptr.vmem [resolvable:$true] %s738
          %744 = dma.hbm_to_vmem [thread:$0]  %s737, 256, %s739, %s728, 128, 128, 8
        $region96: #{tpu_custom_call.1} parent=87 // pred_fallthru
          _
      $region88: #{tpu_custom_call.1} parent=5 // pred_fallthru
        _
      %p745 = scmp.le.s32.totalorder 1, %s40
      %p746 = scmp.lt.s32.totalorder %s40, 3
      %p747 = pnand %p745, %p746
      %p748 = pneg %p747
      // Predicated region
      $region97: #{tpu_custom_call.1} parent=5 // pred_check
        _
      $region98: #{tpu_custom_call.1} parent=5 // pred_check_branch
        %750 = sbr.rel (%p747) target = $region100
      $region99: #{tpu_custom_call.1} parent=5 // pred_region
        %s751 = ssub.s32 %s40, 1
        %s752 = sand.u32 %s53, 1
        %s753 = scalar_lea.sflag [#allocation5], %s752
        %s754 = sand.u32 %s53, 1
        %s755 = smul.addr %s754, 16
        %s756 = scalar_lea.vmem [#allocation4], %s755
        // Predicated region
        $region101: #{tpu_custom_call.1} parent=99 // pred_check
          %p757 = pneg %p66
        $region102: #{tpu_custom_call.1} parent=99 // pred_check_branch
          %759 = sbr.rel (%p757) target = $region104
        $region103: #{tpu_custom_call.1} parent=99 // pred_region
          %760 = dma.done %s753, 256
        $region104: #{tpu_custom_call.1} parent=99 // pred_fallthru
          _
        %s761 = sand.u32 %s45, 1
        %s762 = scalar_lea.sflag [#allocation7], %s761
        %s763 = sand.u32 %s79, 1
        %s764 = smul.addr %s763, 16
        %s765 = scalar_lea.vmem [#allocation6], %s764
        // Predicated region
        $region105: #{tpu_custom_call.1} parent=99 // pred_check
          %p766 = pneg %p92
        $region106: #{tpu_custom_call.1} parent=99 // pred_check_branch
          %768 = sbr.rel (%p766) target = $region108
        $region107: #{tpu_custom_call.1} parent=99 // pred_region
          %769 = dma.done %s762, 256
        $region108: #{tpu_custom_call.1} parent=99 // pred_fallthru
          _
        // Predicated region
        $region109: #{tpu_custom_call.1} parent=99 // pred_check
          %p770 = pneg %p113
        $region110: #{tpu_custom_call.1} parent=99 // pred_check_branch
          %772 = sbr.rel (%p770) target = $region112
        $region111: #{tpu_custom_call.1} parent=99 // pred_region
          %773 = dma.done [#allocation7], 16
        $region112: #{tpu_custom_call.1} parent=99 // pred_fallthru
          _
        // Predicated region
        $region113: #{tpu_custom_call.1} parent=99 // pred_check
          %p774 = pneg %p134
        $region114: #{tpu_custom_call.1} parent=99 // pred_check_branch
          %776 = sbr.rel (%p774) target = $region116
        $region115: #{tpu_custom_call.1} parent=99 // pred_region
          %777 = dma.done [#allocation10], 16
        $region116: #{tpu_custom_call.1} parent=99 // pred_fallthru
          _
        // Predicated region
        $region117: #{tpu_custom_call.1} parent=99 // pred_check
          %p778 = pneg %p155
        $region118: #{tpu_custom_call.1} parent=99 // pred_check_branch
          %780 = sbr.rel (%p778) target = $region120
        $region119: #{tpu_custom_call.1} parent=99 // pred_region
          %781 = dma.done [#allocation10], 16
        $region120: #{tpu_custom_call.1} parent=99 // pred_fallthru
          _
        // Predicated region
        $region121: #{tpu_custom_call.1} parent=99 // pred_check
          %p782 = pneg %p176
        $region122: #{tpu_custom_call.1} parent=99 // pred_check_branch
          %784 = sbr.rel (%p782) target = $region124
        $region123: #{tpu_custom_call.1} parent=99 // pred_region
          %785 = dma.done [#allocation13], 16
        $region124: #{tpu_custom_call.1} parent=99 // pred_fallthru
          _
        // Predicated region
        $region125: #{tpu_custom_call.1} parent=99 // pred_check
          %p786 = pneg %p260
        $region126: #{tpu_custom_call.1} parent=99 // pred_check_branch
          %788 = sbr.rel (%p786) target = $region128
        $region127: #{tpu_custom_call.1} parent=99 // pred_region
          %789 = dma.done [#allocation13], 16
        $region128: #{tpu_custom_call.1} parent=99 // pred_fallthru
          _
        // Predicated region
        $region129: #{tpu_custom_call.1} parent=99 // pred_check
          %p790 = pneg %p281
        $region130: #{tpu_custom_call.1} parent=99 // pred_check_branch
          %792 = sbr.rel (%p790) target = $region132
        $region131: #{tpu_custom_call.1} parent=99 // pred_region
          %793 = dma.done [#allocation16], 256
        $region132: #{tpu_custom_call.1} parent=99 // pred_fallthru
          _
        // Predicated region
        $region133: #{tpu_custom_call.1} parent=99 // pred_check
          %p794 = pneg %p302
        $region134: #{tpu_custom_call.1} parent=99 // pred_check_branch
          %796 = sbr.rel (%p794) target = $region136
        $region135: #{tpu_custom_call.1} parent=99 // pred_region
          %797 = dma.done [#allocation16], 16
        $region136: #{tpu_custom_call.1} parent=99 // pred_fallthru
          _
        // Predicated region
        $region137: #{tpu_custom_call.1} parent=99 // pred_check
          %p798 = pneg %p344
        $region138: #{tpu_custom_call.1} parent=99 // pred_check_branch
          %800 = sbr.rel (%p798) target = $region140
        $region139: #{tpu_custom_call.1} parent=99 // pred_region
          %801 = dma.done [#allocation19], 2304
        $region140: #{tpu_custom_call.1} parent=99 // pred_fallthru
          _
        // Predicated region
        $region141: #{tpu_custom_call.1} parent=99 // pred_check
          %p802 = pneg %p365
        $region142: #{tpu_custom_call.1} parent=99 // pred_check_branch
          %804 = sbr.rel (%p802) target = $region144
        $region143: #{tpu_custom_call.1} parent=99 // pred_region
          %805 = dma.done [#allocation19], 2304
        $region144: #{tpu_custom_call.1} parent=99 // pred_fallthru
          _
        // Predicated region
        $region145: #{tpu_custom_call.1} parent=99 // pred_check
          %p806 = pneg %p386
        $region146: #{tpu_custom_call.1} parent=99 // pred_check_branch
          %808 = sbr.rel (%p806) target = $region148
        $region147: #{tpu_custom_call.1} parent=99 // pred_region
          %809 = dma.done [#allocation22], 2304
        $region148: #{tpu_custom_call.1} parent=99 // pred_fallthru
          _
        // Predicated region
        $region149: #{tpu_custom_call.1} parent=99 // pred_check
          %p810 = pneg %p449
        $region150: #{tpu_custom_call.1} parent=99 // pred_check_branch
          %812 = sbr.rel (%p810) target = $region152
        $region151: #{tpu_custom_call.1} parent=99 // pred_region
          %813 = dma.done [#allocation22], 256
        $region152: #{tpu_custom_call.1} parent=99 // pred_fallthru
          _
        // Predicated region
        $region153: #{tpu_custom_call.1} parent=99 // pred_check
          %p814 = pneg %p470
        $region154: #{tpu_custom_call.1} parent=99 // pred_check_branch
          %816 = sbr.rel (%p814) target = $region156
        $region155: #{tpu_custom_call.1} parent=99 // pred_region
          %817 = dma.done [#allocation25], 256
        $region156: #{tpu_custom_call.1} parent=99 // pred_fallthru
          _
        %s818 = sand.u32 %s53, 1
        %s819 = scalar_lea.sflag [#allocation5], %s818
        %s820 = sand.u32 %s53, 1
        %s821 = smul.addr %s820, 16
        %s822 = scalar_lea.vmem [#allocation4], %s821
        %p823 = pneg %p66
        %p824 = pneg %p63
        %s825 = sand.u32 %s45, 1
        %s826 = scalar_lea.sflag [#allocation7], %s825
        %s827 = sand.u32 %s79, 1
        %s828 = smul.addr %s827, 16
        %s829 = scalar_lea.vmem [#allocation6], %s828
        %p830 = pneg %p92
        %p831 = pneg %p89
        %p832 = pneg %p113
        %p833 = pneg %p110
        %p834 = pneg %p134
        %p835 = pneg %p131
        %p836 = pneg %p155
        %p837 = pneg %p152
        %p838 = pneg %p176
        %p839 = pneg %p173
        %p840 = pneg %p197
        %p841 = pneg %p194
        %p842 = pneg %p218
        %p843 = pneg %p215
        %p844 = pneg %p239
        %p845 = pneg %p236
        %p846 = pneg %p260
        %p847 = pneg %p257
        %p848 = pneg %p281
        %p849 = pneg %p278
        %p850 = pneg %p302
        %p851 = pneg %p299
        %p852 = pneg %p323
        %p853 = pneg %p320
        %p854 = pneg %p344
        %p855 = pneg %p341
        %p856 = pneg %p365
        %p857 = pneg %p362
        %p858 = pneg %p386
        %p859 = pneg %p383
        %p860 = pneg %p407
        %p861 = pneg %p404
        %p862 = pneg %p428
        %p863 = pneg %p425
        %p864 = pneg %p449
        %p865 = pneg %p446
        %p866 = pneg %p470
        %p867 = pneg %p467
        %p868 = pneg %p496
        %p869 = pneg %p493
        %p870 = scmp.lt.s32.totalorder %s45, 1
        %s871 = scalar_select %p870, %s45, 1
        %s872 = smul.addr %s871, 4
        %s873 = smul.addr %s872, 8
        %s874 = scalar_lea.vmem %s20, %s873
        %p875 = pneg %p522
        %p876 = pneg %p519
        %p877 = scmp.lt.s32.totalorder %s45, 1
        %s878 = scalar_select %p877, %s45, 1
        %s879 = smul.addr %s878, 4
        %s880 = smul.addr %s879, 8
        %s881 = scalar_lea.vmem %s21, %s880
        %p882 = scmp.lt.s32.totalorder %s45, 1
        %s883 = scalar_select %p882, %s45, 1
        %s884 = smul.addr %s883, 4
        %s885 = smul.addr %s884, 8
        %s886 = scalar_lea.vmem %s20, %s885
        %p887 = scmp.lt.s32.totalorder %s45, 1
        %s888 = scalar_select %p887, %s45, 1
        %s889 = smul.addr %s888, 4
        %s890 = smul.addr %s889, 8
        %s891 = scalar_lea.vmem %s21, %s890
        %v893 = vld [vmem:[%s756] sm:$0xff]
        %v894 = vld [vmem:[%s756 + $0x8] sm:$0xff]
        %v895 = vld [vmem:[%s765] sm:$0xff]
        %v896 = vld [vmem:[%s765 + $0x8] sm:$0xff]
        %v897 = vld [vmem:[#allocation8] sm:$0x1]
        %v898 = vld [vmem:[#allocation9] sm:$0x1]
        %vm899 = vcmask 261120
        %v900 = vsel %vm899, %v893, 0.0
        %901 = vadd.xlane.f32.xlu0 %v900
        %v902 = vpop.xlane.xlu0 %901
        %v903 = vsel %vm899, %v894, 0.0
        %904 = vadd.xlane.f32.xlu0 %v903
        %v905 = vpop.xlane.xlu0 %904
        %v906 = vrcp.pop 32.0
        %v907 = vmul.f32 %v902, %v906
        %v908 = vmul.f32 %v905, %v906
        %v909 = vsub.f32 %v893, %v907
        %v910 = vsub.f32 %v894, %v908
        %v911 = vmul.f32 %v909, %v909
        %v912 = vmul.f32 %v910, %v910
        %v913 = vsel %vm899, %v911, 0.0
        %914 = vadd.xlane.f32.xlu0 %v913
        %v915 = vpop.xlane.xlu0 %914
        %v916 = vsel %vm899, %v912, 0.0
        %917 = vadd.xlane.f32.xlu0 %v916
        %v918 = vpop.xlane.xlu0 %917
        %v919 = vmul.f32 %v915, %v906
        %v920 = vmul.f32 %v918, %v906
        %v921 = vadd.f32 %v919, 1e-06
        %v922 = vadd.f32 %v920, 1e-06
        %v923 = vrsqrt.pop %v921
        %v924 = vrsqrt.pop %v922
        %v925 = vmul.f32 %v909, %v923
        %v926 = vmul.f32 %v910, %v924
        %v928 = vlaneseq
        %v929 = vshrl.u32 %v928, 7
        %v930 = vsub.s32 0, %v929
        %v931 = vrot.slane %v897, %v930
        %v933 = vmul.f32 %v925, %v931
        %v934 = vmul.f32 %v926, %v931
        %v936 = vlaneseq
        %v937 = vshrl.u32 %v936, 7
        %v938 = vsub.s32 0, %v937
        %v939 = vrot.slane %v898, %v938
        %v941 = vadd.f32 %v933, %v939
        %v942 = vadd.f32 %v934, %v939
        %v943 = vld [vmem:[#allocation11] sm:$0x1]
        %v944 = vld [vmem:[#allocation12] sm:$0x1]
        %v945 = vsel %vm899, %v895, 0.0
        %946 = vadd.xlane.f32.xlu0 %v945
        %v947 = vpop.xlane.xlu0 %946
        %v948 = vsel %vm899, %v896, 0.0
        %949 = vadd.xlane.f32.xlu0 %v948
        %v950 = vpop.xlane.xlu0 %949
        %v951 = vmul.f32 %v947, %v906
        %v952 = vmul.f32 %v950, %v906
        %v953 = vsub.f32 %v895, %v951
        %v954 = vsub.f32 %v896, %v952
        %v955 = vmul.f32 %v953, %v953
        %v956 = vmul.f32 %v954, %v954
        %v957 = vsel %vm899, %v955, 0.0
        %958 = vadd.xlane.f32.xlu0 %v957
        %v959 = vpop.xlane.xlu0 %958
        %v960 = vsel %vm899, %v956, 0.0
        %961 = vadd.xlane.f32.xlu0 %v960
        %v962 = vpop.xlane.xlu0 %961
        %v963 = vmul.f32 %v959, %v906
        %v964 = vmul.f32 %v962, %v906
        %v965 = vadd.f32 %v963, 1e-06
        %v966 = vadd.f32 %v964, 1e-06
        %v967 = vrsqrt.pop %v965
        %v968 = vrsqrt.pop %v966
        %v969 = vmul.f32 %v953, %v967
        %v970 = vmul.f32 %v954, %v968
        %v972 = vlaneseq
        %v973 = vshrl.u32 %v972, 7
        %v974 = vsub.s32 0, %v973
        %v975 = vrot.slane %v943, %v974
        %v977 = vmul.f32 %v969, %v975
        %v978 = vmul.f32 %v970, %v975
        %v980 = vlaneseq
        %v981 = vshrl.u32 %v980, 7
        %v982 = vsub.s32 0, %v981
        %v983 = vrot.slane %v944, %v982
        %v985 = vadd.f32 %v977, %v983
        %v986 = vadd.f32 %v978, %v983
        %v987 = vld [vmem:[%s6] sm:$0xf]
        %v988 = vld [vmem:[%s6 + $0x4] sm:$0xf]
        %v989 = vld [vmem:[%s6 + $0x8] sm:$0xf]
        %v990 = vld [vmem:[%s6 + $0xc] sm:$0xf]
        %v991 = vld [vmem:[%s6 + $0x10] sm:$0xf]
        %v992 = vld [vmem:[%s6 + $0x14] sm:$0xf]
        %v993 = vld [vmem:[%s6 + $0x18] sm:$0xf]
        %v994 = vld [vmem:[%s6 + $0x1c] sm:$0xf]
        %v995 = vld [vmem:[%s6 + $0x20] sm:$0xf]
        %v996 = vld [vmem:[%s6 + $0x24] sm:$0xf]
        %v997 = vld [vmem:[%s6 + $0x28] sm:$0xf]
        %v998 = vld [vmem:[%s6 + $0x2c] sm:$0xf]
        %999 = vxpose.xlu0.b32.start [1/16] %v941, 128
        %1000 = vxpose.xlu0.b32.cont [2/16] %v942, 128
        %1001 = vxpose.xlu0.b32.cont [3/16] 0.0, 128
        %1002 = vxpose.xlu0.b32.cont [4/16] 0.0, 128
        %1003 = vxpose.xlu0.b32.cont [5/16] 0.0, 128
        %1004 = vxpose.xlu0.b32.cont [6/16] 0.0, 128
        %1005 = vxpose.xlu0.b32.cont [7/16] 0.0, 128
        %1006 = vxpose.xlu0.b32.cont [8/16] 0.0, 128
        %1007 = vxpose.xlu0.b32.cont [9/16] 0.0, 128
        %1008 = vxpose.xlu0.b32.cont [10/16] 0.0, 128
        %1009 = vxpose.xlu0.b32.cont [11/16] 0.0, 128
        %1010 = vxpose.xlu0.b32.cont [12/16] 0.0, 128
        %1011 = vxpose.xlu0.b32.cont [13/16] 0.0, 128
        %1012 = vxpose.xlu0.b32.cont [14/16] 0.0, 128
        %1013 = vxpose.xlu0.b32.cont [15/16] 0.0, 128
        %1014 = vxpose.xlu0.b32.end [16/16] 0.0, 128
        %v1015 = vpop.trf.xlu0
        %v1016 = vpop.trf.xlu0
        %v1017 = vpop.trf.xlu0
        %v1018 = vpop.trf.xlu0
        %v1019 = vpop.trf.xlu0
        %v1020 = vpop.trf.xlu0
        %v1021 = vpop.trf.xlu0
        %v1022 = vpop.trf.xlu0
        %v1023 = vpop.trf.xlu0
        %v1024 = vpop.trf.xlu0
        %v1025 = vpop.trf.xlu0
        %v1026 = vpop.trf.xlu0
        %v1027 = vpop.trf.xlu0
        %v1028 = vpop.trf.xlu0
        %v1029 = vpop.trf.xlu0
        %v1030 = vpop.trf.xlu0
        %v1031 = vpack.c.bf16 %v1016, %v1015
        %v1032 = vpack.c.bf16 %v1018, %v1017
        %v1045 = vunpack.c.l.b16 %v987
        %v1046 = vunpack.c.l.b16 %v988
        %v1047 = vunpack.c.l.b16 %v989
        %v1048 = vunpack.c.l.b16 %v990
        %v1049 = vunpack.c.l.b16 %v991
        %v1050 = vunpack.c.l.b16 %v992
        %v1051 = vunpack.c.l.b16 %v993
        %v1052 = vunpack.c.l.b16 %v994
        %v1053 = vunpack.c.l.b16 %v995
        %v1054 = vunpack.c.l.b16 %v996
        %v1055 = vunpack.c.l.b16 %v997
        %v1056 = vunpack.c.l.b16 %v998
        %v1057 = vpack.c.b16 %v1046, %v1045
        %v1058 = vpack.c.b16 %v1048, %v1047
        %v1059 = vpack.c.b16 %v1050, %v1049
        %v1060 = vpack.c.b16 %v1052, %v1051
        %v1061 = vpack.c.b16 %v1054, %v1053
        %v1062 = vpack.c.b16 %v1056, %v1055
        %v1064 = vsel %vm899, %v1057, 0
        %v1067 = vsel %vm899, %v1058, 0
        %v1070 = vsel %vm899, %v1059, 0
        %v1073 = vsel %vm899, %v1060, 0
        %v1076 = vsel %vm899, %v1061, 0
        %v1079 = vsel %vm899, %v1062, 0
        %1081 = vmatprep.subr.bf16.mxu0 0
        %1082 = vmatpush1.bf16.msra.mxu0 %v1031
        %1083 = vmatprep.subr.bf16.mxu0 0
        %1084 = vmatpush1.bf16.msra.mxu0 %v1032
        %1085 = vmatprep.subr.bf16.mxu0 0
        %1086 = vmatpush1.bf16.msra.mxu0 0
        %1087 = vmatprep.subr.bf16.mxu0 0
        %1088 = vmatpush1.bf16.msra.mxu0 0
        %1089 = vmatprep.subr.bf16.mxu0 0
        %1090 = vmatpush1.bf16.msra.mxu0 0
        %1091 = vmatprep.subr.bf16.mxu0 0
        %1092 = vmatpush1.bf16.msra.mxu0 0
        %1093 = vmatprep.subr.bf16.mxu0 0
        %1094 = vmatpush1.bf16.msra.mxu0 0
        %1095 = vmatprep.subr.bf16.mxu0 0
        %1096 = vmatpush1.bf16.msra.mxu0 0
        %1097 = vmatprep.subr.bf16.mxu0 0
        %1098 = vmatpush1.bf16.msra.mxu0 0
        %1099 = vmatprep.subr.bf16.mxu0 0
        %1100 = vmatpush1.bf16.msra.mxu0 0
        %1101 = vmatprep.subr.bf16.mxu0 0
        %1102 = vmatpush1.bf16.msra.mxu0 0
        %1103 = vmatprep.subr.bf16.mxu0 0
        %1104 = vmatpush1.bf16.msra.mxu0 0
        %1105 = vmatprep.subr.bf16.mxu0 0
        %1106 = vmatpush1.bf16.msra.mxu0 0
        %1107 = vmatprep.subr.bf16.mxu0 0
        %1108 = vmatpush1.bf16.msra.mxu0 0
        %1109 = vmatprep.subr.bf16.mxu0 0
        %1110 = vmatpush1.bf16.msra.mxu0 0
        %1111 = vmatprep.subr.bf16.mxu0 0
        %1112 = vmatpush1.bf16.msra.mxu0 0
        %1113 = vmatprep.mubr.bf16.mxu0 0
        %1114 = vmatmul.mubr.bf16.gmra.mrb[0].mxu0 %v1064
        %v1115 = vpop.f32.mrb[0].mxu0
        %v1116 = vadd.f32 0.0, %v1115
        %v1117 = vpop.f32.mrb[0].mxu0
        %v1118 = vpop.f32.mrb[0].mxu0
        %v1119 = vadd.f32 0.0, %v1118
        %v1120 = vpop.f32.mrb[0].mxu0
        %1121 = vmatprep.mubr.bf16.mxu0 0
        %1122 = vmatmul.mubr.bf16.gmra.mrb[0].mxu0 %v1067
        %v1123 = vpop.f32.mrb[0].mxu0
        %v1124 = vadd.f32 0.0, %v1123
        %v1125 = vpop.f32.mrb[0].mxu0
        %v1126 = vpop.f32.mrb[0].mxu0
        %v1127 = vadd.f32 0.0, %v1126
        %v1128 = vpop.f32.mrb[0].mxu0
        %1129 = vmatprep.mubr.bf16.mxu0 0
        %1130 = vmatmul.mubr.bf16.gmra.mrb[0].mxu0 %v1070
        %v1131 = vpop.f32.mrb[0].mxu0
        %v1132 = vadd.f32 0.0, %v1131
        %v1133 = vpop.f32.mrb[0].mxu0
        %v1134 = vpop.f32.mrb[0].mxu0
        %v1135 = vadd.f32 0.0, %v1134
        %v1136 = vpop.f32.mrb[0].mxu0
        %1137 = vmatprep.mubr.bf16.mxu0 0
        %1138 = vmatmul.mubr.bf16.gmra.mrb[0].mxu0 %v1073
        %v1139 = vpop.f32.mrb[0].mxu0
        %v1140 = vadd.f32 0.0, %v1139
        %v1141 = vpop.f32.mrb[0].mxu0
        %v1142 = vpop.f32.mrb[0].mxu0
        %v1143 = vadd.f32 0.0, %v1142
        %v1144 = vpop.f32.mrb[0].mxu0
        %1145 = vmatprep.mubr.bf16.mxu0 0
        %1146 = vmatmul.mubr.bf16.gmra.mrb[0].mxu0 %v1076
        %v1147 = vpop.f32.mrb[0].mxu0
        %v1148 = vadd.f32 0.0, %v1147
        %v1149 = vpop.f32.mrb[0].mxu0
        %v1150 = vpop.f32.mrb[0].mxu0
        %v1151 = vadd.f32 0.0, %v1150
        %v1152 = vpop.f32.mrb[0].mxu0
        %1153 = vmatprep.mubr.bf16.mxu0 0
        %1154 = vmatmul.mubr.bf16.gmra.mrb[0].mxu0 %v1079
        %v1155 = vpop.f32.mrb[0].mxu0
        %v1156 = vadd.f32 0.0, %v1155
        %v1157 = vpop.f32.mrb[0].mxu0
        %v1158 = vpop.f32.mrb[0].mxu0
        %v1159 = vadd.f32 0.0, %v1158
        %v1160 = vpop.f32.mrb[0].mxu0
        %1161 = vdwg.mxu0
        %v1162 = vld [vmem:[%s7] sm:$0xf]
        %v1163 = vld [vmem:[%s7 + $0x4] sm:$0xf]
        %v1164 = vld [vmem:[%s7 + $0x8] sm:$0xf]
        %v1165 = vld [vmem:[%s7 + $0xc] sm:$0xf]
        %v1166 = vld [vmem:[%s7 + $0x10] sm:$0xf]
        %v1167 = vld [vmem:[%s7 + $0x14] sm:$0xf]
        %v1168 = vld [vmem:[%s7 + $0x18] sm:$0xf]
        %v1169 = vld [vmem:[%s7 + $0x1c] sm:$0xf]
        %v1170 = vld [vmem:[%s7 + $0x20] sm:$0xf]
        %v1171 = vld [vmem:[%s7 + $0x24] sm:$0xf]
        %v1172 = vld [vmem:[%s7 + $0x28] sm:$0xf]
        %v1173 = vld [vmem:[%s7 + $0x2c] sm:$0xf]
        %1174 = vxpose.xlu0.b32.start [1/16] %v985, 128
        %1175 = vxpose.xlu0.b32.cont [2/16] %v986, 128
        %1176 = vxpose.xlu0.b32.cont [3/16] 0.0, 128
        %1177 = vxpose.xlu0.b32.cont [4/16] 0.0, 128
        %1178 = vxpose.xlu0.b32.cont [5/16] 0.0, 128
        %1179 = vxpose.xlu0.b32.cont [6/16] 0.0, 128
        %1180 = vxpose.xlu0.b32.cont [7/16] 0.0, 128
        %1181 = vxpose.xlu0.b32.cont [8/16] 0.0, 128
        %1182 = vxpose.xlu0.b32.cont [9/16] 0.0, 128
        %1183 = vxpose.xlu0.b32.cont [10/16] 0.0, 128
        %1184 = vxpose.xlu0.b32.cont [11/16] 0.0, 128
        %1185 = vxpose.xlu0.b32.cont [12/16] 0.0, 128
        %1186 = vxpose.xlu0.b32.cont [13/16] 0.0, 128
        %1187 = vxpose.xlu0.b32.cont [14/16] 0.0, 128
        %1188 = vxpose.xlu0.b32.cont [15/16] 0.0, 128
        %1189 = vxpose.xlu0.b32.end [16/16] 0.0, 128
        %v1190 = vpop.trf.xlu0
        %v1191 = vpop.trf.xlu0
        %v1192 = vpop.trf.xlu0
        %v1193 = vpop.trf.xlu0
        %v1194 = vpop.trf.xlu0
        %v1195 = vpop.trf.xlu0
        %v1196 = vpop.trf.xlu0
        %v1197 = vpop.trf.xlu0
        %v1198 = vpop.trf.xlu0
        %v1199 = vpop.trf.xlu0
        %v1200 = vpop.trf.xlu0
        %v1201 = vpop.trf.xlu0
        %v1202 = vpop.trf.xlu0
        %v1203 = vpop.trf.xlu0
        %v1204 = vpop.trf.xlu0
        %v1205 = vpop.trf.xlu0
        %v1206 = vpack.c.bf16 %v1191, %v1190
        %v1207 = vpack.c.bf16 %v1193, %v1192
        %v1220 = vunpack.c.l.b16 %v1162
        %v1221 = vunpack.c.l.b16 %v1163
        %v1222 = vunpack.c.l.b16 %v1164
        %v1223 = vunpack.c.l.b16 %v1165
        %v1224 = vunpack.c.l.b16 %v1166
        %v1225 = vunpack.c.l.b16 %v1167
        %v1226 = vunpack.c.l.b16 %v1168
        %v1227 = vunpack.c.l.b16 %v1169
        %v1228 = vunpack.c.l.b16 %v1170
        %v1229 = vunpack.c.l.b16 %v1171
        %v1230 = vunpack.c.l.b16 %v1172
        %v1231 = vunpack.c.l.b16 %v1173
        %v1232 = vpack.c.b16 %v1221, %v1220
        %v1233 = vpack.c.b16 %v1223, %v1222
        %v1234 = vpack.c.b16 %v1225, %v1224
        %v1235 = vpack.c.b16 %v1227, %v1226
        %v1236 = vpack.c.b16 %v1229, %v1228
        %v1237 = vpack.c.b16 %v1231, %v1230
        %v1239 = vsel %vm899, %v1232, 0
        %v1242 = vsel %vm899, %v1233, 0
        %v1245 = vsel %vm899, %v1234, 0
        %v1248 = vsel %vm899, %v1235, 0
        %v1251 = vsel %vm899, %v1236, 0
        %v1254 = vsel %vm899, %v1237, 0
        %1256 = vmatprep.subr.bf16.mxu0 0
        %1257 = vmatpush1.bf16.msra.mxu0 %v1206
        %1258 = vmatprep.subr.bf16.mxu0 0
        %1259 = vmatpush1.bf16.msra.mxu0 %v1207
        %1260 = vmatprep.subr.bf16.mxu0 0
        %1261 = vmatpush1.bf16.msra.mxu0 0
        %1262 = vmatprep.subr.bf16.mxu0 0
        %1263 = vmatpush1.bf16.msra.mxu0 0
        %1264 = vmatprep.subr.bf16.mxu0 0
        %1265 = vmatpush1.bf16.msra.mxu0 0
        %1266 = vmatprep.subr.bf16.mxu0 0
        %1267 = vmatpush1.bf16.msra.mxu0 0
        %1268 = vmatprep.subr.bf16.mxu0 0
        %1269 = vmatpush1.bf16.msra.mxu0 0
        %1270 = vmatprep.subr.bf16.mxu0 0
        %1271 = vmatpush1.bf16.msra.mxu0 0
        %1272 = vmatprep.subr.bf16.mxu0 0
        %1273 = vmatpush1.bf16.msra.mxu0 0
        %1274 = vmatprep.subr.bf16.mxu0 0
        %1275 = vmatpush1.bf16.msra.mxu0 0
        %1276 = vmatprep.subr.bf16.mxu0 0
        %1277 = vmatpush1.bf16.msra.mxu0 0
        %1278 = vmatprep.subr.bf16.mxu0 0
        %1279 = vmatpush1.bf16.msra.mxu0 0
        %1280 = vmatprep.subr.bf16.mxu0 0
        %1281 = vmatpush1.bf16.msra.mxu0 0
        %1282 = vmatprep.subr.bf16.mxu0 0
        %1283 = vmatpush1.bf16.msra.mxu0 0
        %1284 = vmatprep.subr.bf16.mxu0 0
        %1285 = vmatpush1.bf16.msra.mxu0 0
        %1286 = vmatprep.subr.bf16.mxu0 0
        %1287 = vmatpush1.bf16.msra.mxu0 0
        %1288 = vmatprep.mubr.bf16.mxu0 0
        %1289 = vmatmul.mubr.bf16.gmra.mrb[0].mxu0 %v1239
        %v1290 = vpop.f32.mrb[0].mxu0
        %v1291 = vadd.f32 0.0, %v1290
        %v1292 = vpop.f32.mrb[0].mxu0
        %v1293 = vpop.f32.mrb[0].mxu0
        %v1294 = vadd.f32 0.0, %v1293
        %v1295 = vpop.f32.mrb[0].mxu0
        %1296 = vmatprep.mubr.bf16.mxu0 0
        %1297 = vmatmul.mubr.bf16.gmra.mrb[0].mxu0 %v1242
        %v1298 = vpop.f32.mrb[0].mxu0
        %v1299 = vadd.f32 0.0, %v1298
        %v1300 = vpop.f32.mrb[0].mxu0
        %v1301 = vpop.f32.mrb[0].mxu0
        %v1302 = vadd.f32 0.0, %v1301
        %v1303 = vpop.f32.mrb[0].mxu0
        %1304 = vmatprep.mubr.bf16.mxu0 0
        %1305 = vmatmul.mubr.bf16.gmra.mrb[0].mxu0 %v1245
        %v1306 = vpop.f32.mrb[0].mxu0
        %v1307 = vadd.f32 0.0, %v1306
        %v1308 = vpop.f32.mrb[0].mxu0
        %v1309 = vpop.f32.mrb[0].mxu0
        %v1310 = vadd.f32 0.0, %v1309
        %v1311 = vpop.f32.mrb[0].mxu0
        %1312 = vmatprep.mubr.bf16.mxu0 0
        %1313 = vmatmul.mubr.bf16.gmra.mrb[0].mxu0 %v1248
        %v1314 = vpop.f32.mrb[0].mxu0
        %v1315 = vadd.f32 0.0, %v1314
        %v1316 = vpop.f32.mrb[0].mxu0
        %v1317 = vpop.f32.mrb[0].mxu0
        %v1318 = vadd.f32 0.0, %v1317
        %v1319 = vpop.f32.mrb[0].mxu0
        %1320 = vmatprep.mubr.bf16.mxu0 0
        %1321 = vmatmul.mubr.bf16.gmra.mrb[0].mxu0 %v1251
        %v1322 = vpop.f32.mrb[0].mxu0
        %v1323 = vadd.f32 0.0, %v1322
        %v1324 = vpop.f32.mrb[0].mxu0
        %v1325 = vpop.f32.mrb[0].mxu0
        %v1326 = vadd.f32 0.0, %v1325
        %v1327 = vpop.f32.mrb[0].mxu0
        %1328 = vmatprep.mubr.bf16.mxu0 0
        %1329 = vmatmul.mubr.bf16.gmra.mrb[0].mxu0 %v1254
        %v1330 = vpop.f32.mrb[0].mxu0
        %v1331 = vadd.f32 0.0, %v1330
        %v1332 = vpop.f32.mrb[0].mxu0
        %v1333 = vpop.f32.mrb[0].mxu0
        %v1334 = vadd.f32 0.0, %v1333
        %v1335 = vpop.f32.mrb[0].mxu0
        %1336 = vdwg.mxu0
        %v1337 = vpack.c.bf16 %v1116, %v1116
        %v1338 = vpack.c.bf16 %v1119, %v1119
        %v1339 = vpack.c.bf16 %v1124, %v1124
        %v1340 = vpack.c.bf16 %v1127, %v1127
        %v1341 = vpack.c.bf16 %v1307, %v1307
        %v1342 = vpack.c.bf16 %v1310, %v1310
        %v1343 = vpack.c.bf16 %v1315, %v1315
        %v1344 = vpack.c.bf16 %v1318, %v1318
        %1345 = vxpose.xlu0.c.b16.start [1/8] %v1337, 128
        %1346 = vxpose.xlu0.c.b16.cont [2/8] 0, 128
        %1347 = vxpose.xlu0.c.b16.cont [3/8] 0, 128
        %1348 = vxpose.xlu0.c.b16.cont [4/8] 0, 128
        %1349 = vxpose.xlu0.c.b16.cont [5/8] 0, 128
        %1350 = vxpose.xlu0.c.b16.cont [6/8] 0, 128
        %1351 = vxpose.xlu0.c.b16.cont [7/8] 0, 128
        %1352 = vxpose.xlu0.c.b16.end [8/8] 0, 128
        %v1353 = vpop.trf.xlu0
        %v1354 = vpop.trf.xlu0
        %v1355 = vpop.trf.xlu0
        %v1356 = vpop.trf.xlu0
        %v1357 = vpop.trf.xlu0
        %v1358 = vpop.trf.xlu0
        %v1359 = vpop.trf.xlu0
        %v1360 = vpop.trf.xlu0
        %vm1361 = vcmask 64512
        %v1363 = vsel %vm1361, %v1353, 0
        %vm1365 = vcmask 1043456
        %v1367 = vsel %vm1365, %v1341, 0
        %1369 = vmatprep.subr.bf16.mxu0 0
        %1370 = vmatpush1.bf16.msra.mxu0 %v1367
        %1371 = vmatprep.subr.bf16.mxu0 0
        %1372 = vmatpush1.bf16.msra.mxu0 0
        %1373 = vmatprep.subr.bf16.mxu0 0
        %1374 = vmatpush1.bf16.msra.mxu0 0
        %1375 = vmatprep.subr.bf16.mxu0 0
        %1376 = vmatpush1.bf16.msra.mxu0 0
        %1377 = vmatprep.subr.bf16.mxu0 0
        %1378 = vmatpush1.bf16.msra.mxu0 0
        %1379 = vmatprep.subr.bf16.mxu0 0
        %1380 = vmatpush1.bf16.msra.mxu0 0
        %1381 = vmatprep.subr.bf16.mxu0 0
        %1382 = vmatpush1.bf16.msra.mxu0 0
        %1383 = vmatprep.subr.bf16.mxu0 0
        %1384 = vmatpush1.bf16.msra.mxu0 0
        %1385 = vmatprep.subr.bf16.mxu0 0
        %1386 = vmatpush1.bf16.msra.mxu0 0
        %1387 = vmatprep.subr.bf16.mxu0 0
        %1388 = vmatpush1.bf16.msra.mxu0 0
        %1389 = vmatprep.subr.bf16.mxu0 0
        %1390 = vmatpush1.bf16.msra.mxu0 0
        %1391 = vmatprep.subr.bf16.mxu0 0
        %1392 = vmatpush1.bf16.msra.mxu0 0
        %1393 = vmatprep.subr.bf16.mxu0 0
        %1394 = vmatpush1.bf16.msra.mxu0 0
        %1395 = vmatprep.subr.bf16.mxu0 0
        %1396 = vmatpush1.bf16.msra.mxu0 0
        %1397 = vmatprep.subr.bf16.mxu0 0
        %1398 = vmatpush1.bf16.msra.mxu0 0
        %1399 = vmatprep.subr.bf16.mxu0 0
        %1400 = vmatpush1.bf16.msra.mxu0 0
        %1401 = vmatprep.mubr.bf16.mxu0 0
        %1402 = vmatmul.mubr.bf16.gmra.mrb[0].mxu0 %v1363
        %v1403 = vpop.f32.mrb[0].mxu0
        %v1404 = vadd.f32 0.0, %v1403
        %v1405 = vpop.f32.mrb[0].mxu0
        %v1406 = vpop.f32.mrb[0].mxu0
        %v1407 = vadd.f32 0.0, %v1406
        %v1408 = vpop.f32.mrb[0].mxu0
        %1409 = vdwg.mxu0
        %1410 = vxpose.xlu0.c.b16.start [1/8] %v1338, 128
        %1411 = vxpose.xlu0.c.b16.cont [2/8] 0, 128
        %1412 = vxpose.xlu0.c.b16.cont [3/8] 0, 128
        %1413 = vxpose.xlu0.c.b16.cont [4/8] 0, 128
        %1414 = vxpose.xlu0.c.b16.cont [5/8] 0, 128
        %1415 = vxpose.xlu0.c.b16.cont [6/8] 0, 128
        %1416 = vxpose.xlu0.c.b16.cont [7/8] 0, 128
        %1417 = vxpose.xlu0.c.b16.end [8/8] 0, 128
        %v1418 = vpop.trf.xlu0
        %v1419 = vpop.trf.xlu0
        %v1420 = vpop.trf.xlu0
        %v1421 = vpop.trf.xlu0
        %v1422 = vpop.trf.xlu0
        %v1423 = vpop.trf.xlu0
        %v1424 = vpop.trf.xlu0
        %v1425 = vpop.trf.xlu0
        %v1427 = vsel %vm1361, %v1418, 0
        %v1430 = vsel %vm1365, %v1342, 0
        %1432 = vmatprep.subr.bf16.mxu0 0
        %1433 = vmatpush1.bf16.msra.mxu0 %v1430
        %1434 = vmatprep.subr.bf16.mxu0 0
        %1435 = vmatpush1.bf16.msra.mxu0 0
        %1436 = vmatprep.subr.bf16.mxu0 0
        %1437 = vmatpush1.bf16.msra.mxu0 0
        %1438 = vmatprep.subr.bf16.mxu0 0
        %1439 = vmatpush1.bf16.msra.mxu0 0
        %1440 = vmatprep.subr.bf16.mxu0 0
        %1441 = vmatpush1.bf16.msra.mxu0 0
        %1442 = vmatprep.subr.bf16.mxu0 0
        %1443 = vmatpush1.bf16.msra.mxu0 0
        %1444 = vmatprep.subr.bf16.mxu0 0
        %1445 = vmatpush1.bf16.msra.mxu0 0
        %1446 = vmatprep.subr.bf16.mxu0 0
        %1447 = vmatpush1.bf16.msra.mxu0 0
        %1448 = vmatprep.subr.bf16.mxu0 0
        %1449 = vmatpush1.bf16.msra.mxu0 0
        %1450 = vmatprep.subr.bf16.mxu0 0
        %1451 = vmatpush1.bf16.msra.mxu0 0
        %1452 = vmatprep.subr.bf16.mxu0 0
        %1453 = vmatpush1.bf16.msra.mxu0 0
        %1454 = vmatprep.subr.bf16.mxu0 0
        %1455 = vmatpush1.bf16.msra.mxu0 0
        %1456 = vmatprep.subr.bf16.mxu0 0
        %1457 = vmatpush1.bf16.msra.mxu0 0
        %1458 = vmatprep.subr.bf16.mxu0 0
        %1459 = vmatpush1.bf16.msra.mxu0 0
        %1460 = vmatprep.subr.bf16.mxu0 0
        %1461 = vmatpush1.bf16.msra.mxu0 0
        %1462 = vmatprep.subr.bf16.mxu0 0
        %1463 = vmatpush1.bf16.msra.mxu0 0
        %1464 = vmatprep.mubr.bf16.mxu0 0
        %1465 = vmatmul.mubr.bf16.gmra.mrb[0].mxu0 %v1427
        %v1466 = vpop.f32.mrb[0].mxu0
        %v1467 = vadd.f32 0.0, %v1466
        %v1468 = vpop.f32.mrb[0].mxu0
        %v1469 = vpop.f32.mrb[0].mxu0
        %v1470 = vadd.f32 0.0, %v1469
        %v1471 = vpop.f32.mrb[0].mxu0
        %1472 = vdwg.mxu0
        %1473 = vxpose.xlu0.c.b16.start [1/8] %v1339, 128
        %1474 = vxpose.xlu0.c.b16.cont [2/8] 0, 128
        %1475 = vxpose.xlu0.c.b16.cont [3/8] 0, 128
        %1476 = vxpose.xlu0.c.b16.cont [4/8] 0, 128
        %1477 = vxpose.xlu0.c.b16.cont [5/8] 0, 128
        %1478 = vxpose.xlu0.c.b16.cont [6/8] 0, 128
        %1479 = vxpose.xlu0.c.b16.cont [7/8] 0, 128
        %1480 = vxpose.xlu0.c.b16.end [8/8] 0, 128
        %v1481 = vpop.trf.xlu0
        %v1482 = vpop.trf.xlu0
        %v1483 = vpop.trf.xlu0
        %v1484 = vpop.trf.xlu0
        %v1485 = vpop.trf.xlu0
        %v1486 = vpop.trf.xlu0
        %v1487 = vpop.trf.xlu0
        %v1488 = vpop.trf.xlu0
        %v1490 = vsel %vm1361, %v1481, 0
        %v1493 = vsel %vm1365, %v1343, 0
        %1495 = vmatprep.subr.bf16.mxu0 0
        %1496 = vmatpush1.bf16.msra.mxu0 %v1493
        %1497 = vmatprep.subr.bf16.mxu0 0
        %1498 = vmatpush1.bf16.msra.mxu0 0
        %1499 = vmatprep.subr.bf16.mxu0 0
        %1500 = vmatpush1.bf16.msra.mxu0 0
        %1501 = vmatprep.subr.bf16.mxu0 0
        %1502 = vmatpush1.bf16.msra.mxu0 0
        %1503 = vmatprep.subr.bf16.mxu0 0
        %1504 = vmatpush1.bf16.msra.mxu0 0
        %1505 = vmatprep.subr.bf16.mxu0 0
        %1506 = vmatpush1.bf16.msra.mxu0 0
        %1507 = vmatprep.subr.bf16.mxu0 0
        %1508 = vmatpush1.bf16.msra.mxu0 0
        %1509 = vmatprep.subr.bf16.mxu0 0
        %1510 = vmatpush1.bf16.msra.mxu0 0
        %1511 = vmatprep.subr.bf16.mxu0 0
        %1512 = vmatpush1.bf16.msra.mxu0 0
        %1513 = vmatprep.subr.bf16.mxu0 0
        %1514 = vmatpush1.bf16.msra.mxu0 0
        %1515 = vmatprep.subr.bf16.mxu0 0
        %1516 = vmatpush1.bf16.msra.mxu0 0
        %1517 = vmatprep.subr.bf16.mxu0 0
        %1518 = vmatpush1.bf16.msra.mxu0 0
        %1519 = vmatprep.subr.bf16.mxu0 0
        %1520 = vmatpush1.bf16.msra.mxu0 0
        %1521 = vmatprep.subr.bf16.mxu0 0
        %1522 = vmatpush1.bf16.msra.mxu0 0
        %1523 = vmatprep.subr.bf16.mxu0 0
        %1524 = vmatpush1.bf16.msra.mxu0 0
        %1525 = vmatprep.subr.bf16.mxu0 0
        %1526 = vmatpush1.bf16.msra.mxu0 0
        %1527 = vmatprep.mubr.bf16.mxu0 0
        %1528 = vmatmul.mubr.bf16.gmra.mrb[0].mxu0 %v1490
        %v1529 = vpop.f32.mrb[0].mxu0
        %v1530 = vadd.f32 0.0, %v1529
        %v1531 = vpop.f32.mrb[0].mxu0
        %v1532 = vpop.f32.mrb[0].mxu0
        %v1533 = vadd.f32 0.0, %v1532
        %v1534 = vpop.f32.mrb[0].mxu0
        %1535 = vdwg.mxu0
        %1536 = vxpose.xlu0.c.b16.start [1/8] %v1340, 128
        %1537 = vxpose.xlu0.c.b16.cont [2/8] 0, 128
        %1538 = vxpose.xlu0.c.b16.cont [3/8] 0, 128
        %1539 = vxpose.xlu0.c.b16.cont [4/8] 0, 128
        %1540 = vxpose.xlu0.c.b16.cont [5/8] 0, 128
        %1541 = vxpose.xlu0.c.b16.cont [6/8] 0, 128
        %1542 = vxpose.xlu0.c.b16.cont [7/8] 0, 128
        %1543 = vxpose.xlu0.c.b16.end [8/8] 0, 128
        %v1544 = vpop.trf.xlu0
        %v1545 = vpop.trf.xlu0
        %v1546 = vpop.trf.xlu0
        %v1547 = vpop.trf.xlu0
        %v1548 = vpop.trf.xlu0
        %v1549 = vpop.trf.xlu0
        %v1550 = vpop.trf.xlu0
        %v1551 = vpop.trf.xlu0
        %v1553 = vsel %vm1361, %v1544, 0
        %v1556 = vsel %vm1365, %v1344, 0
        %1558 = vmatprep.subr.bf16.mxu0 0
        %1559 = vmatpush1.bf16.msra.mxu0 %v1556
        %1560 = vmatprep.subr.bf16.mxu0 0
        %1561 = vmatpush1.bf16.msra.mxu0 0
        %1562 = vmatprep.subr.bf16.mxu0 0
        %1563 = vmatpush1.bf16.msra.mxu0 0
        %1564 = vmatprep.subr.bf16.mxu0 0
        %1565 = vmatpush1.bf16.msra.mxu0 0
        %1566 = vmatprep.subr.bf16.mxu0 0
        %1567 = vmatpush1.bf16.msra.mxu0 0
        %1568 = vmatprep.subr.bf16.mxu0 0
        %1569 = vmatpush1.bf16.msra.mxu0 0
        %1570 = vmatprep.subr.bf16.mxu0 0
        %1571 = vmatpush1.bf16.msra.mxu0 0
        %1572 = vmatprep.subr.bf16.mxu0 0
        %1573 = vmatpush1.bf16.msra.mxu0 0
        %1574 = vmatprep.subr.bf16.mxu0 0
        %1575 = vmatpush1.bf16.msra.mxu0 0
        %1576 = vmatprep.subr.bf16.mxu0 0
        %1577 = vmatpush1.bf16.msra.mxu0 0
        %1578 = vmatprep.subr.bf16.mxu0 0
        %1579 = vmatpush1.bf16.msra.mxu0 0
        %1580 = vmatprep.subr.bf16.mxu0 0
        %1581 = vmatpush1.bf16.msra.mxu0 0
        %1582 = vmatprep.subr.bf16.mxu0 0
        %1583 = vmatpush1.bf16.msra.mxu0 0
        %1584 = vmatprep.subr.bf16.mxu0 0
        %1585 = vmatpush1.bf16.msra.mxu0 0
        %1586 = vmatprep.subr.bf16.mxu0 0
        %1587 = vmatpush1.bf16.msra.mxu0 0
        %1588 = vmatprep.subr.bf16.mxu0 0
        %1589 = vmatpush1.bf16.msra.mxu0 0
        %1590 = vmatprep.mubr.bf16.mxu0 0
        %1591 = vmatmul.mubr.bf16.gmra.mrb[0].mxu0 %v1553
        %v1592 = vpop.f32.mrb[0].mxu0
        %v1593 = vadd.f32 0.0, %v1592
        %v1594 = vpop.f32.mrb[0].mxu0
        %v1595 = vpop.f32.mrb[0].mxu0
        %v1596 = vadd.f32 0.0, %v1595
        %v1597 = vpop.f32.mrb[0].mxu0
        %1598 = vdwg.mxu0
        %v1599 = vmul.f32 %v1404, 0.35355338
        %v1600 = vmul.f32 %v1407, 0.35355338
        %v1601 = vmul.f32 %v1467, 0.35355338
        %v1602 = vmul.f32 %v1470, 0.35355338
        %v1603 = vmul.f32 %v1530, 0.35355338
        %v1604 = vmul.f32 %v1533, 0.35355338
        %v1605 = vmul.f32 %v1593, 0.35355338
        %v1606 = vmul.f32 %v1596, 0.35355338
        %vm1607 = vcmask 130048
        %v1608 = vsel %vm1607, %v1599, -inf
        %1609 = vmax.xlane.f32.xlu0 %v1608
        %v1610 = vpop.xlane.xlu0 %1609
        %v1611 = vsel %vm1607, %v1600, -inf
        %1612 = vmax.xlane.f32.xlu0 %v1611
        %v1613 = vpop.xlane.xlu0 %1612
        %v1614 = vsel %vm1607, %v1601, -inf
        %1615 = vmax.xlane.f32.xlu0 %v1614
        %v1616 = vpop.xlane.xlu0 %1615
        %v1617 = vsel %vm1607, %v1602, -inf
        %1618 = vmax.xlane.f32.xlu0 %v1617
        %v1619 = vpop.xlane.xlu0 %1618
        %v1620 = vsel %vm1607, %v1603, -inf
        %1621 = vmax.xlane.f32.xlu0 %v1620
        %v1622 = vpop.xlane.xlu0 %1621
        %v1623 = vsel %vm1607, %v1604, -inf
        %1624 = vmax.xlane.f32.xlu0 %v1623
        %v1625 = vpop.xlane.xlu0 %1624
        %v1626 = vsel %vm1607, %v1605, -inf
        %1627 = vmax.xlane.f32.xlu0 %v1626
        %v1628 = vpop.xlane.xlu0 %1627
        %v1629 = vsel %vm1607, %v1606, -inf
        %1630 = vmax.xlane.f32.xlu0 %v1629
        %v1631 = vpop.xlane.xlu0 %1630
        %v1632 = vsub.f32 %v1599, %v1610
        %v1633 = vsub.f32 %v1600, %v1613
        %v1634 = vsub.f32 %v1601, %v1616
        %v1635 = vsub.f32 %v1602, %v1619
        %v1636 = vsub.f32 %v1603, %v1622
        %v1637 = vsub.f32 %v1604, %v1625
        %v1638 = vsub.f32 %v1605, %v1628
        %v1639 = vsub.f32 %v1606, %v1631
        %v1640 = vmul.f32 %v1632, 1.442695
        %v1641 = vpow.pop %v1640
        %v1642 = vmul.f32 %v1633, 1.442695
        %v1643 = vpow.pop %v1642
        %v1644 = vmul.f32 %v1634, 1.442695
        %v1645 = vpow.pop %v1644
        %v1646 = vmul.f32 %v1635, 1.442695
        %v1647 = vpow.pop %v1646
        %v1648 = vmul.f32 %v1636, 1.442695
        %v1649 = vpow.pop %v1648
        %v1650 = vmul.f32 %v1637, 1.442695
        %v1651 = vpow.pop %v1650
        %v1652 = vmul.f32 %v1638, 1.442695
        %v1653 = vpow.pop %v1652
        %v1654 = vmul.f32 %v1639, 1.442695
        %v1655 = vpow.pop %v1654
        %v1656 = vsel %vm1607, %v1641, 0.0
        %1657 = vadd.xlane.f32.xlu0 %v1656
        %v1658 = vpop.xlane.xlu0 %1657
        %v1659 = vsel %vm1607, %v1643, 0.0
        %1660 = vadd.xlane.f32.xlu0 %v1659
        %v1661 = vpop.xlane.xlu0 %1660
        %v1662 = vsel %vm1607, %v1645, 0.0
        %1663 = vadd.xlane.f32.xlu0 %v1662
        %v1664 = vpop.xlane.xlu0 %1663
        %v1665 = vsel %vm1607, %v1647, 0.0
        %1666 = vadd.xlane.f32.xlu0 %v1665
        %v1667 = vpop.xlane.xlu0 %1666
        %v1668 = vsel %vm1607, %v1649, 0.0
        %1669 = vadd.xlane.f32.xlu0 %v1668
        %v1670 = vpop.xlane.xlu0 %1669
        %v1671 = vsel %vm1607, %v1651, 0.0
        %1672 = vadd.xlane.f32.xlu0 %v1671
        %v1673 = vpop.xlane.xlu0 %1672
        %v1674 = vsel %vm1607, %v1653, 0.0
        %1675 = vadd.xlane.f32.xlu0 %v1674
        %v1676 = vpop.xlane.xlu0 %1675
        %v1677 = vsel %vm1607, %v1655, 0.0
        %1678 = vadd.xlane.f32.xlu0 %v1677
        %v1679 = vpop.xlane.xlu0 %1678
        %v1680 = vrcp.pop %v1658
        %v1681 = vmul.f32 %v1641, %v1680
        %v1682 = vrcp.pop %v1661
        %v1683 = vmul.f32 %v1643, %v1682
        %v1684 = vrcp.pop %v1664
        %v1685 = vmul.f32 %v1645, %v1684
        %v1686 = vrcp.pop %v1667
        %v1687 = vmul.f32 %v1647, %v1686
        %v1688 = vrcp.pop %v1670
        %v1689 = vmul.f32 %v1649, %v1688
        %v1690 = vrcp.pop %v1673
        %v1691 = vmul.f32 %v1651, %v1690
        %v1692 = vrcp.pop %v1676
        %v1693 = vmul.f32 %v1653, %v1692
        %v1694 = vrcp.pop %v1679
        %v1695 = vmul.f32 %v1655, %v1694
        %v1696 = vpack.c.bf16 %v1323, %v1323
        %v1697 = vpack.c.bf16 %v1326, %v1326
        %v1698 = vpack.c.bf16 %v1331, %v1331
        %v1699 = vpack.c.bf16 %v1334, %v1334
        %v1700 = vpack.c.bf16 %v1683, %v1681
        %v1701 = vpack.c.bf16 %v1687, %v1685
        %v1702 = vpack.c.bf16 %v1691, %v1689
        %v1703 = vpack.c.bf16 %v1695, %v1693
        %v1705 = vsel %vm1607, %v1696, 0
        %v1708 = vsel %vm1607, %v1700, 0
        %1710 = vmatprep.subr.bf16.mxu0 0
        %1711 = vmatpush1.bf16.xpose.msra.mxu0 %v1708
        %1712 = vmatprep.subr.bf16.mxu0 0
        %1713 = vmatpush1.bf16.xpose.msra.mxu0 0
        %1714 = vmatprep.subr.bf16.mxu0 0
        %1715 = vmatpush1.bf16.xpose.msra.mxu0 0
        %1716 = vmatprep.subr.bf16.mxu0 0
        %1717 = vmatpush1.bf16.xpose.msra.mxu0 0
        %1718 = vmatprep.subr.bf16.mxu0 0
        %1719 = vmatpush1.bf16.xpose.msra.mxu0 0
        %1720 = vmatprep.subr.bf16.mxu0 0
        %1721 = vmatpush1.bf16.xpose.msra.mxu0 0
        %1722 = vmatprep.subr.bf16.mxu0 0
        %1723 = vmatpush1.bf16.xpose.msra.mxu0 0
        %1724 = vmatprep.subr.bf16.mxu0 0
        %1725 = vmatpush1.bf16.xpose.msra.mxu0 0
        %1726 = vmatprep.subr.bf16.mxu0 0
        %1727 = vmatpush1.bf16.xpose.msra.mxu0 0
        %1728 = vmatprep.subr.bf16.mxu0 0
        %1729 = vmatpush1.bf16.xpose.msra.mxu0 0
        %1730 = vmatprep.subr.bf16.mxu0 0
        %1731 = vmatpush1.bf16.xpose.msra.mxu0 0
        %1732 = vmatprep.subr.bf16.mxu0 0
        %1733 = vmatpush1.bf16.xpose.msra.mxu0 0
        %1734 = vmatprep.subr.bf16.mxu0 0
        %1735 = vmatpush1.bf16.xpose.msra.mxu0 0
        %1736 = vmatprep.subr.bf16.mxu0 0
        %1737 = vmatpush1.bf16.xpose.msra.mxu0 0
        %1738 = vmatprep.subr.bf16.mxu0 0
        %1739 = vmatpush1.bf16.xpose.msra.mxu0 0
        %1740 = vmatprep.subr.bf16.mxu0 0
        %1741 = vmatpush1.bf16.xpose.msra.mxu0 0
        %1742 = vmatprep.mubr.bf16.mxu0 0
        %1743 = vmatmul.mubr.bf16.gmra.mrb[0].mxu0 %v1705
        %v1744 = vpop.f32.mrb[0].mxu0
        %v1745 = vadd.f32 0.0, %v1744
        %v1746 = vpop.f32.mrb[0].mxu0
        %v1747 = vpop.f32.mrb[0].mxu0
        %v1748 = vpop.f32.mrb[0].mxu0
        %1749 = vdwg.mxu0
        %v1751 = vsel %vm1607, %v1697, 0
        %v1754 = vsel %vm1607, %v1701, 0
        %1756 = vmatprep.subr.bf16.mxu0 0
        %1757 = vmatpush1.bf16.xpose.msra.mxu0 %v1754
        %1758 = vmatprep.subr.bf16.mxu0 0
        %1759 = vmatpush1.bf16.xpose.msra.mxu0 0
        %1760 = vmatprep.subr.bf16.mxu0 0
        %1761 = vmatpush1.bf16.xpose.msra.mxu0 0
        %1762 = vmatprep.subr.bf16.mxu0 0
        %1763 = vmatpush1.bf16.xpose.msra.mxu0 0
        %1764 = vmatprep.subr.bf16.mxu0 0
        %1765 = vmatpush1.bf16.xpose.msra.mxu0 0
        %1766 = vmatprep.subr.bf16.mxu0 0
        %1767 = vmatpush1.bf16.xpose.msra.mxu0 0
        %1768 = vmatprep.subr.bf16.mxu0 0
        %1769 = vmatpush1.bf16.xpose.msra.mxu0 0
        %1770 = vmatprep.subr.bf16.mxu0 0
        %1771 = vmatpush1.bf16.xpose.msra.mxu0 0
        %1772 = vmatprep.subr.bf16.mxu0 0
        %1773 = vmatpush1.bf16.xpose.msra.mxu0 0
        %1774 = vmatprep.subr.bf16.mxu0 0
        %1775 = vmatpush1.bf16.xpose.msra.mxu0 0
        %1776 = vmatprep.subr.bf16.mxu0 0
        %1777 = vmatpush1.bf16.xpose.msra.mxu0 0
        %1778 = vmatprep.subr.bf16.mxu0 0
        %1779 = vmatpush1.bf16.xpose.msra.mxu0 0
        %1780 = vmatprep.subr.bf16.mxu0 0
        %1781 = vmatpush1.bf16.xpose.msra.mxu0 0
        %1782 = vmatprep.subr.bf16.mxu0 0
        %1783 = vmatpush1.bf16.xpose.msra.mxu0 0
        %1784 = vmatprep.subr.bf16.mxu0 0
        %1785 = vmatpush1.bf16.xpose.msra.mxu0 0
        %1786 = vmatprep.subr.bf16.mxu0 0
        %1787 = vmatpush1.bf16.xpose.msra.mxu0 0
        %1788 = vmatprep.mubr.bf16.mxu0 0
        %1789 = vmatmul.mubr.bf16.gmra.mrb[0].mxu0 %v1751
        %v1790 = vpop.f32.mrb[0].mxu0
        %v1791 = vadd.f32 0.0, %v1790
        %v1792 = vpop.f32.mrb[0].mxu0
        %v1793 = vpop.f32.mrb[0].mxu0
        %v1794 = vpop.f32.mrb[0].mxu0
        %1795 = vdwg.mxu0
        %v1797 = vsel %vm1607, %v1698, 0
        %v1800 = vsel %vm1607, %v1702, 0
        %1802 = vmatprep.subr.bf16.mxu0 0
        %1803 = vmatpush1.bf16.xpose.msra.mxu0 %v1800
        %1804 = vmatprep.subr.bf16.mxu0 0
        %1805 = vmatpush1.bf16.xpose.msra.mxu0 0
        %1806 = vmatprep.subr.bf16.mxu0 0
        %1807 = vmatpush1.bf16.xpose.msra.mxu0 0
        %1808 = vmatprep.subr.bf16.mxu0 0
        %1809 = vmatpush1.bf16.xpose.msra.mxu0 0
        %1810 = vmatprep.subr.bf16.mxu0 0
        %1811 = vmatpush1.bf16.xpose.msra.mxu0 0
        %1812 = vmatprep.subr.bf16.mxu0 0
        %1813 = vmatpush1.bf16.xpose.msra.mxu0 0
        %1814 = vmatprep.subr.bf16.mxu0 0
        %1815 = vmatpush1.bf16.xpose.msra.mxu0 0
        %1816 = vmatprep.subr.bf16.mxu0 0
        %1817 = vmatpush1.bf16.xpose.msra.mxu0 0
        %1818 = vmatprep.subr.bf16.mxu0 0
        %1819 = vmatpush1.bf16.xpose.msra.mxu0 0
        %1820 = vmatprep.subr.bf16.mxu0 0
        %1821 = vmatpush1.bf16.xpose.msra.mxu0 0
        %1822 = vmatprep.subr.bf16.mxu0 0
        %1823 = vmatpush1.bf16.xpose.msra.mxu0 0
        %1824 = vmatprep.subr.bf16.mxu0 0
        %1825 = vmatpush1.bf16.xpose.msra.mxu0 0
        %1826 = vmatprep.subr.bf16.mxu0 0
        %1827 = vmatpush1.bf16.xpose.msra.mxu0 0
        %1828 = vmatprep.subr.bf16.mxu0 0
        %1829 = vmatpush1.bf16.xpose.msra.mxu0 0
        %1830 = vmatprep.subr.bf16.mxu0 0
        %1831 = vmatpush1.bf16.xpose.msra.mxu0 0
        %1832 = vmatprep.subr.bf16.mxu0 0
        %1833 = vmatpush1.bf16.xpose.msra.mxu0 0
        %1834 = vmatprep.mubr.bf16.mxu0 0
        %1835 = vmatmul.mubr.bf16.gmra.mrb[0].mxu0 %v1797
        %v1836 = vpop.f32.mrb[0].mxu0
        %v1837 = vadd.f32 0.0, %v1836
        %v1838 = vpop.f32.mrb[0].mxu0
        %v1839 = vpop.f32.mrb[0].mxu0
        %v1840 = vpop.f32.mrb[0].mxu0
        %1841 = vdwg.mxu0
        %v1843 = vsel %vm1607, %v1699, 0
        %v1846 = vsel %vm1607, %v1703, 0
        %1848 = vmatprep.subr.bf16.mxu0 0
        %1849 = vmatpush1.bf16.xpose.msra.mxu0 %v1846
        %1850 = vmatprep.subr.bf16.mxu0 0
        %1851 = vmatpush1.bf16.xpose.msra.mxu0 0
        %1852 = vmatprep.subr.bf16.mxu0 0
        %1853 = vmatpush1.bf16.xpose.msra.mxu0 0
        %1854 = vmatprep.subr.bf16.mxu0 0
        %1855 = vmatpush1.bf16.xpose.msra.mxu0 0
        %1856 = vmatprep.subr.bf16.mxu0 0
        %1857 = vmatpush1.bf16.xpose.msra.mxu0 0
        %1858 = vmatprep.subr.bf16.mxu0 0
        %1859 = vmatpush1.bf16.xpose.msra.mxu0 0
        %1860 = vmatprep.subr.bf16.mxu0 0
        %1861 = vmatpush1.bf16.xpose.msra.mxu0 0
        %1862 = vmatprep.subr.bf16.mxu0 0
        %1863 = vmatpush1.bf16.xpose.msra.mxu0 0
        %1864 = vmatprep.subr.bf16.mxu0 0
        %1865 = vmatpush1.bf16.xpose.msra.mxu0 0
        %1866 = vmatprep.subr.bf16.mxu0 0
        %1867 = vmatpush1.bf16.xpose.msra.mxu0 0
        %1868 = vmatprep.subr.bf16.mxu0 0
        %1869 = vmatpush1.bf16.xpose.msra.mxu0 0
        %1870 = vmatprep.subr.bf16.mxu0 0
        %1871 = vmatpush1.bf16.xpose.msra.mxu0 0
        %1872 = vmatprep.subr.bf16.mxu0 0
        %1873 = vmatpush1.bf16.xpose.msra.mxu0 0
        %1874 = vmatprep.subr.bf16.mxu0 0
        %1875 = vmatpush1.bf16.xpose.msra.mxu0 0
        %1876 = vmatprep.subr.bf16.mxu0 0
        %1877 = vmatpush1.bf16.xpose.msra.mxu0 0
        %1878 = vmatprep.subr.bf16.mxu0 0
        %1879 = vmatpush1.bf16.xpose.msra.mxu0 0
        %1880 = vmatprep.mubr.bf16.mxu0 0
        %1881 = vmatmul.mubr.bf16.gmra.mrb[0].mxu0 %v1843
        %v1882 = vpop.f32.mrb[0].mxu0
        %v1883 = vadd.f32 0.0, %v1882
        %v1884 = vpop.f32.mrb[0].mxu0
        %v1885 = vpop.f32.mrb[0].mxu0
        %v1886 = vpop.f32.mrb[0].mxu0
        %1887 = vdwg.mxu0
        %1888 = vxpose.xlu0.b32.start [1/16] %v1745, 128
        %1889 = vxpose.xlu0.b32.cont [2/16] %v1791, 128
        %1890 = vxpose.xlu0.b32.cont [3/16] %v1837, 128
        %1891 = vxpose.xlu0.b32.cont [4/16] %v1883, 128
        %1892 = vxpose.xlu0.b32.cont [5/16] 0.0, 128
        %1893 = vxpose.xlu0.b32.cont [6/16] 0.0, 128
        %1894 = vxpose.xlu0.b32.cont [7/16] 0.0, 128
        %1895 = vxpose.xlu0.b32.cont [8/16] 0.0, 128
        %1896 = vxpose.xlu0.b32.cont [9/16] 0.0, 128
        %1897 = vxpose.xlu0.b32.cont [10/16] 0.0, 128
        %1898 = vxpose.xlu0.b32.cont [11/16] 0.0, 128
        %1899 = vxpose.xlu0.b32.cont [12/16] 0.0, 128
        %1900 = vxpose.xlu0.b32.cont [13/16] 0.0, 128
        %1901 = vxpose.xlu0.b32.cont [14/16] 0.0, 128
        %1902 = vxpose.xlu0.b32.cont [15/16] 0.0, 128
        %1903 = vxpose.xlu0.b32.end [16/16] 0.0, 128
        %v1904 = vpop.trf.xlu0
        %v1905 = vpop.trf.xlu0
        %v1906 = vpop.trf.xlu0
        %v1907 = vpop.trf.xlu0
        %v1908 = vpop.trf.xlu0
        %v1909 = vpop.trf.xlu0
        %v1910 = vpop.trf.xlu0
        %v1911 = vpop.trf.xlu0
        %v1912 = vpop.trf.xlu0
        %v1913 = vpop.trf.xlu0
        %v1914 = vpop.trf.xlu0
        %v1915 = vpop.trf.xlu0
        %v1916 = vpop.trf.xlu0
        %v1917 = vpop.trf.xlu0
        %v1918 = vpop.trf.xlu0
        %v1919 = vpop.trf.xlu0
        %v1920 = vpack.c.bf16 %v1291, %v1291
        %v1921 = vpack.c.bf16 %v1294, %v1294
        %v1922 = vpack.c.bf16 %v1299, %v1299
        %v1923 = vpack.c.bf16 %v1302, %v1302
        %v1924 = vpack.c.bf16 %v1132, %v1132
        %v1925 = vpack.c.bf16 %v1135, %v1135
        %v1926 = vpack.c.bf16 %v1140, %v1140
        %v1927 = vpack.c.bf16 %v1143, %v1143
        %1928 = vxpose.xlu0.c.b16.start [1/8] %v1920, 128
        %1929 = vxpose.xlu0.c.b16.cont [2/8] 0, 128
        %1930 = vxpose.xlu0.c.b16.cont [3/8] 0, 128
        %1931 = vxpose.xlu0.c.b16.cont [4/8] 0, 128
        %1932 = vxpose.xlu0.c.b16.cont [5/8] 0, 128
        %1933 = vxpose.xlu0.c.b16.cont [6/8] 0, 128
        %1934 = vxpose.xlu0.c.b16.cont [7/8] 0, 128
        %1935 = vxpose.xlu0.c.b16.end [8/8] 0, 128
        %v1936 = vpop.trf.xlu0
        %v1937 = vpop.trf.xlu0
        %v1938 = vpop.trf.xlu0
        %v1939 = vpop.trf.xlu0
        %v1940 = vpop.trf.xlu0
        %v1941 = vpop.trf.xlu0
        %v1942 = vpop.trf.xlu0
        %v1943 = vpop.trf.xlu0
        %v1945 = vsel %vm1361, %v1936, 0
        %v1948 = vsel %vm1365, %v1924, 0
        %1950 = vmatprep.subr.bf16.mxu0 0
        %1951 = vmatpush1.bf16.msra.mxu0 %v1948
        %1952 = vmatprep.subr.bf16.mxu0 0
        %1953 = vmatpush1.bf16.msra.mxu0 0
        %1954 = vmatprep.subr.bf16.mxu0 0
        %1955 = vmatpush1.bf16.msra.mxu0 0
        %1956 = vmatprep.subr.bf16.mxu0 0
        %1957 = vmatpush1.bf16.msra.mxu0 0
        %1958 = vmatprep.subr.bf16.mxu0 0
        %1959 = vmatpush1.bf16.msra.mxu0 0
        %1960 = vmatprep.subr.bf16.mxu0 0
        %1961 = vmatpush1.bf16.msra.mxu0 0
        %1962 = vmatprep.subr.bf16.mxu0 0
        %1963 = vmatpush1.bf16.msra.mxu0 0
        %1964 = vmatprep.subr.bf16.mxu0 0
        %1965 = vmatpush1.bf16.msra.mxu0 0
        %1966 = vmatprep.subr.bf16.mxu0 0
        %1967 = vmatpush1.bf16.msra.mxu0 0
        %1968 = vmatprep.subr.bf16.mxu0 0
        %1969 = vmatpush1.bf16.msra.mxu0 0
        %1970 = vmatprep.subr.bf16.mxu0 0
        %1971 = vmatpush1.bf16.msra.mxu0 0
        %1972 = vmatprep.subr.bf16.mxu0 0
        %1973 = vmatpush1.bf16.msra.mxu0 0
        %1974 = vmatprep.subr.bf16.mxu0 0
        %1975 = vmatpush1.bf16.msra.mxu0 0
        %1976 = vmatprep.subr.bf16.mxu0 0
        %1977 = vmatpush1.bf16.msra.mxu0 0
        %1978 = vmatprep.subr.bf16.mxu0 0
        %1979 = vmatpush1.bf16.msra.mxu0 0
        %1980 = vmatprep.subr.bf16.mxu0 0
        %1981 = vmatpush1.bf16.msra.mxu0 0
        %1982 = vmatprep.mubr.bf16.mxu0 0
        %1983 = vmatmul.mubr.bf16.gmra.mrb[0].mxu0 %v1945
        %v1984 = vpop.f32.mrb[0].mxu0
        %v1985 = vadd.f32 0.0, %v1984
        %v1986 = vpop.f32.mrb[0].mxu0
        %v1987 = vpop.f32.mrb[0].mxu0
        %v1988 = vadd.f32 0.0, %v1987
        %v1989 = vpop.f32.mrb[0].mxu0
        %1990 = vdwg.mxu0
        %1991 = vxpose.xlu0.c.b16.start [1/8] %v1921, 128
        %1992 = vxpose.xlu0.c.b16.cont [2/8] 0, 128
        %1993 = vxpose.xlu0.c.b16.cont [3/8] 0, 128
        %1994 = vxpose.xlu0.c.b16.cont [4/8] 0, 128
        %1995 = vxpose.xlu0.c.b16.cont [5/8] 0, 128
        %1996 = vxpose.xlu0.c.b16.cont [6/8] 0, 128
        %1997 = vxpose.xlu0.c.b16.cont [7/8] 0, 128
        %1998 = vxpose.xlu0.c.b16.end [8/8] 0, 128
        %v1999 = vpop.trf.xlu0
        %v2000 = vpop.trf.xlu0
        %v2001 = vpop.trf.xlu0
        %v2002 = vpop.trf.xlu0
        %v2003 = vpop.trf.xlu0
        %v2004 = vpop.trf.xlu0
        %v2005 = vpop.trf.xlu0
        %v2006 = vpop.trf.xlu0
        %v2008 = vsel %vm1361, %v1999, 0
        %v2011 = vsel %vm1365, %v1925, 0
        %2013 = vmatprep.subr.bf16.mxu0 0
        %2014 = vmatpush1.bf16.msra.mxu0 %v2011
        %2015 = vmatprep.subr.bf16.mxu0 0
        %2016 = vmatpush1.bf16.msra.mxu0 0
        %2017 = vmatprep.subr.bf16.mxu0 0
        %2018 = vmatpush1.bf16.msra.mxu0 0
        %2019 = vmatprep.subr.bf16.mxu0 0
        %2020 = vmatpush1.bf16.msra.mxu0 0
        %2021 = vmatprep.subr.bf16.mxu0 0
        %2022 = vmatpush1.bf16.msra.mxu0 0
        %2023 = vmatprep.subr.bf16.mxu0 0
        %2024 = vmatpush1.bf16.msra.mxu0 0
        %2025 = vmatprep.subr.bf16.mxu0 0
        %2026 = vmatpush1.bf16.msra.mxu0 0
        %2027 = vmatprep.subr.bf16.mxu0 0
        %2028 = vmatpush1.bf16.msra.mxu0 0
        %2029 = vmatprep.subr.bf16.mxu0 0
        %2030 = vmatpush1.bf16.msra.mxu0 0
        %2031 = vmatprep.subr.bf16.mxu0 0
        %2032 = vmatpush1.bf16.msra.mxu0 0
        %2033 = vmatprep.subr.bf16.mxu0 0
        %2034 = vmatpush1.bf16.msra.mxu0 0
        %2035 = vmatprep.subr.bf16.mxu0 0
        %2036 = vmatpush1.bf16.msra.mxu0 0
        %2037 = vmatprep.subr.bf16.mxu0 0
        %2038 = vmatpush1.bf16.msra.mxu0 0
        %2039 = vmatprep.subr.bf16.mxu0 0
        %2040 = vmatpush1.bf16.msra.mxu0 0
        %2041 = vmatprep.subr.bf16.mxu0 0
        %2042 = vmatpush1.bf16.msra.mxu0 0
        %2043 = vmatprep.subr.bf16.mxu0 0
        %2044 = vmatpush1.bf16.msra.mxu0 0
        %2045 = vmatprep.mubr.bf16.mxu0 0
        %2046 = vmatmul.mubr.bf16.gmra.mrb[0].mxu0 %v2008
        %v2047 = vpop.f32.mrb[0].mxu0
        %v2048 = vadd.f32 0.0, %v2047
        %v2049 = vpop.f32.mrb[0].mxu0
        %v2050 = vpop.f32.mrb[0].mxu0
        %v2051 = vadd.f32 0.0, %v2050
        %v2052 = vpop.f32.mrb[0].mxu0
        %2053 = vdwg.mxu0
        %2054 = vxpose.xlu0.c.b16.start [1/8] %v1922, 128
        %2055 = vxpose.xlu0.c.b16.cont [2/8] 0, 128
        %2056 = vxpose.xlu0.c.b16.cont [3/8] 0, 128
        %2057 = vxpose.xlu0.c.b16.cont [4/8] 0, 128
        %2058 = vxpose.xlu0.c.b16.cont [5/8] 0, 128
        %2059 = vxpose.xlu0.c.b16.cont [6/8] 0, 128
        %2060 = vxpose.xlu0.c.b16.cont [7/8] 0, 128
        %2061 = vxpose.xlu0.c.b16.end [8/8] 0, 128
        %v2062 = vpop.trf.xlu0
        %v2063 = vpop.trf.xlu0
        %v2064 = vpop.trf.xlu0
        %v2065 = vpop.trf.xlu0
        %v2066 = vpop.trf.xlu0
        %v2067 = vpop.trf.xlu0
        %v2068 = vpop.trf.xlu0
        %v2069 = vpop.trf.xlu0
        %v2071 = vsel %vm1361, %v2062, 0
        %v2074 = vsel %vm1365, %v1926, 0
        %2076 = vmatprep.subr.bf16.mxu0 0
        %2077 = vmatpush1.bf16.msra.mxu0 %v2074
        %2078 = vmatprep.subr.bf16.mxu0 0
        %2079 = vmatpush1.bf16.msra.mxu0 0
        %2080 = vmatprep.subr.bf16.mxu0 0
        %2081 = vmatpush1.bf16.msra.mxu0 0
        %2082 = vmatprep.subr.bf16.mxu0 0
        %2083 = vmatpush1.bf16.msra.mxu0 0
        %2084 = vmatprep.subr.bf16.mxu0 0
        %2085 = vmatpush1.bf16.msra.mxu0 0
        %2086 = vmatprep.subr.bf16.mxu0 0
        %2087 = vmatpush1.bf16.msra.mxu0 0
        %2088 = vmatprep.subr.bf16.mxu0 0
        %2089 = vmatpush1.bf16.msra.mxu0 0
        %2090 = vmatprep.subr.bf16.mxu0 0
        %2091 = vmatpush1.bf16.msra.mxu0 0
        %2092 = vmatprep.subr.bf16.mxu0 0
        %2093 = vmatpush1.bf16.msra.mxu0 0
        %2094 = vmatprep.subr.bf16.mxu0 0
        %2095 = vmatpush1.bf16.msra.mxu0 0
        %2096 = vmatprep.subr.bf16.mxu0 0
        %2097 = vmatpush1.bf16.msra.mxu0 0
        %2098 = vmatprep.subr.bf16.mxu0 0
        %2099 = vmatpush1.bf16.msra.mxu0 0
        %2100 = vmatprep.subr.bf16.mxu0 0
        %2101 = vmatpush1.bf16.msra.mxu0 0
        %2102 = vmatprep.subr.bf16.mxu0 0
        %2103 = vmatpush1.bf16.msra.mxu0 0
        %2104 = vmatprep.subr.bf16.mxu0 0
        %2105 = vmatpush1.bf16.msra.mxu0 0
        %2106 = vmatprep.subr.bf16.mxu0 0
        %2107 = vmatpush1.bf16.msra.mxu0 0
        %2108 = vmatprep.mubr.bf16.mxu0 0
        %2109 = vmatmul.mubr.bf16.gmra.mrb[0].mxu0 %v2071
        %v2110 = vpop.f32.mrb[0].mxu0
        %v2111 = vadd.f32 0.0, %v2110
        %v2112 = vpop.f32.mrb[0].mxu0
        %v2113 = vpop.f32.mrb[0].mxu0
        %v2114 = vadd.f32 0.0, %v2113
        %v2115 = vpop.f32.mrb[0].mxu0
        %2116 = vdwg.mxu0
        %2117 = vxpose.xlu0.c.b16.start [1/8] %v1923, 128
        %2118 = vxpose.xlu0.c.b16.cont [2/8] 0, 128
        %2119 = vxpose.xlu0.c.b16.cont [3/8] 0, 128
        %2120 = vxpose.xlu0.c.b16.cont [4/8] 0, 128
        %2121 = vxpose.xlu0.c.b16.cont [5/8] 0, 128
        %2122 = vxpose.xlu0.c.b16.cont [6/8] 0, 128
        %2123 = vxpose.xlu0.c.b16.cont [7/8] 0, 128
        %2124 = vxpose.xlu0.c.b16.end [8/8] 0, 128
        %v2125 = vpop.trf.xlu0
        %v2126 = vpop.trf.xlu0
        %v2127 = vpop.trf.xlu0
        %v2128 = vpop.trf.xlu0
        %v2129 = vpop.trf.xlu0
        %v2130 = vpop.trf.xlu0
        %v2131 = vpop.trf.xlu0
        %v2132 = vpop.trf.xlu0
        %v2134 = vsel %vm1361, %v2125, 0
        %v2137 = vsel %vm1365, %v1927, 0
        %2139 = vmatprep.subr.bf16.mxu0 0
        %2140 = vmatpush1.bf16.msra.mxu0 %v2137
        %2141 = vmatprep.subr.bf16.mxu0 0
        %2142 = vmatpush1.bf16.msra.mxu0 0
        %2143 = vmatprep.subr.bf16.mxu0 0
        %2144 = vmatpush1.bf16.msra.mxu0 0
        %2145 = vmatprep.subr.bf16.mxu0 0
        %2146 = vmatpush1.bf16.msra.mxu0 0
        %2147 = vmatprep.subr.bf16.mxu0 0
        %2148 = vmatpush1.bf16.msra.mxu0 0
        %2149 = vmatprep.subr.bf16.mxu0 0
        %2150 = vmatpush1.bf16.msra.mxu0 0
        %2151 = vmatprep.subr.bf16.mxu0 0
        %2152 = vmatpush1.bf16.msra.mxu0 0
        %2153 = vmatprep.subr.bf16.mxu0 0
        %2154 = vmatpush1.bf16.msra.mxu0 0
        %2155 = vmatprep.subr.bf16.mxu0 0
        %2156 = vmatpush1.bf16.msra.mxu0 0
        %2157 = vmatprep.subr.bf16.mxu0 0
        %2158 = vmatpush1.bf16.msra.mxu0 0
        %2159 = vmatprep.subr.bf16.mxu0 0
        %2160 = vmatpush1.bf16.msra.mxu0 0
        %2161 = vmatprep.subr.bf16.mxu0 0
        %2162 = vmatpush1.bf16.msra.mxu0 0
        %2163 = vmatprep.subr.bf16.mxu0 0
        %2164 = vmatpush1.bf16.msra.mxu0 0
        %2165 = vmatprep.subr.bf16.mxu0 0
        %2166 = vmatpush1.bf16.msra.mxu0 0
        %2167 = vmatprep.subr.bf16.mxu0 0
        %2168 = vmatpush1.bf16.msra.mxu0 0
        %2169 = vmatprep.subr.bf16.mxu0 0
        %2170 = vmatpush1.bf16.msra.mxu0 0
        %2171 = vmatprep.mubr.bf16.mxu0 0
        %2172 = vmatmul.mubr.bf16.gmra.mrb[0].mxu0 %v2134
        %v2173 = vpop.f32.mrb[0].mxu0
        %v2174 = vadd.f32 0.0, %v2173
        %v2175 = vpop.f32.mrb[0].mxu0
        %v2176 = vpop.f32.mrb[0].mxu0
        %v2177 = vadd.f32 0.0, %v2176
        %v2178 = vpop.f32.mrb[0].mxu0
        %2179 = vdwg.mxu0
        %v2180 = vmul.f32 %v1985, 0.35355338
        %v2181 = vmul.f32 %v1988, 0.35355338
        %v2182 = vmul.f32 %v2048, 0.35355338
        %v2183 = vmul.f32 %v2051, 0.35355338
        %v2184 = vmul.f32 %v2111, 0.35355338
        %v2185 = vmul.f32 %v2114, 0.35355338
        %v2186 = vmul.f32 %v2174, 0.35355338
        %v2187 = vmul.f32 %v2177, 0.35355338
        %v2188 = vsel %vm1607, %v2180, -inf
        %2189 = vmax.xlane.f32.xlu0 %v2188
        %v2190 = vpop.xlane.xlu0 %2189
        %v2191 = vsel %vm1607, %v2181, -inf
        %2192 = vmax.xlane.f32.xlu0 %v2191
        %v2193 = vpop.xlane.xlu0 %2192
        %v2194 = vsel %vm1607, %v2182, -inf
        %2195 = vmax.xlane.f32.xlu0 %v2194
        %v2196 = vpop.xlane.xlu0 %2195
        %v2197 = vsel %vm1607, %v2183, -inf
        %2198 = vmax.xlane.f32.xlu0 %v2197
        %v2199 = vpop.xlane.xlu0 %2198
        %v2200 = vsel %vm1607, %v2184, -inf
        %2201 = vmax.xlane.f32.xlu0 %v2200
        %v2202 = vpop.xlane.xlu0 %2201
        %v2203 = vsel %vm1607, %v2185, -inf
        %2204 = vmax.xlane.f32.xlu0 %v2203
        %v2205 = vpop.xlane.xlu0 %2204
        %v2206 = vsel %vm1607, %v2186, -inf
        %2207 = vmax.xlane.f32.xlu0 %v2206
        %v2208 = vpop.xlane.xlu0 %2207
        %v2209 = vsel %vm1607, %v2187, -inf
        %2210 = vmax.xlane.f32.xlu0 %v2209
        %v2211 = vpop.xlane.xlu0 %2210
        %v2212 = vsub.f32 %v2180, %v2190
        %v2213 = vsub.f32 %v2181, %v2193
        %v2214 = vsub.f32 %v2182, %v2196
        %v2215 = vsub.f32 %v2183, %v2199
        %v2216 = vsub.f32 %v2184, %v2202
        %v2217 = vsub.f32 %v2185, %v2205
        %v2218 = vsub.f32 %v2186, %v2208
        %v2219 = vsub.f32 %v2187, %v2211
        %v2220 = vmul.f32 %v2212, 1.442695
        %v2221 = vpow.pop %v2220
        %v2222 = vmul.f32 %v2213, 1.442695
        %v2223 = vpow.pop %v2222
        %v2224 = vmul.f32 %v2214, 1.442695
        %v2225 = vpow.pop %v2224
        %v2226 = vmul.f32 %v2215, 1.442695
        %v2227 = vpow.pop %v2226
        %v2228 = vmul.f32 %v2216, 1.442695
        %v2229 = vpow.pop %v2228
        %v2230 = vmul.f32 %v2217, 1.442695
        %v2231 = vpow.pop %v2230
        %v2232 = vmul.f32 %v2218, 1.442695
        %v2233 = vpow.pop %v2232
        %v2234 = vmul.f32 %v2219, 1.442695
        %v2235 = vpow.pop %v2234
        %v2236 = vsel %vm1607, %v2221, 0.0
        %2237 = vadd.xlane.f32.xlu0 %v2236
        %v2238 = vpop.xlane.xlu0 %2237
        %v2239 = vsel %vm1607, %v2223, 0.0
        %2240 = vadd.xlane.f32.xlu0 %v2239
        %v2241 = vpop.xlane.xlu0 %2240
        %v2242 = vsel %vm1607, %v2225, 0.0
        %2243 = vadd.xlane.f32.xlu0 %v2242
        %v2244 = vpop.xlane.xlu0 %2243
        %v2245 = vsel %vm1607, %v2227, 0.0
        %2246 = vadd.xlane.f32.xlu0 %v2245
        %v2247 = vpop.xlane.xlu0 %2246
        %v2248 = vsel %vm1607, %v2229, 0.0
        %2249 = vadd.xlane.f32.xlu0 %v2248
        %v2250 = vpop.xlane.xlu0 %2249
        %v2251 = vsel %vm1607, %v2231, 0.0
        %2252 = vadd.xlane.f32.xlu0 %v2251
        %v2253 = vpop.xlane.xlu0 %2252
        %v2254 = vsel %vm1607, %v2233, 0.0
        %2255 = vadd.xlane.f32.xlu0 %v2254
        %v2256 = vpop.xlane.xlu0 %2255
        %v2257 = vsel %vm1607, %v2235, 0.0
        %2258 = vadd.xlane.f32.xlu0 %v2257
        %v2259 = vpop.xlane.xlu0 %2258
        %v2260 = vrcp.pop %v2238
        %v2261 = vmul.f32 %v2221, %v2260
        %v2262 = vrcp.pop %v2241
        %v2263 = vmul.f32 %v2223, %v2262
        %v2264 = vrcp.pop %v2244
        %v2265 = vmul.f32 %v2225, %v2264
        %v2266 = vrcp.pop %v2247
        %v2267 = vmul.f32 %v2227, %v2266
        %v2268 = vrcp.pop %v2250
        %v2269 = vmul.f32 %v2229, %v2268
        %v2270 = vrcp.pop %v2253
        %v2271 = vmul.f32 %v2231, %v2270
        %v2272 = vrcp.pop %v2256
        %v2273 = vmul.f32 %v2233, %v2272
        %v2274 = vrcp.pop %v2259
        %v2275 = vmul.f32 %v2235, %v2274
        %v2276 = vpack.c.bf16 %v1148, %v1148
        %v2277 = vpack.c.bf16 %v1151, %v1151
        %v2278 = vpack.c.bf16 %v1156, %v1156
        %v2279 = vpack.c.bf16 %v1159, %v1159
        %v2280 = vpack.c.bf16 %v2263, %v2261
        %v2281 = vpack.c.bf16 %v2267, %v2265
        %v2282 = vpack.c.bf16 %v2271, %v2269
        %v2283 = vpack.c.bf16 %v2275, %v2273
        %v2285 = vsel %vm1607, %v2276, 0
        %v2288 = vsel %vm1607, %v2280, 0
        %2290 = vmatprep.subr.bf16.mxu0 0
        %2291 = vmatpush1.bf16.xpose.msra.mxu0 %v2288
        %2292 = vmatprep.subr.bf16.mxu0 0
        %2293 = vmatpush1.bf16.xpose.msra.mxu0 0
        %2294 = vmatprep.subr.bf16.mxu0 0
        %2295 = vmatpush1.bf16.xpose.msra.mxu0 0
        %2296 = vmatprep.subr.bf16.mxu0 0
        %2297 = vmatpush1.bf16.xpose.msra.mxu0 0
        %2298 = vmatprep.subr.bf16.mxu0 0
        %2299 = vmatpush1.bf16.xpose.msra.mxu0 0
        %2300 = vmatprep.subr.bf16.mxu0 0
        %2301 = vmatpush1.bf16.xpose.msra.mxu0 0
        %2302 = vmatprep.subr.bf16.mxu0 0
        %2303 = vmatpush1.bf16.xpose.msra.mxu0 0
        %2304 = vmatprep.subr.bf16.mxu0 0
        %2305 = vmatpush1.bf16.xpose.msra.mxu0 0
        %2306 = vmatprep.subr.bf16.mxu0 0
        %2307 = vmatpush1.bf16.xpose.msra.mxu0 0
        %2308 = vmatprep.subr.bf16.mxu0 0
        %2309 = vmatpush1.bf16.xpose.msra.mxu0 0
        %2310 = vmatprep.subr.bf16.mxu0 0
        %2311 = vmatpush1.bf16.xpose.msra.mxu0 0
        %2312 = vmatprep.subr.bf16.mxu0 0
        %2313 = vmatpush1.bf16.xpose.msra.mxu0 0
        %2314 = vmatprep.subr.bf16.mxu0 0
        %2315 = vmatpush1.bf16.xpose.msra.mxu0 0
        %2316 = vmatprep.subr.bf16.mxu0 0
        %2317 = vmatpush1.bf16.xpose.msra.mxu0 0
        %2318 = vmatprep.subr.bf16.mxu0 0
        %2319 = vmatpush1.bf16.xpose.msra.mxu0 0
        %2320 = vmatprep.subr.bf16.mxu0 0
        %2321 = vmatpush1.bf16.xpose.msra.mxu0 0
        %2322 = vmatprep.mubr.bf16.mxu0 0
        %2323 = vmatmul.mubr.bf16.gmra.mrb[0].mxu0 %v2285
        %v2324 = vpop.f32.mrb[0].mxu0
        %v2325 = vadd.f32 0.0, %v2324
        %v2326 = vpop.f32.mrb[0].mxu0
        %v2327 = vpop.f32.mrb[0].mxu0
        %v2328 = vpop.f32.mrb[0].mxu0
        %2329 = vdwg.mxu0
        %v2331 = vsel %vm1607, %v2277, 0
        %v2334 = vsel %vm1607, %v2281, 0
        %2336 = vmatprep.subr.bf16.mxu0 0
        %2337 = vmatpush1.bf16.xpose.msra.mxu0 %v2334
        %2338 = vmatprep.subr.bf16.mxu0 0
        %2339 = vmatpush1.bf16.xpose.msra.mxu0 0
        %2340 = vmatprep.subr.bf16.mxu0 0
        %2341 = vmatpush1.bf16.xpose.msra.mxu0 0
        %2342 = vmatprep.subr.bf16.mxu0 0
        %2343 = vmatpush1.bf16.xpose.msra.mxu0 0
        %2344 = vmatprep.subr.bf16.mxu0 0
        %2345 = vmatpush1.bf16.xpose.msra.mxu0 0
        %2346 = vmatprep.subr.bf16.mxu0 0
        %2347 = vmatpush1.bf16.xpose.msra.mxu0 0
        %2348 = vmatprep.subr.bf16.mxu0 0
        %2349 = vmatpush1.bf16.xpose.msra.mxu0 0
        %2350 = vmatprep.subr.bf16.mxu0 0
        %2351 = vmatpush1.bf16.xpose.msra.mxu0 0
        %2352 = vmatprep.subr.bf16.mxu0 0
        %2353 = vmatpush1.bf16.xpose.msra.mxu0 0
        %2354 = vmatprep.subr.bf16.mxu0 0
        %2355 = vmatpush1.bf16.xpose.msra.mxu0 0
        %2356 = vmatprep.subr.bf16.mxu0 0
        %2357 = vmatpush1.bf16.xpose.msra.mxu0 0
        %2358 = vmatprep.subr.bf16.mxu0 0
        %2359 = vmatpush1.bf16.xpose.msra.mxu0 0
        %2360 = vmatprep.subr.bf16.mxu0 0
        %2361 = vmatpush1.bf16.xpose.msra.mxu0 0
        %2362 = vmatprep.subr.bf16.mxu0 0
        %2363 = vmatpush1.bf16.xpose.msra.mxu0 0
        %2364 = vmatprep.subr.bf16.mxu0 0
        %2365 = vmatpush1.bf16.xpose.msra.mxu0 0
        %2366 = vmatprep.subr.bf16.mxu0 0
        %2367 = vmatpush1.bf16.xpose.msra.mxu0 0
        %2368 = vmatprep.mubr.bf16.mxu0 0
        %2369 = vmatmul.mubr.bf16.gmra.mrb[0].mxu0 %v2331
        %v2370 = vpop.f32.mrb[0].mxu0
        %v2371 = vadd.f32 0.0, %v2370
        %v2372 = vpop.f32.mrb[0].mxu0
        %v2373 = vpop.f32.mrb[0].mxu0
        %v2374 = vpop.f32.mrb[0].mxu0
        %2375 = vdwg.mxu0
        %v2377 = vsel %vm1607, %v2278, 0
        %v2380 = vsel %vm1607, %v2282, 0
        %2382 = vmatprep.subr.bf16.mxu0 0
        %2383 = vmatpush1.bf16.xpose.msra.mxu0 %v2380
        %2384 = vmatprep.subr.bf16.mxu0 0
        %2385 = vmatpush1.bf16.xpose.msra.mxu0 0
        %2386 = vmatprep.subr.bf16.mxu0 0
        %2387 = vmatpush1.bf16.xpose.msra.mxu0 0
        %2388 = vmatprep.subr.bf16.mxu0 0
        %2389 = vmatpush1.bf16.xpose.msra.mxu0 0
        %2390 = vmatprep.subr.bf16.mxu0 0
        %2391 = vmatpush1.bf16.xpose.msra.mxu0 0
        %2392 = vmatprep.subr.bf16.mxu0 0
        %2393 = vmatpush1.bf16.xpose.msra.mxu0 0
        %2394 = vmatprep.subr.bf16.mxu0 0
        %2395 = vmatpush1.bf16.xpose.msra.mxu0 0
        %2396 = vmatprep.subr.bf16.mxu0 0
        %2397 = vmatpush1.bf16.xpose.msra.mxu0 0
        %2398 = vmatprep.subr.bf16.mxu0 0
        %2399 = vmatpush1.bf16.xpose.msra.mxu0 0
        %2400 = vmatprep.subr.bf16.mxu0 0
        %2401 = vmatpush1.bf16.xpose.msra.mxu0 0
        %2402 = vmatprep.subr.bf16.mxu0 0
        %2403 = vmatpush1.bf16.xpose.msra.mxu0 0
        %2404 = vmatprep.subr.bf16.mxu0 0
        %2405 = vmatpush1.bf16.xpose.msra.mxu0 0
        %2406 = vmatprep.subr.bf16.mxu0 0
        %2407 = vmatpush1.bf16.xpose.msra.mxu0 0
        %2408 = vmatprep.subr.bf16.mxu0 0
        %2409 = vmatpush1.bf16.xpose.msra.mxu0 0
        %2410 = vmatprep.subr.bf16.mxu0 0
        %2411 = vmatpush1.bf16.xpose.msra.mxu0 0
        %2412 = vmatprep.subr.bf16.mxu0 0
        %2413 = vmatpush1.bf16.xpose.msra.mxu0 0
        %2414 = vmatprep.mubr.bf16.mxu0 0
        %2415 = vmatmul.mubr.bf16.gmra.mrb[0].mxu0 %v2377
        %v2416 = vpop.f32.mrb[0].mxu0
        %v2417 = vadd.f32 0.0, %v2416
        %v2418 = vpop.f32.mrb[0].mxu0
        %v2419 = vpop.f32.mrb[0].mxu0
        %v2420 = vpop.f32.mrb[0].mxu0
        %2421 = vdwg.mxu0
        %v2423 = vsel %vm1607, %v2279, 0
        %v2426 = vsel %vm1607, %v2283, 0
        %2428 = vmatprep.subr.bf16.mxu0 0
        %2429 = vmatpush1.bf16.xpose.msra.mxu0 %v2426
        %2430 = vmatprep.subr.bf16.mxu0 0
        %2431 = vmatpush1.bf16.xpose.msra.mxu0 0
        %2432 = vmatprep.subr.bf16.mxu0 0
        %2433 = vmatpush1.bf16.xpose.msra.mxu0 0
        %2434 = vmatprep.subr.bf16.mxu0 0
        %2435 = vmatpush1.bf16.xpose.msra.mxu0 0
        %2436 = vmatprep.subr.bf16.mxu0 0
        %2437 = vmatpush1.bf16.xpose.msra.mxu0 0
        %2438 = vmatprep.subr.bf16.mxu0 0
        %2439 = vmatpush1.bf16.xpose.msra.mxu0 0
        %2440 = vmatprep.subr.bf16.mxu0 0
        %2441 = vmatpush1.bf16.xpose.msra.mxu0 0
        %2442 = vmatprep.subr.bf16.mxu0 0
        %2443 = vmatpush1.bf16.xpose.msra.mxu0 0
        %2444 = vmatprep.subr.bf16.mxu0 0
        %2445 = vmatpush1.bf16.xpose.msra.mxu0 0
        %2446 = vmatprep.subr.bf16.mxu0 0
        %2447 = vmatpush1.bf16.xpose.msra.mxu0 0
        %2448 = vmatprep.subr.bf16.mxu0 0
        %2449 = vmatpush1.bf16.xpose.msra.mxu0 0
        %2450 = vmatprep.subr.bf16.mxu0 0
        %2451 = vmatpush1.bf16.xpose.msra.mxu0 0
        %2452 = vmatprep.subr.bf16.mxu0 0
        %2453 = vmatpush1.bf16.xpose.msra.mxu0 0
        %2454 = vmatprep.subr.bf16.mxu0 0
        %2455 = vmatpush1.bf16.xpose.msra.mxu0 0
        %2456 = vmatprep.subr.bf16.mxu0 0
        %2457 = vmatpush1.bf16.xpose.msra.mxu0 0
        %2458 = vmatprep.subr.bf16.mxu0 0
        %2459 = vmatpush1.bf16.xpose.msra.mxu0 0
        %2460 = vmatprep.mubr.bf16.mxu0 0
        %2461 = vmatmul.mubr.bf16.gmra.mrb[0].mxu0 %v2423
        %v2462 = vpop.f32.mrb[0].mxu0
        %v2463 = vadd.f32 0.0, %v2462
        %v2464 = vpop.f32.mrb[0].mxu0
        %v2465 = vpop.f32.mrb[0].mxu0
        %v2466 = vpop.f32.mrb[0].mxu0
        %2467 = vdwg.mxu0
        %2468 = vxpose.xlu0.b32.start [1/16] %v2325, 128
        %2469 = vxpose.xlu0.b32.cont [2/16] %v2371, 128
        %2470 = vxpose.xlu0.b32.cont [3/16] %v2417, 128
        %2471 = vxpose.xlu0.b32.cont [4/16] %v2463, 128
        %2472 = vxpose.xlu0.b32.cont [5/16] 0.0, 128
        %2473 = vxpose.xlu0.b32.cont [6/16] 0.0, 128
        %2474 = vxpose.xlu0.b32.cont [7/16] 0.0, 128
        %2475 = vxpose.xlu0.b32.cont [8/16] 0.0, 128
        %2476 = vxpose.xlu0.b32.cont [9/16] 0.0, 128
        %2477 = vxpose.xlu0.b32.cont [10/16] 0.0, 128
        %2478 = vxpose.xlu0.b32.cont [11/16] 0.0, 128
        %2479 = vxpose.xlu0.b32.cont [12/16] 0.0, 128
        %2480 = vxpose.xlu0.b32.cont [13/16] 0.0, 128
        %2481 = vxpose.xlu0.b32.cont [14/16] 0.0, 128
        %2482 = vxpose.xlu0.b32.cont [15/16] 0.0, 128
        %2483 = vxpose.xlu0.b32.end [16/16] 0.0, 128
        %v2484 = vpop.trf.xlu0
        %v2485 = vpop.trf.xlu0
        %v2486 = vpop.trf.xlu0
        %v2487 = vpop.trf.xlu0
        %v2488 = vpop.trf.xlu0
        %v2489 = vpop.trf.xlu0
        %v2490 = vpop.trf.xlu0
        %v2491 = vpop.trf.xlu0
        %v2492 = vpop.trf.xlu0
        %v2493 = vpop.trf.xlu0
        %v2494 = vpop.trf.xlu0
        %v2495 = vpop.trf.xlu0
        %v2496 = vpop.trf.xlu0
        %v2497 = vpop.trf.xlu0
        %v2498 = vpop.trf.xlu0
        %v2499 = vpop.trf.xlu0
        %v2500 = vpack.c.bf16 %v1905, %v1904
        %v2501 = vld [vmem:[%s8] sm:$0xf]
        %v2502 = vld [vmem:[%s8 + $0x4] sm:$0xf]
        %v2503 = vld [vmem:[%s8 + $0x8] sm:$0xf]
        %v2504 = vld [vmem:[%s8 + $0xc] sm:$0xf]
        %v2505 = vld [vmem:[#allocation14] sm:$0x1]
        %v2507 = vlaneseq
        %v2508 = vshrl.u32 %v2507, 7
        %v2509 = vsub.s32 0, %v2508
        %v2510 = vrot.slane %v2505, %v2509
        %v2516 = vunpack.c.l.b16 %v2501
        %v2517 = vunpack.c.l.b16 %v2502
        %v2518 = vunpack.c.l.b16 %v2503
        %v2519 = vunpack.c.l.b16 %v2504
        %v2520 = vpack.c.b16 %v2517, %v2516
        %v2521 = vpack.c.b16 %v2519, %v2518
        %v2525 = vsel %vm899, %v2500, 0
        %2527 = vmatprep.subr.bf16.mxu0 0
        %2528 = vmatpush1.bf16.msra.mxu0 %v2520
        %2529 = vmatprep.subr.bf16.mxu0 0
        %2530 = vmatpush1.bf16.msra.mxu0 %v2521
        %2531 = vmatprep.subr.bf16.mxu0 0
        %2532 = vmatpush1.bf16.msra.mxu0 0
        %2533 = vmatprep.subr.bf16.mxu0 0
        %2534 = vmatpush1.bf16.msra.mxu0 0
        %2535 = vmatprep.subr.bf16.mxu0 0
        %2536 = vmatpush1.bf16.msra.mxu0 0
        %2537 = vmatprep.subr.bf16.mxu0 0
        %2538 = vmatpush1.bf16.msra.mxu0 0
        %2539 = vmatprep.subr.bf16.mxu0 0
        %2540 = vmatpush1.bf16.msra.mxu0 0
        %2541 = vmatprep.subr.bf16.mxu0 0
        %2542 = vmatpush1.bf16.msra.mxu0 0
        %2543 = vmatprep.subr.bf16.mxu0 0
        %2544 = vmatpush1.bf16.msra.mxu0 0
        %2545 = vmatprep.subr.bf16.mxu0 0
        %2546 = vmatpush1.bf16.msra.mxu0 0
        %2547 = vmatprep.subr.bf16.mxu0 0
        %2548 = vmatpush1.bf16.msra.mxu0 0
        %2549 = vmatprep.subr.bf16.mxu0 0
        %2550 = vmatpush1.bf16.msra.mxu0 0
        %2551 = vmatprep.subr.bf16.mxu0 0
        %2552 = vmatpush1.bf16.msra.mxu0 0
        %2553 = vmatprep.subr.bf16.mxu0 0
        %2554 = vmatpush1.bf16.msra.mxu0 0
        %2555 = vmatprep.subr.bf16.mxu0 0
        %2556 = vmatpush1.bf16.msra.mxu0 0
        %2557 = vmatprep.subr.bf16.mxu0 0
        %2558 = vmatpush1.bf16.msra.mxu0 0
        %2559 = vmatprep.mubr.bf16.mxu0 0
        %2560 = vmatmul.mubr.bf16.gmra.mrb[0].mxu0 %v2525
        %v2561 = vpop.f32.mrb[0].mxu0
        %v2562 = vadd.f32 %v2510, %v2561
        %v2563 = vpop.f32.mrb[0].mxu0
        %v2564 = vpop.f32.mrb[0].mxu0
        %v2565 = vadd.f32 %v2510, %v2564
        %v2566 = vpop.f32.mrb[0].mxu0
        %2567 = vdwg.mxu0
        %v2568 = vadd.f32 %v2562, %v893
        %v2569 = vadd.f32 %v2565, %v894
        %v2570 = vpack.c.bf16 %v2485, %v2484
        %v2571 = vld [vmem:[#allocation15] sm:$0xf]
        %v2572 = vld [vmem:[#allocation15 + $0x4] sm:$0xf]
        %v2573 = vld [vmem:[#allocation15 + $0x8] sm:$0xf]
        %v2574 = vld [vmem:[#allocation15 + $0xc] sm:$0xf]
        %v2575 = vld [vmem:[#allocation17] sm:$0x1]
        %v2577 = vlaneseq
        %v2578 = vshrl.u32 %v2577, 7
        %v2579 = vsub.s32 0, %v2578
        %v2580 = vrot.slane %v2575, %v2579
        %v2586 = vunpack.c.l.b16 %v2571
        %v2587 = vunpack.c.l.b16 %v2572
        %v2588 = vunpack.c.l.b16 %v2573
        %v2589 = vunpack.c.l.b16 %v2574
        %v2590 = vpack.c.b16 %v2587, %v2586
        %v2591 = vpack.c.b16 %v2589, %v2588
        %v2595 = vsel %vm899, %v2570, 0
        %2597 = vmatprep.subr.bf16.mxu0 0
        %2598 = vmatpush1.bf16.msra.mxu0 %v2590
        %2599 = vmatprep.subr.bf16.mxu0 0
        %2600 = vmatpush1.bf16.msra.mxu0 %v2591
        %2601 = vmatprep.subr.bf16.mxu0 0
        %2602 = vmatpush1.bf16.msra.mxu0 0
        %2603 = vmatprep.subr.bf16.mxu0 0
        %2604 = vmatpush1.bf16.msra.mxu0 0
        %2605 = vmatprep.subr.bf16.mxu0 0
        %2606 = vmatpush1.bf16.msra.mxu0 0
        %2607 = vmatprep.subr.bf16.mxu0 0
        %2608 = vmatpush1.bf16.msra.mxu0 0
        %2609 = vmatprep.subr.bf16.mxu0 0
        %2610 = vmatpush1.bf16.msra.mxu0 0
        %2611 = vmatprep.subr.bf16.mxu0 0
        %2612 = vmatpush1.bf16.msra.mxu0 0
        %2613 = vmatprep.subr.bf16.mxu0 0
        %2614 = vmatpush1.bf16.msra.mxu0 0
        %2615 = vmatprep.subr.bf16.mxu0 0
        %2616 = vmatpush1.bf16.msra.mxu0 0
        %2617 = vmatprep.subr.bf16.mxu0 0
        %2618 = vmatpush1.bf16.msra.mxu0 0
        %2619 = vmatprep.subr.bf16.mxu0 0
        %2620 = vmatpush1.bf16.msra.mxu0 0
        %2621 = vmatprep.subr.bf16.mxu0 0
        %2622 = vmatpush1.bf16.msra.mxu0 0
        %2623 = vmatprep.subr.bf16.mxu0 0
        %2624 = vmatpush1.bf16.msra.mxu0 0
        %2625 = vmatprep.subr.bf16.mxu0 0
        %2626 = vmatpush1.bf16.msra.mxu0 0
        %2627 = vmatprep.subr.bf16.mxu0 0
        %2628 = vmatpush1.bf16.msra.mxu0 0
        %2629 = vmatprep.mubr.bf16.mxu0 0
        %2630 = vmatmul.mubr.bf16.gmra.mrb[0].mxu0 %v2595
        %v2631 = vpop.f32.mrb[0].mxu0
        %v2632 = vadd.f32 %v2580, %v2631
        %v2633 = vpop.f32.mrb[0].mxu0
        %v2634 = vpop.f32.mrb[0].mxu0
        %v2635 = vadd.f32 %v2580, %v2634
        %v2636 = vpop.f32.mrb[0].mxu0
        %2637 = vdwg.mxu0
        %v2638 = vadd.f32 %v2632, %v895
        %v2639 = vadd.f32 %v2635, %v896
        %v2640 = vld [vmem:[%s12] sm:$0xf]
        %v2641 = vld [vmem:[%s12 + $0x4] sm:$0xf]
        %v2642 = vld [vmem:[%s12 + $0x8] sm:$0xf]
        %v2643 = vld [vmem:[%s12 + $0xc] sm:$0xf]
        %v2644 = vld [vmem:[%s12 + $0x10] sm:$0xf]
        %v2645 = vld [vmem:[%s12 + $0x14] sm:$0xf]
        %v2646 = vld [vmem:[%s12 + $0x18] sm:$0xf]
        %v2647 = vld [vmem:[%s12 + $0x1c] sm:$0xf]
        %v2648 = vld [vmem:[%s12 + $0x20] sm:$0xf]
        %v2649 = vld [vmem:[%s12 + $0x24] sm:$0xf]
        %v2650 = vld [vmem:[%s12 + $0x28] sm:$0xf]
        %v2651 = vld [vmem:[%s12 + $0x2c] sm:$0xf]
        %v2652 = vld [vmem:[%s12 + $0x30] sm:$0xf]
        %v2653 = vld [vmem:[%s12 + $0x34] sm:$0xf]
        %v2654 = vld [vmem:[%s12 + $0x38] sm:$0xf]
        %v2655 = vld [vmem:[%s12 + $0x3c] sm:$0xf]
        %v2656 = vld [vmem:[%s12 + $0x40] sm:$0xf]
        %v2657 = vld [vmem:[%s12 + $0x44] sm:$0xf]
        %v2658 = vld [vmem:[%s12 + $0x48] sm:$0xf]
        %v2659 = vld [vmem:[%s12 + $0x4c] sm:$0xf]
        %v2660 = vld [vmem:[%s12 + $0x50] sm:$0xf]
        %v2661 = vld [vmem:[%s12 + $0x54] sm:$0xf]
        %v2662 = vld [vmem:[%s12 + $0x58] sm:$0xf]
        %v2663 = vld [vmem:[%s12 + $0x5c] sm:$0xf]
        %v2664 = vld [vmem:[%s12 + $0x60] sm:$0xf]
        %v2665 = vld [vmem:[%s12 + $0x64] sm:$0xf]
        %v2666 = vld [vmem:[%s12 + $0x68] sm:$0xf]
        %v2667 = vld [vmem:[%s12 + $0x6c] sm:$0xf]
        %v2668 = vld [vmem:[%s12 + $0x70] sm:$0xf]
        %v2669 = vld [vmem:[%s12 + $0x74] sm:$0xf]
        %v2670 = vld [vmem:[%s12 + $0x78] sm:$0xf]
        %v2671 = vld [vmem:[%s12 + $0x7c] sm:$0xf]
        %v2672 = vld [vmem:[%s12 + $0x80] sm:$0xf]
        %v2673 = vld [vmem:[%s12 + $0x84] sm:$0xf]
        %v2674 = vld [vmem:[%s12 + $0x88] sm:$0xf]
        %v2675 = vld [vmem:[%s12 + $0x8c] sm:$0xf]
        %v2676 = vld [vmem:[#allocation18] sm:$0xf]
        %v2677 = vld [vmem:[#allocation18 + $0x4] sm:$0xf]
        %v2678 = vld [vmem:[#allocation18 + $0x8] sm:$0xf]
        %v2679 = vld [vmem:[#allocation18 + $0xc] sm:$0xf]
        %v2680 = vld [vmem:[#allocation18 + $0x10] sm:$0xf]
        %v2681 = vld [vmem:[#allocation18 + $0x14] sm:$0xf]
        %v2682 = vld [vmem:[#allocation18 + $0x18] sm:$0xf]
        %v2683 = vld [vmem:[#allocation18 + $0x1c] sm:$0xf]
        %v2684 = vld [vmem:[#allocation18 + $0x20] sm:$0xf]
        %v2685 = vld [vmem:[#allocation18 + $0x24] sm:$0xf]
        %v2686 = vld [vmem:[#allocation18 + $0x28] sm:$0xf]
        %v2687 = vld [vmem:[#allocation18 + $0x2c] sm:$0xf]
        %v2688 = vld [vmem:[#allocation18 + $0x30] sm:$0xf]
        %v2689 = vld [vmem:[#allocation18 + $0x34] sm:$0xf]
        %v2690 = vld [vmem:[#allocation18 + $0x38] sm:$0xf]
        %v2691 = vld [vmem:[#allocation18 + $0x3c] sm:$0xf]
        %v2692 = vld [vmem:[#allocation18 + $0x40] sm:$0xf]
        %v2693 = vld [vmem:[#allocation18 + $0x44] sm:$0xf]
        %v2694 = vld [vmem:[#allocation18 + $0x48] sm:$0xf]
        %v2695 = vld [vmem:[#allocation18 + $0x4c] sm:$0xf]
        %v2696 = vld [vmem:[#allocation18 + $0x50] sm:$0xf]
        %v2697 = vld [vmem:[#allocation18 + $0x54] sm:$0xf]
        %v2698 = vld [vmem:[#allocation18 + $0x58] sm:$0xf]
        %v2699 = vld [vmem:[#allocation18 + $0x5c] sm:$0xf]
        %v2700 = vld [vmem:[#allocation18 + $0x60] sm:$0xf]
        %v2701 = vld [vmem:[#allocation18 + $0x64] sm:$0xf]
        %v2702 = vld [vmem:[#allocation18 + $0x68] sm:$0xf]
        %v2703 = vld [vmem:[#allocation18 + $0x6c] sm:$0xf]
        %v2704 = vld [vmem:[#allocation18 + $0x70] sm:$0xf]
        %v2705 = vld [vmem:[#allocation18 + $0x74] sm:$0xf]
        %v2706 = vld [vmem:[#allocation18 + $0x78] sm:$0xf]
        %v2707 = vld [vmem:[#allocation18 + $0x7c] sm:$0xf]
        %v2708 = vld [vmem:[#allocation18 + $0x80] sm:$0xf]
        %v2709 = vld [vmem:[#allocation18 + $0x84] sm:$0xf]
        %v2710 = vld [vmem:[#allocation18 + $0x88] sm:$0xf]
        %v2711 = vld [vmem:[#allocation18 + $0x8c] sm:$0xf]
        %vm2712 = vcmask 259072
        %2713 = vst.msk [vmem:[#allocation2] sm:$0x3f] %vm2712, 0.0
        %s2714 = scalar_lea.vmem [#allocation2], 40
        %2715 = vst.msk [vmem:[%s2714] sm:$0x3f] %vm2712, 0.0
        %vm2716 = vcmask 253952
        %2717 = vst.msk [vmem:[#allocation2] sm:$0x1] %vm2716, 0.0
        %2718 = vst.msk [vmem:[#allocation2 + $0x8] sm:$0x1] %vm2716, 0.0
        %2719 = vst.msk [vmem:[#allocation2 + $0x10] sm:$0x1] %vm2716, 0.0
        %2720 = vst.msk [vmem:[#allocation2 + $0x18] sm:$0x1] %vm2716, 0.0
        %2721 = vst.msk [vmem:[#allocation2 + $0x20] sm:$0x1] %vm2716, 0.0
        %2722 = vst.msk [vmem:[#allocation2 + $0x28] sm:$0x1] %vm2716, 0.0
        %2723 = vst.msk [vmem:[#allocation2 + $0x5] sm:$0x1] %vm2716, 0.0
        %2724 = vst.msk [vmem:[#allocation2 + $0xd] sm:$0x1] %vm2716, 0.0
        %2725 = vst.msk [vmem:[#allocation2 + $0x15] sm:$0x1] %vm2716, 0.0
        %2726 = vst.msk [vmem:[#allocation2 + $0x1d] sm:$0x1] %vm2716, 0.0
        %2727 = vst.msk [vmem:[#allocation2 + $0x25] sm:$0x1] %vm2716, 0.0
        %2728 = vst.msk [vmem:[#allocation2 + $0x2d] sm:$0x1] %vm2716, 0.0
        %v2731 = vcombine.high %v941, %v941
        %v2732 = vcombine.high %v942, %v942
        %s2735 = scalar_lea.vmem [#allocation2], 8
        %vm2736 = vcmask 257024
        %2737 = vst.msk [vmem:[%s2735 + $0x1] sm:$0xf] %vm2736, %v941
        %2738 = vst.msk [vmem:[%s2735 + $0x9] sm:$0xf] %vm2736, %v2731
        %2739 = vst.msk [vmem:[%s2735 + $0x11] sm:$0xf] %vm2736, %v942
        %2740 = vst.msk [vmem:[%s2735 + $0x19] sm:$0xf] %vm2736, %v2732
        %v2741 = vld [vmem:[#allocation2] sm:$0xf]
        %v2742 = vld [vmem:[#allocation2 + $0x8] sm:$0xf]
        %v2743 = vld [vmem:[#allocation2 + $0x10] sm:$0xf]
        %v2744 = vld [vmem:[#allocation2 + $0x18] sm:$0xf]
        %v2749 = vcombine.low %v2741, %v2742
        %v2750 = vcombine.low %v2743, %v2744
        %v2753 = vpack.c.bf16 %v2750, %v2749
        %v2754 = vld [vmem:[#allocation2 + $0x1] sm:$0xf]
        %v2755 = vld [vmem:[#allocation2 + $0x9] sm:$0xf]
        %v2756 = vld [vmem:[#allocation2 + $0x11] sm:$0xf]
        %v2757 = vld [vmem:[#allocation2 + $0x19] sm:$0xf]
        %v2762 = vcombine.low %v2754, %v2755
        %v2763 = vcombine.low %v2756, %v2757
        %v2766 = vpack.c.bf16 %v2763, %v2762
        %v2771 = vunpack.c.l.b16 %v2644
        %v2772 = vunpack.c.l.b16 %v2645
        %v2773 = vunpack.c.l.b16 %v2646
        %v2774 = vunpack.c.l.b16 %v2647
        %v2775 = vpack.c.b16 %v2772, %v2771
        %v2776 = vpack.c.b16 %v2774, %v2773
        %v2780 = vsel %vm899, %v2766, 0
        %2782 = vmatprep.subr.bf16.mxu0 0
        %2783 = vmatpush1.bf16.msra.mxu0 %v2775
        %2784 = vmatprep.subr.bf16.mxu0 0
        %2785 = vmatpush1.bf16.msra.mxu0 %v2776
        %2786 = vmatprep.subr.bf16.mxu0 0
        %2787 = vmatpush1.bf16.msra.mxu0 0
        %2788 = vmatprep.subr.bf16.mxu0 0
        %2789 = vmatpush1.bf16.msra.mxu0 0
        %2790 = vmatprep.subr.bf16.mxu0 0
        %2791 = vmatpush1.bf16.msra.mxu0 0
        %2792 = vmatprep.subr.bf16.mxu0 0
        %2793 = vmatpush1.bf16.msra.mxu0 0
        %2794 = vmatprep.subr.bf16.mxu0 0
        %2795 = vmatpush1.bf16.msra.mxu0 0
        %2796 = vmatprep.subr.bf16.mxu0 0
        %2797 = vmatpush1.bf16.msra.mxu0 0
        %2798 = vmatprep.subr.bf16.mxu0 0
        %2799 = vmatpush1.bf16.msra.mxu0 0
        %2800 = vmatprep.subr.bf16.mxu0 0
        %2801 = vmatpush1.bf16.msra.mxu0 0
        %2802 = vmatprep.subr.bf16.mxu0 0
        %2803 = vmatpush1.bf16.msra.mxu0 0
        %2804 = vmatprep.subr.bf16.mxu0 0
        %2805 = vmatpush1.bf16.msra.mxu0 0
        %2806 = vmatprep.subr.bf16.mxu0 0
        %2807 = vmatpush1.bf16.msra.mxu0 0
        %2808 = vmatprep.subr.bf16.mxu0 0
        %2809 = vmatpush1.bf16.msra.mxu0 0
        %2810 = vmatprep.subr.bf16.mxu0 0
        %2811 = vmatpush1.bf16.msra.mxu0 0
        %2812 = vmatprep.subr.bf16.mxu0 0
        %2813 = vmatpush1.bf16.msra.mxu0 0
        %2814 = vmatprep.mubr.bf16.mxu0 0
        %2815 = vmatmul.mubr.bf16.gmra.mrb[0].mxu0 %v2780
        %v2816 = vpop.f32.mrb[0].mxu0
        %v2817 = vadd.f32 0.0, %v2816
        %v2818 = vpop.f32.mrb[0].mxu0
        %v2819 = vpop.f32.mrb[0].mxu0
        %v2820 = vadd.f32 0.0, %v2819
        %v2821 = vpop.f32.mrb[0].mxu0
        %2822 = vdwg.mxu0
        %v2827 = vunpack.c.l.b16 %v2640
        %v2828 = vunpack.c.l.b16 %v2641
        %v2829 = vunpack.c.l.b16 %v2642
        %v2830 = vunpack.c.l.b16 %v2643
        %v2831 = vpack.c.b16 %v2828, %v2827
        %v2832 = vpack.c.b16 %v2830, %v2829
        %v2836 = vsel %vm899, %v2753, 0
        %2838 = vmatprep.subr.bf16.mxu0 0
        %2839 = vmatpush1.bf16.msra.mxu0 %v2831
        %2840 = vmatprep.subr.bf16.mxu0 0
        %2841 = vmatpush1.bf16.msra.mxu0 %v2832
        %2842 = vmatprep.subr.bf16.mxu0 0
        %2843 = vmatpush1.bf16.msra.mxu0 0
        %2844 = vmatprep.subr.bf16.mxu0 0
        %2845 = vmatpush1.bf16.msra.mxu0 0
        %2846 = vmatprep.subr.bf16.mxu0 0
        %2847 = vmatpush1.bf16.msra.mxu0 0
        %2848 = vmatprep.subr.bf16.mxu0 0
        %2849 = vmatpush1.bf16.msra.mxu0 0
        %2850 = vmatprep.subr.bf16.mxu0 0
        %2851 = vmatpush1.bf16.msra.mxu0 0
        %2852 = vmatprep.subr.bf16.mxu0 0
        %2853 = vmatpush1.bf16.msra.mxu0 0
        %2854 = vmatprep.subr.bf16.mxu0 0
        %2855 = vmatpush1.bf16.msra.mxu0 0
        %2856 = vmatprep.subr.bf16.mxu0 0
        %2857 = vmatpush1.bf16.msra.mxu0 0
        %2858 = vmatprep.subr.bf16.mxu0 0
        %2859 = vmatpush1.bf16.msra.mxu0 0
        %2860 = vmatprep.subr.bf16.mxu0 0
        %2861 = vmatpush1.bf16.msra.mxu0 0
        %2862 = vmatprep.subr.bf16.mxu0 0
        %2863 = vmatpush1.bf16.msra.mxu0 0
        %2864 = vmatprep.subr.bf16.mxu0 0
        %2865 = vmatpush1.bf16.msra.mxu0 0
        %2866 = vmatprep.subr.bf16.mxu0 0
        %2867 = vmatpush1.bf16.msra.mxu0 0
        %2868 = vmatprep.subr.bf16.mxu0 0
        %2869 = vmatpush1.bf16.msra.mxu0 0
        %2870 = vmatprep.mubr.bf16.mxu0 0
        %2871 = vmatmul.mubr.bf16.gmra.mrb[0].mxu0 %v2836
        %v2872 = vpop.f32.mrb[0].mxu0
        %v2873 = vadd.f32 %v2817, %v2872
        %v2874 = vpop.f32.mrb[0].mxu0
        %v2875 = vpop.f32.mrb[0].mxu0
        %v2876 = vadd.f32 %v2820, %v2875
        %v2877 = vpop.f32.mrb[0].mxu0
        %2878 = vdwg.mxu0
        %v2879 = vld [vmem:[#allocation2 + $0x2] sm:$0xf]
        %v2880 = vld [vmem:[#allocation2 + $0xa] sm:$0xf]
        %v2881 = vld [vmem:[#allocation2 + $0x12] sm:$0xf]
        %v2882 = vld [vmem:[#allocation2 + $0x1a] sm:$0xf]
        %v2887 = vcombine.low %v2879, %v2880
        %v2888 = vcombine.low %v2881, %v2882
        %v2891 = vpack.c.bf16 %v2888, %v2887
        %v2896 = vunpack.c.l.b16 %v2648
        %v2897 = vunpack.c.l.b16 %v2649
        %v2898 = vunpack.c.l.b16 %v2650
        %v2899 = vunpack.c.l.b16 %v2651
        %v2900 = vpack.c.b16 %v2897, %v2896
        %v2901 = vpack.c.b16 %v2899, %v2898
        %v2905 = vsel %vm899, %v2891, 0
        %2907 = vmatprep.subr.bf16.mxu0 0
        %2908 = vmatpush1.bf16.msra.mxu0 %v2900
        %2909 = vmatprep.subr.bf16.mxu0 0
        %2910 = vmatpush1.bf16.msra.mxu0 %v2901
        %2911 = vmatprep.subr.bf16.mxu0 0
        %2912 = vmatpush1.bf16.msra.mxu0 0
        %2913 = vmatprep.subr.bf16.mxu0 0
        %2914 = vmatpush1.bf16.msra.mxu0 0
        %2915 = vmatprep.subr.bf16.mxu0 0
        %2916 = vmatpush1.bf16.msra.mxu0 0
        %2917 = vmatprep.subr.bf16.mxu0 0
        %2918 = vmatpush1.bf16.msra.mxu0 0
        %2919 = vmatprep.subr.bf16.mxu0 0
        %2920 = vmatpush1.bf16.msra.mxu0 0
        %2921 = vmatprep.subr.bf16.mxu0 0
        %2922 = vmatpush1.bf16.msra.mxu0 0
        %2923 = vmatprep.subr.bf16.mxu0 0
        %2924 = vmatpush1.bf16.msra.mxu0 0
        %2925 = vmatprep.subr.bf16.mxu0 0
        %2926 = vmatpush1.bf16.msra.mxu0 0
        %2927 = vmatprep.subr.bf16.mxu0 0
        %2928 = vmatpush1.bf16.msra.mxu0 0
        %2929 = vmatprep.subr.bf16.mxu0 0
        %2930 = vmatpush1.bf16.msra.mxu0 0
        %2931 = vmatprep.subr.bf16.mxu0 0
        %2932 = vmatpush1.bf16.msra.mxu0 0
        %2933 = vmatprep.subr.bf16.mxu0 0
        %2934 = vmatpush1.bf16.msra.mxu0 0
        %2935 = vmatprep.subr.bf16.mxu0 0
        %2936 = vmatpush1.bf16.msra.mxu0 0
        %2937 = vmatprep.subr.bf16.mxu0 0
        %2938 = vmatpush1.bf16.msra.mxu0 0
        %2939 = vmatprep.mubr.bf16.mxu0 0
        %2940 = vmatmul.mubr.bf16.gmra.mrb[0].mxu0 %v2905
        %v2941 = vpop.f32.mrb[0].mxu0
        %v2942 = vadd.f32 0.0, %v2941
        %v2943 = vpop.f32.mrb[0].mxu0
        %v2944 = vpop.f32.mrb[0].mxu0
        %v2945 = vadd.f32 0.0, %v2944
        %v2946 = vpop.f32.mrb[0].mxu0
        %2947 = vdwg.mxu0
        %v2948 = vadd.f32 %v2873, %v2942
        %v2949 = vadd.f32 %v2876, %v2945
        %v2950 = vld [vmem:[%s2735] sm:$0xf]
        %v2951 = vld [vmem:[%s2735 + $0x8] sm:$0xf]
        %v2952 = vld [vmem:[%s2735 + $0x10] sm:$0xf]
        %v2953 = vld [vmem:[%s2735 + $0x18] sm:$0xf]
        %v2958 = vcombine.low %v2950, %v2951
        %v2959 = vcombine.low %v2952, %v2953
        %v2962 = vpack.c.bf16 %v2959, %v2958
        %v2967 = vunpack.c.l.b16 %v2652
        %v2968 = vunpack.c.l.b16 %v2653
        %v2969 = vunpack.c.l.b16 %v2654
        %v2970 = vunpack.c.l.b16 %v2655
        %v2971 = vpack.c.b16 %v2968, %v2967
        %v2972 = vpack.c.b16 %v2970, %v2969
        %v2976 = vsel %vm899, %v2962, 0
        %2978 = vmatprep.subr.bf16.mxu0 0
        %2979 = vmatpush1.bf16.msra.mxu0 %v2971
        %2980 = vmatprep.subr.bf16.mxu0 0
        %2981 = vmatpush1.bf16.msra.mxu0 %v2972
        %2982 = vmatprep.subr.bf16.mxu0 0
        %2983 = vmatpush1.bf16.msra.mxu0 0
        %2984 = vmatprep.subr.bf16.mxu0 0
        %2985 = vmatpush1.bf16.msra.mxu0 0
        %2986 = vmatprep.subr.bf16.mxu0 0
        %2987 = vmatpush1.bf16.msra.mxu0 0
        %2988 = vmatprep.subr.bf16.mxu0 0
        %2989 = vmatpush1.bf16.msra.mxu0 0
        %2990 = vmatprep.subr.bf16.mxu0 0
        %2991 = vmatpush1.bf16.msra.mxu0 0
        %2992 = vmatprep.subr.bf16.mxu0 0
        %2993 = vmatpush1.bf16.msra.mxu0 0
        %2994 = vmatprep.subr.bf16.mxu0 0
        %2995 = vmatpush1.bf16.msra.mxu0 0
        %2996 = vmatprep.subr.bf16.mxu0 0
        %2997 = vmatpush1.bf16.msra.mxu0 0
        %2998 = vmatprep.subr.bf16.mxu0 0
        %2999 = vmatpush1.bf16.msra.mxu0 0
        %3000 = vmatprep.subr.bf16.mxu0 0
        %3001 = vmatpush1.bf16.msra.mxu0 0
        %3002 = vmatprep.subr.bf16.mxu0 0
        %3003 = vmatpush1.bf16.msra.mxu0 0
        %3004 = vmatprep.subr.bf16.mxu0 0
        %3005 = vmatpush1.bf16.msra.mxu0 0
        %3006 = vmatprep.subr.bf16.mxu0 0
        %3007 = vmatpush1.bf16.msra.mxu0 0
        %3008 = vmatprep.subr.bf16.mxu0 0
        %3009 = vmatpush1.bf16.msra.mxu0 0
        %3010 = vmatprep.mubr.bf16.mxu0 0
        %3011 = vmatmul.mubr.bf16.gmra.mrb[0].mxu0 %v2976
        %v3012 = vpop.f32.mrb[0].mxu0
        %v3013 = vadd.f32 0.0, %v3012
        %v3014 = vpop.f32.mrb[0].mxu0
        %v3015 = vpop.f32.mrb[0].mxu0
        %v3016 = vadd.f32 0.0, %v3015
        %v3017 = vpop.f32.mrb[0].mxu0
        %3018 = vdwg.mxu0
        %v3019 = vadd.f32 %v2948, %v3013
        %v3020 = vadd.f32 %v2949, %v3016
        %v3021 = vld [vmem:[%s2735 + $0x1] sm:$0xf]
        %v3022 = vld [vmem:[%s2735 + $0x9] sm:$0xf]
        %v3023 = vld [vmem:[%s2735 + $0x11] sm:$0xf]
        %v3024 = vld [vmem:[%s2735 + $0x19] sm:$0xf]
        %v3029 = vcombine.low %v3021, %v3022
        %v3030 = vcombine.low %v3023, %v3024
        %v3033 = vpack.c.bf16 %v3030, %v3029
        %v3038 = vunpack.c.l.b16 %v2656
        %v3039 = vunpack.c.l.b16 %v2657
        %v3040 = vunpack.c.l.b16 %v2658
        %v3041 = vunpack.c.l.b16 %v2659
        %v3042 = vpack.c.b16 %v3039, %v3038
        %v3043 = vpack.c.b16 %v3041, %v3040
        %v3047 = vsel %vm899, %v3033, 0
        %3049 = vmatprep.subr.bf16.mxu0 0
        %3050 = vmatpush1.bf16.msra.mxu0 %v3042
        %3051 = vmatprep.subr.bf16.mxu0 0
        %3052 = vmatpush1.bf16.msra.mxu0 %v3043
        %3053 = vmatprep.subr.bf16.mxu0 0
        %3054 = vmatpush1.bf16.msra.mxu0 0
        %3055 = vmatprep.subr.bf16.mxu0 0
        %3056 = vmatpush1.bf16.msra.mxu0 0
        %3057 = vmatprep.subr.bf16.mxu0 0
        %3058 = vmatpush1.bf16.msra.mxu0 0
        %3059 = vmatprep.subr.bf16.mxu0 0
        %3060 = vmatpush1.bf16.msra.mxu0 0
        %3061 = vmatprep.subr.bf16.mxu0 0
        %3062 = vmatpush1.bf16.msra.mxu0 0
        %3063 = vmatprep.subr.bf16.mxu0 0
        %3064 = vmatpush1.bf16.msra.mxu0 0
        %3065 = vmatprep.subr.bf16.mxu0 0
        %3066 = vmatpush1.bf16.msra.mxu0 0
        %3067 = vmatprep.subr.bf16.mxu0 0
        %3068 = vmatpush1.bf16.msra.mxu0 0
        %3069 = vmatprep.subr.bf16.mxu0 0
        %3070 = vmatpush1.bf16.msra.mxu0 0
        %3071 = vmatprep.subr.bf16.mxu0 0
        %3072 = vmatpush1.bf16.msra.mxu0 0
        %3073 = vmatprep.subr.bf16.mxu0 0
        %3074 = vmatpush1.bf16.msra.mxu0 0
        %3075 = vmatprep.subr.bf16.mxu0 0
        %3076 = vmatpush1.bf16.msra.mxu0 0
        %3077 = vmatprep.subr.bf16.mxu0 0
        %3078 = vmatpush1.bf16.msra.mxu0 0
        %3079 = vmatprep.subr.bf16.mxu0 0
        %3080 = vmatpush1.bf16.msra.mxu0 0
        %3081 = vmatprep.mubr.bf16.mxu0 0
        %3082 = vmatmul.mubr.bf16.gmra.mrb[0].mxu0 %v3047
        %v3083 = vpop.f32.mrb[0].mxu0
        %v3084 = vadd.f32 0.0, %v3083
        %v3085 = vpop.f32.mrb[0].mxu0
        %v3086 = vpop.f32.mrb[0].mxu0
        %v3087 = vadd.f32 0.0, %v3086
        %v3088 = vpop.f32.mrb[0].mxu0
        %3089 = vdwg.mxu0
        %v3090 = vadd.f32 %v3019, %v3084
        %v3091 = vadd.f32 %v3020, %v3087
        %v3092 = vld [vmem:[%s2735 + $0x2] sm:$0xf]
        %v3093 = vld [vmem:[%s2735 + $0xa] sm:$0xf]
        %v3094 = vld [vmem:[%s2735 + $0x12] sm:$0xf]
        %v3095 = vld [vmem:[%s2735 + $0x1a] sm:$0xf]
        %v3100 = vcombine.low %v3092, %v3093
        %v3101 = vcombine.low %v3094, %v3095
        %v3104 = vpack.c.bf16 %v3101, %v3100
        %v3109 = vunpack.c.l.b16 %v2660
        %v3110 = vunpack.c.l.b16 %v2661
        %v3111 = vunpack.c.l.b16 %v2662
        %v3112 = vunpack.c.l.b16 %v2663
        %v3113 = vpack.c.b16 %v3110, %v3109
        %v3114 = vpack.c.b16 %v3112, %v3111
        %v3118 = vsel %vm899, %v3104, 0
        %3120 = vmatprep.subr.bf16.mxu0 0
        %3121 = vmatpush1.bf16.msra.mxu0 %v3113
        %3122 = vmatprep.subr.bf16.mxu0 0
        %3123 = vmatpush1.bf16.msra.mxu0 %v3114
        %3124 = vmatprep.subr.bf16.mxu0 0
        %3125 = vmatpush1.bf16.msra.mxu0 0
        %3126 = vmatprep.subr.bf16.mxu0 0
        %3127 = vmatpush1.bf16.msra.mxu0 0
        %3128 = vmatprep.subr.bf16.mxu0 0
        %3129 = vmatpush1.bf16.msra.mxu0 0
        %3130 = vmatprep.subr.bf16.mxu0 0
        %3131 = vmatpush1.bf16.msra.mxu0 0
        %3132 = vmatprep.subr.bf16.mxu0 0
        %3133 = vmatpush1.bf16.msra.mxu0 0
        %3134 = vmatprep.subr.bf16.mxu0 0
        %3135 = vmatpush1.bf16.msra.mxu0 0
        %3136 = vmatprep.subr.bf16.mxu0 0
        %3137 = vmatpush1.bf16.msra.mxu0 0
        %3138 = vmatprep.subr.bf16.mxu0 0
        %3139 = vmatpush1.bf16.msra.mxu0 0
        %3140 = vmatprep.subr.bf16.mxu0 0
        %3141 = vmatpush1.bf16.msra.mxu0 0
        %3142 = vmatprep.subr.bf16.mxu0 0
        %3143 = vmatpush1.bf16.msra.mxu0 0
        %3144 = vmatprep.subr.bf16.mxu0 0
        %3145 = vmatpush1.bf16.msra.mxu0 0
        %3146 = vmatprep.subr.bf16.mxu0 0
        %3147 = vmatpush1.bf16.msra.mxu0 0
        %3148 = vmatprep.subr.bf16.mxu0 0
        %3149 = vmatpush1.bf16.msra.mxu0 0
        %3150 = vmatprep.subr.bf16.mxu0 0
        %3151 = vmatpush1.bf16.msra.mxu0 0
        %3152 = vmatprep.mubr.bf16.mxu0 0
        %3153 = vmatmul.mubr.bf16.gmra.mrb[0].mxu0 %v3118
        %v3154 = vpop.f32.mrb[0].mxu0
        %v3155 = vadd.f32 0.0, %v3154
        %v3156 = vpop.f32.mrb[0].mxu0
        %v3157 = vpop.f32.mrb[0].mxu0
        %v3158 = vadd.f32 0.0, %v3157
        %v3159 = vpop.f32.mrb[0].mxu0
        %3160 = vdwg.mxu0
        %v3161 = vadd.f32 %v3090, %v3155
        %v3162 = vadd.f32 %v3091, %v3158
        %s3163 = scalar_lea.vmem [#allocation2], 16
        %v3164 = vld [vmem:[%s3163] sm:$0xf]
        %v3165 = vld [vmem:[%s3163 + $0x8] sm:$0xf]
        %v3166 = vld [vmem:[%s3163 + $0x10] sm:$0xf]
        %v3167 = vld [vmem:[%s3163 + $0x18] sm:$0xf]
        %v3172 = vcombine.low %v3164, %v3165
        %v3173 = vcombine.low %v3166, %v3167
        %v3176 = vpack.c.bf16 %v3173, %v3172
        %v3181 = vunpack.c.l.b16 %v2664
        %v3182 = vunpack.c.l.b16 %v2665
        %v3183 = vunpack.c.l.b16 %v2666
        %v3184 = vunpack.c.l.b16 %v2667
        %v3185 = vpack.c.b16 %v3182, %v3181
        %v3186 = vpack.c.b16 %v3184, %v3183
        %v3190 = vsel %vm899, %v3176, 0
        %3192 = vmatprep.subr.bf16.mxu0 0
        %3193 = vmatpush1.bf16.msra.mxu0 %v3185
        %3194 = vmatprep.subr.bf16.mxu0 0
        %3195 = vmatpush1.bf16.msra.mxu0 %v3186
        %3196 = vmatprep.subr.bf16.mxu0 0
        %3197 = vmatpush1.bf16.msra.mxu0 0
        %3198 = vmatprep.subr.bf16.mxu0 0
        %3199 = vmatpush1.bf16.msra.mxu0 0
        %3200 = vmatprep.subr.bf16.mxu0 0
        %3201 = vmatpush1.bf16.msra.mxu0 0
        %3202 = vmatprep.subr.bf16.mxu0 0
        %3203 = vmatpush1.bf16.msra.mxu0 0
        %3204 = vmatprep.subr.bf16.mxu0 0
        %3205 = vmatpush1.bf16.msra.mxu0 0
        %3206 = vmatprep.subr.bf16.mxu0 0
        %3207 = vmatpush1.bf16.msra.mxu0 0
        %3208 = vmatprep.subr.bf16.mxu0 0
        %3209 = vmatpush1.bf16.msra.mxu0 0
        %3210 = vmatprep.subr.bf16.mxu0 0
        %3211 = vmatpush1.bf16.msra.mxu0 0
        %3212 = vmatprep.subr.bf16.mxu0 0
        %3213 = vmatpush1.bf16.msra.mxu0 0
        %3214 = vmatprep.subr.bf16.mxu0 0
        %3215 = vmatpush1.bf16.msra.mxu0 0
        %3216 = vmatprep.subr.bf16.mxu0 0
        %3217 = vmatpush1.bf16.msra.mxu0 0
        %3218 = vmatprep.subr.bf16.mxu0 0
        %3219 = vmatpush1.bf16.msra.mxu0 0
        %3220 = vmatprep.subr.bf16.mxu0 0
        %3221 = vmatpush1.bf16.msra.mxu0 0
        %3222 = vmatprep.subr.bf16.mxu0 0
        %3223 = vmatpush1.bf16.msra.mxu0 0
        %3224 = vmatprep.mubr.bf16.mxu0 0
        %3225 = vmatmul.mubr.bf16.gmra.mrb[0].mxu0 %v3190
        %v3226 = vpop.f32.mrb[0].mxu0
        %v3227 = vadd.f32 0.0, %v3226
        %v3228 = vpop.f32.mrb[0].mxu0
        %v3229 = vpop.f32.mrb[0].mxu0
        %v3230 = vadd.f32 0.0, %v3229
        %v3231 = vpop.f32.mrb[0].mxu0
        %3232 = vdwg.mxu0
        %v3233 = vadd.f32 %v3161, %v3227
        %v3234 = vadd.f32 %v3162, %v3230
        %v3235 = vld [vmem:[%s3163 + $0x1] sm:$0xf]
        %v3236 = vld [vmem:[%s3163 + $0x9] sm:$0xf]
        %v3237 = vld [vmem:[%s3163 + $0x11] sm:$0xf]
        %v3238 = vld [vmem:[%s3163 + $0x19] sm:$0xf]
        %v3243 = vcombine.low %v3235, %v3236
        %v3244 = vcombine.low %v3237, %v3238
        %v3247 = vpack.c.bf16 %v3244, %v3243
        %v3252 = vunpack.c.l.b16 %v2668
        %v3253 = vunpack.c.l.b16 %v2669
        %v3254 = vunpack.c.l.b16 %v2670
        %v3255 = vunpack.c.l.b16 %v2671
        %v3256 = vpack.c.b16 %v3253, %v3252
        %v3257 = vpack.c.b16 %v3255, %v3254
        %v3261 = vsel %vm899, %v3247, 0
        %3263 = vmatprep.subr.bf16.mxu0 0
        %3264 = vmatpush1.bf16.msra.mxu0 %v3256
        %3265 = vmatprep.subr.bf16.mxu0 0
        %3266 = vmatpush1.bf16.msra.mxu0 %v3257
        %3267 = vmatprep.subr.bf16.mxu0 0
        %3268 = vmatpush1.bf16.msra.mxu0 0
        %3269 = vmatprep.subr.bf16.mxu0 0
        %3270 = vmatpush1.bf16.msra.mxu0 0
        %3271 = vmatprep.subr.bf16.mxu0 0
        %3272 = vmatpush1.bf16.msra.mxu0 0
        %3273 = vmatprep.subr.bf16.mxu0 0
        %3274 = vmatpush1.bf16.msra.mxu0 0
        %3275 = vmatprep.subr.bf16.mxu0 0
        %3276 = vmatpush1.bf16.msra.mxu0 0
        %3277 = vmatprep.subr.bf16.mxu0 0
        %3278 = vmatpush1.bf16.msra.mxu0 0
        %3279 = vmatprep.subr.bf16.mxu0 0
        %3280 = vmatpush1.bf16.msra.mxu0 0
        %3281 = vmatprep.subr.bf16.mxu0 0
        %3282 = vmatpush1.bf16.msra.mxu0 0
        %3283 = vmatprep.subr.bf16.mxu0 0
        %3284 = vmatpush1.bf16.msra.mxu0 0
        %3285 = vmatprep.subr.bf16.mxu0 0
        %3286 = vmatpush1.bf16.msra.mxu0 0
        %3287 = vmatprep.subr.bf16.mxu0 0
        %3288 = vmatpush1.bf16.msra.mxu0 0
        %3289 = vmatprep.subr.bf16.mxu0 0
        %3290 = vmatpush1.bf16.msra.mxu0 0
        %3291 = vmatprep.subr.bf16.mxu0 0
        %3292 = vmatpush1.bf16.msra.mxu0 0
        %3293 = vmatprep.subr.bf16.mxu0 0
        %3294 = vmatpush1.bf16.msra.mxu0 0
        %3295 = vmatprep.mubr.bf16.mxu0 0
        %3296 = vmatmul.mubr.bf16.gmra.mrb[0].mxu0 %v3261
        %v3297 = vpop.f32.mrb[0].mxu0
        %v3298 = vadd.f32 0.0, %v3297
        %v3299 = vpop.f32.mrb[0].mxu0
        %v3300 = vpop.f32.mrb[0].mxu0
        %v3301 = vadd.f32 0.0, %v3300
        %v3302 = vpop.f32.mrb[0].mxu0
        %3303 = vdwg.mxu0
        %v3304 = vadd.f32 %v3233, %v3298
        %v3305 = vadd.f32 %v3234, %v3301
        %v3306 = vld [vmem:[%s3163 + $0x2] sm:$0xf]
        %v3307 = vld [vmem:[%s3163 + $0xa] sm:$0xf]
        %v3308 = vld [vmem:[%s3163 + $0x12] sm:$0xf]
        %v3309 = vld [vmem:[%s3163 + $0x1a] sm:$0xf]
        %v3314 = vcombine.low %v3306, %v3307
        %v3315 = vcombine.low %v3308, %v3309
        %v3318 = vpack.c.bf16 %v3315, %v3314
        %v3323 = vunpack.c.l.b16 %v2672
        %v3324 = vunpack.c.l.b16 %v2673
        %v3325 = vunpack.c.l.b16 %v2674
        %v3326 = vunpack.c.l.b16 %v2675
        %v3327 = vpack.c.b16 %v3324, %v3323
        %v3328 = vpack.c.b16 %v3326, %v3325
        %v3332 = vsel %vm899, %v3318, 0
        %3334 = vmatprep.subr.bf16.mxu0 0
        %3335 = vmatpush1.bf16.msra.mxu0 %v3327
        %3336 = vmatprep.subr.bf16.mxu0 0
        %3337 = vmatpush1.bf16.msra.mxu0 %v3328
        %3338 = vmatprep.subr.bf16.mxu0 0
        %3339 = vmatpush1.bf16.msra.mxu0 0
        %3340 = vmatprep.subr.bf16.mxu0 0
        %3341 = vmatpush1.bf16.msra.mxu0 0
        %3342 = vmatprep.subr.bf16.mxu0 0
        %3343 = vmatpush1.bf16.msra.mxu0 0
        %3344 = vmatprep.subr.bf16.mxu0 0
        %3345 = vmatpush1.bf16.msra.mxu0 0
        %3346 = vmatprep.subr.bf16.mxu0 0
        %3347 = vmatpush1.bf16.msra.mxu0 0
        %3348 = vmatprep.subr.bf16.mxu0 0
        %3349 = vmatpush1.bf16.msra.mxu0 0
        %3350 = vmatprep.subr.bf16.mxu0 0
        %3351 = vmatpush1.bf16.msra.mxu0 0
        %3352 = vmatprep.subr.bf16.mxu0 0
        %3353 = vmatpush1.bf16.msra.mxu0 0
        %3354 = vmatprep.subr.bf16.mxu0 0
        %3355 = vmatpush1.bf16.msra.mxu0 0
        %3356 = vmatprep.subr.bf16.mxu0 0
        %3357 = vmatpush1.bf16.msra.mxu0 0
        %3358 = vmatprep.subr.bf16.mxu0 0
        %3359 = vmatpush1.bf16.msra.mxu0 0
        %3360 = vmatprep.subr.bf16.mxu0 0
        %3361 = vmatpush1.bf16.msra.mxu0 0
        %3362 = vmatprep.subr.bf16.mxu0 0
        %3363 = vmatpush1.bf16.msra.mxu0 0
        %3364 = vmatprep.subr.bf16.mxu0 0
        %3365 = vmatpush1.bf16.msra.mxu0 0
        %3366 = vmatprep.mubr.bf16.mxu0 0
        %3367 = vmatmul.mubr.bf16.gmra.mrb[0].mxu0 %v3332
        %v3368 = vpop.f32.mrb[0].mxu0
        %v3369 = vadd.f32 0.0, %v3368
        %v3370 = vpop.f32.mrb[0].mxu0
        %v3371 = vpop.f32.mrb[0].mxu0
        %v3372 = vadd.f32 0.0, %v3371
        %v3373 = vpop.f32.mrb[0].mxu0
        %3374 = vdwg.mxu0
        %v3375 = vadd.f32 %v3304, %v3369
        %v3376 = vadd.f32 %v3305, %v3372
        %v3377 = vmax.f32 %v3375, 0.0
        %v3378 = vmax.f32 %v3376, 0.0
        %v3381 = vcombine.high %v3377, %v3377
        %v3382 = vcombine.high %v3378, %v3378
        %3385 = vst.msk [vmem:[%s2735 + $0x1] sm:$0xf] %vm2736, %v3377
        %3386 = vst.msk [vmem:[%s2735 + $0x9] sm:$0xf] %vm2736, %v3381
        %3387 = vst.msk [vmem:[%s2735 + $0x11] sm:$0xf] %vm2736, %v3378
        %3388 = vst.msk [vmem:[%s2735 + $0x19] sm:$0xf] %vm2736, %v3382
        %v3389 = vld [vmem:[#allocation2] sm:$0xf]
        %v3390 = vld [vmem:[#allocation2 + $0x8] sm:$0xf]
        %v3391 = vld [vmem:[#allocation2 + $0x10] sm:$0xf]
        %v3392 = vld [vmem:[#allocation2 + $0x18] sm:$0xf]
        %v3397 = vcombine.low %v3389, %v3390
        %v3398 = vcombine.low %v3391, %v3392
        %v3401 = vpack.c.bf16 %v3398, %v3397
        %v3402 = vld [vmem:[#allocation2 + $0x1] sm:$0xf]
        %v3403 = vld [vmem:[#allocation2 + $0x9] sm:$0xf]
        %v3404 = vld [vmem:[#allocation2 + $0x11] sm:$0xf]
        %v3405 = vld [vmem:[#allocation2 + $0x19] sm:$0xf]
        %v3410 = vcombine.low %v3402, %v3403
        %v3411 = vcombine.low %v3404, %v3405
        %v3414 = vpack.c.bf16 %v3411, %v3410
        %v3419 = vunpack.c.l.b16 %v2680
        %v3420 = vunpack.c.l.b16 %v2681
        %v3421 = vunpack.c.l.b16 %v2682
        %v3422 = vunpack.c.l.b16 %v2683
        %v3423 = vpack.c.b16 %v3420, %v3419
        %v3424 = vpack.c.b16 %v3422, %v3421
        %v3428 = vsel %vm899, %v3414, 0
        %3430 = vmatprep.subr.bf16.mxu0 0
        %3431 = vmatpush1.bf16.msra.mxu0 %v3423
        %3432 = vmatprep.subr.bf16.mxu0 0
        %3433 = vmatpush1.bf16.msra.mxu0 %v3424
        %3434 = vmatprep.subr.bf16.mxu0 0
        %3435 = vmatpush1.bf16.msra.mxu0 0
        %3436 = vmatprep.subr.bf16.mxu0 0
        %3437 = vmatpush1.bf16.msra.mxu0 0
        %3438 = vmatprep.subr.bf16.mxu0 0
        %3439 = vmatpush1.bf16.msra.mxu0 0
        %3440 = vmatprep.subr.bf16.mxu0 0
        %3441 = vmatpush1.bf16.msra.mxu0 0
        %3442 = vmatprep.subr.bf16.mxu0 0
        %3443 = vmatpush1.bf16.msra.mxu0 0
        %3444 = vmatprep.subr.bf16.mxu0 0
        %3445 = vmatpush1.bf16.msra.mxu0 0
        %3446 = vmatprep.subr.bf16.mxu0 0
        %3447 = vmatpush1.bf16.msra.mxu0 0
        %3448 = vmatprep.subr.bf16.mxu0 0
        %3449 = vmatpush1.bf16.msra.mxu0 0
        %3450 = vmatprep.subr.bf16.mxu0 0
        %3451 = vmatpush1.bf16.msra.mxu0 0
        %3452 = vmatprep.subr.bf16.mxu0 0
        %3453 = vmatpush1.bf16.msra.mxu0 0
        %3454 = vmatprep.subr.bf16.mxu0 0
        %3455 = vmatpush1.bf16.msra.mxu0 0
        %3456 = vmatprep.subr.bf16.mxu0 0
        %3457 = vmatpush1.bf16.msra.mxu0 0
        %3458 = vmatprep.subr.bf16.mxu0 0
        %3459 = vmatpush1.bf16.msra.mxu0 0
        %3460 = vmatprep.subr.bf16.mxu0 0
        %3461 = vmatpush1.bf16.msra.mxu0 0
        %3462 = vmatprep.mubr.bf16.mxu0 0
        %3463 = vmatmul.mubr.bf16.gmra.mrb[0].mxu0 %v3428
        %v3464 = vpop.f32.mrb[0].mxu0
        %v3465 = vadd.f32 0.0, %v3464
        %v3466 = vpop.f32.mrb[0].mxu0
        %v3467 = vpop.f32.mrb[0].mxu0
        %v3468 = vadd.f32 0.0, %v3467
        %v3469 = vpop.f32.mrb[0].mxu0
        %3470 = vdwg.mxu0
        %v3475 = vunpack.c.l.b16 %v2676
        %v3476 = vunpack.c.l.b16 %v2677
        %v3477 = vunpack.c.l.b16 %v2678
        %v3478 = vunpack.c.l.b16 %v2679
        %v3479 = vpack.c.b16 %v3476, %v3475
        %v3480 = vpack.c.b16 %v3478, %v3477
        %v3484 = vsel %vm899, %v3401, 0
        %3486 = vmatprep.subr.bf16.mxu0 0
        %3487 = vmatpush1.bf16.msra.mxu0 %v3479
        %3488 = vmatprep.subr.bf16.mxu0 0
        %3489 = vmatpush1.bf16.msra.mxu0 %v3480
        %3490 = vmatprep.subr.bf16.mxu0 0
        %3491 = vmatpush1.bf16.msra.mxu0 0
        %3492 = vmatprep.subr.bf16.mxu0 0
        %3493 = vmatpush1.bf16.msra.mxu0 0
        %3494 = vmatprep.subr.bf16.mxu0 0
        %3495 = vmatpush1.bf16.msra.mxu0 0
        %3496 = vmatprep.subr.bf16.mxu0 0
        %3497 = vmatpush1.bf16.msra.mxu0 0
        %3498 = vmatprep.subr.bf16.mxu0 0
        %3499 = vmatpush1.bf16.msra.mxu0 0
        %3500 = vmatprep.subr.bf16.mxu0 0
        %3501 = vmatpush1.bf16.msra.mxu0 0
        %3502 = vmatprep.subr.bf16.mxu0 0
        %3503 = vmatpush1.bf16.msra.mxu0 0
        %3504 = vmatprep.subr.bf16.mxu0 0
        %3505 = vmatpush1.bf16.msra.mxu0 0
        %3506 = vmatprep.subr.bf16.mxu0 0
        %3507 = vmatpush1.bf16.msra.mxu0 0
        %3508 = vmatprep.subr.bf16.mxu0 0
        %3509 = vmatpush1.bf16.msra.mxu0 0
        %3510 = vmatprep.subr.bf16.mxu0 0
        %3511 = vmatpush1.bf16.msra.mxu0 0
        %3512 = vmatprep.subr.bf16.mxu0 0
        %3513 = vmatpush1.bf16.msra.mxu0 0
        %3514 = vmatprep.subr.bf16.mxu0 0
        %3515 = vmatpush1.bf16.msra.mxu0 0
        %3516 = vmatprep.subr.bf16.mxu0 0
        %3517 = vmatpush1.bf16.msra.mxu0 0
        %3518 = vmatprep.mubr.bf16.mxu0 0
        %3519 = vmatmul.mubr.bf16.gmra.mrb[0].mxu0 %v3484
        %v3520 = vpop.f32.mrb[0].mxu0
        %v3521 = vadd.f32 %v3465, %v3520
        %v3522 = vpop.f32.mrb[0].mxu0
        %v3523 = vpop.f32.mrb[0].mxu0
        %v3524 = vadd.f32 %v3468, %v3523
        %v3525 = vpop.f32.mrb[0].mxu0
        %3526 = vdwg.mxu0
        %v3527 = vld [vmem:[#allocation2 + $0x2] sm:$0xf]
        %v3528 = vld [vmem:[#allocation2 + $0xa] sm:$0xf]
        %v3529 = vld [vmem:[#allocation2 + $0x12] sm:$0xf]
        %v3530 = vld [vmem:[#allocation2 + $0x1a] sm:$0xf]
        %v3535 = vcombine.low %v3527, %v3528
        %v3536 = vcombine.low %v3529, %v3530
        %v3539 = vpack.c.bf16 %v3536, %v3535
        %v3544 = vunpack.c.l.b16 %v2684
        %v3545 = vunpack.c.l.b16 %v2685
        %v3546 = vunpack.c.l.b16 %v2686
        %v3547 = vunpack.c.l.b16 %v2687
        %v3548 = vpack.c.b16 %v3545, %v3544
        %v3549 = vpack.c.b16 %v3547, %v3546
        %v3553 = vsel %vm899, %v3539, 0
        %3555 = vmatprep.subr.bf16.mxu0 0
        %3556 = vmatpush1.bf16.msra.mxu0 %v3548
        %3557 = vmatprep.subr.bf16.mxu0 0
        %3558 = vmatpush1.bf16.msra.mxu0 %v3549
        %3559 = vmatprep.subr.bf16.mxu0 0
        %3560 = vmatpush1.bf16.msra.mxu0 0
        %3561 = vmatprep.subr.bf16.mxu0 0
        %3562 = vmatpush1.bf16.msra.mxu0 0
        %3563 = vmatprep.subr.bf16.mxu0 0
        %3564 = vmatpush1.bf16.msra.mxu0 0
        %3565 = vmatprep.subr.bf16.mxu0 0
        %3566 = vmatpush1.bf16.msra.mxu0 0
        %3567 = vmatprep.subr.bf16.mxu0 0
        %3568 = vmatpush1.bf16.msra.mxu0 0
        %3569 = vmatprep.subr.bf16.mxu0 0
        %3570 = vmatpush1.bf16.msra.mxu0 0
        %3571 = vmatprep.subr.bf16.mxu0 0
        %3572 = vmatpush1.bf16.msra.mxu0 0
        %3573 = vmatprep.subr.bf16.mxu0 0
        %3574 = vmatpush1.bf16.msra.mxu0 0
        %3575 = vmatprep.subr.bf16.mxu0 0
        %3576 = vmatpush1.bf16.msra.mxu0 0
        %3577 = vmatprep.subr.bf16.mxu0 0
        %3578 = vmatpush1.bf16.msra.mxu0 0
        %3579 = vmatprep.subr.bf16.mxu0 0
        %3580 = vmatpush1.bf16.msra.mxu0 0
        %3581 = vmatprep.subr.bf16.mxu0 0
        %3582 = vmatpush1.bf16.msra.mxu0 0
        %3583 = vmatprep.subr.bf16.mxu0 0
        %3584 = vmatpush1.bf16.msra.mxu0 0
        %3585 = vmatprep.subr.bf16.mxu0 0
        %3586 = vmatpush1.bf16.msra.mxu0 0
        %3587 = vmatprep.mubr.bf16.mxu0 0
        %3588 = vmatmul.mubr.bf16.gmra.mrb[0].mxu0 %v3553
        %v3589 = vpop.f32.mrb[0].mxu0
        %v3590 = vadd.f32 0.0, %v3589
        %v3591 = vpop.f32.mrb[0].mxu0
        %v3592 = vpop.f32.mrb[0].mxu0
        %v3593 = vadd.f32 0.0, %v3592
        %v3594 = vpop.f32.mrb[0].mxu0
        %3595 = vdwg.mxu0
        %v3596 = vadd.f32 %v3521, %v3590
        %v3597 = vadd.f32 %v3524, %v3593
        %v3598 = vld [vmem:[%s2735] sm:$0xf]
        %v3599 = vld [vmem:[%s2735 + $0x8] sm:$0xf]
        %v3600 = vld [vmem:[%s2735 + $0x10] sm:$0xf]
        %v3601 = vld [vmem:[%s2735 + $0x18] sm:$0xf]
        %v3606 = vcombine.low %v3598, %v3599
        %v3607 = vcombine.low %v3600, %v3601
        %v3610 = vpack.c.bf16 %v3607, %v3606
        %v3615 = vunpack.c.l.b16 %v2688
        %v3616 = vunpack.c.l.b16 %v2689
        %v3617 = vunpack.c.l.b16 %v2690
        %v3618 = vunpack.c.l.b16 %v2691
        %v3619 = vpack.c.b16 %v3616, %v3615
        %v3620 = vpack.c.b16 %v3618, %v3617
        %v3624 = vsel %vm899, %v3610, 0
        %3626 = vmatprep.subr.bf16.mxu0 0
        %3627 = vmatpush1.bf16.msra.mxu0 %v3619
        %3628 = vmatprep.subr.bf16.mxu0 0
        %3629 = vmatpush1.bf16.msra.mxu0 %v3620
        %3630 = vmatprep.subr.bf16.mxu0 0
        %3631 = vmatpush1.bf16.msra.mxu0 0
        %3632 = vmatprep.subr.bf16.mxu0 0
        %3633 = vmatpush1.bf16.msra.mxu0 0
        %3634 = vmatprep.subr.bf16.mxu0 0
        %3635 = vmatpush1.bf16.msra.mxu0 0
        %3636 = vmatprep.subr.bf16.mxu0 0
        %3637 = vmatpush1.bf16.msra.mxu0 0
        %3638 = vmatprep.subr.bf16.mxu0 0
        %3639 = vmatpush1.bf16.msra.mxu0 0
        %3640 = vmatprep.subr.bf16.mxu0 0
        %3641 = vmatpush1.bf16.msra.mxu0 0
        %3642 = vmatprep.subr.bf16.mxu0 0
        %3643 = vmatpush1.bf16.msra.mxu0 0
        %3644 = vmatprep.subr.bf16.mxu0 0
        %3645 = vmatpush1.bf16.msra.mxu0 0
        %3646 = vmatprep.subr.bf16.mxu0 0
        %3647 = vmatpush1.bf16.msra.mxu0 0
        %3648 = vmatprep.subr.bf16.mxu0 0
        %3649 = vmatpush1.bf16.msra.mxu0 0
        %3650 = vmatprep.subr.bf16.mxu0 0
        %3651 = vmatpush1.bf16.msra.mxu0 0
        %3652 = vmatprep.subr.bf16.mxu0 0
        %3653 = vmatpush1.bf16.msra.mxu0 0
        %3654 = vmatprep.subr.bf16.mxu0 0
        %3655 = vmatpush1.bf16.msra.mxu0 0
        %3656 = vmatprep.subr.bf16.mxu0 0
        %3657 = vmatpush1.bf16.msra.mxu0 0
        %3658 = vmatprep.mubr.bf16.mxu0 0
        %3659 = vmatmul.mubr.bf16.gmra.mrb[0].mxu0 %v3624
        %v3660 = vpop.f32.mrb[0].mxu0
        %v3661 = vadd.f32 0.0, %v3660
        %v3662 = vpop.f32.mrb[0].mxu0
        %v3663 = vpop.f32.mrb[0].mxu0
        %v3664 = vadd.f32 0.0, %v3663
        %v3665 = vpop.f32.mrb[0].mxu0
        %3666 = vdwg.mxu0
        %v3667 = vadd.f32 %v3596, %v3661
        %v3668 = vadd.f32 %v3597, %v3664
        %v3669 = vld [vmem:[%s2735 + $0x1] sm:$0xf]
        %v3670 = vld [vmem:[%s2735 + $0x9] sm:$0xf]
        %v3671 = vld [vmem:[%s2735 + $0x11] sm:$0xf]
        %v3672 = vld [vmem:[%s2735 + $0x19] sm:$0xf]
        %v3677 = vcombine.low %v3669, %v3670
        %v3678 = vcombine.low %v3671, %v3672
        %v3681 = vpack.c.bf16 %v3678, %v3677
        %v3686 = vunpack.c.l.b16 %v2692
        %v3687 = vunpack.c.l.b16 %v2693
        %v3688 = vunpack.c.l.b16 %v2694
        %v3689 = vunpack.c.l.b16 %v2695
        %v3690 = vpack.c.b16 %v3687, %v3686
        %v3691 = vpack.c.b16 %v3689, %v3688
        %v3695 = vsel %vm899, %v3681, 0
        %3697 = vmatprep.subr.bf16.mxu0 0
        %3698 = vmatpush1.bf16.msra.mxu0 %v3690
        %3699 = vmatprep.subr.bf16.mxu0 0
        %3700 = vmatpush1.bf16.msra.mxu0 %v3691
        %3701 = vmatprep.subr.bf16.mxu0 0
        %3702 = vmatpush1.bf16.msra.mxu0 0
        %3703 = vmatprep.subr.bf16.mxu0 0
        %3704 = vmatpush1.bf16.msra.mxu0 0
        %3705 = vmatprep.subr.bf16.mxu0 0
        %3706 = vmatpush1.bf16.msra.mxu0 0
        %3707 = vmatprep.subr.bf16.mxu0 0
        %3708 = vmatpush1.bf16.msra.mxu0 0
        %3709 = vmatprep.subr.bf16.mxu0 0
        %3710 = vmatpush1.bf16.msra.mxu0 0
        %3711 = vmatprep.subr.bf16.mxu0 0
        %3712 = vmatpush1.bf16.msra.mxu0 0
        %3713 = vmatprep.subr.bf16.mxu0 0
        %3714 = vmatpush1.bf16.msra.mxu0 0
        %3715 = vmatprep.subr.bf16.mxu0 0
        %3716 = vmatpush1.bf16.msra.mxu0 0
        %3717 = vmatprep.subr.bf16.mxu0 0
        %3718 = vmatpush1.bf16.msra.mxu0 0
        %3719 = vmatprep.subr.bf16.mxu0 0
        %3720 = vmatpush1.bf16.msra.mxu0 0
        %3721 = vmatprep.subr.bf16.mxu0 0
        %3722 = vmatpush1.bf16.msra.mxu0 0
        %3723 = vmatprep.subr.bf16.mxu0 0
        %3724 = vmatpush1.bf16.msra.mxu0 0
        %3725 = vmatprep.subr.bf16.mxu0 0
        %3726 = vmatpush1.bf16.msra.mxu0 0
        %3727 = vmatprep.subr.bf16.mxu0 0
        %3728 = vmatpush1.bf16.msra.mxu0 0
        %3729 = vmatprep.mubr.bf16.mxu0 0
        %3730 = vmatmul.mubr.bf16.gmra.mrb[0].mxu0 %v3695
        %v3731 = vpop.f32.mrb[0].mxu0
        %v3732 = vadd.f32 0.0, %v3731
        %v3733 = vpop.f32.mrb[0].mxu0
        %v3734 = vpop.f32.mrb[0].mxu0
        %v3735 = vadd.f32 0.0, %v3734
        %v3736 = vpop.f32.mrb[0].mxu0
        %3737 = vdwg.mxu0
        %v3738 = vadd.f32 %v3667, %v3732
        %v3739 = vadd.f32 %v3668, %v3735
        %v3740 = vld [vmem:[%s2735 + $0x2] sm:$0xf]
        %v3741 = vld [vmem:[%s2735 + $0xa] sm:$0xf]
        %v3742 = vld [vmem:[%s2735 + $0x12] sm:$0xf]
        %v3743 = vld [vmem:[%s2735 + $0x1a] sm:$0xf]
        %v3748 = vcombine.low %v3740, %v3741
        %v3749 = vcombine.low %v3742, %v3743
        %v3752 = vpack.c.bf16 %v3749, %v3748
        %v3757 = vunpack.c.l.b16 %v2696
        %v3758 = vunpack.c.l.b16 %v2697
        %v3759 = vunpack.c.l.b16 %v2698
        %v3760 = vunpack.c.l.b16 %v2699
        %v3761 = vpack.c.b16 %v3758, %v3757
        %v3762 = vpack.c.b16 %v3760, %v3759
        %v3766 = vsel %vm899, %v3752, 0
        %3768 = vmatprep.subr.bf16.mxu0 0
        %3769 = vmatpush1.bf16.msra.mxu0 %v3761
        %3770 = vmatprep.subr.bf16.mxu0 0
        %3771 = vmatpush1.bf16.msra.mxu0 %v3762
        %3772 = vmatprep.subr.bf16.mxu0 0
        %3773 = vmatpush1.bf16.msra.mxu0 0
        %3774 = vmatprep.subr.bf16.mxu0 0
        %3775 = vmatpush1.bf16.msra.mxu0 0
        %3776 = vmatprep.subr.bf16.mxu0 0
        %3777 = vmatpush1.bf16.msra.mxu0 0
        %3778 = vmatprep.subr.bf16.mxu0 0
        %3779 = vmatpush1.bf16.msra.mxu0 0
        %3780 = vmatprep.subr.bf16.mxu0 0
        %3781 = vmatpush1.bf16.msra.mxu0 0
        %3782 = vmatprep.subr.bf16.mxu0 0
        %3783 = vmatpush1.bf16.msra.mxu0 0
        %3784 = vmatprep.subr.bf16.mxu0 0
        %3785 = vmatpush1.bf16.msra.mxu0 0
        %3786 = vmatprep.subr.bf16.mxu0 0
        %3787 = vmatpush1.bf16.msra.mxu0 0
        %3788 = vmatprep.subr.bf16.mxu0 0
        %3789 = vmatpush1.bf16.msra.mxu0 0
        %3790 = vmatprep.subr.bf16.mxu0 0
        %3791 = vmatpush1.bf16.msra.mxu0 0
        %3792 = vmatprep.subr.bf16.mxu0 0
        %3793 = vmatpush1.bf16.msra.mxu0 0
        %3794 = vmatprep.subr.bf16.mxu0 0
        %3795 = vmatpush1.bf16.msra.mxu0 0
        %3796 = vmatprep.subr.bf16.mxu0 0
        %3797 = vmatpush1.bf16.msra.mxu0 0
        %3798 = vmatprep.subr.bf16.mxu0 0
        %3799 = vmatpush1.bf16.msra.mxu0 0
        %3800 = vmatprep.mubr.bf16.mxu0 0
        %3801 = vmatmul.mubr.bf16.gmra.mrb[0].mxu0 %v3766
        %v3802 = vpop.f32.mrb[0].mxu0
        %v3803 = vadd.f32 0.0, %v3802
        %v3804 = vpop.f32.mrb[0].mxu0
        %v3805 = vpop.f32.mrb[0].mxu0
        %v3806 = vadd.f32 0.0, %v3805
        %v3807 = vpop.f32.mrb[0].mxu0
        %3808 = vdwg.mxu0
        %v3809 = vadd.f32 %v3738, %v3803
        %v3810 = vadd.f32 %v3739, %v3806
        %v3811 = vld [vmem:[%s3163] sm:$0xf]
        %v3812 = vld [vmem:[%s3163 + $0x8] sm:$0xf]
        %v3813 = vld [vmem:[%s3163 + $0x10] sm:$0xf]
        %v3814 = vld [vmem:[%s3163 + $0x18] sm:$0xf]
        %v3819 = vcombine.low %v3811, %v3812
        %v3820 = vcombine.low %v3813, %v3814
        %v3823 = vpack.c.bf16 %v3820, %v3819
        %v3828 = vunpack.c.l.b16 %v2700
        %v3829 = vunpack.c.l.b16 %v2701
        %v3830 = vunpack.c.l.b16 %v2702
        %v3831 = vunpack.c.l.b16 %v2703
        %v3832 = vpack.c.b16 %v3829, %v3828
        %v3833 = vpack.c.b16 %v3831, %v3830
        %v3837 = vsel %vm899, %v3823, 0
        %3839 = vmatprep.subr.bf16.mxu0 0
        %3840 = vmatpush1.bf16.msra.mxu0 %v3832
        %3841 = vmatprep.subr.bf16.mxu0 0
        %3842 = vmatpush1.bf16.msra.mxu0 %v3833
        %3843 = vmatprep.subr.bf16.mxu0 0
        %3844 = vmatpush1.bf16.msra.mxu0 0
        %3845 = vmatprep.subr.bf16.mxu0 0
        %3846 = vmatpush1.bf16.msra.mxu0 0
        %3847 = vmatprep.subr.bf16.mxu0 0
        %3848 = vmatpush1.bf16.msra.mxu0 0
        %3849 = vmatprep.subr.bf16.mxu0 0
        %3850 = vmatpush1.bf16.msra.mxu0 0
        %3851 = vmatprep.subr.bf16.mxu0 0
        %3852 = vmatpush1.bf16.msra.mxu0 0
        %3853 = vmatprep.subr.bf16.mxu0 0
        %3854 = vmatpush1.bf16.msra.mxu0 0
        %3855 = vmatprep.subr.bf16.mxu0 0
        %3856 = vmatpush1.bf16.msra.mxu0 0
        %3857 = vmatprep.subr.bf16.mxu0 0
        %3858 = vmatpush1.bf16.msra.mxu0 0
        %3859 = vmatprep.subr.bf16.mxu0 0
        %3860 = vmatpush1.bf16.msra.mxu0 0
        %3861 = vmatprep.subr.bf16.mxu0 0
        %3862 = vmatpush1.bf16.msra.mxu0 0
        %3863 = vmatprep.subr.bf16.mxu0 0
        %3864 = vmatpush1.bf16.msra.mxu0 0
        %3865 = vmatprep.subr.bf16.mxu0 0
        %3866 = vmatpush1.bf16.msra.mxu0 0
        %3867 = vmatprep.subr.bf16.mxu0 0
        %3868 = vmatpush1.bf16.msra.mxu0 0
        %3869 = vmatprep.subr.bf16.mxu0 0
        %3870 = vmatpush1.bf16.msra.mxu0 0
        %3871 = vmatprep.mubr.bf16.mxu0 0
        %3872 = vmatmul.mubr.bf16.gmra.mrb[0].mxu0 %v3837
        %v3873 = vpop.f32.mrb[0].mxu0
        %v3874 = vadd.f32 0.0, %v3873
        %v3875 = vpop.f32.mrb[0].mxu0
        %v3876 = vpop.f32.mrb[0].mxu0
        %v3877 = vadd.f32 0.0, %v3876
        %v3878 = vpop.f32.mrb[0].mxu0
        %3879 = vdwg.mxu0
        %v3880 = vadd.f32 %v3809, %v3874
        %v3881 = vadd.f32 %v3810, %v3877
        %v3882 = vld [vmem:[%s3163 + $0x1] sm:$0xf]
        %v3883 = vld [vmem:[%s3163 + $0x9] sm:$0xf]
        %v3884 = vld [vmem:[%s3163 + $0x11] sm:$0xf]
        %v3885 = vld [vmem:[%s3163 + $0x19] sm:$0xf]
        %v3890 = vcombine.low %v3882, %v3883
        %v3891 = vcombine.low %v3884, %v3885
        %v3894 = vpack.c.bf16 %v3891, %v3890
        %v3899 = vunpack.c.l.b16 %v2704
        %v3900 = vunpack.c.l.b16 %v2705
        %v3901 = vunpack.c.l.b16 %v2706
        %v3902 = vunpack.c.l.b16 %v2707
        %v3903 = vpack.c.b16 %v3900, %v3899
        %v3904 = vpack.c.b16 %v3902, %v3901
        %v3908 = vsel %vm899, %v3894, 0
        %3910 = vmatprep.subr.bf16.mxu0 0
        %3911 = vmatpush1.bf16.msra.mxu0 %v3903
        %3912 = vmatprep.subr.bf16.mxu0 0
        %3913 = vmatpush1.bf16.msra.mxu0 %v3904
        %3914 = vmatprep.subr.bf16.mxu0 0
        %3915 = vmatpush1.bf16.msra.mxu0 0
        %3916 = vmatprep.subr.bf16.mxu0 0
        %3917 = vmatpush1.bf16.msra.mxu0 0
        %3918 = vmatprep.subr.bf16.mxu0 0
        %3919 = vmatpush1.bf16.msra.mxu0 0
        %3920 = vmatprep.subr.bf16.mxu0 0
        %3921 = vmatpush1.bf16.msra.mxu0 0
        %3922 = vmatprep.subr.bf16.mxu0 0
        %3923 = vmatpush1.bf16.msra.mxu0 0
        %3924 = vmatprep.subr.bf16.mxu0 0
        %3925 = vmatpush1.bf16.msra.mxu0 0
        %3926 = vmatprep.subr.bf16.mxu0 0
        %3927 = vmatpush1.bf16.msra.mxu0 0
        %3928 = vmatprep.subr.bf16.mxu0 0
        %3929 = vmatpush1.bf16.msra.mxu0 0
        %3930 = vmatprep.subr.bf16.mxu0 0
        %3931 = vmatpush1.bf16.msra.mxu0 0
        %3932 = vmatprep.subr.bf16.mxu0 0
        %3933 = vmatpush1.bf16.msra.mxu0 0
        %3934 = vmatprep.subr.bf16.mxu0 0
        %3935 = vmatpush1.bf16.msra.mxu0 0
        %3936 = vmatprep.subr.bf16.mxu0 0
        %3937 = vmatpush1.bf16.msra.mxu0 0
        %3938 = vmatprep.subr.bf16.mxu0 0
        %3939 = vmatpush1.bf16.msra.mxu0 0
        %3940 = vmatprep.subr.bf16.mxu0 0
        %3941 = vmatpush1.bf16.msra.mxu0 0
        %3942 = vmatprep.mubr.bf16.mxu0 0
        %3943 = vmatmul.mubr.bf16.gmra.mrb[0].mxu0 %v3908
        %v3944 = vpop.f32.mrb[0].mxu0
        %v3945 = vadd.f32 0.0, %v3944
        %v3946 = vpop.f32.mrb[0].mxu0
        %v3947 = vpop.f32.mrb[0].mxu0
        %v3948 = vadd.f32 0.0, %v3947
        %v3949 = vpop.f32.mrb[0].mxu0
        %3950 = vdwg.mxu0
        %v3951 = vadd.f32 %v3880, %v3945
        %v3952 = vadd.f32 %v3881, %v3948
        %v3953 = vld [vmem:[%s3163 + $0x2] sm:$0xf]
        %v3954 = vld [vmem:[%s3163 + $0xa] sm:$0xf]
        %v3955 = vld [vmem:[%s3163 + $0x12] sm:$0xf]
        %v3956 = vld [vmem:[%s3163 + $0x1a] sm:$0xf]
        %v3961 = vcombine.low %v3953, %v3954
        %v3962 = vcombine.low %v3955, %v3956
        %v3965 = vpack.c.bf16 %v3962, %v3961
        %v3970 = vunpack.c.l.b16 %v2708
        %v3971 = vunpack.c.l.b16 %v2709
        %v3972 = vunpack.c.l.b16 %v2710
        %v3973 = vunpack.c.l.b16 %v2711
        %v3974 = vpack.c.b16 %v3971, %v3970
        %v3975 = vpack.c.b16 %v3973, %v3972
        %v3979 = vsel %vm899, %v3965, 0
        %3981 = vmatprep.subr.bf16.mxu0 0
        %3982 = vmatpush1.bf16.msra.mxu0 %v3974
        %3983 = vmatprep.subr.bf16.mxu0 0
        %3984 = vmatpush1.bf16.msra.mxu0 %v3975
        %3985 = vmatprep.subr.bf16.mxu0 0
        %3986 = vmatpush1.bf16.msra.mxu0 0
        %3987 = vmatprep.subr.bf16.mxu0 0
        %3988 = vmatpush1.bf16.msra.mxu0 0
        %3989 = vmatprep.subr.bf16.mxu0 0
        %3990 = vmatpush1.bf16.msra.mxu0 0
        %3991 = vmatprep.subr.bf16.mxu0 0
        %3992 = vmatpush1.bf16.msra.mxu0 0
        %3993 = vmatprep.subr.bf16.mxu0 0
        %3994 = vmatpush1.bf16.msra.mxu0 0
        %3995 = vmatprep.subr.bf16.mxu0 0
        %3996 = vmatpush1.bf16.msra.mxu0 0
        %3997 = vmatprep.subr.bf16.mxu0 0
        %3998 = vmatpush1.bf16.msra.mxu0 0
        %3999 = vmatprep.subr.bf16.mxu0 0
        %4000 = vmatpush1.bf16.msra.mxu0 0
        %4001 = vmatprep.subr.bf16.mxu0 0
        %4002 = vmatpush1.bf16.msra.mxu0 0
        %4003 = vmatprep.subr.bf16.mxu0 0
        %4004 = vmatpush1.bf16.msra.mxu0 0
        %4005 = vmatprep.subr.bf16.mxu0 0
        %4006 = vmatpush1.bf16.msra.mxu0 0
        %4007 = vmatprep.subr.bf16.mxu0 0
        %4008 = vmatpush1.bf16.msra.mxu0 0
        %4009 = vmatprep.subr.bf16.mxu0 0
        %4010 = vmatpush1.bf16.msra.mxu0 0
        %4011 = vmatprep.subr.bf16.mxu0 0
        %4012 = vmatpush1.bf16.msra.mxu0 0
        %4013 = vmatprep.mubr.bf16.mxu0 0
        %4014 = vmatmul.mubr.bf16.gmra.mrb[0].mxu0 %v3979
        %v4015 = vpop.f32.mrb[0].mxu0
        %v4016 = vadd.f32 0.0, %v4015
        %v4017 = vpop.f32.mrb[0].mxu0
        %v4018 = vpop.f32.mrb[0].mxu0
        %v4019 = vadd.f32 0.0, %v4018
        %v4020 = vpop.f32.mrb[0].mxu0
        %4021 = vdwg.mxu0
        %v4022 = vadd.f32 %v3951, %v4016
        %v4023 = vadd.f32 %v3952, %v4019
        %v4024 = vmax.f32 %v4022, 0.0
        %v4025 = vmax.f32 %v4023, 0.0
        %v4026 = vld [vmem:[#allocation20] sm:$0xf]
        %v4027 = vld [vmem:[#allocation20 + $0x4] sm:$0xf]
        %v4028 = vld [vmem:[#allocation20 + $0x8] sm:$0xf]
        %v4029 = vld [vmem:[#allocation20 + $0xc] sm:$0xf]
        %v4030 = vld [vmem:[#allocation20 + $0x10] sm:$0xf]
        %v4031 = vld [vmem:[#allocation20 + $0x14] sm:$0xf]
        %v4032 = vld [vmem:[#allocation20 + $0x18] sm:$0xf]
        %v4033 = vld [vmem:[#allocation20 + $0x1c] sm:$0xf]
        %v4034 = vld [vmem:[#allocation20 + $0x20] sm:$0xf]
        %v4035 = vld [vmem:[#allocation20 + $0x24] sm:$0xf]
        %v4036 = vld [vmem:[#allocation20 + $0x28] sm:$0xf]
        %v4037 = vld [vmem:[#allocation20 + $0x2c] sm:$0xf]
        %v4038 = vld [vmem:[#allocation20 + $0x30] sm:$0xf]
        %v4039 = vld [vmem:[#allocation20 + $0x34] sm:$0xf]
        %v4040 = vld [vmem:[#allocation20 + $0x38] sm:$0xf]
        %v4041 = vld [vmem:[#allocation20 + $0x3c] sm:$0xf]
        %v4042 = vld [vmem:[#allocation20 + $0x40] sm:$0xf]
        %v4043 = vld [vmem:[#allocation20 + $0x44] sm:$0xf]
        %v4044 = vld [vmem:[#allocation20 + $0x48] sm:$0xf]
        %v4045 = vld [vmem:[#allocation20 + $0x4c] sm:$0xf]
        %v4046 = vld [vmem:[#allocation20 + $0x50] sm:$0xf]
        %v4047 = vld [vmem:[#allocation20 + $0x54] sm:$0xf]
        %v4048 = vld [vmem:[#allocation20 + $0x58] sm:$0xf]
        %v4049 = vld [vmem:[#allocation20 + $0x5c] sm:$0xf]
        %v4050 = vld [vmem:[#allocation20 + $0x60] sm:$0xf]
        %v4051 = vld [vmem:[#allocation20 + $0x64] sm:$0xf]
        %v4052 = vld [vmem:[#allocation20 + $0x68] sm:$0xf]
        %v4053 = vld [vmem:[#allocation20 + $0x6c] sm:$0xf]
        %v4054 = vld [vmem:[#allocation20 + $0x70] sm:$0xf]
        %v4055 = vld [vmem:[#allocation20 + $0x74] sm:$0xf]
        %v4056 = vld [vmem:[#allocation20 + $0x78] sm:$0xf]
        %v4057 = vld [vmem:[#allocation20 + $0x7c] sm:$0xf]
        %v4058 = vld [vmem:[#allocation20 + $0x80] sm:$0xf]
        %v4059 = vld [vmem:[#allocation20 + $0x84] sm:$0xf]
        %v4060 = vld [vmem:[#allocation20 + $0x88] sm:$0xf]
        %v4061 = vld [vmem:[#allocation20 + $0x8c] sm:$0xf]
        %v4062 = vld [vmem:[#allocation21] sm:$0xf]
        %v4063 = vld [vmem:[#allocation21 + $0x4] sm:$0xf]
        %v4064 = vld [vmem:[#allocation21 + $0x8] sm:$0xf]
        %v4065 = vld [vmem:[#allocation21 + $0xc] sm:$0xf]
        %v4066 = vld [vmem:[#allocation21 + $0x10] sm:$0xf]
        %v4067 = vld [vmem:[#allocation21 + $0x14] sm:$0xf]
        %v4068 = vld [vmem:[#allocation21 + $0x18] sm:$0xf]
        %v4069 = vld [vmem:[#allocation21 + $0x1c] sm:$0xf]
        %v4070 = vld [vmem:[#allocation21 + $0x20] sm:$0xf]
        %v4071 = vld [vmem:[#allocation21 + $0x24] sm:$0xf]
        %v4072 = vld [vmem:[#allocation21 + $0x28] sm:$0xf]
        %v4073 = vld [vmem:[#allocation21 + $0x2c] sm:$0xf]
        %v4074 = vld [vmem:[#allocation21 + $0x30] sm:$0xf]
        %v4075 = vld [vmem:[#allocation21 + $0x34] sm:$0xf]
        %v4076 = vld [vmem:[#allocation21 + $0x38] sm:$0xf]
        %v4077 = vld [vmem:[#allocation21 + $0x3c] sm:$0xf]
        %v4078 = vld [vmem:[#allocation21 + $0x40] sm:$0xf]
        %v4079 = vld [vmem:[#allocation21 + $0x44] sm:$0xf]
        %v4080 = vld [vmem:[#allocation21 + $0x48] sm:$0xf]
        %v4081 = vld [vmem:[#allocation21 + $0x4c] sm:$0xf]
        %v4082 = vld [vmem:[#allocation21 + $0x50] sm:$0xf]
        %v4083 = vld [vmem:[#allocation21 + $0x54] sm:$0xf]
        %v4084 = vld [vmem:[#allocation21 + $0x58] sm:$0xf]
        %v4085 = vld [vmem:[#allocation21 + $0x5c] sm:$0xf]
        %v4086 = vld [vmem:[#allocation21 + $0x60] sm:$0xf]
        %v4087 = vld [vmem:[#allocation21 + $0x64] sm:$0xf]
        %v4088 = vld [vmem:[#allocation21 + $0x68] sm:$0xf]
        %v4089 = vld [vmem:[#allocation21 + $0x6c] sm:$0xf]
        %v4090 = vld [vmem:[#allocation21 + $0x70] sm:$0xf]
        %v4091 = vld [vmem:[#allocation21 + $0x74] sm:$0xf]
        %v4092 = vld [vmem:[#allocation21 + $0x78] sm:$0xf]
        %v4093 = vld [vmem:[#allocation21 + $0x7c] sm:$0xf]
        %v4094 = vld [vmem:[#allocation21 + $0x80] sm:$0xf]
        %v4095 = vld [vmem:[#allocation21 + $0x84] sm:$0xf]
        %v4096 = vld [vmem:[#allocation21 + $0x88] sm:$0xf]
        %v4097 = vld [vmem:[#allocation21 + $0x8c] sm:$0xf]
        %4098 = vst.msk [vmem:[#allocation3] sm:$0x3f] %vm2712, 0.0
        %s4099 = scalar_lea.vmem [#allocation3], 40
        %4100 = vst.msk [vmem:[%s4099] sm:$0x3f] %vm2712, 0.0
        %4101 = vst.msk [vmem:[#allocation3] sm:$0x1] %vm2716, 0.0
        %4102 = vst.msk [vmem:[#allocation3 + $0x8] sm:$0x1] %vm2716, 0.0
        %4103 = vst.msk [vmem:[#allocation3 + $0x10] sm:$0x1] %vm2716, 0.0
        %4104 = vst.msk [vmem:[#allocation3 + $0x18] sm:$0x1] %vm2716, 0.0
        %4105 = vst.msk [vmem:[#allocation3 + $0x20] sm:$0x1] %vm2716, 0.0
        %4106 = vst.msk [vmem:[#allocation3 + $0x28] sm:$0x1] %vm2716, 0.0
        %4107 = vst.msk [vmem:[#allocation3 + $0x5] sm:$0x1] %vm2716, 0.0
        %4108 = vst.msk [vmem:[#allocation3 + $0xd] sm:$0x1] %vm2716, 0.0
        %4109 = vst.msk [vmem:[#allocation3 + $0x15] sm:$0x1] %vm2716, 0.0
        %4110 = vst.msk [vmem:[#allocation3 + $0x1d] sm:$0x1] %vm2716, 0.0
        %4111 = vst.msk [vmem:[#allocation3 + $0x25] sm:$0x1] %vm2716, 0.0
        %4112 = vst.msk [vmem:[#allocation3 + $0x2d] sm:$0x1] %vm2716, 0.0
        %v4115 = vcombine.high %v985, %v985
        %v4116 = vcombine.high %v986, %v986
        %s4119 = scalar_lea.vmem [#allocation3], 8
        %4120 = vst.msk [vmem:[%s4119 + $0x1] sm:$0xf] %vm2736, %v985
        %4121 = vst.msk [vmem:[%s4119 + $0x9] sm:$0xf] %vm2736, %v4115
        %4122 = vst.msk [vmem:[%s4119 + $0x11] sm:$0xf] %vm2736, %v986
        %4123 = vst.msk [vmem:[%s4119 + $0x19] sm:$0xf] %vm2736, %v4116
        %v4124 = vld [vmem:[#allocation3] sm:$0xf]
        %v4125 = vld [vmem:[#allocation3 + $0x8] sm:$0xf]
        %v4126 = vld [vmem:[#allocation3 + $0x10] sm:$0xf]
        %v4127 = vld [vmem:[#allocation3 + $0x18] sm:$0xf]
        %v4132 = vcombine.low %v4124, %v4125
        %v4133 = vcombine.low %v4126, %v4127
        %v4136 = vpack.c.bf16 %v4133, %v4132
        %v4137 = vld [vmem:[#allocation3 + $0x1] sm:$0xf]
        %v4138 = vld [vmem:[#allocation3 + $0x9] sm:$0xf]
        %v4139 = vld [vmem:[#allocation3 + $0x11] sm:$0xf]
        %v4140 = vld [vmem:[#allocation3 + $0x19] sm:$0xf]
        %v4145 = vcombine.low %v4137, %v4138
        %v4146 = vcombine.low %v4139, %v4140
        %v4149 = vpack.c.bf16 %v4146, %v4145
        %v4154 = vunpack.c.l.b16 %v4030
        %v4155 = vunpack.c.l.b16 %v4031
        %v4156 = vunpack.c.l.b16 %v4032
        %v4157 = vunpack.c.l.b16 %v4033
        %v4158 = vpack.c.b16 %v4155, %v4154
        %v4159 = vpack.c.b16 %v4157, %v4156
        %v4163 = vsel %vm899, %v4149, 0
        %4165 = vmatprep.subr.bf16.mxu0 0
        %4166 = vmatpush1.bf16.msra.mxu0 %v4158
        %4167 = vmatprep.subr.bf16.mxu0 0
        %4168 = vmatpush1.bf16.msra.mxu0 %v4159
        %4169 = vmatprep.subr.bf16.mxu0 0
        %4170 = vmatpush1.bf16.msra.mxu0 0
        %4171 = vmatprep.subr.bf16.mxu0 0
        %4172 = vmatpush1.bf16.msra.mxu0 0
        %4173 = vmatprep.subr.bf16.mxu0 0
        %4174 = vmatpush1.bf16.msra.mxu0 0
        %4175 = vmatprep.subr.bf16.mxu0 0
        %4176 = vmatpush1.bf16.msra.mxu0 0
        %4177 = vmatprep.subr.bf16.mxu0 0
        %4178 = vmatpush1.bf16.msra.mxu0 0
        %4179 = vmatprep.subr.bf16.mxu0 0
        %4180 = vmatpush1.bf16.msra.mxu0 0
        %4181 = vmatprep.subr.bf16.mxu0 0
        %4182 = vmatpush1.bf16.msra.mxu0 0
        %4183 = vmatprep.subr.bf16.mxu0 0
        %4184 = vmatpush1.bf16.msra.mxu0 0
        %4185 = vmatprep.subr.bf16.mxu0 0
        %4186 = vmatpush1.bf16.msra.mxu0 0
        %4187 = vmatprep.subr.bf16.mxu0 0
        %4188 = vmatpush1.bf16.msra.mxu0 0
        %4189 = vmatprep.subr.bf16.mxu0 0
        %4190 = vmatpush1.bf16.msra.mxu0 0
        %4191 = vmatprep.subr.bf16.mxu0 0
        %4192 = vmatpush1.bf16.msra.mxu0 0
        %4193 = vmatprep.subr.bf16.mxu0 0
        %4194 = vmatpush1.bf16.msra.mxu0 0
        %4195 = vmatprep.subr.bf16.mxu0 0
        %4196 = vmatpush1.bf16.msra.mxu0 0
        %4197 = vmatprep.mubr.bf16.mxu0 0
        %4198 = vmatmul.mubr.bf16.gmra.mrb[0].mxu0 %v4163
        %v4199 = vpop.f32.mrb[0].mxu0
        %v4200 = vadd.f32 0.0, %v4199
        %v4201 = vpop.f32.mrb[0].mxu0
        %v4202 = vpop.f32.mrb[0].mxu0
        %v4203 = vadd.f32 0.0, %v4202
        %v4204 = vpop.f32.mrb[0].mxu0
        %4205 = vdwg.mxu0
        %v4210 = vunpack.c.l.b16 %v4026
        %v4211 = vunpack.c.l.b16 %v4027
        %v4212 = vunpack.c.l.b16 %v4028
        %v4213 = vunpack.c.l.b16 %v4029
        %v4214 = vpack.c.b16 %v4211, %v4210
        %v4215 = vpack.c.b16 %v4213, %v4212
        %v4219 = vsel %vm899, %v4136, 0
        %4221 = vmatprep.subr.bf16.mxu0 0
        %4222 = vmatpush1.bf16.msra.mxu0 %v4214
        %4223 = vmatprep.subr.bf16.mxu0 0
        %4224 = vmatpush1.bf16.msra.mxu0 %v4215
        %4225 = vmatprep.subr.bf16.mxu0 0
        %4226 = vmatpush1.bf16.msra.mxu0 0
        %4227 = vmatprep.subr.bf16.mxu0 0
        %4228 = vmatpush1.bf16.msra.mxu0 0
        %4229 = vmatprep.subr.bf16.mxu0 0
        %4230 = vmatpush1.bf16.msra.mxu0 0
        %4231 = vmatprep.subr.bf16.mxu0 0
        %4232 = vmatpush1.bf16.msra.mxu0 0
        %4233 = vmatprep.subr.bf16.mxu0 0
        %4234 = vmatpush1.bf16.msra.mxu0 0
        %4235 = vmatprep.subr.bf16.mxu0 0
        %4236 = vmatpush1.bf16.msra.mxu0 0
        %4237 = vmatprep.subr.bf16.mxu0 0
        %4238 = vmatpush1.bf16.msra.mxu0 0
        %4239 = vmatprep.subr.bf16.mxu0 0
        %4240 = vmatpush1.bf16.msra.mxu0 0
        %4241 = vmatprep.subr.bf16.mxu0 0
        %4242 = vmatpush1.bf16.msra.mxu0 0
        %4243 = vmatprep.subr.bf16.mxu0 0
        %4244 = vmatpush1.bf16.msra.mxu0 0
        %4245 = vmatprep.subr.bf16.mxu0 0
        %4246 = vmatpush1.bf16.msra.mxu0 0
        %4247 = vmatprep.subr.bf16.mxu0 0
        %4248 = vmatpush1.bf16.msra.mxu0 0
        %4249 = vmatprep.subr.bf16.mxu0 0
        %4250 = vmatpush1.bf16.msra.mxu0 0
        %4251 = vmatprep.subr.bf16.mxu0 0
        %4252 = vmatpush1.bf16.msra.mxu0 0
        %4253 = vmatprep.mubr.bf16.mxu0 0
        %4254 = vmatmul.mubr.bf16.gmra.mrb[0].mxu0 %v4219
        %v4255 = vpop.f32.mrb[0].mxu0
        %v4256 = vadd.f32 %v4200, %v4255
        %v4257 = vpop.f32.mrb[0].mxu0
        %v4258 = vpop.f32.mrb[0].mxu0
        %v4259 = vadd.f32 %v4203, %v4258
        %v4260 = vpop.f32.mrb[0].mxu0
        %4261 = vdwg.mxu0
        %v4262 = vld [vmem:[#allocation3 + $0x2] sm:$0xf]
        %v4263 = vld [vmem:[#allocation3 + $0xa] sm:$0xf]
        %v4264 = vld [vmem:[#allocation3 + $0x12] sm:$0xf]
        %v4265 = vld [vmem:[#allocation3 + $0x1a] sm:$0xf]
        %v4270 = vcombine.low %v4262, %v4263
        %v4271 = vcombine.low %v4264, %v4265
        %v4274 = vpack.c.bf16 %v4271, %v4270
        %v4279 = vunpack.c.l.b16 %v4034
        %v4280 = vunpack.c.l.b16 %v4035
        %v4281 = vunpack.c.l.b16 %v4036
        %v4282 = vunpack.c.l.b16 %v4037
        %v4283 = vpack.c.b16 %v4280, %v4279
        %v4284 = vpack.c.b16 %v4282, %v4281
        %v4288 = vsel %vm899, %v4274, 0
        %4290 = vmatprep.subr.bf16.mxu0 0
        %4291 = vmatpush1.bf16.msra.mxu0 %v4283
        %4292 = vmatprep.subr.bf16.mxu0 0
        %4293 = vmatpush1.bf16.msra.mxu0 %v4284
        %4294 = vmatprep.subr.bf16.mxu0 0
        %4295 = vmatpush1.bf16.msra.mxu0 0
        %4296 = vmatprep.subr.bf16.mxu0 0
        %4297 = vmatpush1.bf16.msra.mxu0 0
        %4298 = vmatprep.subr.bf16.mxu0 0
        %4299 = vmatpush1.bf16.msra.mxu0 0
        %4300 = vmatprep.subr.bf16.mxu0 0
        %4301 = vmatpush1.bf16.msra.mxu0 0
        %4302 = vmatprep.subr.bf16.mxu0 0
        %4303 = vmatpush1.bf16.msra.mxu0 0
        %4304 = vmatprep.subr.bf16.mxu0 0
        %4305 = vmatpush1.bf16.msra.mxu0 0
        %4306 = vmatprep.subr.bf16.mxu0 0
        %4307 = vmatpush1.bf16.msra.mxu0 0
        %4308 = vmatprep.subr.bf16.mxu0 0
        %4309 = vmatpush1.bf16.msra.mxu0 0
        %4310 = vmatprep.subr.bf16.mxu0 0
        %4311 = vmatpush1.bf16.msra.mxu0 0
        %4312 = vmatprep.subr.bf16.mxu0 0
        %4313 = vmatpush1.bf16.msra.mxu0 0
        %4314 = vmatprep.subr.bf16.mxu0 0
        %4315 = vmatpush1.bf16.msra.mxu0 0
        %4316 = vmatprep.subr.bf16.mxu0 0
        %4317 = vmatpush1.bf16.msra.mxu0 0
        %4318 = vmatprep.subr.bf16.mxu0 0
        %4319 = vmatpush1.bf16.msra.mxu0 0
        %4320 = vmatprep.subr.bf16.mxu0 0
        %4321 = vmatpush1.bf16.msra.mxu0 0
        %4322 = vmatprep.mubr.bf16.mxu0 0
        %4323 = vmatmul.mubr.bf16.gmra.mrb[0].mxu0 %v4288
        %v4324 = vpop.f32.mrb[0].mxu0
        %v4325 = vadd.f32 0.0, %v4324
        %v4326 = vpop.f32.mrb[0].mxu0
        %v4327 = vpop.f32.mrb[0].mxu0
        %v4328 = vadd.f32 0.0, %v4327
        %v4329 = vpop.f32.mrb[0].mxu0
        %4330 = vdwg.mxu0
        %v4331 = vadd.f32 %v4256, %v4325
        %v4332 = vadd.f32 %v4259, %v4328
        %v4333 = vld [vmem:[%s4119] sm:$0xf]
        %v4334 = vld [vmem:[%s4119 + $0x8] sm:$0xf]
        %v4335 = vld [vmem:[%s4119 + $0x10] sm:$0xf]
        %v4336 = vld [vmem:[%s4119 + $0x18] sm:$0xf]
        %v4341 = vcombine.low %v4333, %v4334
        %v4342 = vcombine.low %v4335, %v4336
        %v4345 = vpack.c.bf16 %v4342, %v4341
        %v4350 = vunpack.c.l.b16 %v4038
        %v4351 = vunpack.c.l.b16 %v4039
        %v4352 = vunpack.c.l.b16 %v4040
        %v4353 = vunpack.c.l.b16 %v4041
        %v4354 = vpack.c.b16 %v4351, %v4350
        %v4355 = vpack.c.b16 %v4353, %v4352
        %v4359 = vsel %vm899, %v4345, 0
        %4361 = vmatprep.subr.bf16.mxu0 0
        %4362 = vmatpush1.bf16.msra.mxu0 %v4354
        %4363 = vmatprep.subr.bf16.mxu0 0
        %4364 = vmatpush1.bf16.msra.mxu0 %v4355
        %4365 = vmatprep.subr.bf16.mxu0 0
        %4366 = vmatpush1.bf16.msra.mxu0 0
        %4367 = vmatprep.subr.bf16.mxu0 0
        %4368 = vmatpush1.bf16.msra.mxu0 0
        %4369 = vmatprep.subr.bf16.mxu0 0
        %4370 = vmatpush1.bf16.msra.mxu0 0
        %4371 = vmatprep.subr.bf16.mxu0 0
        %4372 = vmatpush1.bf16.msra.mxu0 0
        %4373 = vmatprep.subr.bf16.mxu0 0
        %4374 = vmatpush1.bf16.msra.mxu0 0
        %4375 = vmatprep.subr.bf16.mxu0 0
        %4376 = vmatpush1.bf16.msra.mxu0 0
        %4377 = vmatprep.subr.bf16.mxu0 0
        %4378 = vmatpush1.bf16.msra.mxu0 0
        %4379 = vmatprep.subr.bf16.mxu0 0
        %4380 = vmatpush1.bf16.msra.mxu0 0
        %4381 = vmatprep.subr.bf16.mxu0 0
        %4382 = vmatpush1.bf16.msra.mxu0 0
        %4383 = vmatprep.subr.bf16.mxu0 0
        %4384 = vmatpush1.bf16.msra.mxu0 0
        %4385 = vmatprep.subr.bf16.mxu0 0
        %4386 = vmatpush1.bf16.msra.mxu0 0
        %4387 = vmatprep.subr.bf16.mxu0 0
        %4388 = vmatpush1.bf16.msra.mxu0 0
        %4389 = vmatprep.subr.bf16.mxu0 0
        %4390 = vmatpush1.bf16.msra.mxu0 0
        %4391 = vmatprep.subr.bf16.mxu0 0
        %4392 = vmatpush1.bf16.msra.mxu0 0
        %4393 = vmatprep.mubr.bf16.mxu0 0
        %4394 = vmatmul.mubr.bf16.gmra.mrb[0].mxu0 %v4359
        %v4395 = vpop.f32.mrb[0].mxu0
        %v4396 = vadd.f32 0.0, %v4395
        %v4397 = vpop.f32.mrb[0].mxu0
        %v4398 = vpop.f32.mrb[0].mxu0
        %v4399 = vadd.f32 0.0, %v4398
        %v4400 = vpop.f32.mrb[0].mxu0
        %4401 = vdwg.mxu0
        %v4402 = vadd.f32 %v4331, %v4396
        %v4403 = vadd.f32 %v4332, %v4399
        %v4404 = vld [vmem:[%s4119 + $0x1] sm:$0xf]
        %v4405 = vld [vmem:[%s4119 + $0x9] sm:$0xf]
        %v4406 = vld [vmem:[%s4119 + $0x11] sm:$0xf]
        %v4407 = vld [vmem:[%s4119 + $0x19] sm:$0xf]
        %v4412 = vcombine.low %v4404, %v4405
        %v4413 = vcombine.low %v4406, %v4407
        %v4416 = vpack.c.bf16 %v4413, %v4412
        %v4421 = vunpack.c.l.b16 %v4042
        %v4422 = vunpack.c.l.b16 %v4043
        %v4423 = vunpack.c.l.b16 %v4044
        %v4424 = vunpack.c.l.b16 %v4045
        %v4425 = vpack.c.b16 %v4422, %v4421
        %v4426 = vpack.c.b16 %v4424, %v4423
        %v4430 = vsel %vm899, %v4416, 0
        %4432 = vmatprep.subr.bf16.mxu0 0
        %4433 = vmatpush1.bf16.msra.mxu0 %v4425
        %4434 = vmatprep.subr.bf16.mxu0 0
        %4435 = vmatpush1.bf16.msra.mxu0 %v4426
        %4436 = vmatprep.subr.bf16.mxu0 0
        %4437 = vmatpush1.bf16.msra.mxu0 0
        %4438 = vmatprep.subr.bf16.mxu0 0
        %4439 = vmatpush1.bf16.msra.mxu0 0
        %4440 = vmatprep.subr.bf16.mxu0 0
        %4441 = vmatpush1.bf16.msra.mxu0 0
        %4442 = vmatprep.subr.bf16.mxu0 0
        %4443 = vmatpush1.bf16.msra.mxu0 0
        %4444 = vmatprep.subr.bf16.mxu0 0
        %4445 = vmatpush1.bf16.msra.mxu0 0
        %4446 = vmatprep.subr.bf16.mxu0 0
        %4447 = vmatpush1.bf16.msra.mxu0 0
        %4448 = vmatprep.subr.bf16.mxu0 0
        %4449 = vmatpush1.bf16.msra.mxu0 0
        %4450 = vmatprep.subr.bf16.mxu0 0
        %4451 = vmatpush1.bf16.msra.mxu0 0
        %4452 = vmatprep.subr.bf16.mxu0 0
        %4453 = vmatpush1.bf16.msra.mxu0 0
        %4454 = vmatprep.subr.bf16.mxu0 0
        %4455 = vmatpush1.bf16.msra.mxu0 0
        %4456 = vmatprep.subr.bf16.mxu0 0
        %4457 = vmatpush1.bf16.msra.mxu0 0
        %4458 = vmatprep.subr.bf16.mxu0 0
        %4459 = vmatpush1.bf16.msra.mxu0 0
        %4460 = vmatprep.subr.bf16.mxu0 0
        %4461 = vmatpush1.bf16.msra.mxu0 0
        %4462 = vmatprep.subr.bf16.mxu0 0
        %4463 = vmatpush1.bf16.msra.mxu0 0
        %4464 = vmatprep.mubr.bf16.mxu0 0
        %4465 = vmatmul.mubr.bf16.gmra.mrb[0].mxu0 %v4430
        %v4466 = vpop.f32.mrb[0].mxu0
        %v4467 = vadd.f32 0.0, %v4466
        %v4468 = vpop.f32.mrb[0].mxu0
        %v4469 = vpop.f32.mrb[0].mxu0
        %v4470 = vadd.f32 0.0, %v4469
        %v4471 = vpop.f32.mrb[0].mxu0
        %4472 = vdwg.mxu0
        %v4473 = vadd.f32 %v4402, %v4467
        %v4474 = vadd.f32 %v4403, %v4470
        %v4475 = vld [vmem:[%s4119 + $0x2] sm:$0xf]
        %v4476 = vld [vmem:[%s4119 + $0xa] sm:$0xf]
        %v4477 = vld [vmem:[%s4119 + $0x12] sm:$0xf]
        %v4478 = vld [vmem:[%s4119 + $0x1a] sm:$0xf]
        %v4483 = vcombine.low %v4475, %v4476
        %v4484 = vcombine.low %v4477, %v4478
        %v4487 = vpack.c.bf16 %v4484, %v4483
        %v4492 = vunpack.c.l.b16 %v4046
        %v4493 = vunpack.c.l.b16 %v4047
        %v4494 = vunpack.c.l.b16 %v4048
        %v4495 = vunpack.c.l.b16 %v4049
        %v4496 = vpack.c.b16 %v4493, %v4492
        %v4497 = vpack.c.b16 %v4495, %v4494
        %v4501 = vsel %vm899, %v4487, 0
        %4503 = vmatprep.subr.bf16.mxu0 0
        %4504 = vmatpush1.bf16.msra.mxu0 %v4496
        %4505 = vmatprep.subr.bf16.mxu0 0
        %4506 = vmatpush1.bf16.msra.mxu0 %v4497
        %4507 = vmatprep.subr.bf16.mxu0 0
        %4508 = vmatpush1.bf16.msra.mxu0 0
        %4509 = vmatprep.subr.bf16.mxu0 0
        %4510 = vmatpush1.bf16.msra.mxu0 0
        %4511 = vmatprep.subr.bf16.mxu0 0
        %4512 = vmatpush1.bf16.msra.mxu0 0
        %4513 = vmatprep.subr.bf16.mxu0 0
        %4514 = vmatpush1.bf16.msra.mxu0 0
        %4515 = vmatprep.subr.bf16.mxu0 0
        %4516 = vmatpush1.bf16.msra.mxu0 0
        %4517 = vmatprep.subr.bf16.mxu0 0
        %4518 = vmatpush1.bf16.msra.mxu0 0
        %4519 = vmatprep.subr.bf16.mxu0 0
        %4520 = vmatpush1.bf16.msra.mxu0 0
        %4521 = vmatprep.subr.bf16.mxu0 0
        %4522 = vmatpush1.bf16.msra.mxu0 0
        %4523 = vmatprep.subr.bf16.mxu0 0
        %4524 = vmatpush1.bf16.msra.mxu0 0
        %4525 = vmatprep.subr.bf16.mxu0 0
        %4526 = vmatpush1.bf16.msra.mxu0 0
        %4527 = vmatprep.subr.bf16.mxu0 0
        %4528 = vmatpush1.bf16.msra.mxu0 0
        %4529 = vmatprep.subr.bf16.mxu0 0
        %4530 = vmatpush1.bf16.msra.mxu0 0
        %4531 = vmatprep.subr.bf16.mxu0 0
        %4532 = vmatpush1.bf16.msra.mxu0 0
        %4533 = vmatprep.subr.bf16.mxu0 0
        %4534 = vmatpush1.bf16.msra.mxu0 0
        %4535 = vmatprep.mubr.bf16.mxu0 0
        %4536 = vmatmul.mubr.bf16.gmra.mrb[0].mxu0 %v4501
        %v4537 = vpop.f32.mrb[0].mxu0
        %v4538 = vadd.f32 0.0, %v4537
        %v4539 = vpop.f32.mrb[0].mxu0
        %v4540 = vpop.f32.mrb[0].mxu0
        %v4541 = vadd.f32 0.0, %v4540
        %v4542 = vpop.f32.mrb[0].mxu0
        %4543 = vdwg.mxu0
        %v4544 = vadd.f32 %v4473, %v4538
        %v4545 = vadd.f32 %v4474, %v4541
        %s4546 = scalar_lea.vmem [#allocation3], 16
        %v4547 = vld [vmem:[%s4546] sm:$0xf]
        %v4548 = vld [vmem:[%s4546 + $0x8] sm:$0xf]
        %v4549 = vld [vmem:[%s4546 + $0x10] sm:$0xf]
        %v4550 = vld [vmem:[%s4546 + $0x18] sm:$0xf]
        %v4555 = vcombine.low %v4547, %v4548
        %v4556 = vcombine.low %v4549, %v4550
        %v4559 = vpack.c.bf16 %v4556, %v4555
        %v4564 = vunpack.c.l.b16 %v4050
        %v4565 = vunpack.c.l.b16 %v4051
        %v4566 = vunpack.c.l.b16 %v4052
        %v4567 = vunpack.c.l.b16 %v4053
        %v4568 = vpack.c.b16 %v4565, %v4564
        %v4569 = vpack.c.b16 %v4567, %v4566
        %v4573 = vsel %vm899, %v4559, 0
        %4575 = vmatprep.subr.bf16.mxu0 0
        %4576 = vmatpush1.bf16.msra.mxu0 %v4568
        %4577 = vmatprep.subr.bf16.mxu0 0
        %4578 = vmatpush1.bf16.msra.mxu0 %v4569
        %4579 = vmatprep.subr.bf16.mxu0 0
        %4580 = vmatpush1.bf16.msra.mxu0 0
        %4581 = vmatprep.subr.bf16.mxu0 0
        %4582 = vmatpush1.bf16.msra.mxu0 0
        %4583 = vmatprep.subr.bf16.mxu0 0
        %4584 = vmatpush1.bf16.msra.mxu0 0
        %4585 = vmatprep.subr.bf16.mxu0 0
        %4586 = vmatpush1.bf16.msra.mxu0 0
        %4587 = vmatprep.subr.bf16.mxu0 0
        %4588 = vmatpush1.bf16.msra.mxu0 0
        %4589 = vmatprep.subr.bf16.mxu0 0
        %4590 = vmatpush1.bf16.msra.mxu0 0
        %4591 = vmatprep.subr.bf16.mxu0 0
        %4592 = vmatpush1.bf16.msra.mxu0 0
        %4593 = vmatprep.subr.bf16.mxu0 0
        %4594 = vmatpush1.bf16.msra.mxu0 0
        %4595 = vmatprep.subr.bf16.mxu0 0
        %4596 = vmatpush1.bf16.msra.mxu0 0
        %4597 = vmatprep.subr.bf16.mxu0 0
        %4598 = vmatpush1.bf16.msra.mxu0 0
        %4599 = vmatprep.subr.bf16.mxu0 0
        %4600 = vmatpush1.bf16.msra.mxu0 0
        %4601 = vmatprep.subr.bf16.mxu0 0
        %4602 = vmatpush1.bf16.msra.mxu0 0
        %4603 = vmatprep.subr.bf16.mxu0 0
        %4604 = vmatpush1.bf16.msra.mxu0 0
        %4605 = vmatprep.subr.bf16.mxu0 0
        %4606 = vmatpush1.bf16.msra.mxu0 0
        %4607 = vmatprep.mubr.bf16.mxu0 0
        %4608 = vmatmul.mubr.bf16.gmra.mrb[0].mxu0 %v4573
        %v4609 = vpop.f32.mrb[0].mxu0
        %v4610 = vadd.f32 0.0, %v4609
        %v4611 = vpop.f32.mrb[0].mxu0
        %v4612 = vpop.f32.mrb[0].mxu0
        %v4613 = vadd.f32 0.0, %v4612
        %v4614 = vpop.f32.mrb[0].mxu0
        %4615 = vdwg.mxu0
        %v4616 = vadd.f32 %v4544, %v4610
        %v4617 = vadd.f32 %v4545, %v4613
        %v4618 = vld [vmem:[%s4546 + $0x1] sm:$0xf]
        %v4619 = vld [vmem:[%s4546 + $0x9] sm:$0xf]
        %v4620 = vld [vmem:[%s4546 + $0x11] sm:$0xf]
        %v4621 = vld [vmem:[%s4546 + $0x19] sm:$0xf]
        %v4626 = vcombine.low %v4618, %v4619
        %v4627 = vcombine.low %v4620, %v4621
        %v4630 = vpack.c.bf16 %v4627, %v4626
        %v4635 = vunpack.c.l.b16 %v4054
        %v4636 = vunpack.c.l.b16 %v4055
        %v4637 = vunpack.c.l.b16 %v4056
        %v4638 = vunpack.c.l.b16 %v4057
        %v4639 = vpack.c.b16 %v4636, %v4635
        %v4640 = vpack.c.b16 %v4638, %v4637
        %v4644 = vsel %vm899, %v4630, 0
        %4646 = vmatprep.subr.bf16.mxu0 0
        %4647 = vmatpush1.bf16.msra.mxu0 %v4639
        %4648 = vmatprep.subr.bf16.mxu0 0
        %4649 = vmatpush1.bf16.msra.mxu0 %v4640
        %4650 = vmatprep.subr.bf16.mxu0 0
        %4651 = vmatpush1.bf16.msra.mxu0 0
        %4652 = vmatprep.subr.bf16.mxu0 0
        %4653 = vmatpush1.bf16.msra.mxu0 0
        %4654 = vmatprep.subr.bf16.mxu0 0
        %4655 = vmatpush1.bf16.msra.mxu0 0
        %4656 = vmatprep.subr.bf16.mxu0 0
        %4657 = vmatpush1.bf16.msra.mxu0 0
        %4658 = vmatprep.subr.bf16.mxu0 0
        %4659 = vmatpush1.bf16.msra.mxu0 0
        %4660 = vmatprep.subr.bf16.mxu0 0
        %4661 = vmatpush1.bf16.msra.mxu0 0
        %4662 = vmatprep.subr.bf16.mxu0 0
        %4663 = vmatpush1.bf16.msra.mxu0 0
        %4664 = vmatprep.subr.bf16.mxu0 0
        %4665 = vmatpush1.bf16.msra.mxu0 0
        %4666 = vmatprep.subr.bf16.mxu0 0
        %4667 = vmatpush1.bf16.msra.mxu0 0
        %4668 = vmatprep.subr.bf16.mxu0 0
        %4669 = vmatpush1.bf16.msra.mxu0 0
        %4670 = vmatprep.subr.bf16.mxu0 0
        %4671 = vmatpush1.bf16.msra.mxu0 0
        %4672 = vmatprep.subr.bf16.mxu0 0
        %4673 = vmatpush1.bf16.msra.mxu0 0
        %4674 = vmatprep.subr.bf16.mxu0 0
        %4675 = vmatpush1.bf16.msra.mxu0 0
        %4676 = vmatprep.subr.bf16.mxu0 0
        %4677 = vmatpush1.bf16.msra.mxu0 0
        %4678 = vmatprep.mubr.bf16.mxu0 0
        %4679 = vmatmul.mubr.bf16.gmra.mrb[0].mxu0 %v4644
        %v4680 = vpop.f32.mrb[0].mxu0
        %v4681 = vadd.f32 0.0, %v4680
        %v4682 = vpop.f32.mrb[0].mxu0
        %v4683 = vpop.f32.mrb[0].mxu0
        %v4684 = vadd.f32 0.0, %v4683
        %v4685 = vpop.f32.mrb[0].mxu0
        %4686 = vdwg.mxu0
        %v4687 = vadd.f32 %v4616, %v4681
        %v4688 = vadd.f32 %v4617, %v4684
        %v4689 = vld [vmem:[%s4546 + $0x2] sm:$0xf]
        %v4690 = vld [vmem:[%s4546 + $0xa] sm:$0xf]
        %v4691 = vld [vmem:[%s4546 + $0x12] sm:$0xf]
        %v4692 = vld [vmem:[%s4546 + $0x1a] sm:$0xf]
        %v4697 = vcombine.low %v4689, %v4690
        %v4698 = vcombine.low %v4691, %v4692
        %v4701 = vpack.c.bf16 %v4698, %v4697
        %v4706 = vunpack.c.l.b16 %v4058
        %v4707 = vunpack.c.l.b16 %v4059
        %v4708 = vunpack.c.l.b16 %v4060
        %v4709 = vunpack.c.l.b16 %v4061
        %v4710 = vpack.c.b16 %v4707, %v4706
        %v4711 = vpack.c.b16 %v4709, %v4708
        %v4715 = vsel %vm899, %v4701, 0
        %4717 = vmatprep.subr.bf16.mxu0 0
        %4718 = vmatpush1.bf16.msra.mxu0 %v4710
        %4719 = vmatprep.subr.bf16.mxu0 0
        %4720 = vmatpush1.bf16.msra.mxu0 %v4711
        %4721 = vmatprep.subr.bf16.mxu0 0
        %4722 = vmatpush1.bf16.msra.mxu0 0
        %4723 = vmatprep.subr.bf16.mxu0 0
        %4724 = vmatpush1.bf16.msra.mxu0 0
        %4725 = vmatprep.subr.bf16.mxu0 0
        %4726 = vmatpush1.bf16.msra.mxu0 0
        %4727 = vmatprep.subr.bf16.mxu0 0
        %4728 = vmatpush1.bf16.msra.mxu0 0
        %4729 = vmatprep.subr.bf16.mxu0 0
        %4730 = vmatpush1.bf16.msra.mxu0 0
        %4731 = vmatprep.subr.bf16.mxu0 0
        %4732 = vmatpush1.bf16.msra.mxu0 0
        %4733 = vmatprep.subr.bf16.mxu0 0
        %4734 = vmatpush1.bf16.msra.mxu0 0
        %4735 = vmatprep.subr.bf16.mxu0 0
        %4736 = vmatpush1.bf16.msra.mxu0 0
        %4737 = vmatprep.subr.bf16.mxu0 0
        %4738 = vmatpush1.bf16.msra.mxu0 0
        %4739 = vmatprep.subr.bf16.mxu0 0
        %4740 = vmatpush1.bf16.msra.mxu0 0
        %4741 = vmatprep.subr.bf16.mxu0 0
        %4742 = vmatpush1.bf16.msra.mxu0 0
        %4743 = vmatprep.subr.bf16.mxu0 0
        %4744 = vmatpush1.bf16.msra.mxu0 0
        %4745 = vmatprep.subr.bf16.mxu0 0
        %4746 = vmatpush1.bf16.msra.mxu0 0
        %4747 = vmatprep.subr.bf16.mxu0 0
        %4748 = vmatpush1.bf16.msra.mxu0 0
        %4749 = vmatprep.mubr.bf16.mxu0 0
        %4750 = vmatmul.mubr.bf16.gmra.mrb[0].mxu0 %v4715
        %v4751 = vpop.f32.mrb[0].mxu0
        %v4752 = vadd.f32 0.0, %v4751
        %v4753 = vpop.f32.mrb[0].mxu0
        %v4754 = vpop.f32.mrb[0].mxu0
        %v4755 = vadd.f32 0.0, %v4754
        %v4756 = vpop.f32.mrb[0].mxu0
        %4757 = vdwg.mxu0
        %v4758 = vadd.f32 %v4687, %v4752
        %v4759 = vadd.f32 %v4688, %v4755
        %v4760 = vmax.f32 %v4758, 0.0
        %v4761 = vmax.f32 %v4759, 0.0
        %v4764 = vcombine.high %v4760, %v4760
        %v4765 = vcombine.high %v4761, %v4761
        %4768 = vst.msk [vmem:[%s4119 + $0x1] sm:$0xf] %vm2736, %v4760
        %4769 = vst.msk [vmem:[%s4119 + $0x9] sm:$0xf] %vm2736, %v4764
        %4770 = vst.msk [vmem:[%s4119 + $0x11] sm:$0xf] %vm2736, %v4761
        %4771 = vst.msk [vmem:[%s4119 + $0x19] sm:$0xf] %vm2736, %v4765
        %v4772 = vld [vmem:[#allocation3] sm:$0xf]
        %v4773 = vld [vmem:[#allocation3 + $0x8] sm:$0xf]
        %v4774 = vld [vmem:[#allocation3 + $0x10] sm:$0xf]
        %v4775 = vld [vmem:[#allocation3 + $0x18] sm:$0xf]
        %v4780 = vcombine.low %v4772, %v4773
        %v4781 = vcombine.low %v4774, %v4775
        %v4784 = vpack.c.bf16 %v4781, %v4780
        %v4785 = vld [vmem:[#allocation3 + $0x1] sm:$0xf]
        %v4786 = vld [vmem:[#allocation3 + $0x9] sm:$0xf]
        %v4787 = vld [vmem:[#allocation3 + $0x11] sm:$0xf]
        %v4788 = vld [vmem:[#allocation3 + $0x19] sm:$0xf]
        %v4793 = vcombine.low %v4785, %v4786
        %v4794 = vcombine.low %v4787, %v4788
        %v4797 = vpack.c.bf16 %v4794, %v4793
        %v4802 = vunpack.c.l.b16 %v4066
        %v4803 = vunpack.c.l.b16 %v4067
        %v4804 = vunpack.c.l.b16 %v4068
        %v4805 = vunpack.c.l.b16 %v4069
        %v4806 = vpack.c.b16 %v4803, %v4802
        %v4807 = vpack.c.b16 %v4805, %v4804
        %v4811 = vsel %vm899, %v4797, 0
        %4813 = vmatprep.subr.bf16.mxu0 0
        %4814 = vmatpush1.bf16.msra.mxu0 %v4806
        %4815 = vmatprep.subr.bf16.mxu0 0
        %4816 = vmatpush1.bf16.msra.mxu0 %v4807
        %4817 = vmatprep.subr.bf16.mxu0 0
        %4818 = vmatpush1.bf16.msra.mxu0 0
        %4819 = vmatprep.subr.bf16.mxu0 0
        %4820 = vmatpush1.bf16.msra.mxu0 0
        %4821 = vmatprep.subr.bf16.mxu0 0
        %4822 = vmatpush1.bf16.msra.mxu0 0
        %4823 = vmatprep.subr.bf16.mxu0 0
        %4824 = vmatpush1.bf16.msra.mxu0 0
        %4825 = vmatprep.subr.bf16.mxu0 0
        %4826 = vmatpush1.bf16.msra.mxu0 0
        %4827 = vmatprep.subr.bf16.mxu0 0
        %4828 = vmatpush1.bf16.msra.mxu0 0
        %4829 = vmatprep.subr.bf16.mxu0 0
        %4830 = vmatpush1.bf16.msra.mxu0 0
        %4831 = vmatprep.subr.bf16.mxu0 0
        %4832 = vmatpush1.bf16.msra.mxu0 0
        %4833 = vmatprep.subr.bf16.mxu0 0
        %4834 = vmatpush1.bf16.msra.mxu0 0
        %4835 = vmatprep.subr.bf16.mxu0 0
        %4836 = vmatpush1.bf16.msra.mxu0 0
        %4837 = vmatprep.subr.bf16.mxu0 0
        %4838 = vmatpush1.bf16.msra.mxu0 0
        %4839 = vmatprep.subr.bf16.mxu0 0
        %4840 = vmatpush1.bf16.msra.mxu0 0
        %4841 = vmatprep.subr.bf16.mxu0 0
        %4842 = vmatpush1.bf16.msra.mxu0 0
        %4843 = vmatprep.subr.bf16.mxu0 0
        %4844 = vmatpush1.bf16.msra.mxu0 0
        %4845 = vmatprep.mubr.bf16.mxu0 0
        %4846 = vmatmul.mubr.bf16.gmra.mrb[0].mxu0 %v4811
        %v4847 = vpop.f32.mrb[0].mxu0
        %v4848 = vadd.f32 0.0, %v4847
        %v4849 = vpop.f32.mrb[0].mxu0
        %v4850 = vpop.f32.mrb[0].mxu0
        %v4851 = vadd.f32 0.0, %v4850
        %v4852 = vpop.f32.mrb[0].mxu0
        %4853 = vdwg.mxu0
        %v4858 = vunpack.c.l.b16 %v4062
        %v4859 = vunpack.c.l.b16 %v4063
        %v4860 = vunpack.c.l.b16 %v4064
        %v4861 = vunpack.c.l.b16 %v4065
        %v4862 = vpack.c.b16 %v4859, %v4858
        %v4863 = vpack.c.b16 %v4861, %v4860
        %v4867 = vsel %vm899, %v4784, 0
        %4869 = vmatprep.subr.bf16.mxu0 0
        %4870 = vmatpush1.bf16.msra.mxu0 %v4862
        %4871 = vmatprep.subr.bf16.mxu0 0
        %4872 = vmatpush1.bf16.msra.mxu0 %v4863
        %4873 = vmatprep.subr.bf16.mxu0 0
        %4874 = vmatpush1.bf16.msra.mxu0 0
        %4875 = vmatprep.subr.bf16.mxu0 0
        %4876 = vmatpush1.bf16.msra.mxu0 0
        %4877 = vmatprep.subr.bf16.mxu0 0
        %4878 = vmatpush1.bf16.msra.mxu0 0
        %4879 = vmatprep.subr.bf16.mxu0 0
        %4880 = vmatpush1.bf16.msra.mxu0 0
        %4881 = vmatprep.subr.bf16.mxu0 0
        %4882 = vmatpush1.bf16.msra.mxu0 0
        %4883 = vmatprep.subr.bf16.mxu0 0
        %4884 = vmatpush1.bf16.msra.mxu0 0
        %4885 = vmatprep.subr.bf16.mxu0 0
        %4886 = vmatpush1.bf16.msra.mxu0 0
        %4887 = vmatprep.subr.bf16.mxu0 0
        %4888 = vmatpush1.bf16.msra.mxu0 0
        %4889 = vmatprep.subr.bf16.mxu0 0
        %4890 = vmatpush1.bf16.msra.mxu0 0
        %4891 = vmatprep.subr.bf16.mxu0 0
        %4892 = vmatpush1.bf16.msra.mxu0 0
        %4893 = vmatprep.subr.bf16.mxu0 0
        %4894 = vmatpush1.bf16.msra.mxu0 0
        %4895 = vmatprep.subr.bf16.mxu0 0
        %4896 = vmatpush1.bf16.msra.mxu0 0
        %4897 = vmatprep.subr.bf16.mxu0 0
        %4898 = vmatpush1.bf16.msra.mxu0 0
        %4899 = vmatprep.subr.bf16.mxu0 0
        %4900 = vmatpush1.bf16.msra.mxu0 0
        %4901 = vmatprep.mubr.bf16.mxu0 0
        %4902 = vmatmul.mubr.bf16.gmra.mrb[0].mxu0 %v4867
        %v4903 = vpop.f32.mrb[0].mxu0
        %v4904 = vadd.f32 %v4848, %v4903
        %v4905 = vpop.f32.mrb[0].mxu0
        %v4906 = vpop.f32.mrb[0].mxu0
        %v4907 = vadd.f32 %v4851, %v4906
        %v4908 = vpop.f32.mrb[0].mxu0
        %4909 = vdwg.mxu0
        %v4910 = vld [vmem:[#allocation3 + $0x2] sm:$0xf]
        %v4911 = vld [vmem:[#allocation3 + $0xa] sm:$0xf]
        %v4912 = vld [vmem:[#allocation3 + $0x12] sm:$0xf]
        %v4913 = vld [vmem:[#allocation3 + $0x1a] sm:$0xf]
        %v4918 = vcombine.low %v4910, %v4911
        %v4919 = vcombine.low %v4912, %v4913
        %v4922 = vpack.c.bf16 %v4919, %v4918
        %v4927 = vunpack.c.l.b16 %v4070
        %v4928 = vunpack.c.l.b16 %v4071
        %v4929 = vunpack.c.l.b16 %v4072
        %v4930 = vunpack.c.l.b16 %v4073
        %v4931 = vpack.c.b16 %v4928, %v4927
        %v4932 = vpack.c.b16 %v4930, %v4929
        %v4936 = vsel %vm899, %v4922, 0
        %4938 = vmatprep.subr.bf16.mxu0 0
        %4939 = vmatpush1.bf16.msra.mxu0 %v4931
        %4940 = vmatprep.subr.bf16.mxu0 0
        %4941 = vmatpush1.bf16.msra.mxu0 %v4932
        %4942 = vmatprep.subr.bf16.mxu0 0
        %4943 = vmatpush1.bf16.msra.mxu0 0
        %4944 = vmatprep.subr.bf16.mxu0 0
        %4945 = vmatpush1.bf16.msra.mxu0 0
        %4946 = vmatprep.subr.bf16.mxu0 0
        %4947 = vmatpush1.bf16.msra.mxu0 0
        %4948 = vmatprep.subr.bf16.mxu0 0
        %4949 = vmatpush1.bf16.msra.mxu0 0
        %4950 = vmatprep.subr.bf16.mxu0 0
        %4951 = vmatpush1.bf16.msra.mxu0 0
        %4952 = vmatprep.subr.bf16.mxu0 0
        %4953 = vmatpush1.bf16.msra.mxu0 0
        %4954 = vmatprep.subr.bf16.mxu0 0
        %4955 = vmatpush1.bf16.msra.mxu0 0
        %4956 = vmatprep.subr.bf16.mxu0 0
        %4957 = vmatpush1.bf16.msra.mxu0 0
        %4958 = vmatprep.subr.bf16.mxu0 0
        %4959 = vmatpush1.bf16.msra.mxu0 0
        %4960 = vmatprep.subr.bf16.mxu0 0
        %4961 = vmatpush1.bf16.msra.mxu0 0
        %4962 = vmatprep.subr.bf16.mxu0 0
        %4963 = vmatpush1.bf16.msra.mxu0 0
        %4964 = vmatprep.subr.bf16.mxu0 0
        %4965 = vmatpush1.bf16.msra.mxu0 0
        %4966 = vmatprep.subr.bf16.mxu0 0
        %4967 = vmatpush1.bf16.msra.mxu0 0
        %4968 = vmatprep.subr.bf16.mxu0 0
        %4969 = vmatpush1.bf16.msra.mxu0 0
        %4970 = vmatprep.mubr.bf16.mxu0 0
        %4971 = vmatmul.mubr.bf16.gmra.mrb[0].mxu0 %v4936
        %v4972 = vpop.f32.mrb[0].mxu0
        %v4973 = vadd.f32 0.0, %v4972
        %v4974 = vpop.f32.mrb[0].mxu0
        %v4975 = vpop.f32.mrb[0].mxu0
        %v4976 = vadd.f32 0.0, %v4975
        %v4977 = vpop.f32.mrb[0].mxu0
        %4978 = vdwg.mxu0
        %v4979 = vadd.f32 %v4904, %v4973
        %v4980 = vadd.f32 %v4907, %v4976
        %v4981 = vld [vmem:[%s4119] sm:$0xf]
        %v4982 = vld [vmem:[%s4119 + $0x8] sm:$0xf]
        %v4983 = vld [vmem:[%s4119 + $0x10] sm:$0xf]
        %v4984 = vld [vmem:[%s4119 + $0x18] sm:$0xf]
        %v4989 = vcombine.low %v4981, %v4982
        %v4990 = vcombine.low %v4983, %v4984
        %v4993 = vpack.c.bf16 %v4990, %v4989
        %v4998 = vunpack.c.l.b16 %v4074
        %v4999 = vunpack.c.l.b16 %v4075
        %v5000 = vunpack.c.l.b16 %v4076
        %v5001 = vunpack.c.l.b16 %v4077
        %v5002 = vpack.c.b16 %v4999, %v4998
        %v5003 = vpack.c.b16 %v5001, %v5000
        %v5007 = vsel %vm899, %v4993, 0
        %5009 = vmatprep.subr.bf16.mxu0 0
        %5010 = vmatpush1.bf16.msra.mxu0 %v5002
        %5011 = vmatprep.subr.bf16.mxu0 0
        %5012 = vmatpush1.bf16.msra.mxu0 %v5003
        %5013 = vmatprep.subr.bf16.mxu0 0
        %5014 = vmatpush1.bf16.msra.mxu0 0
        %5015 = vmatprep.subr.bf16.mxu0 0
        %5016 = vmatpush1.bf16.msra.mxu0 0
        %5017 = vmatprep.subr.bf16.mxu0 0
        %5018 = vmatpush1.bf16.msra.mxu0 0
        %5019 = vmatprep.subr.bf16.mxu0 0
        %5020 = vmatpush1.bf16.msra.mxu0 0
        %5021 = vmatprep.subr.bf16.mxu0 0
        %5022 = vmatpush1.bf16.msra.mxu0 0
        %5023 = vmatprep.subr.bf16.mxu0 0
        %5024 = vmatpush1.bf16.msra.mxu0 0
        %5025 = vmatprep.subr.bf16.mxu0 0
        %5026 = vmatpush1.bf16.msra.mxu0 0
        %5027 = vmatprep.subr.bf16.mxu0 0
        %5028 = vmatpush1.bf16.msra.mxu0 0
        %5029 = vmatprep.subr.bf16.mxu0 0
        %5030 = vmatpush1.bf16.msra.mxu0 0
        %5031 = vmatprep.subr.bf16.mxu0 0
        %5032 = vmatpush1.bf16.msra.mxu0 0
        %5033 = vmatprep.subr.bf16.mxu0 0
        %5034 = vmatpush1.bf16.msra.mxu0 0
        %5035 = vmatprep.subr.bf16.mxu0 0
        %5036 = vmatpush1.bf16.msra.mxu0 0
        %5037 = vmatprep.subr.bf16.mxu0 0
        %5038 = vmatpush1.bf16.msra.mxu0 0
        %5039 = vmatprep.subr.bf16.mxu0 0
        %5040 = vmatpush1.bf16.msra.mxu0 0
        %5041 = vmatprep.mubr.bf16.mxu0 0
        %5042 = vmatmul.mubr.bf16.gmra.mrb[0].mxu0 %v5007
        %v5043 = vpop.f32.mrb[0].mxu0
        %v5044 = vadd.f32 0.0, %v5043
        %v5045 = vpop.f32.mrb[0].mxu0
        %v5046 = vpop.f32.mrb[0].mxu0
        %v5047 = vadd.f32 0.0, %v5046
        %v5048 = vpop.f32.mrb[0].mxu0
        %5049 = vdwg.mxu0
        %v5050 = vadd.f32 %v4979, %v5044
        %v5051 = vadd.f32 %v4980, %v5047
        %v5052 = vld [vmem:[%s4119 + $0x1] sm:$0xf]
        %v5053 = vld [vmem:[%s4119 + $0x9] sm:$0xf]
        %v5054 = vld [vmem:[%s4119 + $0x11] sm:$0xf]
        %v5055 = vld [vmem:[%s4119 + $0x19] sm:$0xf]
        %v5060 = vcombine.low %v5052, %v5053
        %v5061 = vcombine.low %v5054, %v5055
        %v5064 = vpack.c.bf16 %v5061, %v5060
        %v5069 = vunpack.c.l.b16 %v4078
        %v5070 = vunpack.c.l.b16 %v4079
        %v5071 = vunpack.c.l.b16 %v4080
        %v5072 = vunpack.c.l.b16 %v4081
        %v5073 = vpack.c.b16 %v5070, %v5069
        %v5074 = vpack.c.b16 %v5072, %v5071
        %v5078 = vsel %vm899, %v5064, 0
        %5080 = vmatprep.subr.bf16.mxu0 0
        %5081 = vmatpush1.bf16.msra.mxu0 %v5073
        %5082 = vmatprep.subr.bf16.mxu0 0
        %5083 = vmatpush1.bf16.msra.mxu0 %v5074
        %5084 = vmatprep.subr.bf16.mxu0 0
        %5085 = vmatpush1.bf16.msra.mxu0 0
        %5086 = vmatprep.subr.bf16.mxu0 0
        %5087 = vmatpush1.bf16.msra.mxu0 0
        %5088 = vmatprep.subr.bf16.mxu0 0
        %5089 = vmatpush1.bf16.msra.mxu0 0
        %5090 = vmatprep.subr.bf16.mxu0 0
        %5091 = vmatpush1.bf16.msra.mxu0 0
        %5092 = vmatprep.subr.bf16.mxu0 0
        %5093 = vmatpush1.bf16.msra.mxu0 0
        %5094 = vmatprep.subr.bf16.mxu0 0
        %5095 = vmatpush1.bf16.msra.mxu0 0
        %5096 = vmatprep.subr.bf16.mxu0 0
        %5097 = vmatpush1.bf16.msra.mxu0 0
        %5098 = vmatprep.subr.bf16.mxu0 0
        %5099 = vmatpush1.bf16.msra.mxu0 0
        %5100 = vmatprep.subr.bf16.mxu0 0
        %5101 = vmatpush1.bf16.msra.mxu0 0
        %5102 = vmatprep.subr.bf16.mxu0 0
        %5103 = vmatpush1.bf16.msra.mxu0 0
        %5104 = vmatprep.subr.bf16.mxu0 0
        %5105 = vmatpush1.bf16.msra.mxu0 0
        %5106 = vmatprep.subr.bf16.mxu0 0
        %5107 = vmatpush1.bf16.msra.mxu0 0
        %5108 = vmatprep.subr.bf16.mxu0 0
        %5109 = vmatpush1.bf16.msra.mxu0 0
        %5110 = vmatprep.subr.bf16.mxu0 0
        %5111 = vmatpush1.bf16.msra.mxu0 0
        %5112 = vmatprep.mubr.bf16.mxu0 0
        %5113 = vmatmul.mubr.bf16.gmra.mrb[0].mxu0 %v5078
        %v5114 = vpop.f32.mrb[0].mxu0
        %v5115 = vadd.f32 0.0, %v5114
        %v5116 = vpop.f32.mrb[0].mxu0
        %v5117 = vpop.f32.mrb[0].mxu0
        %v5118 = vadd.f32 0.0, %v5117
        %v5119 = vpop.f32.mrb[0].mxu0
        %5120 = vdwg.mxu0
        %v5121 = vadd.f32 %v5050, %v5115
        %v5122 = vadd.f32 %v5051, %v5118
        %v5123 = vld [vmem:[%s4119 + $0x2] sm:$0xf]
        %v5124 = vld [vmem:[%s4119 + $0xa] sm:$0xf]
        %v5125 = vld [vmem:[%s4119 + $0x12] sm:$0xf]
        %v5126 = vld [vmem:[%s4119 + $0x1a] sm:$0xf]
        %v5131 = vcombine.low %v5123, %v5124
        %v5132 = vcombine.low %v5125, %v5126
        %v5135 = vpack.c.bf16 %v5132, %v5131
        %v5140 = vunpack.c.l.b16 %v4082
        %v5141 = vunpack.c.l.b16 %v4083
        %v5142 = vunpack.c.l.b16 %v4084
        %v5143 = vunpack.c.l.b16 %v4085
        %v5144 = vpack.c.b16 %v5141, %v5140
        %v5145 = vpack.c.b16 %v5143, %v5142
        %v5149 = vsel %vm899, %v5135, 0
        %5151 = vmatprep.subr.bf16.mxu0 0
        %5152 = vmatpush1.bf16.msra.mxu0 %v5144
        %5153 = vmatprep.subr.bf16.mxu0 0
        %5154 = vmatpush1.bf16.msra.mxu0 %v5145
        %5155 = vmatprep.subr.bf16.mxu0 0
        %5156 = vmatpush1.bf16.msra.mxu0 0
        %5157 = vmatprep.subr.bf16.mxu0 0
        %5158 = vmatpush1.bf16.msra.mxu0 0
        %5159 = vmatprep.subr.bf16.mxu0 0
        %5160 = vmatpush1.bf16.msra.mxu0 0
        %5161 = vmatprep.subr.bf16.mxu0 0
        %5162 = vmatpush1.bf16.msra.mxu0 0
        %5163 = vmatprep.subr.bf16.mxu0 0
        %5164 = vmatpush1.bf16.msra.mxu0 0
        %5165 = vmatprep.subr.bf16.mxu0 0
        %5166 = vmatpush1.bf16.msra.mxu0 0
        %5167 = vmatprep.subr.bf16.mxu0 0
        %5168 = vmatpush1.bf16.msra.mxu0 0
        %5169 = vmatprep.subr.bf16.mxu0 0
        %5170 = vmatpush1.bf16.msra.mxu0 0
        %5171 = vmatprep.subr.bf16.mxu0 0
        %5172 = vmatpush1.bf16.msra.mxu0 0
        %5173 = vmatprep.subr.bf16.mxu0 0
        %5174 = vmatpush1.bf16.msra.mxu0 0
        %5175 = vmatprep.subr.bf16.mxu0 0
        %5176 = vmatpush1.bf16.msra.mxu0 0
        %5177 = vmatprep.subr.bf16.mxu0 0
        %5178 = vmatpush1.bf16.msra.mxu0 0
        %5179 = vmatprep.subr.bf16.mxu0 0
        %5180 = vmatpush1.bf16.msra.mxu0 0
        %5181 = vmatprep.subr.bf16.mxu0 0
        %5182 = vmatpush1.bf16.msra.mxu0 0
        %5183 = vmatprep.mubr.bf16.mxu0 0
        %5184 = vmatmul.mubr.bf16.gmra.mrb[0].mxu0 %v5149
        %v5185 = vpop.f32.mrb[0].mxu0
        %v5186 = vadd.f32 0.0, %v5185
        %v5187 = vpop.f32.mrb[0].mxu0
        %v5188 = vpop.f32.mrb[0].mxu0
        %v5189 = vadd.f32 0.0, %v5188
        %v5190 = vpop.f32.mrb[0].mxu0
        %5191 = vdwg.mxu0
        %v5192 = vadd.f32 %v5121, %v5186
        %v5193 = vadd.f32 %v5122, %v5189
        %v5194 = vld [vmem:[%s4546] sm:$0xf]
        %v5195 = vld [vmem:[%s4546 + $0x8] sm:$0xf]
        %v5196 = vld [vmem:[%s4546 + $0x10] sm:$0xf]
        %v5197 = vld [vmem:[%s4546 + $0x18] sm:$0xf]
        %v5202 = vcombine.low %v5194, %v5195
        %v5203 = vcombine.low %v5196, %v5197
        %v5206 = vpack.c.bf16 %v5203, %v5202
        %v5211 = vunpack.c.l.b16 %v4086
        %v5212 = vunpack.c.l.b16 %v4087
        %v5213 = vunpack.c.l.b16 %v4088
        %v5214 = vunpack.c.l.b16 %v4089
        %v5215 = vpack.c.b16 %v5212, %v5211
        %v5216 = vpack.c.b16 %v5214, %v5213
        %v5220 = vsel %vm899, %v5206, 0
        %5222 = vmatprep.subr.bf16.mxu0 0
        %5223 = vmatpush1.bf16.msra.mxu0 %v5215
        %5224 = vmatprep.subr.bf16.mxu0 0
        %5225 = vmatpush1.bf16.msra.mxu0 %v5216
        %5226 = vmatprep.subr.bf16.mxu0 0
        %5227 = vmatpush1.bf16.msra.mxu0 0
        %5228 = vmatprep.subr.bf16.mxu0 0
        %5229 = vmatpush1.bf16.msra.mxu0 0
        %5230 = vmatprep.subr.bf16.mxu0 0
        %5231 = vmatpush1.bf16.msra.mxu0 0
        %5232 = vmatprep.subr.bf16.mxu0 0
        %5233 = vmatpush1.bf16.msra.mxu0 0
        %5234 = vmatprep.subr.bf16.mxu0 0
        %5235 = vmatpush1.bf16.msra.mxu0 0
        %5236 = vmatprep.subr.bf16.mxu0 0
        %5237 = vmatpush1.bf16.msra.mxu0 0
        %5238 = vmatprep.subr.bf16.mxu0 0
        %5239 = vmatpush1.bf16.msra.mxu0 0
        %5240 = vmatprep.subr.bf16.mxu0 0
        %5241 = vmatpush1.bf16.msra.mxu0 0
        %5242 = vmatprep.subr.bf16.mxu0 0
        %5243 = vmatpush1.bf16.msra.mxu0 0
        %5244 = vmatprep.subr.bf16.mxu0 0
        %5245 = vmatpush1.bf16.msra.mxu0 0
        %5246 = vmatprep.subr.bf16.mxu0 0
        %5247 = vmatpush1.bf16.msra.mxu0 0
        %5248 = vmatprep.subr.bf16.mxu0 0
        %5249 = vmatpush1.bf16.msra.mxu0 0
        %5250 = vmatprep.subr.bf16.mxu0 0
        %5251 = vmatpush1.bf16.msra.mxu0 0
        %5252 = vmatprep.subr.bf16.mxu0 0
        %5253 = vmatpush1.bf16.msra.mxu0 0
        %5254 = vmatprep.mubr.bf16.mxu0 0
        %5255 = vmatmul.mubr.bf16.gmra.mrb[0].mxu0 %v5220
        %v5256 = vpop.f32.mrb[0].mxu0
        %v5257 = vadd.f32 0.0, %v5256
        %v5258 = vpop.f32.mrb[0].mxu0
        %v5259 = vpop.f32.mrb[0].mxu0
        %v5260 = vadd.f32 0.0, %v5259
        %v5261 = vpop.f32.mrb[0].mxu0
        %5262 = vdwg.mxu0
        %v5263 = vadd.f32 %v5192, %v5257
        %v5264 = vadd.f32 %v5193, %v5260
        %v5265 = vld [vmem:[%s4546 + $0x1] sm:$0xf]
        %v5266 = vld [vmem:[%s4546 + $0x9] sm:$0xf]
        %v5267 = vld [vmem:[%s4546 + $0x11] sm:$0xf]
        %v5268 = vld [vmem:[%s4546 + $0x19] sm:$0xf]
        %v5273 = vcombine.low %v5265, %v5266
        %v5274 = vcombine.low %v5267, %v5268
        %v5277 = vpack.c.bf16 %v5274, %v5273
        %v5282 = vunpack.c.l.b16 %v4090
        %v5283 = vunpack.c.l.b16 %v4091
        %v5284 = vunpack.c.l.b16 %v4092
        %v5285 = vunpack.c.l.b16 %v4093
        %v5286 = vpack.c.b16 %v5283, %v5282
        %v5287 = vpack.c.b16 %v5285, %v5284
        %v5291 = vsel %vm899, %v5277, 0
        %5293 = vmatprep.subr.bf16.mxu0 0
        %5294 = vmatpush1.bf16.msra.mxu0 %v5286
        %5295 = vmatprep.subr.bf16.mxu0 0
        %5296 = vmatpush1.bf16.msra.mxu0 %v5287
        %5297 = vmatprep.subr.bf16.mxu0 0
        %5298 = vmatpush1.bf16.msra.mxu0 0
        %5299 = vmatprep.subr.bf16.mxu0 0
        %5300 = vmatpush1.bf16.msra.mxu0 0
        %5301 = vmatprep.subr.bf16.mxu0 0
        %5302 = vmatpush1.bf16.msra.mxu0 0
        %5303 = vmatprep.subr.bf16.mxu0 0
        %5304 = vmatpush1.bf16.msra.mxu0 0
        %5305 = vmatprep.subr.bf16.mxu0 0
        %5306 = vmatpush1.bf16.msra.mxu0 0
        %5307 = vmatprep.subr.bf16.mxu0 0
        %5308 = vmatpush1.bf16.msra.mxu0 0
        %5309 = vmatprep.subr.bf16.mxu0 0
        %5310 = vmatpush1.bf16.msra.mxu0 0
        %5311 = vmatprep.subr.bf16.mxu0 0
        %5312 = vmatpush1.bf16.msra.mxu0 0
        %5313 = vmatprep.subr.bf16.mxu0 0
        %5314 = vmatpush1.bf16.msra.mxu0 0
        %5315 = vmatprep.subr.bf16.mxu0 0
        %5316 = vmatpush1.bf16.msra.mxu0 0
        %5317 = vmatprep.subr.bf16.mxu0 0
        %5318 = vmatpush1.bf16.msra.mxu0 0
        %5319 = vmatprep.subr.bf16.mxu0 0
        %5320 = vmatpush1.bf16.msra.mxu0 0
        %5321 = vmatprep.subr.bf16.mxu0 0
        %5322 = vmatpush1.bf16.msra.mxu0 0
        %5323 = vmatprep.subr.bf16.mxu0 0
        %5324 = vmatpush1.bf16.msra.mxu0 0
        %5325 = vmatprep.mubr.bf16.mxu0 0
        %5326 = vmatmul.mubr.bf16.gmra.mrb[0].mxu0 %v5291
        %v5327 = vpop.f32.mrb[0].mxu0
        %v5328 = vadd.f32 0.0, %v5327
        %v5329 = vpop.f32.mrb[0].mxu0
        %v5330 = vpop.f32.mrb[0].mxu0
        %v5331 = vadd.f32 0.0, %v5330
        %v5332 = vpop.f32.mrb[0].mxu0
        %5333 = vdwg.mxu0
        %v5334 = vadd.f32 %v5263, %v5328
        %v5335 = vadd.f32 %v5264, %v5331
        %v5336 = vld [vmem:[%s4546 + $0x2] sm:$0xf]
        %v5337 = vld [vmem:[%s4546 + $0xa] sm:$0xf]
        %v5338 = vld [vmem:[%s4546 + $0x12] sm:$0xf]
        %v5339 = vld [vmem:[%s4546 + $0x1a] sm:$0xf]
        %v5344 = vcombine.low %v5336, %v5337
        %v5345 = vcombine.low %v5338, %v5339
        %v5348 = vpack.c.bf16 %v5345, %v5344
        %v5353 = vunpack.c.l.b16 %v4094
        %v5354 = vunpack.c.l.b16 %v4095
        %v5355 = vunpack.c.l.b16 %v4096
        %v5356 = vunpack.c.l.b16 %v4097
        %v5357 = vpack.c.b16 %v5354, %v5353
        %v5358 = vpack.c.b16 %v5356, %v5355
        %v5362 = vsel %vm899, %v5348, 0
        %5364 = vmatprep.subr.bf16.mxu0 0
        %5365 = vmatpush1.bf16.msra.mxu0 %v5357
        %5366 = vmatprep.subr.bf16.mxu0 0
        %5367 = vmatpush1.bf16.msra.mxu0 %v5358
        %5368 = vmatprep.subr.bf16.mxu0 0
        %5369 = vmatpush1.bf16.msra.mxu0 0
        %5370 = vmatprep.subr.bf16.mxu0 0
        %5371 = vmatpush1.bf16.msra.mxu0 0
        %5372 = vmatprep.subr.bf16.mxu0 0
        %5373 = vmatpush1.bf16.msra.mxu0 0
        %5374 = vmatprep.subr.bf16.mxu0 0
        %5375 = vmatpush1.bf16.msra.mxu0 0
        %5376 = vmatprep.subr.bf16.mxu0 0
        %5377 = vmatpush1.bf16.msra.mxu0 0
        %5378 = vmatprep.subr.bf16.mxu0 0
        %5379 = vmatpush1.bf16.msra.mxu0 0
        %5380 = vmatprep.subr.bf16.mxu0 0
        %5381 = vmatpush1.bf16.msra.mxu0 0
        %5382 = vmatprep.subr.bf16.mxu0 0
        %5383 = vmatpush1.bf16.msra.mxu0 0
        %5384 = vmatprep.subr.bf16.mxu0 0
        %5385 = vmatpush1.bf16.msra.mxu0 0
        %5386 = vmatprep.subr.bf16.mxu0 0
        %5387 = vmatpush1.bf16.msra.mxu0 0
        %5388 = vmatprep.subr.bf16.mxu0 0
        %5389 = vmatpush1.bf16.msra.mxu0 0
        %5390 = vmatprep.subr.bf16.mxu0 0
        %5391 = vmatpush1.bf16.msra.mxu0 0
        %5392 = vmatprep.subr.bf16.mxu0 0
        %5393 = vmatpush1.bf16.msra.mxu0 0
        %5394 = vmatprep.subr.bf16.mxu0 0
        %5395 = vmatpush1.bf16.msra.mxu0 0
        %5396 = vmatprep.mubr.bf16.mxu0 0
        %5397 = vmatmul.mubr.bf16.gmra.mrb[0].mxu0 %v5362
        %v5398 = vpop.f32.mrb[0].mxu0
        %v5399 = vadd.f32 0.0, %v5398
        %v5400 = vpop.f32.mrb[0].mxu0
        %v5401 = vpop.f32.mrb[0].mxu0
        %v5402 = vadd.f32 0.0, %v5401
        %v5403 = vpop.f32.mrb[0].mxu0
        %5404 = vdwg.mxu0
        %v5405 = vadd.f32 %v5334, %v5399
        %v5406 = vadd.f32 %v5335, %v5402
        %v5407 = vmax.f32 %v5405, 0.0
        %v5408 = vmax.f32 %v5406, 0.0
        %v5409 = vxor.u32 %v5407, 2147483648
        %v5410 = vxor.u32 %v5408, 2147483648
        %v5411 = vmul.f32 %v5409, 1.442695
        %v5412 = vpow.pop %v5411
        %v5413 = vmul.f32 %v5410, 1.442695
        %v5414 = vpow.pop %v5413
        %v5415 = vadd.f32 %v5412, 1.0
        %v5416 = vadd.f32 %v5414, 1.0
        %v5417 = vrcp.pop %v5415
        %v5418 = vmul.f32 1.0, %v5417
        %v5419 = vrcp.pop %v5416
        %v5420 = vmul.f32 1.0, %v5419
        %v5421 = vmul.f32 %v5418, %v4024
        %v5422 = vmul.f32 %v5420, %v4025
        %v5423 = vadd.f32 %v5421, %v893
        %v5424 = vadd.f32 %v5422, %v894
        %v5425 = vxor.u32 %v4024, 2147483648
        %v5426 = vxor.u32 %v4025, 2147483648
        %v5427 = vmul.f32 %v5425, 1.442695
        %v5428 = vpow.pop %v5427
        %v5429 = vmul.f32 %v5426, 1.442695
        %v5430 = vpow.pop %v5429
        %v5431 = vadd.f32 %v5428, 1.0
        %v5432 = vadd.f32 %v5430, 1.0
        %v5433 = vrcp.pop %v5431
        %v5434 = vmul.f32 1.0, %v5433
        %v5435 = vrcp.pop %v5432
        %v5436 = vmul.f32 1.0, %v5435
        %v5437 = vmul.f32 %v5434, %v5407
        %v5438 = vmul.f32 %v5436, %v5408
        %v5439 = vadd.f32 %v5437, %v895
        %v5440 = vadd.f32 %v5438, %v896
        %v5443 = vcombine.high %v2568, %v2568
        %v5445 = vunpack.c.l.s4 1966171168
        %v5446 = vunpack.c.0.s8 %v5445
        %v5447 = vlaneseq
        %v5448 = vshrl.u32 %v5447, 7
        %v5449 = vsub.s32 %v5446, %v5448
        %v5450 = vrot.slane %v2568, %v5449
        %v5452 = vunpack.c.l.s4 1966171168
        %v5453 = vunpack.c.0.s8 %v5452
        %v5454 = vlaneseq
        %v5455 = vshrl.u32 %v5454, 7
        %v5456 = vsub.s32 %v5453, %v5455
        %v5457 = vrot.slane %v5443, %v5456
        %v5458 = vcombine.high %v5450, %v5450
        %v5459 = vcombine.high %v5457, %v5457
        %v5461 = vunpack.c.l.s4 1966171168
        %v5462 = vunpack.c.0.s8 %v5461
        %v5463 = vlaneseq
        %v5464 = vshrl.u32 %v5463, 7
        %v5465 = vsub.s32 %v5462, %v5464
        %v5466 = vrot.slane %v5450, %v5465
        %v5468 = vunpack.c.l.s4 1966171168
        %v5469 = vunpack.c.0.s8 %v5468
        %v5470 = vlaneseq
        %v5471 = vshrl.u32 %v5470, 7
        %v5472 = vsub.s32 %v5469, %v5471
        %v5473 = vrot.slane %v5457, %v5472
        %v5475 = vunpack.c.l.s4 1966171168
        %v5476 = vunpack.c.0.s8 %v5475
        %v5477 = vlaneseq
        %v5478 = vshrl.u32 %v5477, 7
        %v5479 = vsub.s32 %v5476, %v5478
        %v5480 = vrot.slane %v5458, %v5479
        %v5482 = vunpack.c.l.s4 1966171168
        %v5483 = vunpack.c.0.s8 %v5482
        %v5484 = vlaneseq
        %v5485 = vshrl.u32 %v5484, 7
        %v5486 = vsub.s32 %v5483, %v5485
        %v5487 = vrot.slane %v5459, %v5486
        %v5488 = vcombine.high %v5466, %v5466
        %v5489 = vcombine.high %v5473, %v5473
        %v5490 = vcombine.high %v5480, %v5480
        %v5491 = vcombine.high %v5487, %v5487
        %v5492 = vcombine.high %v2569, %v2569
        %v5494 = vunpack.c.l.s4 1966171168
        %v5495 = vunpack.c.0.s8 %v5494
        %v5496 = vlaneseq
        %v5497 = vshrl.u32 %v5496, 7
        %v5498 = vsub.s32 %v5495, %v5497
        %v5499 = vrot.slane %v2569, %v5498
        %v5501 = vunpack.c.l.s4 1966171168
        %v5502 = vunpack.c.0.s8 %v5501
        %v5503 = vlaneseq
        %v5504 = vshrl.u32 %v5503, 7
        %v5505 = vsub.s32 %v5502, %v5504
        %v5506 = vrot.slane %v5492, %v5505
        %v5507 = vcombine.high %v5499, %v5499
        %v5508 = vcombine.high %v5506, %v5506
        %v5510 = vunpack.c.l.s4 1966171168
        %v5511 = vunpack.c.0.s8 %v5510
        %v5512 = vlaneseq
        %v5513 = vshrl.u32 %v5512, 7
        %v5514 = vsub.s32 %v5511, %v5513
        %v5515 = vrot.slane %v5499, %v5514
        %v5517 = vunpack.c.l.s4 1966171168
        %v5518 = vunpack.c.0.s8 %v5517
        %v5519 = vlaneseq
        %v5520 = vshrl.u32 %v5519, 7
        %v5521 = vsub.s32 %v5518, %v5520
        %v5522 = vrot.slane %v5506, %v5521
        %v5524 = vunpack.c.l.s4 1966171168
        %v5525 = vunpack.c.0.s8 %v5524
        %v5526 = vlaneseq
        %v5527 = vshrl.u32 %v5526, 7
        %v5528 = vsub.s32 %v5525, %v5527
        %v5529 = vrot.slane %v5507, %v5528
        %v5531 = vunpack.c.l.s4 1966171168
        %v5532 = vunpack.c.0.s8 %v5531
        %v5533 = vlaneseq
        %v5534 = vshrl.u32 %v5533, 7
        %v5535 = vsub.s32 %v5532, %v5534
        %v5536 = vrot.slane %v5508, %v5535
        %v5537 = vcombine.high %v5515, %v5515
        %v5538 = vcombine.high %v5522, %v5522
        %v5539 = vcombine.high %v5529, %v5529
        %v5540 = vcombine.high %v5536, %v5536
        %v5557 = vlaneseq
        %v5558 = vshrl.u32 %v5557, 7
        %v5559 = vsub.s32 0, %v5558
        %v5560 = vrot.slane %v5466, %v5559
        %v5561 = vlaneseq
        %v5562 = vshrl.u32 %v5561, 7
        %v5563 = vsub.s32 0, %v5562
        %v5564 = vrot.slane %v5480, %v5563
        %v5565 = vlaneseq
        %v5566 = vshrl.u32 %v5565, 7
        %v5567 = vsub.s32 0, %v5566
        %v5568 = vrot.slane %v5488, %v5567
        %v5569 = vlaneseq
        %v5570 = vshrl.u32 %v5569, 7
        %v5571 = vsub.s32 0, %v5570
        %v5572 = vrot.slane %v5490, %v5571
        %v5573 = vlaneseq
        %v5574 = vshrl.u32 %v5573, 7
        %v5575 = vsub.s32 0, %v5574
        %v5576 = vrot.slane %v5473, %v5575
        %v5577 = vlaneseq
        %v5578 = vshrl.u32 %v5577, 7
        %v5579 = vsub.s32 0, %v5578
        %v5580 = vrot.slane %v5487, %v5579
        %v5581 = vlaneseq
        %v5582 = vshrl.u32 %v5581, 7
        %v5583 = vsub.s32 0, %v5582
        %v5584 = vrot.slane %v5489, %v5583
        %v5585 = vlaneseq
        %v5586 = vshrl.u32 %v5585, 7
        %v5587 = vsub.s32 0, %v5586
        %v5588 = vrot.slane %v5491, %v5587
        %v5589 = vlaneseq
        %v5590 = vshrl.u32 %v5589, 7
        %v5591 = vsub.s32 0, %v5590
        %v5592 = vrot.slane %v5515, %v5591
        %v5593 = vlaneseq
        %v5594 = vshrl.u32 %v5593, 7
        %v5595 = vsub.s32 0, %v5594
        %v5596 = vrot.slane %v5529, %v5595
        %v5597 = vlaneseq
        %v5598 = vshrl.u32 %v5597, 7
        %v5599 = vsub.s32 0, %v5598
        %v5600 = vrot.slane %v5537, %v5599
        %v5601 = vlaneseq
        %v5602 = vshrl.u32 %v5601, 7
        %v5603 = vsub.s32 0, %v5602
        %v5604 = vrot.slane %v5539, %v5603
        %v5605 = vlaneseq
        %v5606 = vshrl.u32 %v5605, 7
        %v5607 = vsub.s32 0, %v5606
        %v5608 = vrot.slane %v5522, %v5607
        %v5609 = vlaneseq
        %v5610 = vshrl.u32 %v5609, 7
        %v5611 = vsub.s32 0, %v5610
        %v5612 = vrot.slane %v5536, %v5611
        %v5613 = vlaneseq
        %v5614 = vshrl.u32 %v5613, 7
        %v5615 = vsub.s32 0, %v5614
        %v5616 = vrot.slane %v5538, %v5615
        %v5617 = vlaneseq
        %v5618 = vshrl.u32 %v5617, 7
        %v5619 = vsub.s32 0, %v5618
        %v5620 = vrot.slane %v5540, %v5619
        %5621 = vrot.lane.b32.xlu0 %v5560, 112
        %v5622 = vpop.permute.xlu0 %5621
        %5623 = vrot.lane.b32.xlu0 %v5564, 112
        %v5624 = vpop.permute.xlu0 %5623
        %5625 = vrot.lane.b32.xlu0 %v5568, 112
        %v5626 = vpop.permute.xlu0 %5625
        %5627 = vrot.lane.b32.xlu0 %v5572, 112
        %v5628 = vpop.permute.xlu0 %5627
        %5629 = vrot.lane.b32.xlu0 %v5576, 112
        %v5630 = vpop.permute.xlu0 %5629
        %5631 = vrot.lane.b32.xlu0 %v5580, 112
        %v5632 = vpop.permute.xlu0 %5631
        %5633 = vrot.lane.b32.xlu0 %v5584, 112
        %v5634 = vpop.permute.xlu0 %5633
        %5635 = vrot.lane.b32.xlu0 %v5588, 112
        %v5636 = vpop.permute.xlu0 %5635
        %5637 = vrot.lane.b32.xlu0 %v5592, 112
        %v5638 = vpop.permute.xlu0 %5637
        %5639 = vrot.lane.b32.xlu0 %v5596, 112
        %v5640 = vpop.permute.xlu0 %5639
        %5641 = vrot.lane.b32.xlu0 %v5600, 112
        %v5642 = vpop.permute.xlu0 %5641
        %5643 = vrot.lane.b32.xlu0 %v5604, 112
        %v5644 = vpop.permute.xlu0 %5643
        %5645 = vrot.lane.b32.xlu0 %v5608, 112
        %v5646 = vpop.permute.xlu0 %5645
        %5647 = vrot.lane.b32.xlu0 %v5612, 112
        %v5648 = vpop.permute.xlu0 %5647
        %5649 = vrot.lane.b32.xlu0 %v5616, 112
        %v5650 = vpop.permute.xlu0 %5649
        %5651 = vrot.lane.b32.xlu0 %v5620, 112
        %v5652 = vpop.permute.xlu0 %5651
        %vm5669 = vcmask 1040384
        %v5670 = vsel %vm5669, %v5466, %v5622
        %v5671 = vsel %vm5669, %v5480, %v5624
        %v5672 = vsel %vm5669, %v5488, %v5626
        %v5673 = vsel %vm5669, %v5490, %v5628
        %v5674 = vsel %vm5669, %v5473, %v5630
        %v5675 = vsel %vm5669, %v5487, %v5632
        %v5676 = vsel %vm5669, %v5489, %v5634
        %v5677 = vsel %vm5669, %v5491, %v5636
        %v5678 = vsel %vm5669, %v5515, %v5638
        %v5679 = vsel %vm5669, %v5529, %v5640
        %v5680 = vsel %vm5669, %v5537, %v5642
        %v5681 = vsel %vm5669, %v5539, %v5644
        %v5682 = vsel %vm5669, %v5522, %v5646
        %v5683 = vsel %vm5669, %v5536, %v5648
        %v5684 = vsel %vm5669, %v5538, %v5650
        %v5685 = vsel %vm5669, %v5540, %v5652
        %v5702 = vcombine.low %v5670, %v5671
        %v5703 = vcombine.low %v5672, %v5673
        %v5705 = vunpack.c.l.s4 1983009808
        %v5706 = vunpack.c.0.s8 %v5705
        %v5707 = vlaneseq
        %v5708 = vshrl.u32 %v5707, 7
        %v5709 = vsub.s32 %v5706, %v5708
        %v5710 = vrot.slane %v5702, %v5709
        %v5712 = vunpack.c.l.s4 1983009808
        %v5713 = vunpack.c.0.s8 %v5712
        %v5714 = vlaneseq
        %v5715 = vshrl.u32 %v5714, 7
        %v5716 = vsub.s32 %v5713, %v5715
        %v5717 = vrot.slane %v5703, %v5716
        %v5718 = vcombine.low %v5710, %v5717
        %v5719 = vcombine.low %v5674, %v5675
        %v5720 = vcombine.low %v5676, %v5677
        %v5722 = vunpack.c.l.s4 1983009808
        %v5723 = vunpack.c.0.s8 %v5722
        %v5724 = vlaneseq
        %v5725 = vshrl.u32 %v5724, 7
        %v5726 = vsub.s32 %v5723, %v5725
        %v5727 = vrot.slane %v5719, %v5726
        %v5729 = vunpack.c.l.s4 1983009808
        %v5730 = vunpack.c.0.s8 %v5729
        %v5731 = vlaneseq
        %v5732 = vshrl.u32 %v5731, 7
        %v5733 = vsub.s32 %v5730, %v5732
        %v5734 = vrot.slane %v5720, %v5733
        %v5735 = vcombine.low %v5727, %v5734
        %v5736 = vcombine.low %v5678, %v5679
        %v5737 = vcombine.low %v5680, %v5681
        %v5739 = vunpack.c.l.s4 1983009808
        %v5740 = vunpack.c.0.s8 %v5739
        %v5741 = vlaneseq
        %v5742 = vshrl.u32 %v5741, 7
        %v5743 = vsub.s32 %v5740, %v5742
        %v5744 = vrot.slane %v5736, %v5743
        %v5746 = vunpack.c.l.s4 1983009808
        %v5747 = vunpack.c.0.s8 %v5746
        %v5748 = vlaneseq
        %v5749 = vshrl.u32 %v5748, 7
        %v5750 = vsub.s32 %v5747, %v5749
        %v5751 = vrot.slane %v5737, %v5750
        %v5752 = vcombine.low %v5744, %v5751
        %v5753 = vcombine.low %v5682, %v5683
        %v5754 = vcombine.low %v5684, %v5685
        %v5756 = vunpack.c.l.s4 1983009808
        %v5757 = vunpack.c.0.s8 %v5756
        %v5758 = vlaneseq
        %v5759 = vshrl.u32 %v5758, 7
        %v5760 = vsub.s32 %v5757, %v5759
        %v5761 = vrot.slane %v5753, %v5760
        %v5763 = vunpack.c.l.s4 1983009808
        %v5764 = vunpack.c.0.s8 %v5763
        %v5765 = vlaneseq
        %v5766 = vshrl.u32 %v5765, 7
        %v5767 = vsub.s32 %v5764, %v5766
        %v5768 = vrot.slane %v5754, %v5767
        %v5769 = vcombine.low %v5761, %v5768
        %v5774 = vpack.c.bf16 %v5735, %v5718
        %v5775 = vpack.c.bf16 %v5769, %v5752
        %v5778 = vcombine.high %v2638, %v2638
        %v5780 = vunpack.c.l.s4 1966171168
        %v5781 = vunpack.c.0.s8 %v5780
        %v5782 = vlaneseq
        %v5783 = vshrl.u32 %v5782, 7
        %v5784 = vsub.s32 %v5781, %v5783
        %v5785 = vrot.slane %v2638, %v5784
        %v5787 = vunpack.c.l.s4 1966171168
        %v5788 = vunpack.c.0.s8 %v5787
        %v5789 = vlaneseq
        %v5790 = vshrl.u32 %v5789, 7
        %v5791 = vsub.s32 %v5788, %v5790
        %v5792 = vrot.slane %v5778, %v5791
        %v5793 = vcombine.high %v5785, %v5785
        %v5794 = vcombine.high %v5792, %v5792
        %v5796 = vunpack.c.l.s4 1966171168
        %v5797 = vunpack.c.0.s8 %v5796
        %v5798 = vlaneseq
        %v5799 = vshrl.u32 %v5798, 7
        %v5800 = vsub.s32 %v5797, %v5799
        %v5801 = vrot.slane %v5785, %v5800
        %v5803 = vunpack.c.l.s4 1966171168
        %v5804 = vunpack.c.0.s8 %v5803
        %v5805 = vlaneseq
        %v5806 = vshrl.u32 %v5805, 7
        %v5807 = vsub.s32 %v5804, %v5806
        %v5808 = vrot.slane %v5792, %v5807
        %v5810 = vunpack.c.l.s4 1966171168
        %v5811 = vunpack.c.0.s8 %v5810
        %v5812 = vlaneseq
        %v5813 = vshrl.u32 %v5812, 7
        %v5814 = vsub.s32 %v5811, %v5813
        %v5815 = vrot.slane %v5793, %v5814
        %v5817 = vunpack.c.l.s4 1966171168
        %v5818 = vunpack.c.0.s8 %v5817
        %v5819 = vlaneseq
        %v5820 = vshrl.u32 %v5819, 7
        %v5821 = vsub.s32 %v5818, %v5820
        %v5822 = vrot.slane %v5794, %v5821
        %v5823 = vcombine.high %v5801, %v5801
        %v5824 = vcombine.high %v5808, %v5808
        %v5825 = vcombine.high %v5815, %v5815
        %v5826 = vcombine.high %v5822, %v5822
        %v5827 = vcombine.high %v2639, %v2639
        %v5829 = vunpack.c.l.s4 1966171168
        %v5830 = vunpack.c.0.s8 %v5829
        %v5831 = vlaneseq
        %v5832 = vshrl.u32 %v5831, 7
        %v5833 = vsub.s32 %v5830, %v5832
        %v5834 = vrot.slane %v2639, %v5833
        %v5836 = vunpack.c.l.s4 1966171168
        %v5837 = vunpack.c.0.s8 %v5836
        %v5838 = vlaneseq
        %v5839 = vshrl.u32 %v5838, 7
        %v5840 = vsub.s32 %v5837, %v5839
        %v5841 = vrot.slane %v5827, %v5840
        %v5842 = vcombine.high %v5834, %v5834
        %v5843 = vcombine.high %v5841, %v5841
        %v5845 = vunpack.c.l.s4 1966171168
        %v5846 = vunpack.c.0.s8 %v5845
        %v5847 = vlaneseq
        %v5848 = vshrl.u32 %v5847, 7
        %v5849 = vsub.s32 %v5846, %v5848
        %v5850 = vrot.slane %v5834, %v5849
        %v5852 = vunpack.c.l.s4 1966171168
        %v5853 = vunpack.c.0.s8 %v5852
        %v5854 = vlaneseq
        %v5855 = vshrl.u32 %v5854, 7
        %v5856 = vsub.s32 %v5853, %v5855
        %v5857 = vrot.slane %v5841, %v5856
        %v5859 = vunpack.c.l.s4 1966171168
        %v5860 = vunpack.c.0.s8 %v5859
        %v5861 = vlaneseq
        %v5862 = vshrl.u32 %v5861, 7
        %v5863 = vsub.s32 %v5860, %v5862
        %v5864 = vrot.slane %v5842, %v5863
        %v5866 = vunpack.c.l.s4 1966171168
        %v5867 = vunpack.c.0.s8 %v5866
        %v5868 = vlaneseq
        %v5869 = vshrl.u32 %v5868, 7
        %v5870 = vsub.s32 %v5867, %v5869
        %v5871 = vrot.slane %v5843, %v5870
        %v5872 = vcombine.high %v5850, %v5850
        %v5873 = vcombine.high %v5857, %v5857
        %v5874 = vcombine.high %v5864, %v5864
        %v5875 = vcombine.high %v5871, %v5871
        %v5892 = vlaneseq
        %v5893 = vshrl.u32 %v5892, 7
        %v5894 = vsub.s32 0, %v5893
        %v5895 = vrot.slane %v5801, %v5894
        %v5896 = vlaneseq
        %v5897 = vshrl.u32 %v5896, 7
        %v5898 = vsub.s32 0, %v5897
        %v5899 = vrot.slane %v5815, %v5898
        %v5900 = vlaneseq
        %v5901 = vshrl.u32 %v5900, 7
        %v5902 = vsub.s32 0, %v5901
        %v5903 = vrot.slane %v5823, %v5902
        %v5904 = vlaneseq
        %v5905 = vshrl.u32 %v5904, 7
        %v5906 = vsub.s32 0, %v5905
        %v5907 = vrot.slane %v5825, %v5906
        %v5908 = vlaneseq
        %v5909 = vshrl.u32 %v5908, 7
        %v5910 = vsub.s32 0, %v5909
        %v5911 = vrot.slane %v5808, %v5910
        %v5912 = vlaneseq
        %v5913 = vshrl.u32 %v5912, 7
        %v5914 = vsub.s32 0, %v5913
        %v5915 = vrot.slane %v5822, %v5914
        %v5916 = vlaneseq
        %v5917 = vshrl.u32 %v5916, 7
        %v5918 = vsub.s32 0, %v5917
        %v5919 = vrot.slane %v5824, %v5918
        %v5920 = vlaneseq
        %v5921 = vshrl.u32 %v5920, 7
        %v5922 = vsub.s32 0, %v5921
        %v5923 = vrot.slane %v5826, %v5922
        %v5924 = vlaneseq
        %v5925 = vshrl.u32 %v5924, 7
        %v5926 = vsub.s32 0, %v5925
        %v5927 = vrot.slane %v5850, %v5926
        %v5928 = vlaneseq
        %v5929 = vshrl.u32 %v5928, 7
        %v5930 = vsub.s32 0, %v5929
        %v5931 = vrot.slane %v5864, %v5930
        %v5932 = vlaneseq
        %v5933 = vshrl.u32 %v5932, 7
        %v5934 = vsub.s32 0, %v5933
        %v5935 = vrot.slane %v5872, %v5934
        %v5936 = vlaneseq
        %v5937 = vshrl.u32 %v5936, 7
        %v5938 = vsub.s32 0, %v5937
        %v5939 = vrot.slane %v5874, %v5938
        %v5940 = vlaneseq
        %v5941 = vshrl.u32 %v5940, 7
        %v5942 = vsub.s32 0, %v5941
        %v5943 = vrot.slane %v5857, %v5942
        %v5944 = vlaneseq
        %v5945 = vshrl.u32 %v5944, 7
        %v5946 = vsub.s32 0, %v5945
        %v5947 = vrot.slane %v5871, %v5946
        %v5948 = vlaneseq
        %v5949 = vshrl.u32 %v5948, 7
        %v5950 = vsub.s32 0, %v5949
        %v5951 = vrot.slane %v5873, %v5950
        %v5952 = vlaneseq
        %v5953 = vshrl.u32 %v5952, 7
        %v5954 = vsub.s32 0, %v5953
        %v5955 = vrot.slane %v5875, %v5954
        %5956 = vrot.lane.b32.xlu0 %v5895, 112
        %v5957 = vpop.permute.xlu0 %5956
        %5958 = vrot.lane.b32.xlu0 %v5899, 112
        %v5959 = vpop.permute.xlu0 %5958
        %5960 = vrot.lane.b32.xlu0 %v5903, 112
        %v5961 = vpop.permute.xlu0 %5960
        %5962 = vrot.lane.b32.xlu0 %v5907, 112
        %v5963 = vpop.permute.xlu0 %5962
        %5964 = vrot.lane.b32.xlu0 %v5911, 112
        %v5965 = vpop.permute.xlu0 %5964
        %5966 = vrot.lane.b32.xlu0 %v5915, 112
        %v5967 = vpop.permute.xlu0 %5966
        %5968 = vrot.lane.b32.xlu0 %v5919, 112
        %v5969 = vpop.permute.xlu0 %5968
        %5970 = vrot.lane.b32.xlu0 %v5923, 112
        %v5971 = vpop.permute.xlu0 %5970
        %5972 = vrot.lane.b32.xlu0 %v5927, 112
        %v5973 = vpop.permute.xlu0 %5972
        %5974 = vrot.lane.b32.xlu0 %v5931, 112
        %v5975 = vpop.permute.xlu0 %5974
        %5976 = vrot.lane.b32.xlu0 %v5935, 112
        %v5977 = vpop.permute.xlu0 %5976
        %5978 = vrot.lane.b32.xlu0 %v5939, 112
        %v5979 = vpop.permute.xlu0 %5978
        %5980 = vrot.lane.b32.xlu0 %v5943, 112
        %v5981 = vpop.permute.xlu0 %5980
        %5982 = vrot.lane.b32.xlu0 %v5947, 112
        %v5983 = vpop.permute.xlu0 %5982
        %5984 = vrot.lane.b32.xlu0 %v5951, 112
        %v5985 = vpop.permute.xlu0 %5984
        %5986 = vrot.lane.b32.xlu0 %v5955, 112
        %v5987 = vpop.permute.xlu0 %5986
        %v6004 = vsel %vm5669, %v5801, %v5957
        %v6005 = vsel %vm5669, %v5815, %v5959
        %v6006 = vsel %vm5669, %v5823, %v5961
        %v6007 = vsel %vm5669, %v5825, %v5963
        %v6008 = vsel %vm5669, %v5808, %v5965
        %v6009 = vsel %vm5669, %v5822, %v5967
        %v6010 = vsel %vm5669, %v5824, %v5969
        %v6011 = vsel %vm5669, %v5826, %v5971
        %v6012 = vsel %vm5669, %v5850, %v5973
        %v6013 = vsel %vm5669, %v5864, %v5975
        %v6014 = vsel %vm5669, %v5872, %v5977
        %v6015 = vsel %vm5669, %v5874, %v5979
        %v6016 = vsel %vm5669, %v5857, %v5981
        %v6017 = vsel %vm5669, %v5871, %v5983
        %v6018 = vsel %vm5669, %v5873, %v5985
        %v6019 = vsel %vm5669, %v5875, %v5987
        %v6036 = vcombine.low %v6004, %v6005
        %v6037 = vcombine.low %v6006, %v6007
        %v6039 = vunpack.c.l.s4 1983009808
        %v6040 = vunpack.c.0.s8 %v6039
        %v6041 = vlaneseq
        %v6042 = vshrl.u32 %v6041, 7
        %v6043 = vsub.s32 %v6040, %v6042
        %v6044 = vrot.slane %v6036, %v6043
        %v6046 = vunpack.c.l.s4 1983009808
        %v6047 = vunpack.c.0.s8 %v6046
        %v6048 = vlaneseq
        %v6049 = vshrl.u32 %v6048, 7
        %v6050 = vsub.s32 %v6047, %v6049
        %v6051 = vrot.slane %v6037, %v6050
        %v6052 = vcombine.low %v6044, %v6051
        %v6053 = vcombine.low %v6008, %v6009
        %v6054 = vcombine.low %v6010, %v6011
        %v6056 = vunpack.c.l.s4 1983009808
        %v6057 = vunpack.c.0.s8 %v6056
        %v6058 = vlaneseq
        %v6059 = vshrl.u32 %v6058, 7
        %v6060 = vsub.s32 %v6057, %v6059
        %v6061 = vrot.slane %v6053, %v6060
        %v6063 = vunpack.c.l.s4 1983009808
        %v6064 = vunpack.c.0.s8 %v6063
        %v6065 = vlaneseq
        %v6066 = vshrl.u32 %v6065, 7
        %v6067 = vsub.s32 %v6064, %v6066
        %v6068 = vrot.slane %v6054, %v6067
        %v6069 = vcombine.low %v6061, %v6068
        %v6070 = vcombine.low %v6012, %v6013
        %v6071 = vcombine.low %v6014, %v6015
        %v6073 = vunpack.c.l.s4 1983009808
        %v6074 = vunpack.c.0.s8 %v6073
        %v6075 = vlaneseq
        %v6076 = vshrl.u32 %v6075, 7
        %v6077 = vsub.s32 %v6074, %v6076
        %v6078 = vrot.slane %v6070, %v6077
        %v6080 = vunpack.c.l.s4 1983009808
        %v6081 = vunpack.c.0.s8 %v6080
        %v6082 = vlaneseq
        %v6083 = vshrl.u32 %v6082, 7
        %v6084 = vsub.s32 %v6081, %v6083
        %v6085 = vrot.slane %v6071, %v6084
        %v6086 = vcombine.low %v6078, %v6085
        %v6087 = vcombine.low %v6016, %v6017
        %v6088 = vcombine.low %v6018, %v6019
        %v6090 = vunpack.c.l.s4 1983009808
        %v6091 = vunpack.c.0.s8 %v6090
        %v6092 = vlaneseq
        %v6093 = vshrl.u32 %v6092, 7
        %v6094 = vsub.s32 %v6091, %v6093
        %v6095 = vrot.slane %v6087, %v6094
        %v6097 = vunpack.c.l.s4 1983009808
        %v6098 = vunpack.c.0.s8 %v6097
        %v6099 = vlaneseq
        %v6100 = vshrl.u32 %v6099, 7
        %v6101 = vsub.s32 %v6098, %v6100
        %v6102 = vrot.slane %v6088, %v6101
        %v6103 = vcombine.low %v6095, %v6102
        %v6108 = vpack.c.bf16 %v6069, %v6052
        %v6109 = vpack.c.bf16 %v6103, %v6086
        %v6110 = vld [vmem:[%s16] sm:$0xf]
        %v6111 = vld [vmem:[%s16 + $0x4] sm:$0xf]
        %v6112 = vld [vmem:[%s16 + $0x8] sm:$0xf]
        %v6113 = vld [vmem:[%s16 + $0xc] sm:$0xf]
        %v6114 = vld [vmem:[%s17] sm:$0xf]
        %v6115 = vld [vmem:[%s17 + $0x4] sm:$0xf]
        %v6116 = vld [vmem:[%s17 + $0x8] sm:$0xf]
        %v6117 = vld [vmem:[%s17 + $0xc] sm:$0xf]
        %v6118 = vpack.c.bf16 %v5424, %v5423
        %v6123 = vunpack.c.l.b16 %v6114
        %v6124 = vunpack.c.l.b16 %v6115
        %v6125 = vunpack.c.l.b16 %v6116
        %v6126 = vunpack.c.l.b16 %v6117
        %v6127 = vpack.c.b16 %v6124, %v6123
        %v6128 = vpack.c.b16 %v6126, %v6125
        %v6130 = vsel %vm899, %v6127, 0
        %v6133 = vsel %vm899, %v6128, 0
        %v6136 = vsel %vm899, %v6118, 0
        %6138 = vmatprep.subr.bf16.mxu0 0
        %6139 = vmatpush1.bf16.xpose.msra.mxu0 %v6136
        %6140 = vmatprep.subr.bf16.mxu0 0
        %6141 = vmatpush1.bf16.xpose.msra.mxu0 0
        %6142 = vmatprep.subr.bf16.mxu0 0
        %6143 = vmatpush1.bf16.xpose.msra.mxu0 0
        %6144 = vmatprep.subr.bf16.mxu0 0
        %6145 = vmatpush1.bf16.xpose.msra.mxu0 0
        %6146 = vmatprep.subr.bf16.mxu0 0
        %6147 = vmatpush1.bf16.xpose.msra.mxu0 0
        %6148 = vmatprep.subr.bf16.mxu0 0
        %6149 = vmatpush1.bf16.xpose.msra.mxu0 0
        %6150 = vmatprep.subr.bf16.mxu0 0
        %6151 = vmatpush1.bf16.xpose.msra.mxu0 0
        %6152 = vmatprep.subr.bf16.mxu0 0
        %6153 = vmatpush1.bf16.xpose.msra.mxu0 0
        %6154 = vmatprep.subr.bf16.mxu0 0
        %6155 = vmatpush1.bf16.xpose.msra.mxu0 0
        %6156 = vmatprep.subr.bf16.mxu0 0
        %6157 = vmatpush1.bf16.xpose.msra.mxu0 0
        %6158 = vmatprep.subr.bf16.mxu0 0
        %6159 = vmatpush1.bf16.xpose.msra.mxu0 0
        %6160 = vmatprep.subr.bf16.mxu0 0
        %6161 = vmatpush1.bf16.xpose.msra.mxu0 0
        %6162 = vmatprep.subr.bf16.mxu0 0
        %6163 = vmatpush1.bf16.xpose.msra.mxu0 0
        %6164 = vmatprep.subr.bf16.mxu0 0
        %6165 = vmatpush1.bf16.xpose.msra.mxu0 0
        %6166 = vmatprep.subr.bf16.mxu0 0
        %6167 = vmatpush1.bf16.xpose.msra.mxu0 0
        %6168 = vmatprep.subr.bf16.mxu0 0
        %6169 = vmatpush1.bf16.xpose.msra.mxu0 0
        %6170 = vmatprep.mubr.bf16.mxu0 0
        %6171 = vmatmul.mubr.bf16.gmra.mrb[0].mxu0 %v6130
        %v6172 = vpop.f32.mrb[0].mxu0
        %v6173 = vadd.f32 0.0, %v6172
        %v6174 = vpop.f32.mrb[0].mxu0
        %v6175 = vpop.f32.mrb[0].mxu0
        %v6176 = vadd.f32 0.0, %v6175
        %v6177 = vpop.f32.mrb[0].mxu0
        %6178 = vmatprep.mubr.bf16.mxu0 0
        %6179 = vmatmul.mubr.bf16.gmra.mrb[0].mxu0 %v6133
        %v6180 = vpop.f32.mrb[0].mxu0
        %v6181 = vadd.f32 0.0, %v6180
        %v6182 = vpop.f32.mrb[0].mxu0
        %v6183 = vpop.f32.mrb[0].mxu0
        %v6184 = vadd.f32 0.0, %v6183
        %v6185 = vpop.f32.mrb[0].mxu0
        %6186 = vdwg.mxu0
        %v6191 = vunpack.c.l.b16 %v6110
        %v6192 = vunpack.c.l.b16 %v6111
        %v6193 = vunpack.c.l.b16 %v6112
        %v6194 = vunpack.c.l.b16 %v6113
        %v6195 = vpack.c.b16 %v6192, %v6191
        %v6196 = vpack.c.b16 %v6194, %v6193
        %v6198 = vsel %vm899, %v6195, 0
        %v6201 = vsel %vm899, %v6196, 0
        %6203 = vmatprep.subr.bf16.mxu0 0
        %6204 = vmatpush1.bf16.msra.mxu0 %v5774
        %6205 = vmatprep.subr.bf16.mxu0 0
        %6206 = vmatpush1.bf16.msra.mxu0 %v5775
        %6207 = vmatprep.subr.bf16.mxu0 0
        %6208 = vmatpush1.bf16.msra.mxu0 0
        %6209 = vmatprep.subr.bf16.mxu0 0
        %6210 = vmatpush1.bf16.msra.mxu0 0
        %6211 = vmatprep.subr.bf16.mxu0 0
        %6212 = vmatpush1.bf16.msra.mxu0 0
        %6213 = vmatprep.subr.bf16.mxu0 0
        %6214 = vmatpush1.bf16.msra.mxu0 0
        %6215 = vmatprep.subr.bf16.mxu0 0
        %6216 = vmatpush1.bf16.msra.mxu0 0
        %6217 = vmatprep.subr.bf16.mxu0 0
        %6218 = vmatpush1.bf16.msra.mxu0 0
        %6219 = vmatprep.subr.bf16.mxu0 0
        %6220 = vmatpush1.bf16.msra.mxu0 0
        %6221 = vmatprep.subr.bf16.mxu0 0
        %6222 = vmatpush1.bf16.msra.mxu0 0
        %6223 = vmatprep.subr.bf16.mxu0 0
        %6224 = vmatpush1.bf16.msra.mxu0 0
        %6225 = vmatprep.subr.bf16.mxu0 0
        %6226 = vmatpush1.bf16.msra.mxu0 0
        %6227 = vmatprep.subr.bf16.mxu0 0
        %6228 = vmatpush1.bf16.msra.mxu0 0
        %6229 = vmatprep.subr.bf16.mxu0 0
        %6230 = vmatpush1.bf16.msra.mxu0 0
        %6231 = vmatprep.subr.bf16.mxu0 0
        %6232 = vmatpush1.bf16.msra.mxu0 0
        %6233 = vmatprep.subr.bf16.mxu0 0
        %6234 = vmatpush1.bf16.msra.mxu0 0
        %6235 = vmatprep.mubr.bf16.mxu0 0
        %6236 = vmatmul.mubr.bf16.gmra.mrb[0].mxu0 %v6198
        %v6237 = vpop.f32.mrb[0].mxu0
        %v6238 = vadd.f32 %v6173, %v6237
        %v6239 = vpop.f32.mrb[0].mxu0
        %v6240 = vpop.f32.mrb[0].mxu0
        %v6241 = vadd.f32 %v6176, %v6240
        %v6242 = vpop.f32.mrb[0].mxu0
        %6243 = vmatprep.mubr.bf16.mxu0 0
        %6244 = vmatmul.mubr.bf16.gmra.mrb[0].mxu0 %v6201
        %v6245 = vpop.f32.mrb[0].mxu0
        %v6246 = vadd.f32 %v6181, %v6245
        %v6247 = vpop.f32.mrb[0].mxu0
        %v6248 = vpop.f32.mrb[0].mxu0
        %v6249 = vadd.f32 %v6184, %v6248
        %v6250 = vpop.f32.mrb[0].mxu0
        %6251 = vdwg.mxu0
        %6252 = vst.msk [vmem:[%s886] sm:$0xff] %vm1607, %v6238
        %6253 = vst.msk [vmem:[%s886 + $0x8] sm:$0xff] %vm1607, %v6241
        %6254 = vst.msk [vmem:[%s886 + $0x10] sm:$0xff] %vm1607, %v6246
        %6255 = vst.msk [vmem:[%s886 + $0x18] sm:$0xff] %vm1607, %v6249
        %v6256 = vld [vmem:[#allocation23] sm:$0xf]
        %v6257 = vld [vmem:[#allocation23 + $0x4] sm:$0xf]
        %v6258 = vld [vmem:[#allocation23 + $0x8] sm:$0xf]
        %v6259 = vld [vmem:[#allocation23 + $0xc] sm:$0xf]
        %v6260 = vld [vmem:[#allocation24] sm:$0xf]
        %v6261 = vld [vmem:[#allocation24 + $0x4] sm:$0xf]
        %v6262 = vld [vmem:[#allocation24 + $0x8] sm:$0xf]
        %v6263 = vld [vmem:[#allocation24 + $0xc] sm:$0xf]
        %v6264 = vpack.c.bf16 %v5440, %v5439
        %v6269 = vunpack.c.l.b16 %v6260
        %v6270 = vunpack.c.l.b16 %v6261
        %v6271 = vunpack.c.l.b16 %v6262
        %v6272 = vunpack.c.l.b16 %v6263
        %v6273 = vpack.c.b16 %v6270, %v6269
        %v6274 = vpack.c.b16 %v6272, %v6271
        %v6276 = vsel %vm899, %v6273, 0
        %v6279 = vsel %vm899, %v6274, 0
        %v6282 = vsel %vm899, %v6264, 0
        %6284 = vmatprep.subr.bf16.mxu0 0
        %6285 = vmatpush1.bf16.xpose.msra.mxu0 %v6282
        %6286 = vmatprep.subr.bf16.mxu0 0
        %6287 = vmatpush1.bf16.xpose.msra.mxu0 0
        %6288 = vmatprep.subr.bf16.mxu0 0
        %6289 = vmatpush1.bf16.xpose.msra.mxu0 0
        %6290 = vmatprep.subr.bf16.mxu0 0
        %6291 = vmatpush1.bf16.xpose.msra.mxu0 0
        %6292 = vmatprep.subr.bf16.mxu0 0
        %6293 = vmatpush1.bf16.xpose.msra.mxu0 0
        %6294 = vmatprep.subr.bf16.mxu0 0
        %6295 = vmatpush1.bf16.xpose.msra.mxu0 0
        %6296 = vmatprep.subr.bf16.mxu0 0
        %6297 = vmatpush1.bf16.xpose.msra.mxu0 0
        %6298 = vmatprep.subr.bf16.mxu0 0
        %6299 = vmatpush1.bf16.xpose.msra.mxu0 0
        %6300 = vmatprep.subr.bf16.mxu0 0
        %6301 = vmatpush1.bf16.xpose.msra.mxu0 0
        %6302 = vmatprep.subr.bf16.mxu0 0
        %6303 = vmatpush1.bf16.xpose.msra.mxu0 0
        %6304 = vmatprep.subr.bf16.mxu0 0
        %6305 = vmatpush1.bf16.xpose.msra.mxu0 0
        %6306 = vmatprep.subr.bf16.mxu0 0
        %6307 = vmatpush1.bf16.xpose.msra.mxu0 0
        %6308 = vmatprep.subr.bf16.mxu0 0
        %6309 = vmatpush1.bf16.xpose.msra.mxu0 0
        %6310 = vmatprep.subr.bf16.mxu0 0
        %6311 = vmatpush1.bf16.xpose.msra.mxu0 0
        %6312 = vmatprep.subr.bf16.mxu0 0
        %6313 = vmatpush1.bf16.xpose.msra.mxu0 0
        %6314 = vmatprep.subr.bf16.mxu0 0
        %6315 = vmatpush1.bf16.xpose.msra.mxu0 0
        %6316 = vmatprep.mubr.bf16.mxu0 0
        %6317 = vmatmul.mubr.bf16.gmra.mrb[0].mxu0 %v6276
        %v6318 = vpop.f32.mrb[0].mxu0
        %v6319 = vadd.f32 0.0, %v6318
        %v6320 = vpop.f32.mrb[0].mxu0
        %v6321 = vpop.f32.mrb[0].mxu0
        %v6322 = vadd.f32 0.0, %v6321
        %v6323 = vpop.f32.mrb[0].mxu0
        %6324 = vmatprep.mubr.bf16.mxu0 0
        %6325 = vmatmul.mubr.bf16.gmra.mrb[0].mxu0 %v6279
        %v6326 = vpop.f32.mrb[0].mxu0
        %v6327 = vadd.f32 0.0, %v6326
        %v6328 = vpop.f32.mrb[0].mxu0
        %v6329 = vpop.f32.mrb[0].mxu0
        %v6330 = vadd.f32 0.0, %v6329
        %v6331 = vpop.f32.mrb[0].mxu0
        %6332 = vdwg.mxu0
        %v6337 = vunpack.c.l.b16 %v6256
        %v6338 = vunpack.c.l.b16 %v6257
        %v6339 = vunpack.c.l.b16 %v6258
        %v6340 = vunpack.c.l.b16 %v6259
        %v6341 = vpack.c.b16 %v6338, %v6337
        %v6342 = vpack.c.b16 %v6340, %v6339
        %v6344 = vsel %vm899, %v6341, 0
        %v6347 = vsel %vm899, %v6342, 0
        %6349 = vmatprep.subr.bf16.mxu0 0
        %6350 = vmatpush1.bf16.msra.mxu0 %v6108
        %6351 = vmatprep.subr.bf16.mxu0 0
        %6352 = vmatpush1.bf16.msra.mxu0 %v6109
        %6353 = vmatprep.subr.bf16.mxu0 0
        %6354 = vmatpush1.bf16.msra.mxu0 0
        %6355 = vmatprep.subr.bf16.mxu0 0
        %6356 = vmatpush1.bf16.msra.mxu0 0
        %6357 = vmatprep.subr.bf16.mxu0 0
        %6358 = vmatpush1.bf16.msra.mxu0 0
        %6359 = vmatprep.subr.bf16.mxu0 0
        %6360 = vmatpush1.bf16.msra.mxu0 0
        %6361 = vmatprep.subr.bf16.mxu0 0
        %6362 = vmatpush1.bf16.msra.mxu0 0
        %6363 = vmatprep.subr.bf16.mxu0 0
        %6364 = vmatpush1.bf16.msra.mxu0 0
        %6365 = vmatprep.subr.bf16.mxu0 0
        %6366 = vmatpush1.bf16.msra.mxu0 0
        %6367 = vmatprep.subr.bf16.mxu0 0
        %6368 = vmatpush1.bf16.msra.mxu0 0
        %6369 = vmatprep.subr.bf16.mxu0 0
        %6370 = vmatpush1.bf16.msra.mxu0 0
        %6371 = vmatprep.subr.bf16.mxu0 0
        %6372 = vmatpush1.bf16.msra.mxu0 0
        %6373 = vmatprep.subr.bf16.mxu0 0
        %6374 = vmatpush1.bf16.msra.mxu0 0
        %6375 = vmatprep.subr.bf16.mxu0 0
        %6376 = vmatpush1.bf16.msra.mxu0 0
        %6377 = vmatprep.subr.bf16.mxu0 0
        %6378 = vmatpush1.bf16.msra.mxu0 0
        %6379 = vmatprep.subr.bf16.mxu0 0
        %6380 = vmatpush1.bf16.msra.mxu0 0
        %6381 = vmatprep.mubr.bf16.mxu0 0
        %6382 = vmatmul.mubr.bf16.gmra.mrb[0].mxu0 %v6344
        %v6383 = vpop.f32.mrb[0].mxu0
        %v6384 = vadd.f32 %v6319, %v6383
        %v6385 = vpop.f32.mrb[0].mxu0
        %v6386 = vpop.f32.mrb[0].mxu0
        %v6387 = vadd.f32 %v6322, %v6386
        %v6388 = vpop.f32.mrb[0].mxu0
        %6389 = vmatprep.mubr.bf16.mxu0 0
        %6390 = vmatmul.mubr.bf16.gmra.mrb[0].mxu0 %v6347
        %v6391 = vpop.f32.mrb[0].mxu0
        %v6392 = vadd.f32 %v6327, %v6391
        %v6393 = vpop.f32.mrb[0].mxu0
        %v6394 = vpop.f32.mrb[0].mxu0
        %v6395 = vadd.f32 %v6330, %v6394
        %v6396 = vpop.f32.mrb[0].mxu0
        %6397 = vdwg.mxu0
        %6398 = vst.msk [vmem:[%s891] sm:$0xff] %vm1607, %v6384
        %6399 = vst.msk [vmem:[%s891 + $0x8] sm:$0xff] %vm1607, %v6387
        %6400 = vst.msk [vmem:[%s891 + $0x10] sm:$0xff] %vm1607, %v6392
        %6401 = vst.msk [vmem:[%s891 + $0x18] sm:$0xff] %vm1607, %v6395
        %p6402 = scmp.lt.s32.totalorder %s45, 1
        %s6403 = scalar_select %p6402, %s45, 1
        %s6404 = smul.addr %s6403, 4
        %s6405 = smul.addr %s6404, 8
        %s6406 = scalar_lea.vmem %s20, %s6405
        %p6407 = scmp.lt.s32.totalorder %s45, 1
        %s6408 = scalar_select %p6407, %s45, 1
        %s6409 = smul.addr %s6408, 4
        %s6410 = smul.addr %s6409, 8
        %s6411 = scalar_lea.vmem %s21, %s6410
        // Predicated region
        $region157: #{tpu_custom_call.1} parent=99 // pred_check
          %p6412 = pneg %p493
        $region158: #{tpu_custom_call.1} parent=99 // pred_check_branch
          %6414 = sbr.rel (%p6412) target = $region160
        $region159: #{tpu_custom_call.1} parent=99 // pred_region
          _
        $region160: #{tpu_custom_call.1} parent=99 // pred_fallthru
          _
        // Predicated region
        $region161: #{tpu_custom_call.1} parent=99 // pred_check
          %p6415 = pneg %p519
        $region162: #{tpu_custom_call.1} parent=99 // pred_check_branch
          %6417 = sbr.rel (%p6415) target = $region164
        $region163: #{tpu_custom_call.1} parent=99 // pred_region
          _
        $region164: #{tpu_custom_call.1} parent=99 // pred_fallthru
          _
      $region100: #{tpu_custom_call.1} parent=5 // pred_fallthru
        _
      %p6418 = scmp.le.s32.totalorder 2, %s40
      // Predicated region
      $region165: #{tpu_custom_call.1} parent=5 // pred_check
        %p6419 = pneg %p6418
      $region166: #{tpu_custom_call.1} parent=5 // pred_check_branch
        %6421 = sbr.rel (%p6419) target = $region168
      $region167: #{tpu_custom_call.1} parent=5 // pred_region
        %s6422 = ssub.s32 %s40, 2
        // Predicated region
        $region169: #{tpu_custom_call.1} parent=167 // pred_check
          %p6423 = pneg %p499
        $region170: #{tpu_custom_call.1} parent=167 // pred_check_branch
          %6425 = sbr.rel (%p6423) target = $region172
        $region171: #{tpu_custom_call.1} parent=167 // pred_region
          %p6426 = scmp.lt.s32.totalorder %s46, 1
          %s6427 = scalar_select %p6426, %s46, 1
          %s6428 = smul.addr %s6427, 4
          %s6429 = smul.addr %s6428, 8
          %s6430 = scalar_lea.vmem %s20, %s6429
        $region172: #{tpu_custom_call.1} parent=167 // pred_fallthru
          _
        // Predicated region
        $region173: #{tpu_custom_call.1} parent=167 // pred_check
          %p6431 = pneg %p525
        $region174: #{tpu_custom_call.1} parent=167 // pred_check_branch
          %6433 = sbr.rel (%p6431) target = $region176
        $region175: #{tpu_custom_call.1} parent=167 // pred_region
          %p6434 = scmp.lt.s32.totalorder %s46, 1
          %s6435 = scalar_select %p6434, %s46, 1
          %s6436 = smul.addr %s6435, 4
          %s6437 = smul.addr %s6436, 8
          %s6438 = scalar_lea.vmem %s21, %s6437
        $region176: #{tpu_custom_call.1} parent=167 // pred_fallthru
          _
      $region168: #{tpu_custom_call.1} parent=5 // pred_fallthru
        _
    $region6: #{tpu_custom_call.1} parent=1 // loop_footer
      %s44 = sadd.s32 1, %s40
    $region7: #{tpu_custom_call.1} parent=1 // loop_footer_branch
      %39 = sbr.rel target = $region3
    $region8: #{tpu_custom_call.1} parent=1 // loop_exit
      _
    %6439 = vsyncpa [#allocation5], 1
    %s6440 = scalar_lea.sflag [#allocation5], 1
    %6441 = vsyncpa %s6440, 1
    %6442 = vsyncpa [#allocation7], 1
    %s6443 = scalar_lea.sflag [#allocation7], 1
    %6444 = vsyncpa %s6443, 1
    %6445 = vsyncpa [#allocation10], 1
    %6446 = vsyncpa [#allocation13], 1
    %6447 = vsyncpa [#allocation16], 1
    %6448 = vsyncpa [#allocation19], 1
    %6449 = vsyncpa [#allocation22], 1
    %6450 = vsyncpa [#allocation25], 1

</llo_original>
